<compile_context>
chip_gen: v5e
topology: v5e:2x2
jax: 0.10.0
libtpu: 0.0.40
codegen_flags: <defaults>
</compile_context>

<pallas_src>
import functools

import jax
import jax.numpy as jnp
from jax.experimental import pallas as pl
from jax.experimental.pallas import tpu as pltpu

EPS = 1e-5
COMPUTE_DTYPE = jnp.float32  # set to jnp.bfloat16 on v6e/v7x for extra speed


def _round_up(x, m):
    return (x + m - 1) // m * m


def _pick_row_tile(m):
    """Largest row tile that divides m and still leaves a multi-step grid."""
    for t in (1024, 512, 256, 128, 64, 32, 16, 8):
        if m % t == 0 and m // t >= 2:
            return t
    return m


# ---------------------------------------------------------------------------
# Kernel A: (optional fused BN+ReLU of previous layer) -> conv taps -> stats
# ---------------------------------------------------------------------------
def _conv_bn_stats_kernel(x_ref, w_ref, scale_ref, shift_ref,
                          out_ref, sum_ref, ssq_ref,
                          yp_ref, acc_ref,
                          *, k, pad, apply_pre_bn_relu):
    _, h, w, cin = x_ref.shape
    cp = out_ref.shape[-1]

    x = x_ref[0].astype(jnp.float32)                      # (h, w, cin)
    if apply_pre_bn_relu:
        # Fused BatchNorm+ReLU of the *previous* layer (per-channel affine).
        x = jnp.maximum(x * scale_ref[...] + shift_ref[...], 0.0)

    # Zero-bordered halo scratch in VMEM (replaces any HBM-side padding).
    yp_ref[...] = jnp.zeros_like(yp_ref)
    yp_ref[pad:pad + h, pad:pad + w, :] = x

    # k*k shifted tap matmuls accumulated in f32 (no im2col materialization).
    acc_ref[...] = jnp.zeros_like(acc_ref)
    for t in range(k * k):
        di, dj = divmod(t, k)
        xs = yp_ref[di:di + h, dj:dj + w, :].reshape(h * w, cin)
        acc_ref[...] += jnp.dot(xs.astype(w_ref.dtype), w_ref[t],
                                preferred_element_type=jnp.float32)

    acc = acc_ref[...]
    out_ref[...] = acc.reshape(1, h, w, cp)
    sum_ref[...] = jnp.sum(acc, axis=0).reshape(1, 1, cp)
    ssq_ref[...] = jnp.sum(acc * acc, axis=0).reshape(1, 1, cp)


def _conv_bn_stats(x, w_p, scale, shift, *, k, apply_pre_bn_relu):
    n, h, wd, cin = x.shape
    cp = w_p.shape[-1]
    pad = (k - 1) // 2
    hp, wp_ = h + 2 * pad, wd + 2 * pad

    kern = functools.partial(_conv_bn_stats_kernel, k=k, pad=pad,
                             apply_pre_bn_relu=apply_pre_bn_relu)
    return pl.pallas_call(
        kern,
        out_shape=(
            jax.ShapeDtypeStruct((n, h, wd, cp), jnp.float32),   # raw conv out
            jax.ShapeDtypeStruct((n, 1, cp), jnp.float32),       # per-image sum
            jax.ShapeDtypeStruct((n, 1, cp), jnp.float32),       # per-image sum of squares
        ),
        grid_spec=pltpu.PrefetchScalarGridSpec(
            num_scalar_prefetch=0,
            grid=(n,),
            in_specs=[
                pl.BlockSpec((1, h, wd, cin), lambda i: (i, 0, 0, 0)),
                pl.BlockSpec((k * k, cin, cp), lambda i: (0, 0, 0)),
                pl.BlockSpec((1, cin), lambda i: (0, 0)),
                pl.BlockSpec((1, cin), lambda i: (0, 0)),
            ],
            out_specs=[
                pl.BlockSpec((1, h, wd, cp), lambda i: (i, 0, 0, 0)),
                pl.BlockSpec((1, 1, cp), lambda i: (i, 0, 0)),
                pl.BlockSpec((1, 1, cp), lambda i: (i, 0, 0)),
            ],
            scratch_shapes=[
                pltpu.VMEM((hp, wp_, cin), jnp.float32),   # halo-padded tile
                pltpu.VMEM((h * wd, cp), jnp.float32),     # f32 accumulator
            ],
        ),
        compiler_params=pltpu.CompilerParams(
            dimension_semantics=("parallel",)),
    )(x, w_p, scale, shift)


# ---------------------------------------------------------------------------
# Kernel B: final normalize + ReLU (row-tiled, lane-dense, parallel)
# ---------------------------------------------------------------------------
def _bn_relu_kernel(x_ref, scale_ref, shift_ref, o_ref):
    x = x_ref[...].astype(jnp.float32)
    o_ref[...] = jnp.maximum(x * scale_ref[...] + shift_ref[...],
                             0.0).astype(o_ref.dtype)


def _bn_relu(x2d, scale, shift):
    m, cp = x2d.shape
    tm = _pick_row_tile(m)
    return pl.pallas_call(
        _bn_relu_kernel,
        out_shape=jax.ShapeDtypeStruct((m, cp), jnp.float32),
        grid_spec=pltpu.PrefetchScalarGridSpec(
            num_scalar_prefetch=0,
            grid=(m // tm,),
            in_specs=[
                pl.BlockSpec((tm, cp), lambda i: (i, 0)),
                pl.BlockSpec((1, cp), lambda i: (0, 0)),
                pl.BlockSpec((1, cp), lambda i: (0, 0)),
            ],
            out_specs=pl.BlockSpec((tm, cp), lambda i: (i, 0)),
        ),
        compiler_params=pltpu.CompilerParams(
            dimension_semantics=("parallel",)),
    )(x2d, scale, shift)


# ---------------------------------------------------------------------------
# Parameter init (mirrors nn.Conv2d / nn.BatchNorm2d shapes & default init)
# ---------------------------------------------------------------------------
def init_inconv_params(key, in_ch, out_ch, kernel_size, use_double_conv):
    def conv_params(k, cin, cout, ks):
        kw, kb = jax.random.split(k)
        fan_in = cin * ks * ks
        bound = 1.0 / jnp.sqrt(fan_in)
        w = jax.random.uniform(kw, (ks, ks, cin, cout), jnp.float32, -bound, bound)
        b = jax.random.uniform(kb, (cout,), jnp.float32, -bound, bound)
        return w, b

    params = []
    k1, k2 = jax.random.split(key)
    w1, b1 = conv_params(k1, in_ch, out_ch, kernel_size)
    params.append(dict(w=w1, b=b1,   # bias kept for parity; cancelled by train-mode BN
                       gamma=jnp.ones((out_ch,), jnp.float32),
                       beta=jnp.zeros((out_ch,), jnp.float32)))
    if use_double_conv:
        w2, b2 = conv_params(k2, out_ch, out_ch, kernel_size)
        params.append(dict(w=w2, b=b2,
                           gamma=jnp.ones((out_ch,), jnp.float32),
                           beta=jnp.zeros((out_ch,), jnp.float32)))
    return params


def _pad_weight(w, cin_p, cp):
    """(k, k, cin, cout) -> (k*k, cin_p, cp) with zero padding (lane-dense)."""
    k, _, cin, cout = w.shape
    wp = jnp.zeros((k * k, cin_p, cp), jnp.float32)
    wp = wp.at[:, :cin, :cout].set(w.reshape(k * k, cin, cout))
    return wp.astype(COMPUTE_DTYPE)


# ---------------------------------------------------------------------------
# InConv forward (NCHW in / NCHW out, like the PyTorch module)
# ---------------------------------------------------------------------------
@jax.jit
def inconv_forward(x_nchw, params):
    x = jnp.transpose(x_nchw, (0, 2, 3, 1))        # NCHW -> NHWC (boundary only)
    n, h, w, cin0 = x.shape
    cout = params[0]["w"].shape[-1]
    cp = _round_up(cout, 128)                      # lane-dense padded channel dim
    m_total = n * h * w

    act = x
    scale = jnp.ones((1, cin0), jnp.float32)
    shift = jnp.zeros((1, cin0), jnp.float32)
    apply_pre = False

    for layer in params:
        k = layer["w"].shape[0]
        cin_l = act.shape[-1]
        w_p = _pad_weight(layer["w"], cin_l, cp)

        # conv (+ fused BN/ReLU of the previous layer) + per-image stats
        conv_raw, sums, ssqs = _conv_bn_stats(
            act, w_p, scale, shift, k=k, apply_pre_bn_relu=apply_pre)

        # tiny combine: training-mode batch stats (biased variance), eps=1e-5
        mean = jnp.sum(sums.reshape(n, cp), axis=0) / m_total
        ex2 = jnp.sum(ssqs.reshape(n, cp), axis=0) / m_total
        var = jnp.maximum(ex2 - mean * mean, 0.0)
        gamma_p = jnp.zeros((cp,), jnp.float32).at[:cout].set(layer["gamma"])
        beta_p = jnp.zeros((cp,), jnp.float32).at[:cout].set(layer["beta"])
        s = gamma_p * jax.lax.rsqrt(var + EPS)
        scale = s.reshape(1, cp)                       # zero on padded channels
        shift = (beta_p - mean * s).reshape(1, cp)     # zero on padded channels

        act = conv_raw
        apply_pre = True

    # final BN + ReLU, tiled & lane-dense
    y = _bn_relu(act.reshape(m_total, cp), scale, shift)
    y = y.reshape(n, h, w, cp)[..., :cout]
    return jnp.transpose(y, (0, 3, 1, 2))          # NHWC -> NCHW


# ---------------------------------------------------------------------------
# Pure-JAX reference (uses the bias + two-pass variance; for validation only)
# ---------------------------------------------------------------------------
def _reference_forward(x_nchw, params):
    x = jnp.transpose(x_nchw, (0, 2, 3, 1))
    for p in params:
        w = p["w"]
        k = w.shape[0]
        pad = (k - 1) // 2
        z = jax.lax.conv_general_dilated(
            x, w, window_strides=(1, 1),
            padding=[(pad, pad), (pad, pad)],
            dimension_numbers=("NHWC", "HWIO", "NHWC"),
            precision=jax.lax.Precision.HIGHEST) + p["b"]
        mean = jnp.mean(z, axis=(0, 1, 2))
        var = jnp.mean((z - mean) ** 2, axis=(0, 1, 2))
        z = (z - mean) * jax.lax.rsqrt(var + EPS) * p["gamma"] + p["beta"]
        x = jnp.maximum(z, 0.0)
    return jnp.transpose(x, (0, 3, 1, 2))


if __name__ == "__main__":
    key = jax.random.PRNGKey(0)
    kx, kp = jax.random.split(key)

    N, IN_CH, OUT_CH, H, W, KS = 2, 4, 8, 16, 16, 3
    USE_DOUBLE_CONV = True

    x = jax.random.normal(kx, (N, IN_CH, H, W), jnp.float32)
    params = init_inconv_params(kp, IN_CH, OUT_CH, KS, USE_DOUBLE_CONV)

    out = inconv_forward(x, params)
    jax.block_until_ready(out)
    assert out.shape == (N, OUT_CH, H, W), out.shape

    ref = _reference_forward(x, params)
    assert bool(jnp.allclose(out, ref, atol=2e-3, rtol=2e-3)), \
        float(jnp.max(jnp.abs(out - ref)))

    print("KERNEL_OK")
</pallas_src>

<mosaic_0001>
module attributes {stable_mosaic.version = 11 : i64} {
  func.func @_conv_bn_stats_kernel(%arg0: i32, %arg1: memref<1x16x16x4xf32, #tpu.memory_space<vmem>>, %arg2: memref<9x4x128xf32, #tpu.memory_space<vmem>>, %arg3: memref<1x4xf32, #tpu.memory_space<vmem>>, %arg4: memref<1x4xf32, #tpu.memory_space<vmem>>, %arg5: memref<1x16x16x128xf32, #tpu.memory_space<vmem>>, %arg6: memref<1x1x128xf32, #tpu.memory_space<vmem>>, %arg7: memref<1x1x128xf32, #tpu.memory_space<vmem>>, %arg8: memref<18x18x4xf32, #tpu.memory_space<vmem>>, %arg9: memref<256x128xf32, #tpu.memory_space<vmem>>) attributes {dimension_semantics = [#tpu.dimension_semantics<parallel>], iteration_bounds = array<i64: 2>, scalar_prefetch = 0 : i64, scratch_operands = 2 : i64, tpu.core_type = #tpu.core_type<tc>, window_params = [{transform_indices = @transform_0, window_bounds = array<i64: 1, 16, 16, 4>}, {pipeline_mode = #tpu.pipeline_mode<synchronous>, transform_indices = @transform_1, window_bounds = array<i64: 9, 4, 128>}, {pipeline_mode = #tpu.pipeline_mode<synchronous>, transform_indices = @transform_2, window_bounds = array<i64: 1, 4>}, {pipeline_mode = #tpu.pipeline_mode<synchronous>, transform_indices = @transform_3, window_bounds = array<i64: 1, 4>}, {transform_indices = @transform_4, window_bounds = array<i64: 1, 16, 16, 128>}, {transform_indices = @transform_5, window_bounds = array<i64: 1, 1, 128>}, {transform_indices = @transform_6, window_bounds = array<i64: 1, 1, 128>}]} {
    %c0 = arith.constant 0 : index
    %c0_0 = arith.constant 0 : index
    %c0_1 = arith.constant 0 : index
    %c0_2 = arith.constant 0 : index
    %0 = vector.load %arg1[%c0, %c0_0, %c0_1, %c0_2] : memref<1x16x16x4xf32, #tpu.memory_space<vmem>>, vector<1x16x16x4xf32>
    %1 = vector.shape_cast %0 : vector<1x16x16x4xf32> to vector<16x16x4xf32>
    %cst = arith.constant 0.000000e+00 : f32
    %2 = vector.broadcast %cst : f32 to vector<18x18x4xf32>
    %c0_3 = arith.constant 0 : index
    %c0_4 = arith.constant 0 : index
    %c0_5 = arith.constant 0 : index
    %3 = vector.load %arg8[%c0_3, %c0_4, %c0_5] : memref<18x18x4xf32, #tpu.memory_space<vmem>>, vector<18x18x4xf32>
    tpu.vector_store %arg8[%c0_3, %c0_4, %c0_5], %2 {strides = array<i32>} : memref<18x18x4xf32, #tpu.memory_space<vmem>>, vector<18x18x4xf32>,
    %c1 = arith.constant 1 : index
    %c1_6 = arith.constant 1 : index
    %c0_7 = arith.constant 0 : index
    %4 = vector.load %arg8[%c1, %c1_6, %c0_7] : memref<18x18x4xf32, #tpu.memory_space<vmem>>, vector<16x16x4xf32>
    tpu.vector_store %arg8[%c1, %c1_6, %c0_7], %1 {strides = array<i32>} : memref<18x18x4xf32, #tpu.memory_space<vmem>>, vector<16x16x4xf32>,
    %cst_8 = arith.constant 0.000000e+00 : f32
    %5 = vector.broadcast %cst_8 : f32 to vector<256x128xf32>
    %c0_9 = arith.constant 0 : index
    %c0_10 = arith.constant 0 : index
    %6 = vector.load %arg9[%c0_9, %c0_10] : memref<256x128xf32, #tpu.memory_space<vmem>>, vector<256x128xf32>
    tpu.vector_store %arg9[%c0_9, %c0_10], %5 {strides = array<i32>} : memref<256x128xf32, #tpu.memory_space<vmem>>, vector<256x128xf32>,
    %c0_11 = arith.constant 0 : index
    %c0_12 = arith.constant 0 : index
    %c0_13 = arith.constant 0 : index
    %7 = vector.load %arg8[%c0_11, %c0_12, %c0_13] : memref<18x18x4xf32, #tpu.memory_space<vmem>>, vector<16x16x4xf32>
    %8 = vector.shape_cast %7 : vector<16x16x4xf32> to vector<256x4xf32>
    %c0_14 = arith.constant 0 : index
    %c0_15 = arith.constant 0 : index
    %9 = vector.load %arg9[%c0_14, %c0_15] : memref<256x128xf32, #tpu.memory_space<vmem>>, vector<256x128xf32>
    %c0_16 = arith.constant 0 : index
    %c0_17 = arith.constant 0 : index
    %c0_18 = arith.constant 0 : index
    %10 = vector.load %arg2[%c0_16, %c0_17, %c0_18] : memref<9x4x128xf32, #tpu.memory_space<vmem>>, vector<1x4x128xf32>
    %11 = vector.shape_cast %10 : vector<1x4x128xf32> to vector<4x128xf32>
    %cst_19 = arith.constant dense<0.000000e+00> : vector<256x128xf32>
    %12 = tpu.matmul %8, %11, %cst_19 {dimension_numbers = #tpu.dot_dimension_numbers<[1], [0], [0], [1], [0, 0, 1, 1], [], []>} : vector<256x4xf32>, vector<4x128xf32>, vector<256x128xf32> -> vector<256x128xf32>
    %13 = arith.addf %9, %12 : vector<256x128xf32>
    %c0_20 = arith.constant 0 : index
    %c0_21 = arith.constant 0 : index
    %14 = vector.load %arg9[%c0_20, %c0_21] : memref<256x128xf32, #tpu.memory_space<vmem>>, vector<256x128xf32>
    tpu.vector_store %arg9[%c0_20, %c0_21], %13 {strides = array<i32>} : memref<256x128xf32, #tpu.memory_space<vmem>>, vector<256x128xf32>,
    %c0_22 = arith.constant 0 : index
    %c1_23 = arith.constant 1 : index
    %c0_24 = arith.constant 0 : index
    %15 = vector.load %arg8[%c0_22, %c1_23, %c0_24] : memref<18x18x4xf32, #tpu.memory_space<vmem>>, vector<16x16x4xf32>
    %16 = vector.shape_cast %15 : vector<16x16x4xf32> to vector<256x4xf32>
    %c0_25 = arith.constant 0 : index
    %c0_26 = arith.constant 0 : index
    %17 = vector.load %arg9[%c0_25, %c0_26] : memref<256x128xf32, #tpu.memory_space<vmem>>, vector<256x128xf32>
    %c1_27 = arith.constant 1 : index
    %c0_28 = arith.constant 0 : index
    %c0_29 = arith.constant 0 : index
    %18 = vector.load %arg2[%c1_27, %c0_28, %c0_29] : memref<9x4x128xf32, #tpu.memory_space<vmem>>, vector<1x4x128xf32>
    %19 = vector.shape_cast %18 : vector<1x4x128xf32> to vector<4x128xf32>
    %cst_30 = arith.constant dense<0.000000e+00> : vector<256x128xf32>
    %20 = tpu.matmul %16, %19, %cst_30 {dimension_numbers = #tpu.dot_dimension_numbers<[1], [0], [0], [1], [0, 0, 1, 1], [], []>} : vector<256x4xf32>, vector<4x128xf32>, vector<256x128xf32> -> vector<256x128xf32>
    %21 = arith.addf %17, %20 : vector<256x128xf32>
    %c0_31 = arith.constant 0 : index
    %c0_32 = arith.constant 0 : index
    %22 = vector.load %arg9[%c0_31, %c0_32] : memref<256x128xf32, #tpu.memory_space<vmem>>, vector<256x128xf32>
    tpu.vector_store %arg9[%c0_31, %c0_32], %21 {strides = array<i32>} : memref<256x128xf32, #tpu.memory_space<vmem>>, vector<256x128xf32>,
    %c0_33 = arith.constant 0 : index
    %c2 = arith.constant 2 : index
    %c0_34 = arith.constant 0 : index
    %23 = vector.load %arg8[%c0_33, %c2, %c0_34] : memref<18x18x4xf32, #tpu.memory_space<vmem>>, vector<16x16x4xf32>
    %24 = vector.shape_cast %23 : vector<16x16x4xf32> to vector<256x4xf32>
    %c0_35 = arith.constant 0 : index
    %c0_36 = arith.constant 0 : index
    %25 = vector.load %arg9[%c0_35, %c0_36] : memref<256x128xf32, #tpu.memory_space<vmem>>, vector<256x128xf32>
    %c2_37 = arith.constant 2 : index
    %c0_38 = arith.constant 0 : index
    %c0_39 = arith.constant 0 : index
    %26 = vector.load %arg2[%c2_37, %c0_38, %c0_39] : memref<9x4x128xf32, #tpu.memory_space<vmem>>, vector<1x4x128xf32>
    %27 = vector.shape_cast %26 : vector<1x4x128xf32> to vector<4x128xf32>
    %cst_40 = arith.constant dense<0.000000e+00> : vector<256x128xf32>
    %28 = tpu.matmul %24, %27, %cst_40 {dimension_numbers = #tpu.dot_dimension_numbers<[1], [0], [0], [1], [0, 0, 1, 1], [], []>} : vector<256x4xf32>, vector<4x128xf32>, vector<256x128xf32> -> vector<256x128xf32>
    %29 = arith.addf %25, %28 : vector<256x128xf32>
    %c0_41 = arith.constant 0 : index
    %c0_42 = arith.constant 0 : index
    %30 = vector.load %arg9[%c0_41, %c0_42] : memref<256x128xf32, #tpu.memory_space<vmem>>, vector<256x128xf32>
    tpu.vector_store %arg9[%c0_41, %c0_42], %29 {strides = array<i32>} : memref<256x128xf32, #tpu.memory_space<vmem>>, vector<256x128xf32>,
    %c1_43 = arith.constant 1 : index
    %c0_44 = arith.constant 0 : index
    %c0_45 = arith.constant 0 : index
    %31 = vector.load %arg8[%c1_43, %c0_44, %c0_45] : memref<18x18x4xf32, #tpu.memory_space<vmem>>, vector<16x16x4xf32>
    %32 = vector.shape_cast %31 : vector<16x16x4xf32> to vector<256x4xf32>
    %c0_46 = arith.constant 0 : index
    %c0_47 = arith.constant 0 : index
    %33 = vector.load %arg9[%c0_46, %c0_47] : memref<256x128xf32, #tpu.memory_space<vmem>>, vector<256x128xf32>
    %c3 = arith.constant 3 : index
    %c0_48 = arith.constant 0 : index
    %c0_49 = arith.constant 0 : index
    %34 = vector.load %arg2[%c3, %c0_48, %c0_49] : memref<9x4x128xf32, #tpu.memory_space<vmem>>, vector<1x4x128xf32>
    %35 = vector.shape_cast %34 : vector<1x4x128xf32> to vector<4x128xf32>
    %cst_50 = arith.constant dense<0.000000e+00> : vector<256x128xf32>
    %36 = tpu.matmul %32, %35, %cst_50 {dimension_numbers = #tpu.dot_dimension_numbers<[1], [0], [0], [1], [0, 0, 1, 1], [], []>} : vector<256x4xf32>, vector<4x128xf32>, vector<256x128xf32> -> vector<256x128xf32>
    %37 = arith.addf %33, %36 : vector<256x128xf32>
    %c0_51 = arith.constant 0 : index
    %c0_52 = arith.constant 0 : index
    %38 = vector.load %arg9[%c0_51, %c0_52] : memref<256x128xf32, #tpu.memory_space<vmem>>, vector<256x128xf32>
    tpu.vector_store %arg9[%c0_51, %c0_52], %37 {strides = array<i32>} : memref<256x128xf32, #tpu.memory_space<vmem>>, vector<256x128xf32>,
    %c1_53 = arith.constant 1 : index
    %c1_54 = arith.constant 1 : index
    %c0_55 = arith.constant 0 : index
    %39 = vector.load %arg8[%c1_53, %c1_54, %c0_55] : memref<18x18x4xf32, #tpu.memory_space<vmem>>, vector<16x16x4xf32>
    %40 = vector.shape_cast %39 : vector<16x16x4xf32> to vector<256x4xf32>
    %c0_56 = arith.constant 0 : index
    %c0_57 = arith.constant 0 : index
    %41 = vector.load %arg9[%c0_56, %c0_57] : memref<256x128xf32, #tpu.memory_space<vmem>>, vector<256x128xf32>
    %c4 = arith.constant 4 : index
    %c0_58 = arith.constant 0 : index
    %c0_59 = arith.constant 0 : index
    %42 = vector.load %arg2[%c4, %c0_58, %c0_59] : memref<9x4x128xf32, #tpu.memory_space<vmem>>, vector<1x4x128xf32>
    %43 = vector.shape_cast %42 : vector<1x4x128xf32> to vector<4x128xf32>
    %cst_60 = arith.constant dense<0.000000e+00> : vector<256x128xf32>
    %44 = tpu.matmul %40, %43, %cst_60 {dimension_numbers = #tpu.dot_dimension_numbers<[1], [0], [0], [1], [0, 0, 1, 1], [], []>} : vector<256x4xf32>, vector<4x128xf32>, vector<256x128xf32> -> vector<256x128xf32>
    %45 = arith.addf %41, %44 : vector<256x128xf32>
    %c0_61 = arith.constant 0 : index
    %c0_62 = arith.constant 0 : index
    %46 = vector.load %arg9[%c0_61, %c0_62] : memref<256x128xf32, #tpu.memory_space<vmem>>, vector<256x128xf32>
    tpu.vector_store %arg9[%c0_61, %c0_62], %45 {strides = array<i32>} : memref<256x128xf32, #tpu.memory_space<vmem>>, vector<256x128xf32>,
    %c1_63 = arith.constant 1 : index
    %c2_64 = arith.constant 2 : index
    %c0_65 = arith.constant 0 : index
    %47 = vector.load %arg8[%c1_63, %c2_64, %c0_65] : memref<18x18x4xf32, #tpu.memory_space<vmem>>, vector<16x16x4xf32>
    %48 = vector.shape_cast %47 : vector<16x16x4xf32> to vector<256x4xf32>
    %c0_66 = arith.constant 0 : index
    %c0_67 = arith.constant 0 : index
    %49 = vector.load %arg9[%c0_66, %c0_67] : memref<256x128xf32, #tpu.memory_space<vmem>>, vector<256x128xf32>
    %c5 = arith.constant 5 : index
    %c0_68 = arith.constant 0 : index
    %c0_69 = arith.constant 0 : index
    %50 = vector.load %arg2[%c5, %c0_68, %c0_69] : memref<9x4x128xf32, #tpu.memory_space<vmem>>, vector<1x4x128xf32>
    %51 = vector.shape_cast %50 : vector<1x4x128xf32> to vector<4x128xf32>
    %cst_70 = arith.constant dense<0.000000e+00> : vector<256x128xf32>
    %52 = tpu.matmul %48, %51, %cst_70 {dimension_numbers = #tpu.dot_dimension_numbers<[1], [0], [0], [1], [0, 0, 1, 1], [], []>} : vector<256x4xf32>, vector<4x128xf32>, vector<256x128xf32> -> vector<256x128xf32>
    %53 = arith.addf %49, %52 : vector<256x128xf32>
    %c0_71 = arith.constant 0 : index
    %c0_72 = arith.constant 0 : index
    %54 = vector.load %arg9[%c0_71, %c0_72] : memref<256x128xf32, #tpu.memory_space<vmem>>, vector<256x128xf32>
    tpu.vector_store %arg9[%c0_71, %c0_72], %53 {strides = array<i32>} : memref<256x128xf32, #tpu.memory_space<vmem>>, vector<256x128xf32>,
    %c2_73 = arith.constant 2 : index
    %c0_74 = arith.constant 0 : index
    %c0_75 = arith.constant 0 : index
    %55 = vector.load %arg8[%c2_73, %c0_74, %c0_75] : memref<18x18x4xf32, #tpu.memory_space<vmem>>, vector<16x16x4xf32>
    %56 = vector.shape_cast %55 : vector<16x16x4xf32> to vector<256x4xf32>
    %c0_76 = arith.constant 0 : index
    %c0_77 = arith.constant 0 : index
    %57 = vector.load %arg9[%c0_76, %c0_77] : memref<256x128xf32, #tpu.memory_space<vmem>>, vector<256x128xf32>
    %c6 = arith.constant 6 : index
    %c0_78 = arith.constant 0 : index
    %c0_79 = arith.constant 0 : index
    %58 = vector.load %arg2[%c6, %c0_78, %c0_79] : memref<9x4x128xf32, #tpu.memory_space<vmem>>, vector<1x4x128xf32>
    %59 = vector.shape_cast %58 : vector<1x4x128xf32> to vector<4x128xf32>
    %cst_80 = arith.constant dense<0.000000e+00> : vector<256x128xf32>
    %60 = tpu.matmul %56, %59, %cst_80 {dimension_numbers = #tpu.dot_dimension_numbers<[1], [0], [0], [1], [0, 0, 1, 1], [], []>} : vector<256x4xf32>, vector<4x128xf32>, vector<256x128xf32> -> vector<256x128xf32>
    %61 = arith.addf %57, %60 : vector<256x128xf32>
    %c0_81 = arith.constant 0 : index
    %c0_82 = arith.constant 0 : index
    %62 = vector.load %arg9[%c0_81, %c0_82] : memref<256x128xf32, #tpu.memory_space<vmem>>, vector<256x128xf32>
    tpu.vector_store %arg9[%c0_81, %c0_82], %61 {strides = array<i32>} : memref<256x128xf32, #tpu.memory_space<vmem>>, vector<256x128xf32>,
    %c2_83 = arith.constant 2 : index
    %c1_84 = arith.constant 1 : index
    %c0_85 = arith.constant 0 : index
    %63 = vector.load %arg8[%c2_83, %c1_84, %c0_85] : memref<18x18x4xf32, #tpu.memory_space<vmem>>, vector<16x16x4xf32>
    %64 = vector.shape_cast %63 : vector<16x16x4xf32> to vector<256x4xf32>
    %c0_86 = arith.constant 0 : index
    %c0_87 = arith.constant 0 : index
    %65 = vector.load %arg9[%c0_86, %c0_87] : memref<256x128xf32, #tpu.memory_space<vmem>>, vector<256x128xf32>
    %c7 = arith.constant 7 : index
    %c0_88 = arith.constant 0 : index
    %c0_89 = arith.constant 0 : index
    %66 = vector.load %arg2[%c7, %c0_88, %c0_89] : memref<9x4x128xf32, #tpu.memory_space<vmem>>, vector<1x4x128xf32>
    %67 = vector.shape_cast %66 : vector<1x4x128xf32> to vector<4x128xf32>
    %cst_90 = arith.constant dense<0.000000e+00> : vector<256x128xf32>
    %68 = tpu.matmul %64, %67, %cst_90 {dimension_numbers = #tpu.dot_dimension_numbers<[1], [0], [0], [1], [0, 0, 1, 1], [], []>} : vector<256x4xf32>, vector<4x128xf32>, vector<256x128xf32> -> vector<256x128xf32>
    %69 = arith.addf %65, %68 : vector<256x128xf32>
    %c0_91 = arith.constant 0 : index
    %c0_92 = arith.constant 0 : index
    %70 = vector.load %arg9[%c0_91, %c0_92] : memref<256x128xf32, #tpu.memory_space<vmem>>, vector<256x128xf32>
    tpu.vector_store %arg9[%c0_91, %c0_92], %69 {strides = array<i32>} : memref<256x128xf32, #tpu.memory_space<vmem>>, vector<256x128xf32>,
    %c2_93 = arith.constant 2 : index
    %c2_94 = arith.constant 2 : index
    %c0_95 = arith.constant 0 : index
    %71 = vector.load %arg8[%c2_93, %c2_94, %c0_95] : memref<18x18x4xf32, #tpu.memory_space<vmem>>, vector<16x16x4xf32>
    %72 = vector.shape_cast %71 : vector<16x16x4xf32> to vector<256x4xf32>
    %c0_96 = arith.constant 0 : index
    %c0_97 = arith.constant 0 : index
    %73 = vector.load %arg9[%c0_96, %c0_97] : memref<256x128xf32, #tpu.memory_space<vmem>>, vector<256x128xf32>
    %c8 = arith.constant 8 : index
    %c0_98 = arith.constant 0 : index
    %c0_99 = arith.constant 0 : index
    %74 = vector.load %arg2[%c8, %c0_98, %c0_99] : memref<9x4x128xf32, #tpu.memory_space<vmem>>, vector<1x4x128xf32>
    %75 = vector.shape_cast %74 : vector<1x4x128xf32> to vector<4x128xf32>
    %cst_100 = arith.constant dense<0.000000e+00> : vector<256x128xf32>
    %76 = tpu.matmul %72, %75, %cst_100 {dimension_numbers = #tpu.dot_dimension_numbers<[1], [0], [0], [1], [0, 0, 1, 1], [], []>} : vector<256x4xf32>, vector<4x128xf32>, vector<256x128xf32> -> vector<256x128xf32>
    %77 = arith.addf %73, %76 : vector<256x128xf32>
    %c0_101 = arith.constant 0 : index
    %c0_102 = arith.constant 0 : index
    %78 = vector.load %arg9[%c0_101, %c0_102] : memref<256x128xf32, #tpu.memory_space<vmem>>, vector<256x128xf32>
    tpu.vector_store %arg9[%c0_101, %c0_102], %77 {strides = array<i32>} : memref<256x128xf32, #tpu.memory_space<vmem>>, vector<256x128xf32>,
    %c0_103 = arith.constant 0 : index
    %c0_104 = arith.constant 0 : index
    %79 = vector.load %arg9[%c0_103, %c0_104] : memref<256x128xf32, #tpu.memory_space<vmem>>, vector<256x128xf32>
    %80 = vector.shape_cast %79 : vector<256x128xf32> to vector<1x16x16x128xf32>
    %c0_105 = arith.constant 0 : index
    %c0_106 = arith.constant 0 : index
    %c0_107 = arith.constant 0 : index
    %c0_108 = arith.constant 0 : index
    %81 = vector.load %arg5[%c0_105, %c0_106, %c0_107, %c0_108] : memref<1x16x16x128xf32, #tpu.memory_space<vmem>>, vector<1x16x16x128xf32>
    tpu.vector_store %arg5[%c0_105, %c0_106, %c0_107, %c0_108], %80 {strides = array<i32>} : memref<1x16x16x128xf32, #tpu.memory_space<vmem>>, vector<1x16x16x128xf32>,
    %cst_109 = arith.constant dense<0.000000e+00> : vector<128xf32>
    %82 = vector.multi_reduction <add>, %79, %cst_109 [0] : vector<256x128xf32> to vector<128xf32>
    %83 = vector.shape_cast %82 : vector<128xf32> to vector<1x1x128xf32>
    %c0_110 = arith.constant 0 : index
    %c0_111 = arith.constant 0 : index
    %c0_112 = arith.constant 0 : index
    %84 = vector.load %arg6[%c0_110, %c0_111, %c0_112] : memref<1x1x128xf32, #tpu.memory_space<vmem>>, vector<1x1x128xf32>
    tpu.vector_store %arg6[%c0_110, %c0_111, %c0_112], %83 {strides = array<i32>} : memref<1x1x128xf32, #tpu.memory_space<vmem>>, vector<1x1x128xf32>,
    %85 = arith.mulf %79, %79 : vector<256x128xf32>
    %cst_113 = arith.constant dense<0.000000e+00> : vector<128xf32>
    %86 = vector.multi_reduction <add>, %85, %cst_113 [0] : vector<256x128xf32> to vector<128xf32>
    %87 = vector.shape_cast %86 : vector<128xf32> to vector<1x1x128xf32>
    %c0_114 = arith.constant 0 : index
    %c0_115 = arith.constant 0 : index
    %c0_116 = arith.constant 0 : index
    %88 = vector.load %arg7[%c0_114, %c0_115, %c0_116] : memref<1x1x128xf32, #tpu.memory_space<vmem>>, vector<1x1x128xf32>
    tpu.vector_store %arg7[%c0_114, %c0_115, %c0_116], %87 {strides = array<i32>} : memref<1x1x128xf32, #tpu.memory_space<vmem>>, vector<1x1x128xf32>,
    return
  }
  func.func @transform_0(%arg0: i32) -> (i32, i32, i32, i32) {
    %c0_i32 = arith.constant 0 : i32
    %c0_i32_0 = arith.constant 0 : i32
    %c0_i32_1 = arith.constant 0 : i32
    %c0_i32_2 = arith.constant 0 : i32
    return %arg0, %c0_i32, %c0_i32_0, %c0_i32_1 : i32, i32, i32, i32
  }
  func.func @transform_1(%arg0: i32) -> (i32, i32, i32) {
    %c0_i32 = arith.constant 0 : i32
    %c0_i32_0 = arith.constant 0 : i32
    %c0_i32_1 = arith.constant 0 : i32
    %c0_i32_2 = arith.constant 0 : i32
    return %c0_i32, %c0_i32_0, %c0_i32_1 : i32, i32, i32
  }
  func.func @transform_2(%arg0: i32) -> (i32, i32) {
    %c0_i32 = arith.constant 0 : i32
    %c0_i32_0 = arith.constant 0 : i32
    %c0_i32_1 = arith.constant 0 : i32
    return %c0_i32, %c0_i32_0 : i32, i32
  }
  func.func @transform_3(%arg0: i32) -> (i32, i32) {
    %c0_i32 = arith.constant 0 : i32
    %c0_i32_0 = arith.constant 0 : i32
    %c0_i32_1 = arith.constant 0 : i32
    return %c0_i32, %c0_i32_0 : i32, i32
  }
  func.func @transform_4(%arg0: i32) -> (i32, i32, i32, i32) {
    %c0_i32 = arith.constant 0 : i32
    %c0_i32_0 = arith.constant 0 : i32
    %c0_i32_1 = arith.constant 0 : i32
    %c0_i32_2 = arith.constant 0 : i32
    return %arg0, %c0_i32, %c0_i32_0, %c0_i32_1 : i32, i32, i32, i32
  }
  func.func @transform_5(%arg0: i32) -> (i32, i32, i32) {
    %c0_i32 = arith.constant 0 : i32
    %c0_i32_0 = arith.constant 0 : i32
    %c0_i32_1 = arith.constant 0 : i32
    return %arg0, %c0_i32, %c0_i32_0 : i32, i32, i32
  }
  func.func @transform_6(%arg0: i32) -> (i32, i32, i32) {
    %c0_i32 = arith.constant 0 : i32
    %c0_i32_0 = arith.constant 0 : i32
    %c0_i32_1 = arith.constant 0 : i32
    return %arg0, %c0_i32, %c0_i32_0 : i32, i32, i32
  }
}

module attributes {stable_mosaic.version = 11 : i64} {
  func.func @_conv_bn_stats_kernel(%arg0: i32, %arg1: memref<1x16x16x128xf32, #tpu.memory_space<vmem>>, %arg2: memref<9x128x128xf32, #tpu.memory_space<vmem>>, %arg3: memref<1x128xf32, #tpu.memory_space<vmem>>, %arg4: memref<1x128xf32, #tpu.memory_space<vmem>>, %arg5: memref<1x16x16x128xf32, #tpu.memory_space<vmem>>, %arg6: memref<1x1x128xf32, #tpu.memory_space<vmem>>, %arg7: memref<1x1x128xf32, #tpu.memory_space<vmem>>, %arg8: memref<18x18x128xf32, #tpu.memory_space<vmem>>, %arg9: memref<256x128xf32, #tpu.memory_space<vmem>>) attributes {dimension_semantics = [#tpu.dimension_semantics<parallel>], iteration_bounds = array<i64: 2>, scalar_prefetch = 0 : i64, scratch_operands = 2 : i64, tpu.core_type = #tpu.core_type<tc>, window_params = [{transform_indices = @transform_0, window_bounds = array<i64: 1, 16, 16, 128>}, {pipeline_mode = #tpu.pipeline_mode<synchronous>, transform_indices = @transform_1, window_bounds = array<i64: 9, 128, 128>}, {pipeline_mode = #tpu.pipeline_mode<synchronous>, transform_indices = @transform_2, window_bounds = array<i64: 1, 128>}, {pipeline_mode = #tpu.pipeline_mode<synchronous>, transform_indices = @transform_3, window_bounds = array<i64: 1, 128>}, {transform_indices = @transform_4, window_bounds = array<i64: 1, 16, 16, 128>}, {transform_indices = @transform_5, window_bounds = array<i64: 1, 1, 128>}, {transform_indices = @transform_6, window_bounds = array<i64: 1, 1, 128>}]} {
    %c0 = arith.constant 0 : index
    %c0_0 = arith.constant 0 : index
    %c0_1 = arith.constant 0 : index
    %c0_2 = arith.constant 0 : index
    %0 = vector.load %arg1[%c0, %c0_0, %c0_1, %c0_2] : memref<1x16x16x128xf32, #tpu.memory_space<vmem>>, vector<1x16x16x128xf32>
    %1 = vector.shape_cast %0 : vector<1x16x16x128xf32> to vector<16x16x128xf32>
    %c0_3 = arith.constant 0 : index
    %c0_4 = arith.constant 0 : index
    %2 = vector.load %arg3[%c0_3, %c0_4] : memref<1x128xf32, #tpu.memory_space<vmem>>, vector<1x128xf32>
    %3 = vector.shape_cast %2 : vector<1x128xf32> to vector<1x1x128xf32>
    %4 = vector.broadcast %3 : vector<1x1x128xf32> to vector<16x16x128xf32>
    %5 = arith.mulf %1, %4 : vector<16x16x128xf32>
    %c0_5 = arith.constant 0 : index
    %c0_6 = arith.constant 0 : index
    %6 = vector.load %arg4[%c0_5, %c0_6] : memref<1x128xf32, #tpu.memory_space<vmem>>, vector<1x128xf32>
    %7 = vector.shape_cast %6 : vector<1x128xf32> to vector<1x1x128xf32>
    %8 = vector.broadcast %7 : vector<1x1x128xf32> to vector<16x16x128xf32>
    %9 = arith.addf %5, %8 : vector<16x16x128xf32>
    %cst = arith.constant 0.000000e+00 : f32
    %10 = vector.broadcast %cst : f32 to vector<16x16x128xf32>
    %11 = arith.maximumf %9, %10 : vector<16x16x128xf32>
    %cst_7 = arith.constant 0.000000e+00 : f32
    %12 = vector.broadcast %cst_7 : f32 to vector<18x18x128xf32>
    %c0_8 = arith.constant 0 : index
    %c0_9 = arith.constant 0 : index
    %c0_10 = arith.constant 0 : index
    %13 = vector.load %arg8[%c0_8, %c0_9, %c0_10] : memref<18x18x128xf32, #tpu.memory_space<vmem>>, vector<18x18x128xf32>
    tpu.vector_store %arg8[%c0_8, %c0_9, %c0_10], %12 {strides = array<i32>} : memref<18x18x128xf32, #tpu.memory_space<vmem>>, vector<18x18x128xf32>,
    %c1 = arith.constant 1 : index
    %c1_11 = arith.constant 1 : index
    %c0_12 = arith.constant 0 : index
    %14 = vector.load %arg8[%c1, %c1_11, %c0_12] : memref<18x18x128xf32, #tpu.memory_space<vmem>>, vector<16x16x128xf32>
    tpu.vector_store %arg8[%c1, %c1_11, %c0_12], %11 {strides = array<i32>} : memref<18x18x128xf32, #tpu.memory_space<vmem>>, vector<16x16x128xf32>,
    %cst_13 = arith.constant 0.000000e+00 : f32
    %15 = vector.broadcast %cst_13 : f32 to vector<256x128xf32>
    %c0_14 = arith.constant 0 : index
    %c0_15 = arith.constant 0 : index
    %16 = vector.load %arg9[%c0_14, %c0_15] : memref<256x128xf32, #tpu.memory_space<vmem>>, vector<256x128xf32>
    tpu.vector_store %arg9[%c0_14, %c0_15], %15 {strides = array<i32>} : memref<256x128xf32, #tpu.memory_space<vmem>>, vector<256x128xf32>,
    %c0_16 = arith.constant 0 : index
    %c0_17 = arith.constant 0 : index
    %c0_18 = arith.constant 0 : index
    %17 = vector.load %arg8[%c0_16, %c0_17, %c0_18] : memref<18x18x128xf32, #tpu.memory_space<vmem>>, vector<16x16x128xf32>
    %18 = vector.shape_cast %17 : vector<16x16x128xf32> to vector<256x128xf32>
    %c0_19 = arith.constant 0 : index
    %c0_20 = arith.constant 0 : index
    %19 = vector.load %arg9[%c0_19, %c0_20] : memref<256x128xf32, #tpu.memory_space<vmem>>, vector<256x128xf32>
    %c0_21 = arith.constant 0 : index
    %c0_22 = arith.constant 0 : index
    %c0_23 = arith.constant 0 : index
    %20 = vector.load %arg2[%c0_21, %c0_22, %c0_23] : memref<9x128x128xf32, #tpu.memory_space<vmem>>, vector<1x128x128xf32>
    %21 = vector.shape_cast %20 : vector<1x128x128xf32> to vector<128x128xf32>
    %cst_24 = arith.constant dense<0.000000e+00> : vector<256x128xf32>
    %22 = tpu.matmul %18, %21, %cst_24 {dimension_numbers = #tpu.dot_dimension_numbers<[1], [0], [0], [1], [0, 0, 1, 1], [], []>} : vector<256x128xf32>, vector<128x128xf32>, vector<256x128xf32> -> vector<256x128xf32>
    %23 = arith.addf %19, %22 : vector<256x128xf32>
    %c0_25 = arith.constant 0 : index
    %c0_26 = arith.constant 0 : index
    %24 = vector.load %arg9[%c0_25, %c0_26] : memref<256x128xf32, #tpu.memory_space<vmem>>, vector<256x128xf32>
    tpu.vector_store %arg9[%c0_25, %c0_26], %23 {strides = array<i32>} : memref<256x128xf32, #tpu.memory_space<vmem>>, vector<256x128xf32>,
    %c0_27 = arith.constant 0 : index
    %c1_28 = arith.constant 1 : index
    %c0_29 = arith.constant 0 : index
    %25 = vector.load %arg8[%c0_27, %c1_28, %c0_29] : memref<18x18x128xf32, #tpu.memory_space<vmem>>, vector<16x16x128xf32>
    %26 = vector.shape_cast %25 : vector<16x16x128xf32> to vector<256x128xf32>
    %c0_30 = arith.constant 0 : index
    %c0_31 = arith.constant 0 : index
    %27 = vector.load %arg9[%c0_30, %c0_31] : memref<256x128xf32, #tpu.memory_space<vmem>>, vector<256x128xf32>
    %c1_32 = arith.constant 1 : index
    %c0_33 = arith.constant 0 : index
    %c0_34 = arith.constant 0 : index
    %28 = vector.load %arg2[%c1_32, %c0_33, %c0_34] : memref<9x128x128xf32, #tpu.memory_space<vmem>>, vector<1x128x128xf32>
    %29 = vector.shape_cast %28 : vector<1x128x128xf32> to vector<128x128xf32>
    %cst_35 = arith.constant dense<0.000000e+00> : vector<256x128xf32>
    %30 = tpu.matmul %26, %29, %cst_35 {dimension_numbers = #tpu.dot_dimension_numbers<[1], [0], [0], [1], [0, 0, 1, 1], [], []>} : vector<256x128xf32>, vector<128x128xf32>, vector<256x128xf32> -> vector<256x128xf32>
    %31 = arith.addf %27, %30 : vector<256x128xf32>
    %c0_36 = arith.constant 0 : index
    %c0_37 = arith.constant 0 : index
    %32 = vector.load %arg9[%c0_36, %c0_37] : memref<256x128xf32, #tpu.memory_space<vmem>>, vector<256x128xf32>
    tpu.vector_store %arg9[%c0_36, %c0_37], %31 {strides = array<i32>} : memref<256x128xf32, #tpu.memory_space<vmem>>, vector<256x128xf32>,
    %c0_38 = arith.constant 0 : index
    %c2 = arith.constant 2 : index
    %c0_39 = arith.constant 0 : index
    %33 = vector.load %arg8[%c0_38, %c2, %c0_39] : memref<18x18x128xf32, #tpu.memory_space<vmem>>, vector<16x16x128xf32>
    %34 = vector.shape_cast %33 : vector<16x16x128xf32> to vector<256x128xf32>
    %c0_40 = arith.constant 0 : index
    %c0_41 = arith.constant 0 : index
    %35 = vector.load %arg9[%c0_40, %c0_41] : memref<256x128xf32, #tpu.memory_space<vmem>>, vector<256x128xf32>
    %c2_42 = arith.constant 2 : index
    %c0_43 = arith.constant 0 : index
    %c0_44 = arith.constant 0 : index
    %36 = vector.load %arg2[%c2_42, %c0_43, %c0_44] : memref<9x128x128xf32, #tpu.memory_space<vmem>>, vector<1x128x128xf32>
    %37 = vector.shape_cast %36 : vector<1x128x128xf32> to vector<128x128xf32>
    %cst_45 = arith.constant dense<0.000000e+00> : vector<256x128xf32>
    %38 = tpu.matmul %34, %37, %cst_45 {dimension_numbers = #tpu.dot_dimension_numbers<[1], [0], [0], [1], [0, 0, 1, 1], [], []>} : vector<256x128xf32>, vector<128x128xf32>, vector<256x128xf32> -> vector<256x128xf32>
    %39 = arith.addf %35, %38 : vector<256x128xf32>
    %c0_46 = arith.constant 0 : index
    %c0_47 = arith.constant 0 : index
    %40 = vector.load %arg9[%c0_46, %c0_47] : memref<256x128xf32, #tpu.memory_space<vmem>>, vector<256x128xf32>
    tpu.vector_store %arg9[%c0_46, %c0_47], %39 {strides = array<i32>} : memref<256x128xf32, #tpu.memory_space<vmem>>, vector<256x128xf32>,
    %c1_48 = arith.constant 1 : index
    %c0_49 = arith.constant 0 : index
    %c0_50 = arith.constant 0 : index
    %41 = vector.load %arg8[%c1_48, %c0_49, %c0_50] : memref<18x18x128xf32, #tpu.memory_space<vmem>>, vector<16x16x128xf32>
    %42 = vector.shape_cast %41 : vector<16x16x128xf32> to vector<256x128xf32>
    %c0_51 = arith.constant 0 : index
    %c0_52 = arith.constant 0 : index
    %43 = vector.load %arg9[%c0_51, %c0_52] : memref<256x128xf32, #tpu.memory_space<vmem>>, vector<256x128xf32>
    %c3 = arith.constant 3 : index
    %c0_53 = arith.constant 0 : index
    %c0_54 = arith.constant 0 : index
    %44 = vector.load %arg2[%c3, %c0_53, %c0_54] : memref<9x128x128xf32, #tpu.memory_space<vmem>>, vector<1x128x128xf32>
    %45 = vector.shape_cast %44 : vector<1x128x128xf32> to vector<128x128xf32>
    %cst_55 = arith.constant dense<0.000000e+00> : vector<256x128xf32>
    %46 = tpu.matmul %42, %45, %cst_55 {dimension_numbers = #tpu.dot_dimension_numbers<[1], [0], [0], [1], [0, 0, 1, 1], [], []>} : vector<256x128xf32>, vector<128x128xf32>, vector<256x128xf32> -> vector<256x128xf32>
    %47 = arith.addf %43, %46 : vector<256x128xf32>
    %c0_56 = arith.constant 0 : index
    %c0_57 = arith.constant 0 : index
    %48 = vector.load %arg9[%c0_56, %c0_57] : memref<256x128xf32, #tpu.memory_space<vmem>>, vector<256x128xf32>
    tpu.vector_store %arg9[%c0_56, %c0_57], %47 {strides = array<i32>} : memref<256x128xf32, #tpu.memory_space<vmem>>, vector<256x128xf32>,
    %c1_58 = arith.constant 1 : index
    %c1_59 = arith.constant 1 : index
    %c0_60 = arith.constant 0 : index
    %49 = vector.load %arg8[%c1_58, %c1_59, %c0_60] : memref<18x18x128xf32, #tpu.memory_space<vmem>>, vector<16x16x128xf32>
    %50 = vector.shape_cast %49 : vector<16x16x128xf32> to vector<256x128xf32>
    %c0_61 = arith.constant 0 : index
    %c0_62 = arith.constant 0 : index
    %51 = vector.load %arg9[%c0_61, %c0_62] : memref<256x128xf32, #tpu.memory_space<vmem>>, vector<256x128xf32>
    %c4 = arith.constant 4 : index
    %c0_63 = arith.constant 0 : index
    %c0_64 = arith.constant 0 : index
    %52 = vector.load %arg2[%c4, %c0_63, %c0_64] : memref<9x128x128xf32, #tpu.memory_space<vmem>>, vector<1x128x128xf32>
    %53 = vector.shape_cast %52 : vector<1x128x128xf32> to vector<128x128xf32>
    %cst_65 = arith.constant dense<0.000000e+00> : vector<256x128xf32>
    %54 = tpu.matmul %50, %53, %cst_65 {dimension_numbers = #tpu.dot_dimension_numbers<[1], [0], [0], [1], [0, 0, 1, 1], [], []>} : vector<256x128xf32>, vector<128x128xf32>, vector<256x128xf32> -> vector<256x128xf32>
    %55 = arith.addf %51, %54 : vector<256x128xf32>
    %c0_66 = arith.constant 0 : index
    %c0_67 = arith.constant 0 : index
    %56 = vector.load %arg9[%c0_66, %c0_67] : memref<256x128xf32, #tpu.memory_space<vmem>>, vector<256x128xf32>
    tpu.vector_store %arg9[%c0_66, %c0_67], %55 {strides = array<i32>} : memref<256x128xf32, #tpu.memory_space<vmem>>, vector<256x128xf32>,
    %c1_68 = arith.constant 1 : index
    %c2_69 = arith.constant 2 : index
    %c0_70 = arith.constant 0 : index
    %57 = vector.load %arg8[%c1_68, %c2_69, %c0_70] : memref<18x18x128xf32, #tpu.memory_space<vmem>>, vector<16x16x128xf32>
    %58 = vector.shape_cast %57 : vector<16x16x128xf32> to vector<256x128xf32>
    %c0_71 = arith.constant 0 : index
    %c0_72 = arith.constant 0 : index
    %59 = vector.load %arg9[%c0_71, %c0_72] : memref<256x128xf32, #tpu.memory_space<vmem>>, vector<256x128xf32>
    %c5 = arith.constant 5 : index
    %c0_73 = arith.constant 0 : index
    %c0_74 = arith.constant 0 : index
    %60 = vector.load %arg2[%c5, %c0_73, %c0_74] : memref<9x128x128xf32, #tpu.memory_space<vmem>>, vector<1x128x128xf32>
    %61 = vector.shape_cast %60 : vector<1x128x128xf32> to vector<128x128xf32>
    %cst_75 = arith.constant dense<0.000000e+00> : vector<256x128xf32>
    %62 = tpu.matmul %58, %61, %cst_75 {dimension_numbers = #tpu.dot_dimension_numbers<[1], [0], [0], [1], [0, 0, 1, 1], [], []>} : vector<256x128xf32>, vector<128x128xf32>, vector<256x128xf32> -> vector<256x128xf32>
    %63 = arith.addf %59, %62 : vector<256x128xf32>
    %c0_76 = arith.constant 0 : index
    %c0_77 = arith.constant 0 : index
    %64 = vector.load %arg9[%c0_76, %c0_77] : memref<256x128xf32, #tpu.memory_space<vmem>>, vector<256x128xf32>
    tpu.vector_store %arg9[%c0_76, %c0_77], %63 {strides = array<i32>} : memref<256x128xf32, #tpu.memory_space<vmem>>, vector<256x128xf32>,
    %c2_78 = arith.constant 2 : index
    %c0_79 = arith.constant 0 : index
    %c0_80 = arith.constant 0 : index
    %65 = vector.load %arg8[%c2_78, %c0_79, %c0_80] : memref<18x18x128xf32, #tpu.memory_space<vmem>>, vector<16x16x128xf32>
    %66 = vector.shape_cast %65 : vector<16x16x128xf32> to vector<256x128xf32>
    %c0_81 = arith.constant 0 : index
    %c0_82 = arith.constant 0 : index
    %67 = vector.load %arg9[%c0_81, %c0_82] : memref<256x128xf32, #tpu.memory_space<vmem>>, vector<256x128xf32>
    %c6 = arith.constant 6 : index
    %c0_83 = arith.constant 0 : index
    %c0_84 = arith.constant 0 : index
    %68 = vector.load %arg2[%c6, %c0_83, %c0_84] : memref<9x128x128xf32, #tpu.memory_space<vmem>>, vector<1x128x128xf32>
    %69 = vector.shape_cast %68 : vector<1x128x128xf32> to vector<128x128xf32>
    %cst_85 = arith.constant dense<0.000000e+00> : vector<256x128xf32>
    %70 = tpu.matmul %66, %69, %cst_85 {dimension_numbers = #tpu.dot_dimension_numbers<[1], [0], [0], [1], [0, 0, 1, 1], [], []>} : vector<256x128xf32>, vector<128x128xf32>, vector<256x128xf32> -> vector<256x128xf32>
    %71 = arith.addf %67, %70 : vector<256x128xf32>
    %c0_86 = arith.constant 0 : index
    %c0_87 = arith.constant 0 : index
    %72 = vector.load %arg9[%c0_86, %c0_87] : memref<256x128xf32, #tpu.memory_space<vmem>>, vector<256x128xf32>
    tpu.vector_store %arg9[%c0_86, %c0_87], %71 {strides = array<i32>} : memref<256x128xf32, #tpu.memory_space<vmem>>, vector<256x128xf32>,
    %c2_88 = arith.constant 2 : index
    %c1_89 = arith.constant 1 : index
    %c0_90 = arith.constant 0 : index
    %73 = vector.load %arg8[%c2_88, %c1_89, %c0_90] : memref<18x18x128xf32, #tpu.memory_space<vmem>>, vector<16x16x128xf32>
    %74 = vector.shape_cast %73 : vector<16x16x128xf32> to vector<256x128xf32>
    %c0_91 = arith.constant 0 : index
    %c0_92 = arith.constant 0 : index
    %75 = vector.load %arg9[%c0_91, %c0_92] : memref<256x128xf32, #tpu.memory_space<vmem>>, vector<256x128xf32>
    %c7 = arith.constant 7 : index
    %c0_93 = arith.constant 0 : index
    %c0_94 = arith.constant 0 : index
    %76 = vector.load %arg2[%c7, %c0_93, %c0_94] : memref<9x128x128xf32, #tpu.memory_space<vmem>>, vector<1x128x128xf32>
    %77 = vector.shape_cast %76 : vector<1x128x128xf32> to vector<128x128xf32>
    %cst_95 = arith.constant dense<0.000000e+00> : vector<256x128xf32>
    %78 = tpu.matmul %74, %77, %cst_95 {dimension_numbers = #tpu.dot_dimension_numbers<[1], [0], [0], [1], [0, 0, 1, 1], [], []>} : vector<256x128xf32>, vector<128x128xf32>, vector<256x128xf32> -> vector<256x128xf32>
    %79 = arith.addf %75, %78 : vector<256x128xf32>
    %c0_96 = arith.constant 0 : index
    %c0_97 = arith.constant 0 : index
    %80 = vector.load %arg9[%c0_96, %c0_97] : memref<256x128xf32, #tpu.memory_space<vmem>>, vector<256x128xf32>
    tpu.vector_store %arg9[%c0_96, %c0_97], %79 {strides = array<i32>} : memref<256x128xf32, #tpu.memory_space<vmem>>, vector<256x128xf32>,
    %c2_98 = arith.constant 2 : index
    %c2_99 = arith.constant 2 : index
    %c0_100 = arith.constant 0 : index
    %81 = vector.load %arg8[%c2_98, %c2_99, %c0_100] : memref<18x18x128xf32, #tpu.memory_space<vmem>>, vector<16x16x128xf32>
    %82 = vector.shape_cast %81 : vector<16x16x128xf32> to vector<256x128xf32>
    %c0_101 = arith.constant 0 : index
    %c0_102 = arith.constant 0 : index
    %83 = vector.load %arg9[%c0_101, %c0_102] : memref<256x128xf32, #tpu.memory_space<vmem>>, vector<256x128xf32>
    %c8 = arith.constant 8 : index
    %c0_103 = arith.constant 0 : index
    %c0_104 = arith.constant 0 : index
    %84 = vector.load %arg2[%c8, %c0_103, %c0_104] : memref<9x128x128xf32, #tpu.memory_space<vmem>>, vector<1x128x128xf32>
    %85 = vector.shape_cast %84 : vector<1x128x128xf32> to vector<128x128xf32>
    %cst_105 = arith.constant dense<0.000000e+00> : vector<256x128xf32>
    %86 = tpu.matmul %82, %85, %cst_105 {dimension_numbers = #tpu.dot_dimension_numbers<[1], [0], [0], [1], [0, 0, 1, 1], [], []>} : vector<256x128xf32>, vector<128x128xf32>, vector<256x128xf32> -> vector<256x128xf32>
    %87 = arith.addf %83, %86 : vector<256x128xf32>
    %c0_106 = arith.constant 0 : index
    %c0_107 = arith.constant 0 : index
    %88 = vector.load %arg9[%c0_106, %c0_107] : memref<256x128xf32, #tpu.memory_space<vmem>>, vector<256x128xf32>
    tpu.vector_store %arg9[%c0_106, %c0_107], %87 {strides = array<i32>} : memref<256x128xf32, #tpu.memory_space<vmem>>, vector<256x128xf32>,
    %c0_108 = arith.constant 0 : index
    %c0_109 = arith.constant 0 : index
    %89 = vector.load %arg9[%c0_108, %c0_109] : memref<256x128xf32, #tpu.memory_space<vmem>>, vector<256x128xf32>
    %90 = vector.shape_cast %89 : vector<256x128xf32> to vector<1x16x16x128xf32>
    %c0_110 = arith.constant 0 : index
    %c0_111 = arith.constant 0 : index
    %c0_112 = arith.constant 0 : index
    %c0_113 = arith.constant 0 : index
    %91 = vector.load %arg5[%c0_110, %c0_111, %c0_112, %c0_113] : memref<1x16x16x128xf32, #tpu.memory_space<vmem>>, vector<1x16x16x128xf32>
    tpu.vector_store %arg5[%c0_110, %c0_111, %c0_112, %c0_113], %90 {strides = array<i32>} : memref<1x16x16x128xf32, #tpu.memory_space<vmem>>, vector<1x16x16x128xf32>,
    %cst_114 = arith.constant dense<0.000000e+00> : vector<128xf32>
    %92 = vector.multi_reduction <add>, %89, %cst_114 [0] : vector<256x128xf32> to vector<128xf32>
    %93 = vector.shape_cast %92 : vector<128xf32> to vector<1x1x128xf32>
    %c0_115 = arith.constant 0 : index
    %c0_116 = arith.constant 0 : index
    %c0_117 = arith.constant 0 : index
    %94 = vector.load %arg6[%c0_115, %c0_116, %c0_117] : memref<1x1x128xf32, #tpu.memory_space<vmem>>, vector<1x1x128xf32>
    tpu.vector_store %arg6[%c0_115, %c0_116, %c0_117], %93 {strides = array<i32>} : memref<1x1x128xf32, #tpu.memory_space<vmem>>, vector<1x1x128xf32>,
    %95 = arith.mulf %89, %89 : vector<256x128xf32>
    %cst_118 = arith.constant dense<0.000000e+00> : vector<128xf32>
    %96 = vector.multi_reduction <add>, %95, %cst_118 [0] : vector<256x128xf32> to vector<128xf32>
    %97 = vector.shape_cast %96 : vector<128xf32> to vector<1x1x128xf32>
    %c0_119 = arith.constant 0 : index
    %c0_120 = arith.constant 0 : index
    %c0_121 = arith.constant 0 : index
    %98 = vector.load %arg7[%c0_119, %c0_120, %c0_121] : memref<1x1x128xf32, #tpu.memory_space<vmem>>, vector<1x1x128xf32>
    tpu.vector_store %arg7[%c0_119, %c0_120, %c0_121], %97 {strides = array<i32>} : memref<1x1x128xf32, #tpu.memory_space<vmem>>, vector<1x1x128xf32>,
    return
  }
  func.func @transform_0(%arg0: i32) -> (i32, i32, i32, i32) {
    %c0_i32 = arith.constant 0 : i32
    %c0_i32_0 = arith.constant 0 : i32
    %c0_i32_1 = arith.constant 0 : i32
    %c0_i32_2 = arith.constant 0 : i32
    return %arg0, %c0_i32, %c0_i32_0, %c0_i32_1 : i32, i32, i32, i32
  }
  func.func @transform_1(%arg0: i32) -> (i32, i32, i32) {
    %c0_i32 = arith.constant 0 : i32
    %c0_i32_0 = arith.constant 0 : i32
    %c0_i32_1 = arith.constant 0 : i32
    %c0_i32_2 = arith.constant 0 : i32
    return %c0_i32, %c0_i32_0, %c0_i32_1 : i32, i32, i32
  }
  func.func @transform_2(%arg0: i32) -> (i32, i32) {
    %c0_i32 = arith.constant 0 : i32
    %c0_i32_0 = arith.constant 0 : i32
    %c0_i32_1 = arith.constant 0 : i32
    return %c0_i32, %c0_i32_0 : i32, i32
  }
  func.func @transform_3(%arg0: i32) -> (i32, i32) {
    %c0_i32 = arith.constant 0 : i32
    %c0_i32_0 = arith.constant 0 : i32
    %c0_i32_1 = arith.constant 0 : i32
    return %c0_i32, %c0_i32_0 : i32, i32
  }
  func.func @transform_4(%arg0: i32) -> (i32, i32, i32, i32) {
    %c0_i32 = arith.constant 0 : i32
    %c0_i32_0 = arith.constant 0 : i32
    %c0_i32_1 = arith.constant 0 : i32
    %c0_i32_2 = arith.constant 0 : i32
    return %arg0, %c0_i32, %c0_i32_0, %c0_i32_1 : i32, i32, i32, i32
  }
  func.func @transform_5(%arg0: i32) -> (i32, i32, i32) {
    %c0_i32 = arith.constant 0 : i32
    %c0_i32_0 = arith.constant 0 : i32
    %c0_i32_1 = arith.constant 0 : i32
    return %arg0, %c0_i32, %c0_i32_0 : i32, i32, i32
  }
  func.func @transform_6(%arg0: i32) -> (i32, i32, i32) {
    %c0_i32 = arith.constant 0 : i32
    %c0_i32_0 = arith.constant 0 : i32
    %c0_i32_1 = arith.constant 0 : i32
    return %arg0, %c0_i32, %c0_i32_0 : i32, i32, i32
  }
}

module attributes {stable_mosaic.version = 11 : i64} {
  func.func @_bn_relu_kernel(%arg0: i32, %arg1: memref<256x128xf32, #tpu.memory_space<vmem>>, %arg2: memref<1x128xf32, #tpu.memory_space<vmem>>, %arg3: memref<1x128xf32, #tpu.memory_space<vmem>>, %arg4: memref<256x128xf32, #tpu.memory_space<vmem>>) attributes {dimension_semantics = [#tpu.dimension_semantics<parallel>], iteration_bounds = array<i64: 2>, scalar_prefetch = 0 : i64, scratch_operands = 0 : i64, tpu.core_type = #tpu.core_type<tc>, window_params = [{transform_indices = @transform_0, window_bounds = array<i64: 256, 128>}, {pipeline_mode = #tpu.pipeline_mode<synchronous>, transform_indices = @transform_1, window_bounds = array<i64: 1, 128>}, {pipeline_mode = #tpu.pipeline_mode<synchronous>, transform_indices = @transform_2, window_bounds = array<i64: 1, 128>}, {transform_indices = @transform_3, window_bounds = array<i64: 256, 128>}]} {
    %c0 = arith.constant 0 : index
    %c0_0 = arith.constant 0 : index
    %0 = vector.load %arg1[%c0, %c0_0] : memref<256x128xf32, #tpu.memory_space<vmem>>, vector<256x128xf32>
    %c0_1 = arith.constant 0 : index
    %c0_2 = arith.constant 0 : index
    %1 = vector.load %arg2[%c0_1, %c0_2] : memref<1x128xf32, #tpu.memory_space<vmem>>, vector<1x128xf32>
    %2 = vector.broadcast %1 : vector<1x128xf32> to vector<256x128xf32>
    %3 = arith.mulf %0, %2 : vector<256x128xf32>
    %c0_3 = arith.constant 0 : index
    %c0_4 = arith.constant 0 : index
    %4 = vector.load %arg3[%c0_3, %c0_4] : memref<1x128xf32, #tpu.memory_space<vmem>>, vector<1x128xf32>
    %5 = vector.broadcast %4 : vector<1x128xf32> to vector<256x128xf32>
    %6 = arith.addf %3, %5 : vector<256x128xf32>
    %cst = arith.constant 0.000000e+00 : f32
    %7 = vector.broadcast %cst : f32 to vector<256x128xf32>
    %8 = arith.maximumf %6, %7 : vector<256x128xf32>
    %c0_5 = arith.constant 0 : index
    %c0_6 = arith.constant 0 : index
    %9 = vector.load %arg4[%c0_5, %c0_6] : memref<256x128xf32, #tpu.memory_space<vmem>>, vector<256x128xf32>
    tpu.vector_store %arg4[%c0_5, %c0_6], %8 {strides = array<i32>} : memref<256x128xf32, #tpu.memory_space<vmem>>, vector<256x128xf32>,
    return
  }
  func.func @transform_0(%arg0: i32) -> (i32, i32) {
    %c0_i32 = arith.constant 0 : i32
    %c0_i32_0 = arith.constant 0 : i32
    return %arg0, %c0_i32 : i32, i32
  }
  func.func @transform_1(%arg0: i32) -> (i32, i32) {
    %c0_i32 = arith.constant 0 : i32
    %c0_i32_0 = arith.constant 0 : i32
    %c0_i32_1 = arith.constant 0 : i32
    return %c0_i32, %c0_i32_0 : i32, i32
  }
  func.func @transform_2(%arg0: i32) -> (i32, i32) {
    %c0_i32 = arith.constant 0 : i32
    %c0_i32_0 = arith.constant 0 : i32
    %c0_i32_1 = arith.constant 0 : i32
    return %c0_i32, %c0_i32_0 : i32, i32
  }
  func.func @transform_3(%arg0: i32) -> (i32, i32) {
    %c0_i32 = arith.constant 0 : i32
    %c0_i32_0 = arith.constant 0 : i32
    return %arg0, %c0_i32 : i32, i32
  }
}

</mosaic_0001>

<llo_original>
// kernel: inconv_forward.5
$region0: #{inconv_forward.5}
  #allocation0 [shape = 'u32[]', space=smem, size = 0x4, offset = 0x4, fixed_abs, tag = 'smem constant byte address 0x4 - core index']
  #allocation1 [shape = 'u32[72,128]{1,0:T(1,128)}', space=vmem, size = 0x9000, scoped, tag = 'internal scratch']
  %s0 = inlined_call_operand.vmem [shape: f32[512,128], index: 0, kind: input, shape index: {}]
  %s1 = inlined_call_operand.vmem [shape: f32[1,128], index: 1, kind: input, shape index: {}]
  %s2 = inlined_call_operand.vmem [shape: f32[1,128], index: 2, kind: input, shape index: {}]
  %s3 = inlined_call_operand.vmem [shape: f32[512,128], index: 3, kind: output, shape index: {}]
  %s4 = sld [smem:[#allocation0]]
  $region45: #{inconv_forward.5} parent=0
    _
  %s6 = ssub.s32 1, %s4
  %s7 = scalar_select 0, %s6, %s4
  loop: start=0, step=1, limit=4
  $region2: #{inconv_forward.5} parent=0 // loop_pre_header
    _
  $region3: #{inconv_forward.5} parent=0 // loop_header
    %s9 = sphi 0, %s13
    %p10 = scmp.ge.s32.totalorder %s9, 4
    %s19 = sphi 0, %s21
    %s22 = sphi 0, %s19
    %s23 = sphi 0, %s22
    %s39 = sphi 0, %s23
    %s43 = sphi 0, %s43
    %s45 = sphi 0, %s43
    %s46 = sphi 0, %s45
    %s60 = sphi 0, %s46
    %s64 = sphi 0, %s64
    %s66 = sphi 0, %s64
    %s67 = sphi 0, %s66
    %s81 = sphi 0, %s67
    %s87 = sphi 0, %s89
    %s90 = sphi 0, %s87
    %s91 = sphi 0, %s90
    %s107 = sphi 0, %s91
  $region4: #{inconv_forward.5} parent=0 // loop_header_branch
    %12 = sbr.rel (%p10) target = $region8
  $region5: #{inconv_forward.5} parent=0 // loop_body
    %s14 = ssub.s32 %s9, 1
    %s15 = ssub.s32 %s9, 2
    %s16 = sadd.s32 %s9, 1
    %s17 = ssub.s32 %s9, %s16
    %p18 = scmp.eq.s32.totalorder %s17, 0
    %s20 = sadd.s32 %s19, 1
    %s21 = scalar_select %p18, %s19, %s20
    %p24 = pneg %p18
    %p25 = scmp.eq.s32.totalorder %s9, 1
    %p26 = por %p24, %p25
    %p27 = scmp.ne.s32.totalorder %s19, %s22
    %p28 = scmp.eq.s32.totalorder %s9, 0
    %p29 = por %p27, %p28
    %p30 = scmp.ne.s32.totalorder %s19, %s22
    %p31 = scmp.eq.s32.totalorder %s14, 1
    %p32 = por %p30, %p31
    %p33 = scmp.ne.s32.totalorder %s22, %s23
    %p34 = scmp.eq.s32.totalorder %s14, 0
    %p35 = por %p33, %p34
    %p36 = scmp.ne.s32.totalorder %s22, %s23
    %p37 = scmp.eq.s32.totalorder %s15, 1
    %p38 = por %p36, %p37
    %p40 = scmp.ne.s32.totalorder %s23, %s39
    %p41 = scmp.eq.s32.totalorder %s15, 0
    %p42 = por %p40, %p41
    %s44 = sadd.s32 %s43, 1
    %p47 = scmp.eq.s32.totalorder %s9, 1
    %p48 = scmp.ne.s32.totalorder %s43, %s45
    %p49 = scmp.eq.s32.totalorder %s9, 0
    %p50 = por %p48, %p49
    %p51 = scmp.ne.s32.totalorder %s43, %s45
    %p52 = scmp.eq.s32.totalorder %s14, 1
    %p53 = por %p51, %p52
    %p54 = scmp.ne.s32.totalorder %s45, %s46
    %p55 = scmp.eq.s32.totalorder %s14, 0
    %p56 = por %p54, %p55
    %p57 = scmp.ne.s32.totalorder %s45, %s46
    %p58 = scmp.eq.s32.totalorder %s15, 1
    %p59 = por %p57, %p58
    %p61 = scmp.ne.s32.totalorder %s46, %s60
    %p62 = scmp.eq.s32.totalorder %s15, 0
    %p63 = por %p61, %p62
    %s65 = sadd.s32 %s64, 1
    %p68 = scmp.eq.s32.totalorder %s9, 1
    %p69 = scmp.ne.s32.totalorder %s64, %s66
    %p70 = scmp.eq.s32.totalorder %s9, 0
    %p71 = por %p69, %p70
    %p72 = scmp.ne.s32.totalorder %s64, %s66
    %p73 = scmp.eq.s32.totalorder %s14, 1
    %p74 = por %p72, %p73
    %p75 = scmp.ne.s32.totalorder %s66, %s67
    %p76 = scmp.eq.s32.totalorder %s14, 0
    %p77 = por %p75, %p76
    %p78 = scmp.ne.s32.totalorder %s66, %s67
    %p79 = scmp.eq.s32.totalorder %s15, 1
    %p80 = por %p78, %p79
    %p82 = scmp.ne.s32.totalorder %s67, %s81
    %p83 = scmp.eq.s32.totalorder %s15, 0
    %p84 = por %p82, %p83
    %s85 = ssub.s32 %s9, %s16
    %p86 = scmp.eq.s32.totalorder %s85, 0
    %s88 = sadd.s32 %s87, 1
    %s89 = scalar_select %p86, %s87, %s88
    %p92 = pneg %p86
    %p93 = scmp.eq.s32.totalorder %s9, 1
    %p94 = por %p92, %p93
    %p95 = scmp.ne.s32.totalorder %s87, %s90
    %p96 = scmp.eq.s32.totalorder %s9, 0
    %p97 = por %p95, %p96
    %p98 = scmp.ne.s32.totalorder %s87, %s90
    %p99 = scmp.eq.s32.totalorder %s14, 1
    %p100 = por %p98, %p99
    %p101 = scmp.ne.s32.totalorder %s90, %s91
    %p102 = scmp.eq.s32.totalorder %s14, 0
    %p103 = por %p101, %p102
    %p104 = scmp.ne.s32.totalorder %s90, %s91
    %p105 = scmp.eq.s32.totalorder %s15, 1
    %p106 = por %p104, %p105
    %p108 = scmp.ne.s32.totalorder %s91, %s107
    %p109 = scmp.eq.s32.totalorder %s15, 0
    %p110 = por %p108, %p109
    %p111 = scmp.le.s32.totalorder 1, %s9
    %p112 = scmp.lt.s32.totalorder %s9, 3
    %p113 = pnand %p111, %p112
    %p114 = pneg %p113
    // Predicated region
    $region9: #{inconv_forward.5} parent=5 // pred_check
      _
    $region10: #{inconv_forward.5} parent=5 // pred_check_branch
      %116 = sbr.rel (%p113) target = $region12
    $region11: #{inconv_forward.5} parent=5 // pred_region
      %s117 = ssub.s32 %s9, 1
      // Predicated region
      $region13: #{inconv_forward.5} parent=11 // pred_check
        %p118 = pneg %p56
      $region14: #{inconv_forward.5} parent=11 // pred_check_branch
        %120 = sbr.rel (%p118) target = $region16
      $region15: #{inconv_forward.5} parent=11 // pred_region
        _
      $region16: #{inconv_forward.5} parent=11 // pred_fallthru
        _
      // Predicated region
      $region17: #{inconv_forward.5} parent=11 // pred_check
        %p121 = pneg %p77
      $region18: #{inconv_forward.5} parent=11 // pred_check_branch
        %123 = sbr.rel (%p121) target = $region20
      $region19: #{inconv_forward.5} parent=11 // pred_region
        _
      $region20: #{inconv_forward.5} parent=11 // pred_fallthru
        _
    $region12: #{inconv_forward.5} parent=5 // pred_fallthru
      _
    %p124 = scmp.lt.s32.totalorder %s9, 2
    // Predicated region
    $region21: #{inconv_forward.5} parent=5 // pred_check
      %p125 = pneg %p124
    $region22: #{inconv_forward.5} parent=5 // pred_check_branch
      %127 = sbr.rel (%p125) target = $region24
    $region23: #{inconv_forward.5} parent=5 // pred_region
      // Predicated region
      $region25: #{inconv_forward.5} parent=23 // pred_check
        %p128 = pneg %p29
      $region26: #{inconv_forward.5} parent=23 // pred_check_branch
        %130 = sbr.rel (%p128) target = $region28
      $region27: #{inconv_forward.5} parent=23 // pred_region
        %s131 = smul.u32 32, %s9
        %p132 = scmp.lt.s32.totalorder %s131, 63
        %s133 = scalar_select %p132, %s131, 63
        %s134 = smul.addr %s133, 8
        %s135 = scalar_lea.vmem %s0, %s134
        %s136 = smul.u32 32, %s9
      $region28: #{inconv_forward.5} parent=23 // pred_fallthru
        _
    $region24: #{inconv_forward.5} parent=5 // pred_fallthru
      _
    %p137 = scmp.le.s32.totalorder 1, %s9
    %p138 = scmp.lt.s32.totalorder %s9, 3
    %p139 = pnand %p137, %p138
    %p140 = pneg %p139
    // Predicated region
    $region29: #{inconv_forward.5} parent=5 // pred_check
      _
    $region30: #{inconv_forward.5} parent=5 // pred_check_branch
      %142 = sbr.rel (%p139) target = $region32
    $region31: #{inconv_forward.5} parent=5 // pred_region
      %s143 = ssub.s32 %s9, 1
      %s144 = smul.u32 32, %s14
      %p145 = scmp.lt.s32.totalorder %s144, 63
      %s146 = scalar_select %p145, %s144, 63
      %s147 = smul.addr %s146, 8
      %s148 = scalar_lea.vmem %s0, %s147
      %p149 = pneg %p35
      %p150 = pneg %p32
      %p151 = pneg %p56
      %p152 = pneg %p53
      %p153 = pneg %p77
      %p154 = pneg %p74
      %p155 = pneg %p103
      %p156 = pneg %p100
      %s157 = smul.u32 32, %s14
      %p158 = scmp.lt.s32.totalorder %s157, 63
      %s159 = scalar_select %p158, %s157, 63
      %s160 = smul.addr %s159, 8
      %s161 = scalar_lea.vmem %s3, %s160
      %s162 = smul.u32 32, %s14
      %p163 = scmp.lt.s32.totalorder %s162, 63
      %s164 = scalar_select %p163, %s162, 63
      %s165 = smul.addr %s164, 8
      %s166 = scalar_lea.vmem %s0, %s165
      %s167 = smul.u32 32, %s14
      %s168 = smul.u32 32, %s14
      %p169 = scmp.lt.s32.totalorder %s168, 63
      %s170 = scalar_select %p169, %s168, 63
      %s171 = smul.addr %s170, 8
      %s172 = scalar_lea.vmem %s3, %s171
      %s173 = smul.u32 32, %s14
      %v174 = vld [vmem:[%s166] sm:$0xff]
      %v175 = vld [vmem:[%s166 + $0x8] sm:$0xff]
      %v176 = vld [vmem:[%s166 + $0x10] sm:$0xff]
      %v177 = vld [vmem:[%s166 + $0x18] sm:$0xff]
      %v178 = vld [vmem:[%s166 + $0x20] sm:$0xff]
      %v179 = vld [vmem:[%s166 + $0x28] sm:$0xff]
      %v180 = vld [vmem:[%s166 + $0x30] sm:$0xff]
      %v181 = vld [vmem:[%s166 + $0x38] sm:$0xff]
      %v182 = vld [vmem:[%s166 + $0x40] sm:$0xff]
      %v183 = vld [vmem:[%s166 + $0x48] sm:$0xff]
      %v184 = vld [vmem:[%s166 + $0x50] sm:$0xff]
      %v185 = vld [vmem:[%s166 + $0x58] sm:$0xff]
      %v186 = vld [vmem:[%s166 + $0x60] sm:$0xff]
      %v187 = vld [vmem:[%s166 + $0x68] sm:$0xff]
      %v188 = vld [vmem:[%s166 + $0x70] sm:$0xff]
      %v189 = vld [vmem:[%s166 + $0x78] sm:$0xff]
      %v190 = vld [vmem:[%s166 + $0x80] sm:$0xff]
      %v191 = vld [vmem:[%s166 + $0x88] sm:$0xff]
      %v192 = vld [vmem:[%s166 + $0x90] sm:$0xff]
      %v193 = vld [vmem:[%s166 + $0x98] sm:$0xff]
      %v194 = vld [vmem:[%s166 + $0xa0] sm:$0xff]
      %v195 = vld [vmem:[%s166 + $0xa8] sm:$0xff]
      %v196 = vld [vmem:[%s166 + $0xb0] sm:$0xff]
      %v197 = vld [vmem:[%s166 + $0xb8] sm:$0xff]
      %v198 = vld [vmem:[%s166 + $0xc0] sm:$0xff]
      %v199 = vld [vmem:[%s166 + $0xc8] sm:$0xff]
      %v200 = vld [vmem:[%s166 + $0xd0] sm:$0xff]
      %v201 = vld [vmem:[%s166 + $0xd8] sm:$0xff]
      %v202 = vld [vmem:[%s166 + $0xe0] sm:$0xff]
      %v203 = vld [vmem:[%s166 + $0xe8] sm:$0xff]
      %v204 = vld [vmem:[%s166 + $0xf0] sm:$0xff]
      %v205 = vld [vmem:[%s166 + $0xf8] sm:$0xff]
      %v206 = vld [vmem:[%s1] sm:$0x1]
      %v208 = vperm.slane %v206, 0
      %v210 = vmul.f32 %v174, %v208
      %v211 = vmul.f32 %v175, %v208
      %v212 = vmul.f32 %v176, %v208
      %v213 = vmul.f32 %v177, %v208
      %v214 = vmul.f32 %v178, %v208
      %v215 = vmul.f32 %v179, %v208
      %v216 = vmul.f32 %v180, %v208
      %v217 = vmul.f32 %v181, %v208
      %v218 = vmul.f32 %v182, %v208
      %v219 = vmul.f32 %v183, %v208
      %v220 = vmul.f32 %v184, %v208
      %v221 = vmul.f32 %v185, %v208
      %v222 = vmul.f32 %v186, %v208
      %v223 = vmul.f32 %v187, %v208
      %v224 = vmul.f32 %v188, %v208
      %v225 = vmul.f32 %v189, %v208
      %v226 = vmul.f32 %v190, %v208
      %v227 = vmul.f32 %v191, %v208
      %v228 = vmul.f32 %v192, %v208
      %v229 = vmul.f32 %v193, %v208
      %v230 = vmul.f32 %v194, %v208
      %v231 = vmul.f32 %v195, %v208
      %v232 = vmul.f32 %v196, %v208
      %v233 = vmul.f32 %v197, %v208
      %v234 = vmul.f32 %v198, %v208
      %v235 = vmul.f32 %v199, %v208
      %v236 = vmul.f32 %v200, %v208
      %v237 = vmul.f32 %v201, %v208
      %v238 = vmul.f32 %v202, %v208
      %v239 = vmul.f32 %v203, %v208
      %v240 = vmul.f32 %v204, %v208
      %v241 = vmul.f32 %v205, %v208
      %v242 = vld [vmem:[%s2] sm:$0x1]
      %v244 = vperm.slane %v242, 0
      %v246 = vadd.f32 %v210, %v244
      %v247 = vadd.f32 %v211, %v244
      %v248 = vadd.f32 %v212, %v244
      %v249 = vadd.f32 %v213, %v244
      %v250 = vadd.f32 %v214, %v244
      %v251 = vadd.f32 %v215, %v244
      %v252 = vadd.f32 %v216, %v244
      %v253 = vadd.f32 %v217, %v244
      %v254 = vadd.f32 %v218, %v244
      %v255 = vadd.f32 %v219, %v244
      %v256 = vadd.f32 %v220, %v244
      %v257 = vadd.f32 %v221, %v244
      %v258 = vadd.f32 %v222, %v244
      %v259 = vadd.f32 %v223, %v244
      %v260 = vadd.f32 %v224, %v244
      %v261 = vadd.f32 %v225, %v244
      %v262 = vadd.f32 %v226, %v244
      %v263 = vadd.f32 %v227, %v244
      %v264 = vadd.f32 %v228, %v244
      %v265 = vadd.f32 %v229, %v244
      %v266 = vadd.f32 %v230, %v244
      %v267 = vadd.f32 %v231, %v244
      %v268 = vadd.f32 %v232, %v244
      %v269 = vadd.f32 %v233, %v244
      %v270 = vadd.f32 %v234, %v244
      %v271 = vadd.f32 %v235, %v244
      %v272 = vadd.f32 %v236, %v244
      %v273 = vadd.f32 %v237, %v244
      %v274 = vadd.f32 %v238, %v244
      %v275 = vadd.f32 %v239, %v244
      %v276 = vadd.f32 %v240, %v244
      %v277 = vadd.f32 %v241, %v244
      %v278 = vmax.f32 %v246, 0.0
      %v279 = vmax.f32 %v247, 0.0
      %v280 = vmax.f32 %v248, 0.0
      %v281 = vmax.f32 %v249, 0.0
      %v282 = vmax.f32 %v250, 0.0
      %v283 = vmax.f32 %v251, 0.0
      %v284 = vmax.f32 %v252, 0.0
      %v285 = vmax.f32 %v253, 0.0
      %v286 = vmax.f32 %v254, 0.0
      %v287 = vmax.f32 %v255, 0.0
      %v288 = vmax.f32 %v256, 0.0
      %v289 = vmax.f32 %v257, 0.0
      %v290 = vmax.f32 %v258, 0.0
      %v291 = vmax.f32 %v259, 0.0
      %v292 = vmax.f32 %v260, 0.0
      %v293 = vmax.f32 %v261, 0.0
      %v294 = vmax.f32 %v262, 0.0
      %v295 = vmax.f32 %v263, 0.0
      %v296 = vmax.f32 %v264, 0.0
      %v297 = vmax.f32 %v265, 0.0
      %v298 = vmax.f32 %v266, 0.0
      %v299 = vmax.f32 %v267, 0.0
      %v300 = vmax.f32 %v268, 0.0
      %v301 = vmax.f32 %v269, 0.0
      %v302 = vmax.f32 %v270, 0.0
      %v303 = vmax.f32 %v271, 0.0
      %v304 = vmax.f32 %v272, 0.0
      %v305 = vmax.f32 %v273, 0.0
      %v306 = vmax.f32 %v274, 0.0
      %v307 = vmax.f32 %v275, 0.0
      %v308 = vmax.f32 %v276, 0.0
      %v309 = vmax.f32 %v277, 0.0
      %310 = vst [vmem:[%s172] sm:$0xff] %v278
      %311 = vst [vmem:[%s172 + $0x8] sm:$0xff] %v279
      %312 = vst [vmem:[%s172 + $0x10] sm:$0xff] %v280
      %313 = vst [vmem:[%s172 + $0x18] sm:$0xff] %v281
      %314 = vst [vmem:[%s172 + $0x20] sm:$0xff] %v282
      %315 = vst [vmem:[%s172 + $0x28] sm:$0xff] %v283
      %316 = vst [vmem:[%s172 + $0x30] sm:$0xff] %v284
      %317 = vst [vmem:[%s172 + $0x38] sm:$0xff] %v285
      %318 = vst [vmem:[%s172 + $0x40] sm:$0xff] %v286
      %319 = vst [vmem:[%s172 + $0x48] sm:$0xff] %v287
      %320 = vst [vmem:[%s172 + $0x50] sm:$0xff] %v288
      %321 = vst [vmem:[%s172 + $0x58] sm:$0xff] %v289
      %322 = vst [vmem:[%s172 + $0x60] sm:$0xff] %v290
      %323 = vst [vmem:[%s172 + $0x68] sm:$0xff] %v291
      %324 = vst [vmem:[%s172 + $0x70] sm:$0xff] %v292
      %325 = vst [vmem:[%s172 + $0x78] sm:$0xff] %v293
      %326 = vst [vmem:[%s172 + $0x80] sm:$0xff] %v294
      %327 = vst [vmem:[%s172 + $0x88] sm:$0xff] %v295
      %328 = vst [vmem:[%s172 + $0x90] sm:$0xff] %v296
      %329 = vst [vmem:[%s172 + $0x98] sm:$0xff] %v297
      %330 = vst [vmem:[%s172 + $0xa0] sm:$0xff] %v298
      %331 = vst [vmem:[%s172 + $0xa8] sm:$0xff] %v299
      %332 = vst [vmem:[%s172 + $0xb0] sm:$0xff] %v300
      %333 = vst [vmem:[%s172 + $0xb8] sm:$0xff] %v301
      %334 = vst [vmem:[%s172 + $0xc0] sm:$0xff] %v302
      %335 = vst [vmem:[%s172 + $0xc8] sm:$0xff] %v303
      %336 = vst [vmem:[%s172 + $0xd0] sm:$0xff] %v304
      %337 = vst [vmem:[%s172 + $0xd8] sm:$0xff] %v305
      %338 = vst [vmem:[%s172 + $0xe0] sm:$0xff] %v306
      %339 = vst [vmem:[%s172 + $0xe8] sm:$0xff] %v307
      %340 = vst [vmem:[%s172 + $0xf0] sm:$0xff] %v308
      %341 = vst [vmem:[%s172 + $0xf8] sm:$0xff] %v309
      %s342 = smul.u32 32, %s14
      %p343 = scmp.lt.s32.totalorder %s342, 63
      %s344 = scalar_select %p343, %s342, 63
      %s345 = smul.addr %s344, 8
      %s346 = scalar_lea.vmem %s3, %s345
      // Predicated region
      $region33: #{inconv_forward.5} parent=31 // pred_check
        %p347 = pneg %p100
      $region34: #{inconv_forward.5} parent=31 // pred_check_branch
        %349 = sbr.rel (%p347) target = $region36
      $region35: #{inconv_forward.5} parent=31 // pred_region
        %s350 = smul.u32 32, %s14
      $region36: #{inconv_forward.5} parent=31 // pred_fallthru
        _
    $region32: #{inconv_forward.5} parent=5 // pred_fallthru
      _
    %p351 = scmp.le.s32.totalorder 2, %s9
    // Predicated region
    $region37: #{inconv_forward.5} parent=5 // pred_check
      %p352 = pneg %p351
    $region38: #{inconv_forward.5} parent=5 // pred_check_branch
      %354 = sbr.rel (%p352) target = $region40
    $region39: #{inconv_forward.5} parent=5 // pred_region
      %s355 = ssub.s32 %s9, 2
      // Predicated region
      $region41: #{inconv_forward.5} parent=39 // pred_check
        %p356 = pneg %p106
      $region42: #{inconv_forward.5} parent=39 // pred_check_branch
        %358 = sbr.rel (%p356) target = $region44
      $region43: #{inconv_forward.5} parent=39 // pred_region
        %s359 = smul.u32 32, %s15
        %p360 = scmp.lt.s32.totalorder %s359, 63
        %s361 = scalar_select %p360, %s359, 63
        %s362 = smul.addr %s361, 8
        %s363 = scalar_lea.vmem %s3, %s362
      $region44: #{inconv_forward.5} parent=39 // pred_fallthru
        _
    $region40: #{inconv_forward.5} parent=5 // pred_fallthru
      _
  $region6: #{inconv_forward.5} parent=0 // loop_footer
    %s13 = sadd.s32 1, %s9
  $region7: #{inconv_forward.5} parent=0 // loop_footer_branch
    %8 = sbr.rel target = $region3
  $region8: #{inconv_forward.5} parent=0 // loop_exit
    _

// kernel: inconv_forward.4
$region0: #{inconv_forward.4}
  #allocation0 [shape = 'u32[]', space=smem, size = 0x4, offset = 0x4, fixed_abs, tag = 'smem constant byte address 0x4 - core index']
  #allocation1 [shape = 'u32[72,128]{1,0:T(1,128)}', space=vmem, size = 0x9000, scoped, tag = 'internal scratch']
  #allocation2 [shape = 'f32[18,18,128]{2,1,0:T(8,128)}', space=vmem, size = 0x36000, scoped, tag = 'scratch operand']
  #allocation3 [shape = 'f32[256,128]{1,0:T(8,128)}', space=vmem, size = 0x20000, scoped, tag = 'scratch operand']
  %s0 = inlined_call_operand.vmem [shape: f32[2,16,16,128], index: 0, kind: input, shape index: {}]
  %s1 = inlined_call_operand.vmem [shape: f32[9,128,128], index: 1, kind: input, shape index: {}]
  %s2 = inlined_call_operand.vmem [shape: f32[1,128], index: 2, kind: input, shape index: {}]
  %s3 = inlined_call_operand.vmem [shape: f32[1,128], index: 3, kind: input, shape index: {}]
  %s4 = inlined_call_operand.vmem [shape: f32[2,16,16,128], index: 4, kind: output, shape index: {0}]
  %s5 = inlined_call_operand.vmem [shape: f32[2,1,128], index: 5, kind: output, shape index: {1}]
  %s6 = inlined_call_operand.vmem [shape: f32[2,1,128], index: 6, kind: output, shape index: {2}]
  %7 = xla_tuple %s4, %s5, %s6
  %s8 = sld [smem:[#allocation0]]
  $region65: #{inconv_forward.4} parent=0
    _
  %s10 = ssub.s32 1, %s8
  %s11 = scalar_select 0, %s10, %s8
  loop: start=0, step=1, limit=4
  $region2: #{inconv_forward.4} parent=0 // loop_pre_header
    _
  $region3: #{inconv_forward.4} parent=0 // loop_header
    %s13 = sphi 0, %s17
    %p14 = scmp.ge.s32.totalorder %s13, 4
    %s23 = sphi 0, %s25
    %s26 = sphi 0, %s23
    %s27 = sphi 0, %s26
    %s43 = sphi 0, %s27
    %s47 = sphi 0, %s47
    %s49 = sphi 0, %s47
    %s50 = sphi 0, %s49
    %s64 = sphi 0, %s50
    %s68 = sphi 0, %s68
    %s70 = sphi 0, %s68
    %s71 = sphi 0, %s70
    %s85 = sphi 0, %s71
    %s89 = sphi 0, %s89
    %s91 = sphi 0, %s89
    %s92 = sphi 0, %s91
    %s106 = sphi 0, %s92
    %s112 = sphi 0, %s114
    %s115 = sphi 0, %s112
    %s116 = sphi 0, %s115
    %s132 = sphi 0, %s116
    %s138 = sphi 0, %s140
    %s141 = sphi 0, %s138
    %s142 = sphi 0, %s141
    %s158 = sphi 0, %s142
    %s164 = sphi 0, %s166
    %s167 = sphi 0, %s164
    %s168 = sphi 0, %s167
    %s184 = sphi 0, %s168
  $region4: #{inconv_forward.4} parent=0 // loop_header_branch
    %16 = sbr.rel (%p14) target = $region8
  $region5: #{inconv_forward.4} parent=0 // loop_body
    %s18 = ssub.s32 %s13, 1
    %s19 = ssub.s32 %s13, 2
    %s20 = sadd.s32 %s13, 1
    %s21 = ssub.s32 %s13, %s20
    %p22 = scmp.eq.s32.totalorder %s21, 0
    %s24 = sadd.s32 %s23, 1
    %s25 = scalar_select %p22, %s23, %s24
    %p28 = pneg %p22
    %p29 = scmp.eq.s32.totalorder %s13, 1
    %p30 = por %p28, %p29
    %p31 = scmp.ne.s32.totalorder %s23, %s26
    %p32 = scmp.eq.s32.totalorder %s13, 0
    %p33 = por %p31, %p32
    %p34 = scmp.ne.s32.totalorder %s23, %s26
    %p35 = scmp.eq.s32.totalorder %s18, 1
    %p36 = por %p34, %p35
    %p37 = scmp.ne.s32.totalorder %s26, %s27
    %p38 = scmp.eq.s32.totalorder %s18, 0
    %p39 = por %p37, %p38
    %p40 = scmp.ne.s32.totalorder %s26, %s27
    %p41 = scmp.eq.s32.totalorder %s19, 1
    %p42 = por %p40, %p41
    %p44 = scmp.ne.s32.totalorder %s27, %s43
    %p45 = scmp.eq.s32.totalorder %s19, 0
    %p46 = por %p44, %p45
    %s48 = sadd.s32 %s47, 1
    %p51 = scmp.eq.s32.totalorder %s13, 1
    %p52 = scmp.ne.s32.totalorder %s47, %s49
    %p53 = scmp.eq.s32.totalorder %s13, 0
    %p54 = por %p52, %p53
    %p55 = scmp.ne.s32.totalorder %s47, %s49
    %p56 = scmp.eq.s32.totalorder %s18, 1
    %p57 = por %p55, %p56
    %p58 = scmp.ne.s32.totalorder %s49, %s50
    %p59 = scmp.eq.s32.totalorder %s18, 0
    %p60 = por %p58, %p59
    %p61 = scmp.ne.s32.totalorder %s49, %s50
    %p62 = scmp.eq.s32.totalorder %s19, 1
    %p63 = por %p61, %p62
    %p65 = scmp.ne.s32.totalorder %s50, %s64
    %p66 = scmp.eq.s32.totalorder %s19, 0
    %p67 = por %p65, %p66
    %s69 = sadd.s32 %s68, 1
    %p72 = scmp.eq.s32.totalorder %s13, 1
    %p73 = scmp.ne.s32.totalorder %s68, %s70
    %p74 = scmp.eq.s32.totalorder %s13, 0
    %p75 = por %p73, %p74
    %p76 = scmp.ne.s32.totalorder %s68, %s70
    %p77 = scmp.eq.s32.totalorder %s18, 1
    %p78 = por %p76, %p77
    %p79 = scmp.ne.s32.totalorder %s70, %s71
    %p80 = scmp.eq.s32.totalorder %s18, 0
    %p81 = por %p79, %p80
    %p82 = scmp.ne.s32.totalorder %s70, %s71
    %p83 = scmp.eq.s32.totalorder %s19, 1
    %p84 = por %p82, %p83
    %p86 = scmp.ne.s32.totalorder %s71, %s85
    %p87 = scmp.eq.s32.totalorder %s19, 0
    %p88 = por %p86, %p87
    %s90 = sadd.s32 %s89, 1
    %p93 = scmp.eq.s32.totalorder %s13, 1
    %p94 = scmp.ne.s32.totalorder %s89, %s91
    %p95 = scmp.eq.s32.totalorder %s13, 0
    %p96 = por %p94, %p95
    %p97 = scmp.ne.s32.totalorder %s89, %s91
    %p98 = scmp.eq.s32.totalorder %s18, 1
    %p99 = por %p97, %p98
    %p100 = scmp.ne.s32.totalorder %s91, %s92
    %p101 = scmp.eq.s32.totalorder %s18, 0
    %p102 = por %p100, %p101
    %p103 = scmp.ne.s32.totalorder %s91, %s92
    %p104 = scmp.eq.s32.totalorder %s19, 1
    %p105 = por %p103, %p104
    %p107 = scmp.ne.s32.totalorder %s92, %s106
    %p108 = scmp.eq.s32.totalorder %s19, 0
    %p109 = por %p107, %p108
    %s110 = ssub.s32 %s13, %s20
    %p111 = scmp.eq.s32.totalorder %s110, 0
    %s113 = sadd.s32 %s112, 1
    %s114 = scalar_select %p111, %s112, %s113
    %p117 = pneg %p111
    %p118 = scmp.eq.s32.totalorder %s13, 1
    %p119 = por %p117, %p118
    %p120 = scmp.ne.s32.totalorder %s112, %s115
    %p121 = scmp.eq.s32.totalorder %s13, 0
    %p122 = por %p120, %p121
    %p123 = scmp.ne.s32.totalorder %s112, %s115
    %p124 = scmp.eq.s32.totalorder %s18, 1
    %p125 = por %p123, %p124
    %p126 = scmp.ne.s32.totalorder %s115, %s116
    %p127 = scmp.eq.s32.totalorder %s18, 0
    %p128 = por %p126, %p127
    %p129 = scmp.ne.s32.totalorder %s115, %s116
    %p130 = scmp.eq.s32.totalorder %s19, 1
    %p131 = por %p129, %p130
    %p133 = scmp.ne.s32.totalorder %s116, %s132
    %p134 = scmp.eq.s32.totalorder %s19, 0
    %p135 = por %p133, %p134
    %s136 = ssub.s32 %s13, %s20
    %p137 = scmp.eq.s32.totalorder %s136, 0
    %s139 = sadd.s32 %s138, 1
    %s140 = scalar_select %p137, %s138, %s139
    %p143 = pneg %p137
    %p144 = scmp.eq.s32.totalorder %s13, 1
    %p145 = por %p143, %p144
    %p146 = scmp.ne.s32.totalorder %s138, %s141
    %p147 = scmp.eq.s32.totalorder %s13, 0
    %p148 = por %p146, %p147
    %p149 = scmp.ne.s32.totalorder %s138, %s141
    %p150 = scmp.eq.s32.totalorder %s18, 1
    %p151 = por %p149, %p150
    %p152 = scmp.ne.s32.totalorder %s141, %s142
    %p153 = scmp.eq.s32.totalorder %s18, 0
    %p154 = por %p152, %p153
    %p155 = scmp.ne.s32.totalorder %s141, %s142
    %p156 = scmp.eq.s32.totalorder %s19, 1
    %p157 = por %p155, %p156
    %p159 = scmp.ne.s32.totalorder %s142, %s158
    %p160 = scmp.eq.s32.totalorder %s19, 0
    %p161 = por %p159, %p160
    %s162 = ssub.s32 %s13, %s20
    %p163 = scmp.eq.s32.totalorder %s162, 0
    %s165 = sadd.s32 %s164, 1
    %s166 = scalar_select %p163, %s164, %s165
    %p169 = pneg %p163
    %p170 = scmp.eq.s32.totalorder %s13, 1
    %p171 = por %p169, %p170
    %p172 = scmp.ne.s32.totalorder %s164, %s167
    %p173 = scmp.eq.s32.totalorder %s13, 0
    %p174 = por %p172, %p173
    %p175 = scmp.ne.s32.totalorder %s164, %s167
    %p176 = scmp.eq.s32.totalorder %s18, 1
    %p177 = por %p175, %p176
    %p178 = scmp.ne.s32.totalorder %s167, %s168
    %p179 = scmp.eq.s32.totalorder %s18, 0
    %p180 = por %p178, %p179
    %p181 = scmp.ne.s32.totalorder %s167, %s168
    %p182 = scmp.eq.s32.totalorder %s19, 1
    %p183 = por %p181, %p182
    %p185 = scmp.ne.s32.totalorder %s168, %s184
    %p186 = scmp.eq.s32.totalorder %s19, 0
    %p187 = por %p185, %p186
    %p188 = scmp.le.s32.totalorder 1, %s13
    %p189 = scmp.lt.s32.totalorder %s13, 3
    %p190 = pnand %p188, %p189
    %p191 = pneg %p190
    // Predicated region
    $region9: #{inconv_forward.4} parent=5 // pred_check
      _
    $region10: #{inconv_forward.4} parent=5 // pred_check_branch
      %193 = sbr.rel (%p190) target = $region12
    $region11: #{inconv_forward.4} parent=5 // pred_region
      %s194 = ssub.s32 %s13, 1
      // Predicated region
      $region13: #{inconv_forward.4} parent=11 // pred_check
        %p195 = pneg %p60
      $region14: #{inconv_forward.4} parent=11 // pred_check_branch
        %197 = sbr.rel (%p195) target = $region16
      $region15: #{inconv_forward.4} parent=11 // pred_region
        _
      $region16: #{inconv_forward.4} parent=11 // pred_fallthru
        _
      // Predicated region
      $region17: #{inconv_forward.4} parent=11 // pred_check
        %p198 = pneg %p81
      $region18: #{inconv_forward.4} parent=11 // pred_check_branch
        %200 = sbr.rel (%p198) target = $region20
      $region19: #{inconv_forward.4} parent=11 // pred_region
        _
      $region20: #{inconv_forward.4} parent=11 // pred_fallthru
        _
      // Predicated region
      $region21: #{inconv_forward.4} parent=11 // pred_check
        %p201 = pneg %p102
      $region22: #{inconv_forward.4} parent=11 // pred_check_branch
        %203 = sbr.rel (%p201) target = $region24
      $region23: #{inconv_forward.4} parent=11 // pred_region
        _
      $region24: #{inconv_forward.4} parent=11 // pred_fallthru
        _
    $region12: #{inconv_forward.4} parent=5 // pred_fallthru
      _
    %p204 = scmp.lt.s32.totalorder %s13, 2
    // Predicated region
    $region25: #{inconv_forward.4} parent=5 // pred_check
      %p205 = pneg %p204
    $region26: #{inconv_forward.4} parent=5 // pred_check_branch
      %207 = sbr.rel (%p205) target = $region28
    $region27: #{inconv_forward.4} parent=5 // pred_region
      // Predicated region
      $region29: #{inconv_forward.4} parent=27 // pred_check
        %p208 = pneg %p33
      $region30: #{inconv_forward.4} parent=27 // pred_check_branch
        %210 = sbr.rel (%p208) target = $region32
      $region31: #{inconv_forward.4} parent=27 // pred_region
        %p211 = scmp.lt.s32.totalorder %s13, 1
        %s212 = scalar_select %p211, %s13, 1
        %s213 = smul.addr %s212, 32
        %s214 = smul.addr %s213, 8
        %s215 = scalar_lea.vmem %s0, %s214
      $region32: #{inconv_forward.4} parent=27 // pred_fallthru
        _
    $region28: #{inconv_forward.4} parent=5 // pred_fallthru
      _
    %p216 = scmp.le.s32.totalorder 1, %s13
    %p217 = scmp.lt.s32.totalorder %s13, 3
    %p218 = pnand %p216, %p217
    %p219 = pneg %p218
    // Predicated region
    $region33: #{inconv_forward.4} parent=5 // pred_check
      _
    $region34: #{inconv_forward.4} parent=5 // pred_check_branch
      %221 = sbr.rel (%p218) target = $region36
    $region35: #{inconv_forward.4} parent=5 // pred_region
      %s222 = ssub.s32 %s13, 1
      %p223 = scmp.lt.s32.totalorder %s18, 1
      %s224 = scalar_select %p223, %s18, 1
      %s225 = smul.addr %s224, 32
      %s226 = smul.addr %s225, 8
      %s227 = scalar_lea.vmem %s0, %s226
      %p228 = pneg %p39
      %p229 = pneg %p36
      %p230 = pneg %p60
      %p231 = pneg %p57
      %p232 = pneg %p81
      %p233 = pneg %p78
      %p234 = pneg %p102
      %p235 = pneg %p99
      %p236 = pneg %p128
      %p237 = pneg %p125
      %p238 = scmp.lt.s32.totalorder %s18, 1
      %s239 = scalar_select %p238, %s18, 1
      %s240 = smul.addr %s239, 32
      %s241 = smul.addr %s240, 8
      %s242 = scalar_lea.vmem %s4, %s241
      %p243 = pneg %p154
      %p244 = pneg %p151
      %p245 = scmp.lt.s32.totalorder %s18, 1
      %s246 = scalar_select %p245, %s18, 1
      %s247 = scalar_lea.vmem %s5, %s246
      %p248 = pneg %p180
      %p249 = pneg %p177
      %p250 = scmp.lt.s32.totalorder %s18, 1
      %s251 = scalar_select %p250, %s18, 1
      %s252 = scalar_lea.vmem %s6, %s251
      %p253 = scmp.lt.s32.totalorder %s18, 1
      %s254 = scalar_select %p253, %s18, 1
      %s255 = smul.addr %s254, 32
      %s256 = smul.addr %s255, 8
      %s257 = scalar_lea.vmem %s0, %s256
      %p258 = scmp.lt.s32.totalorder %s18, 1
      %s259 = scalar_select %p258, %s18, 1
      %s260 = smul.addr %s259, 32
      %s261 = smul.addr %s260, 8
      %s262 = scalar_lea.vmem %s4, %s261
      %p263 = scmp.lt.s32.totalorder %s18, 1
      %s264 = scalar_select %p263, %s18, 1
      %s265 = scalar_lea.vmem %s5, %s264
      %p266 = scmp.lt.s32.totalorder %s18, 1
      %s267 = scalar_select %p266, %s18, 1
      %s268 = scalar_lea.vmem %s6, %s267
      %v269 = vld [vmem:[%s257] sm:$0xff]
      %v270 = vld [vmem:[%s257 + $0x8] sm:$0xff]
      %v271 = vld [vmem:[%s257 + $0x10] sm:$0xff]
      %v272 = vld [vmem:[%s257 + $0x18] sm:$0xff]
      %v273 = vld [vmem:[%s257 + $0x20] sm:$0xff]
      %v274 = vld [vmem:[%s257 + $0x28] sm:$0xff]
      %v275 = vld [vmem:[%s257 + $0x30] sm:$0xff]
      %v276 = vld [vmem:[%s257 + $0x38] sm:$0xff]
      %v277 = vld [vmem:[%s257 + $0x40] sm:$0xff]
      %v278 = vld [vmem:[%s257 + $0x48] sm:$0xff]
      %v279 = vld [vmem:[%s257 + $0x50] sm:$0xff]
      %v280 = vld [vmem:[%s257 + $0x58] sm:$0xff]
      %v281 = vld [vmem:[%s257 + $0x60] sm:$0xff]
      %v282 = vld [vmem:[%s257 + $0x68] sm:$0xff]
      %v283 = vld [vmem:[%s257 + $0x70] sm:$0xff]
      %v284 = vld [vmem:[%s257 + $0x78] sm:$0xff]
      %v285 = vld [vmem:[%s257 + $0x80] sm:$0xff]
      %v286 = vld [vmem:[%s257 + $0x88] sm:$0xff]
      %v287 = vld [vmem:[%s257 + $0x90] sm:$0xff]
      %v288 = vld [vmem:[%s257 + $0x98] sm:$0xff]
      %v289 = vld [vmem:[%s257 + $0xa0] sm:$0xff]
      %v290 = vld [vmem:[%s257 + $0xa8] sm:$0xff]
      %v291 = vld [vmem:[%s257 + $0xb0] sm:$0xff]
      %v292 = vld [vmem:[%s257 + $0xb8] sm:$0xff]
      %v293 = vld [vmem:[%s257 + $0xc0] sm:$0xff]
      %v294 = vld [vmem:[%s257 + $0xc8] sm:$0xff]
      %v295 = vld [vmem:[%s257 + $0xd0] sm:$0xff]
      %v296 = vld [vmem:[%s257 + $0xd8] sm:$0xff]
      %v297 = vld [vmem:[%s257 + $0xe0] sm:$0xff]
      %v298 = vld [vmem:[%s257 + $0xe8] sm:$0xff]
      %v299 = vld [vmem:[%s257 + $0xf0] sm:$0xff]
      %v300 = vld [vmem:[%s257 + $0xf8] sm:$0xff]
      %v301 = vld [vmem:[%s2] sm:$0x1]
      %v303 = vperm.slane %v301, 0
      %v305 = vmul.f32 %v269, %v303
      %v306 = vmul.f32 %v270, %v303
      %v307 = vmul.f32 %v271, %v303
      %v308 = vmul.f32 %v272, %v303
      %v309 = vmul.f32 %v273, %v303
      %v310 = vmul.f32 %v274, %v303
      %v311 = vmul.f32 %v275, %v303
      %v312 = vmul.f32 %v276, %v303
      %v313 = vmul.f32 %v277, %v303
      %v314 = vmul.f32 %v278, %v303
      %v315 = vmul.f32 %v279, %v303
      %v316 = vmul.f32 %v280, %v303
      %v317 = vmul.f32 %v281, %v303
      %v318 = vmul.f32 %v282, %v303
      %v319 = vmul.f32 %v283, %v303
      %v320 = vmul.f32 %v284, %v303
      %v321 = vmul.f32 %v285, %v303
      %v322 = vmul.f32 %v286, %v303
      %v323 = vmul.f32 %v287, %v303
      %v324 = vmul.f32 %v288, %v303
      %v325 = vmul.f32 %v289, %v303
      %v326 = vmul.f32 %v290, %v303
      %v327 = vmul.f32 %v291, %v303
      %v328 = vmul.f32 %v292, %v303
      %v329 = vmul.f32 %v293, %v303
      %v330 = vmul.f32 %v294, %v303
      %v331 = vmul.f32 %v295, %v303
      %v332 = vmul.f32 %v296, %v303
      %v333 = vmul.f32 %v297, %v303
      %v334 = vmul.f32 %v298, %v303
      %v335 = vmul.f32 %v299, %v303
      %v336 = vmul.f32 %v300, %v303
      %v337 = vld [vmem:[%s3] sm:$0x1]
      %v339 = vperm.slane %v337, 0
      %v341 = vadd.f32 %v305, %v339
      %v342 = vadd.f32 %v306, %v339
      %v343 = vadd.f32 %v307, %v339
      %v344 = vadd.f32 %v308, %v339
      %v345 = vadd.f32 %v309, %v339
      %v346 = vadd.f32 %v310, %v339
      %v347 = vadd.f32 %v311, %v339
      %v348 = vadd.f32 %v312, %v339
      %v349 = vadd.f32 %v313, %v339
      %v350 = vadd.f32 %v314, %v339
      %v351 = vadd.f32 %v315, %v339
      %v352 = vadd.f32 %v316, %v339
      %v353 = vadd.f32 %v317, %v339
      %v354 = vadd.f32 %v318, %v339
      %v355 = vadd.f32 %v319, %v339
      %v356 = vadd.f32 %v320, %v339
      %v357 = vadd.f32 %v321, %v339
      %v358 = vadd.f32 %v322, %v339
      %v359 = vadd.f32 %v323, %v339
      %v360 = vadd.f32 %v324, %v339
      %v361 = vadd.f32 %v325, %v339
      %v362 = vadd.f32 %v326, %v339
      %v363 = vadd.f32 %v327, %v339
      %v364 = vadd.f32 %v328, %v339
      %v365 = vadd.f32 %v329, %v339
      %v366 = vadd.f32 %v330, %v339
      %v367 = vadd.f32 %v331, %v339
      %v368 = vadd.f32 %v332, %v339
      %v369 = vadd.f32 %v333, %v339
      %v370 = vadd.f32 %v334, %v339
      %v371 = vadd.f32 %v335, %v339
      %v372 = vadd.f32 %v336, %v339
      %v373 = vmax.f32 %v341, 0.0
      %v374 = vmax.f32 %v342, 0.0
      %v375 = vmax.f32 %v343, 0.0
      %v376 = vmax.f32 %v344, 0.0
      %v377 = vmax.f32 %v345, 0.0
      %v378 = vmax.f32 %v346, 0.0
      %v379 = vmax.f32 %v347, 0.0
      %v380 = vmax.f32 %v348, 0.0
      %v381 = vmax.f32 %v349, 0.0
      %v382 = vmax.f32 %v350, 0.0
      %v383 = vmax.f32 %v351, 0.0
      %v384 = vmax.f32 %v352, 0.0
      %v385 = vmax.f32 %v353, 0.0
      %v386 = vmax.f32 %v354, 0.0
      %v387 = vmax.f32 %v355, 0.0
      %v388 = vmax.f32 %v356, 0.0
      %v389 = vmax.f32 %v357, 0.0
      %v390 = vmax.f32 %v358, 0.0
      %v391 = vmax.f32 %v359, 0.0
      %v392 = vmax.f32 %v360, 0.0
      %v393 = vmax.f32 %v361, 0.0
      %v394 = vmax.f32 %v362, 0.0
      %v395 = vmax.f32 %v363, 0.0
      %v396 = vmax.f32 %v364, 0.0
      %v397 = vmax.f32 %v365, 0.0
      %v398 = vmax.f32 %v366, 0.0
      %v399 = vmax.f32 %v367, 0.0
      %v400 = vmax.f32 %v368, 0.0
      %v401 = vmax.f32 %v369, 0.0
      %v402 = vmax.f32 %v370, 0.0
      %v403 = vmax.f32 %v371, 0.0
      %v404 = vmax.f32 %v372, 0.0
      %405 = vst [vmem:[#allocation2] sm:$0xff] 0.0
      %406 = vst [vmem:[#allocation2 + $0x8] sm:$0xff] 0.0
      %407 = vst [vmem:[#allocation2 + $0x10] sm:$0x3] 0.0
      %408 = vst [vmem:[#allocation2 + $0x18] sm:$0xff] 0.0
      %409 = vst [vmem:[#allocation2 + $0x20] sm:$0xff] 0.0
      %410 = vst [vmem:[#allocation2 + $0x28] sm:$0x3] 0.0
      %411 = vst [vmem:[#allocation2 + $0x30] sm:$0xff] 0.0
      %412 = vst [vmem:[#allocation2 + $0x38] sm:$0xff] 0.0
      %413 = vst [vmem:[#allocation2 + $0x40] sm:$0x3] 0.0
      %414 = vst [vmem:[#allocation2 + $0x48] sm:$0xff] 0.0
      %415 = vst [vmem:[#allocation2 + $0x50] sm:$0xff] 0.0
      %416 = vst [vmem:[#allocation2 + $0x58] sm:$0x3] 0.0
      %417 = vst [vmem:[#allocation2 + $0x60] sm:$0xff] 0.0
      %418 = vst [vmem:[#allocation2 + $0x68] sm:$0xff] 0.0
      %419 = vst [vmem:[#allocation2 + $0x70] sm:$0x3] 0.0
      %420 = vst [vmem:[#allocation2 + $0x78] sm:$0xff] 0.0
      %421 = vst [vmem:[#allocation2 + $0x80] sm:$0xff] 0.0
      %422 = vst [vmem:[#allocation2 + $0x88] sm:$0x3] 0.0
      %423 = vst [vmem:[#allocation2 + $0x90] sm:$0xff] 0.0
      %424 = vst [vmem:[#allocation2 + $0x98] sm:$0xff] 0.0
      %425 = vst [vmem:[#allocation2 + $0xa0] sm:$0x3] 0.0
      %426 = vst [vmem:[#allocation2 + $0xa8] sm:$0xff] 0.0
      %427 = vst [vmem:[#allocation2 + $0xb0] sm:$0xff] 0.0
      %428 = vst [vmem:[#allocation2 + $0xb8] sm:$0x3] 0.0
      %429 = vst [vmem:[#allocation2 + $0xc0] sm:$0xff] 0.0
      %430 = vst [vmem:[#allocation2 + $0xc8] sm:$0xff] 0.0
      %431 = vst [vmem:[#allocation2 + $0xd0] sm:$0x3] 0.0
      %432 = vst [vmem:[#allocation2 + $0xd8] sm:$0xff] 0.0
      %433 = vst [vmem:[#allocation2 + $0xe0] sm:$0xff] 0.0
      %434 = vst [vmem:[#allocation2 + $0xe8] sm:$0x3] 0.0
      %435 = vst [vmem:[#allocation2 + $0xf0] sm:$0xff] 0.0
      %436 = vst [vmem:[#allocation2 + $0xf8] sm:$0xff] 0.0
      %437 = vst [vmem:[#allocation2 + $0x100] sm:$0x3] 0.0
      %438 = vst [vmem:[#allocation2 + $0x108] sm:$0xff] 0.0
      %439 = vst [vmem:[#allocation2 + $0x110] sm:$0xff] 0.0
      %440 = vst [vmem:[#allocation2 + $0x118] sm:$0x3] 0.0
      %441 = vst [vmem:[#allocation2 + $0x120] sm:$0xff] 0.0
      %442 = vst [vmem:[#allocation2 + $0x128] sm:$0xff] 0.0
      %443 = vst [vmem:[#allocation2 + $0x130] sm:$0x3] 0.0
      %444 = vst [vmem:[#allocation2 + $0x138] sm:$0xff] 0.0
      %445 = vst [vmem:[#allocation2 + $0x140] sm:$0xff] 0.0
      %446 = vst [vmem:[#allocation2 + $0x148] sm:$0x3] 0.0
      %447 = vst [vmem:[#allocation2 + $0x150] sm:$0xff] 0.0
      %448 = vst [vmem:[#allocation2 + $0x158] sm:$0xff] 0.0
      %449 = vst [vmem:[#allocation2 + $0x160] sm:$0x3] 0.0
      %450 = vst [vmem:[#allocation2 + $0x168] sm:$0xff] 0.0
      %451 = vst [vmem:[#allocation2 + $0x170] sm:$0xff] 0.0
      %452 = vst [vmem:[#allocation2 + $0x178] sm:$0x3] 0.0
      %453 = vst [vmem:[#allocation2 + $0x180] sm:$0xff] 0.0
      %454 = vst [vmem:[#allocation2 + $0x188] sm:$0xff] 0.0
      %455 = vst [vmem:[#allocation2 + $0x190] sm:$0x3] 0.0
      %456 = vst [vmem:[#allocation2 + $0x198] sm:$0xff] 0.0
      %457 = vst [vmem:[#allocation2 + $0x1a0] sm:$0xff] 0.0
      %458 = vst [vmem:[#allocation2 + $0x1a8] sm:$0x3] 0.0
      %s459 = scalar_lea.vmem [#allocation2], 24
      %460 = vst [vmem:[%s459 + $0x1] sm:$0xff] %v373
      %461 = vst [vmem:[%s459 + $0x9] sm:$0xff] %v374
      %462 = vst [vmem:[%s459 + $0x19] sm:$0xff] %v375
      %463 = vst [vmem:[%s459 + $0x21] sm:$0xff] %v376
      %464 = vst [vmem:[%s459 + $0x31] sm:$0xff] %v377
      %465 = vst [vmem:[%s459 + $0x39] sm:$0xff] %v378
      %466 = vst [vmem:[%s459 + $0x49] sm:$0xff] %v379
      %467 = vst [vmem:[%s459 + $0x51] sm:$0xff] %v380
      %468 = vst [vmem:[%s459 + $0x61] sm:$0xff] %v381
      %469 = vst [vmem:[%s459 + $0x69] sm:$0xff] %v382
      %470 = vst [vmem:[%s459 + $0x79] sm:$0xff] %v383
      %471 = vst [vmem:[%s459 + $0x81] sm:$0xff] %v384
      %472 = vst [vmem:[%s459 + $0x91] sm:$0xff] %v385
      %473 = vst [vmem:[%s459 + $0x99] sm:$0xff] %v386
      %474 = vst [vmem:[%s459 + $0xa9] sm:$0xff] %v387
      %475 = vst [vmem:[%s459 + $0xb1] sm:$0xff] %v388
      %476 = vst [vmem:[%s459 + $0xc1] sm:$0xff] %v389
      %477 = vst [vmem:[%s459 + $0xc9] sm:$0xff] %v390
      %478 = vst [vmem:[%s459 + $0xd9] sm:$0xff] %v391
      %479 = vst [vmem:[%s459 + $0xe1] sm:$0xff] %v392
      %480 = vst [vmem:[%s459 + $0xf1] sm:$0xff] %v393
      %481 = vst [vmem:[%s459 + $0xf9] sm:$0xff] %v394
      %482 = vst [vmem:[%s459 + $0x109] sm:$0xff] %v395
      %483 = vst [vmem:[%s459 + $0x111] sm:$0xff] %v396
      %484 = vst [vmem:[%s459 + $0x121] sm:$0xff] %v397
      %485 = vst [vmem:[%s459 + $0x129] sm:$0xff] %v398
      %486 = vst [vmem:[%s459 + $0x139] sm:$0xff] %v399
      %487 = vst [vmem:[%s459 + $0x141] sm:$0xff] %v400
      %488 = vst [vmem:[%s459 + $0x151] sm:$0xff] %v401
      %489 = vst [vmem:[%s459 + $0x159] sm:$0xff] %v402
      %490 = vst [vmem:[%s459 + $0x169] sm:$0xff] %v403
      %491 = vst [vmem:[%s459 + $0x171] sm:$0xff] %v404
      %492 = vst [vmem:[#allocation3] sm:$0xff] 0.0
      %493 = vst [vmem:[#allocation3 + $0x8] sm:$0xff] 0.0
      %494 = vst [vmem:[#allocation3 + $0x10] sm:$0xff] 0.0
      %495 = vst [vmem:[#allocation3 + $0x18] sm:$0xff] 0.0
      %496 = vst [vmem:[#allocation3 + $0x20] sm:$0xff] 0.0
      %497 = vst [vmem:[#allocation3 + $0x28] sm:$0xff] 0.0
      %498 = vst [vmem:[#allocation3 + $0x30] sm:$0xff] 0.0
      %499 = vst [vmem:[#allocation3 + $0x38] sm:$0xff] 0.0
      %500 = vst [vmem:[#allocation3 + $0x40] sm:$0xff] 0.0
      %501 = vst [vmem:[#allocation3 + $0x48] sm:$0xff] 0.0
      %502 = vst [vmem:[#allocation3 + $0x50] sm:$0xff] 0.0
      %503 = vst [vmem:[#allocation3 + $0x58] sm:$0xff] 0.0
      %504 = vst [vmem:[#allocation3 + $0x60] sm:$0xff] 0.0
      %505 = vst [vmem:[#allocation3 + $0x68] sm:$0xff] 0.0
      %506 = vst [vmem:[#allocation3 + $0x70] sm:$0xff] 0.0
      %507 = vst [vmem:[#allocation3 + $0x78] sm:$0xff] 0.0
      %508 = vst [vmem:[#allocation3 + $0x80] sm:$0xff] 0.0
      %509 = vst [vmem:[#allocation3 + $0x88] sm:$0xff] 0.0
      %510 = vst [vmem:[#allocation3 + $0x90] sm:$0xff] 0.0
      %511 = vst [vmem:[#allocation3 + $0x98] sm:$0xff] 0.0
      %512 = vst [vmem:[#allocation3 + $0xa0] sm:$0xff] 0.0
      %513 = vst [vmem:[#allocation3 + $0xa8] sm:$0xff] 0.0
      %514 = vst [vmem:[#allocation3 + $0xb0] sm:$0xff] 0.0
      %515 = vst [vmem:[#allocation3 + $0xb8] sm:$0xff] 0.0
      %516 = vst [vmem:[#allocation3 + $0xc0] sm:$0xff] 0.0
      %517 = vst [vmem:[#allocation3 + $0xc8] sm:$0xff] 0.0
      %518 = vst [vmem:[#allocation3 + $0xd0] sm:$0xff] 0.0
      %519 = vst [vmem:[#allocation3 + $0xd8] sm:$0xff] 0.0
      %520 = vst [vmem:[#allocation3 + $0xe0] sm:$0xff] 0.0
      %521 = vst [vmem:[#allocation3 + $0xe8] sm:$0xff] 0.0
      %522 = vst [vmem:[#allocation3 + $0xf0] sm:$0xff] 0.0
      %523 = vst [vmem:[#allocation3 + $0xf8] sm:$0xff] 0.0
      %v524 = vld [vmem:[#allocation2] sm:$0xff]
      %v525 = vld [vmem:[#allocation2 + $0x8] sm:$0xff]
      %v526 = vld [vmem:[#allocation2 + $0x18] sm:$0xff]
      %v527 = vld [vmem:[#allocation2 + $0x20] sm:$0xff]
      %v528 = vld [vmem:[#allocation2 + $0x30] sm:$0xff]
      %v529 = vld [vmem:[#allocation2 + $0x38] sm:$0xff]
      %v530 = vld [vmem:[#allocation2 + $0x48] sm:$0xff]
      %v531 = vld [vmem:[#allocation2 + $0x50] sm:$0xff]
      %v532 = vld [vmem:[#allocation2 + $0x60] sm:$0xff]
      %v533 = vld [vmem:[#allocation2 + $0x68] sm:$0xff]
      %v534 = vld [vmem:[#allocation2 + $0x78] sm:$0xff]
      %v535 = vld [vmem:[#allocation2 + $0x80] sm:$0xff]
      %v536 = vld [vmem:[#allocation2 + $0x90] sm:$0xff]
      %v537 = vld [vmem:[#allocation2 + $0x98] sm:$0xff]
      %v538 = vld [vmem:[#allocation2 + $0xa8] sm:$0xff]
      %v539 = vld [vmem:[#allocation2 + $0xb0] sm:$0xff]
      %v540 = vld [vmem:[#allocation2 + $0xc0] sm:$0xff]
      %v541 = vld [vmem:[#allocation2 + $0xc8] sm:$0xff]
      %v542 = vld [vmem:[#allocation2 + $0xd8] sm:$0xff]
      %v543 = vld [vmem:[#allocation2 + $0xe0] sm:$0xff]
      %v544 = vld [vmem:[#allocation2 + $0xf0] sm:$0xff]
      %v545 = vld [vmem:[#allocation2 + $0xf8] sm:$0xff]
      %v546 = vld [vmem:[#allocation2 + $0x108] sm:$0xff]
      %v547 = vld [vmem:[#allocation2 + $0x110] sm:$0xff]
      %v548 = vld [vmem:[#allocation2 + $0x120] sm:$0xff]
      %v549 = vld [vmem:[#allocation2 + $0x128] sm:$0xff]
      %v550 = vld [vmem:[#allocation2 + $0x138] sm:$0xff]
      %v551 = vld [vmem:[#allocation2 + $0x140] sm:$0xff]
      %v552 = vld [vmem:[#allocation2 + $0x150] sm:$0xff]
      %v553 = vld [vmem:[#allocation2 + $0x158] sm:$0xff]
      %v554 = vld [vmem:[#allocation2 + $0x168] sm:$0xff]
      %v555 = vld [vmem:[#allocation2 + $0x170] sm:$0xff]
      %v556 = vld [vmem:[#allocation3] sm:$0xff]
      %v557 = vld [vmem:[#allocation3 + $0x8] sm:$0xff]
      %v558 = vld [vmem:[#allocation3 + $0x10] sm:$0xff]
      %v559 = vld [vmem:[#allocation3 + $0x18] sm:$0xff]
      %v560 = vld [vmem:[#allocation3 + $0x20] sm:$0xff]
      %v561 = vld [vmem:[#allocation3 + $0x28] sm:$0xff]
      %v562 = vld [vmem:[#allocation3 + $0x30] sm:$0xff]
      %v563 = vld [vmem:[#allocation3 + $0x38] sm:$0xff]
      %v564 = vld [vmem:[#allocation3 + $0x40] sm:$0xff]
      %v565 = vld [vmem:[#allocation3 + $0x48] sm:$0xff]
      %v566 = vld [vmem:[#allocation3 + $0x50] sm:$0xff]
      %v567 = vld [vmem:[#allocation3 + $0x58] sm:$0xff]
      %v568 = vld [vmem:[#allocation3 + $0x60] sm:$0xff]
      %v569 = vld [vmem:[#allocation3 + $0x68] sm:$0xff]
      %v570 = vld [vmem:[#allocation3 + $0x70] sm:$0xff]
      %v571 = vld [vmem:[#allocation3 + $0x78] sm:$0xff]
      %v572 = vld [vmem:[#allocation3 + $0x80] sm:$0xff]
      %v573 = vld [vmem:[#allocation3 + $0x88] sm:$0xff]
      %v574 = vld [vmem:[#allocation3 + $0x90] sm:$0xff]
      %v575 = vld [vmem:[#allocation3 + $0x98] sm:$0xff]
      %v576 = vld [vmem:[#allocation3 + $0xa0] sm:$0xff]
      %v577 = vld [vmem:[#allocation3 + $0xa8] sm:$0xff]
      %v578 = vld [vmem:[#allocation3 + $0xb0] sm:$0xff]
      %v579 = vld [vmem:[#allocation3 + $0xb8] sm:$0xff]
      %v580 = vld [vmem:[#allocation3 + $0xc0] sm:$0xff]
      %v581 = vld [vmem:[#allocation3 + $0xc8] sm:$0xff]
      %v582 = vld [vmem:[#allocation3 + $0xd0] sm:$0xff]
      %v583 = vld [vmem:[#allocation3 + $0xd8] sm:$0xff]
      %v584 = vld [vmem:[#allocation3 + $0xe0] sm:$0xff]
      %v585 = vld [vmem:[#allocation3 + $0xe8] sm:$0xff]
      %v586 = vld [vmem:[#allocation3 + $0xf0] sm:$0xff]
      %v587 = vld [vmem:[#allocation3 + $0xf8] sm:$0xff]
      %v588 = vld [vmem:[%s1] sm:$0xff]
      %v589 = vld [vmem:[%s1 + $0x8] sm:$0xff]
      %v590 = vld [vmem:[%s1 + $0x10] sm:$0xff]
      %v591 = vld [vmem:[%s1 + $0x18] sm:$0xff]
      %v592 = vld [vmem:[%s1 + $0x20] sm:$0xff]
      %v593 = vld [vmem:[%s1 + $0x28] sm:$0xff]
      %v594 = vld [vmem:[%s1 + $0x30] sm:$0xff]
      %v595 = vld [vmem:[%s1 + $0x38] sm:$0xff]
      %v596 = vld [vmem:[%s1 + $0x40] sm:$0xff]
      %v597 = vld [vmem:[%s1 + $0x48] sm:$0xff]
      %v598 = vld [vmem:[%s1 + $0x50] sm:$0xff]
      %v599 = vld [vmem:[%s1 + $0x58] sm:$0xff]
      %v600 = vld [vmem:[%s1 + $0x60] sm:$0xff]
      %v601 = vld [vmem:[%s1 + $0x68] sm:$0xff]
      %v602 = vld [vmem:[%s1 + $0x70] sm:$0xff]
      %v603 = vld [vmem:[%s1 + $0x78] sm:$0xff]
      %604 = vmatpush.msra.mxu0 %v603
      %605 = vmatpush.msra.mxu0 %v602
      %606 = vmatpush.msra.mxu0 %v601
      %607 = vmatpush.msra.mxu0 %v600
      %608 = vmatpush.msra.mxu0 %v599
      %609 = vmatpush.msra.mxu0 %v598
      %610 = vmatpush.msra.mxu0 %v597
      %611 = vmatpush.msra.mxu0 %v596
      %612 = vmatpush.msra.mxu0 %v595
      %613 = vmatpush.msra.mxu0 %v594
      %614 = vmatpush.msra.mxu0 %v593
      %615 = vmatpush.msra.mxu0 %v592
      %616 = vmatpush.msra.mxu0 %v591
      %617 = vmatpush.msra.mxu0 %v590
      %618 = vmatpush.msra.mxu0 %v589
      %619 = vmatpush.msra.mxu0 %v588
      %620 = vmatmul.f32.gmra.mxu0 %v524
      %v621 = vpop.f32.mrf.mxu0
      %v622 = vadd.f32 0.0, %v621
      %623 = vmatmul.f32.gmra.mxu0 %v525
      %v624 = vpop.f32.mrf.mxu0
      %v625 = vadd.f32 0.0, %v624
      %626 = vmatmul.f32.gmra.mxu0 %v526
      %v627 = vpop.f32.mrf.mxu0
      %v628 = vadd.f32 0.0, %v627
      %629 = vmatmul.f32.gmra.mxu0 %v527
      %v630 = vpop.f32.mrf.mxu0
      %v631 = vadd.f32 0.0, %v630
      %632 = vmatmul.f32.gmra.mxu0 %v528
      %v633 = vpop.f32.mrf.mxu0
      %v634 = vadd.f32 0.0, %v633
      %635 = vmatmul.f32.gmra.mxu0 %v529
      %v636 = vpop.f32.mrf.mxu0
      %v637 = vadd.f32 0.0, %v636
      %638 = vmatmul.f32.gmra.mxu0 %v530
      %v639 = vpop.f32.mrf.mxu0
      %v640 = vadd.f32 0.0, %v639
      %641 = vmatmul.f32.gmra.mxu0 %v531
      %v642 = vpop.f32.mrf.mxu0
      %v643 = vadd.f32 0.0, %v642
      %644 = vmatmul.f32.gmra.mxu0 %v532
      %v645 = vpop.f32.mrf.mxu0
      %v646 = vadd.f32 0.0, %v645
      %647 = vmatmul.f32.gmra.mxu0 %v533
      %v648 = vpop.f32.mrf.mxu0
      %v649 = vadd.f32 0.0, %v648
      %650 = vmatmul.f32.gmra.mxu0 %v534
      %v651 = vpop.f32.mrf.mxu0
      %v652 = vadd.f32 0.0, %v651
      %653 = vmatmul.f32.gmra.mxu0 %v535
      %v654 = vpop.f32.mrf.mxu0
      %v655 = vadd.f32 0.0, %v654
      %656 = vmatmul.f32.gmra.mxu0 %v536
      %v657 = vpop.f32.mrf.mxu0
      %v658 = vadd.f32 0.0, %v657
      %659 = vmatmul.f32.gmra.mxu0 %v537
      %v660 = vpop.f32.mrf.mxu0
      %v661 = vadd.f32 0.0, %v660
      %662 = vmatmul.f32.gmra.mxu0 %v538
      %v663 = vpop.f32.mrf.mxu0
      %v664 = vadd.f32 0.0, %v663
      %665 = vmatmul.f32.gmra.mxu0 %v539
      %v666 = vpop.f32.mrf.mxu0
      %v667 = vadd.f32 0.0, %v666
      %668 = vmatmul.f32.gmra.mxu0 %v540
      %v669 = vpop.f32.mrf.mxu0
      %v670 = vadd.f32 0.0, %v669
      %671 = vmatmul.f32.gmra.mxu0 %v541
      %v672 = vpop.f32.mrf.mxu0
      %v673 = vadd.f32 0.0, %v672
      %674 = vmatmul.f32.gmra.mxu0 %v542
      %v675 = vpop.f32.mrf.mxu0
      %v676 = vadd.f32 0.0, %v675
      %677 = vmatmul.f32.gmra.mxu0 %v543
      %v678 = vpop.f32.mrf.mxu0
      %v679 = vadd.f32 0.0, %v678
      %680 = vmatmul.f32.gmra.mxu0 %v544
      %v681 = vpop.f32.mrf.mxu0
      %v682 = vadd.f32 0.0, %v681
      %683 = vmatmul.f32.gmra.mxu0 %v545
      %v684 = vpop.f32.mrf.mxu0
      %v685 = vadd.f32 0.0, %v684
      %686 = vmatmul.f32.gmra.mxu0 %v546
      %v687 = vpop.f32.mrf.mxu0
      %v688 = vadd.f32 0.0, %v687
      %689 = vmatmul.f32.gmra.mxu0 %v547
      %v690 = vpop.f32.mrf.mxu0
      %v691 = vadd.f32 0.0, %v690
      %692 = vmatmul.f32.gmra.mxu0 %v548
      %v693 = vpop.f32.mrf.mxu0
      %v694 = vadd.f32 0.0, %v693
      %695 = vmatmul.f32.gmra.mxu0 %v549
      %v696 = vpop.f32.mrf.mxu0
      %v697 = vadd.f32 0.0, %v696
      %698 = vmatmul.f32.gmra.mxu0 %v550
      %v699 = vpop.f32.mrf.mxu0
      %v700 = vadd.f32 0.0, %v699
      %701 = vmatmul.f32.gmra.mxu0 %v551
      %v702 = vpop.f32.mrf.mxu0
      %v703 = vadd.f32 0.0, %v702
      %704 = vmatmul.f32.gmra.mxu0 %v552
      %v705 = vpop.f32.mrf.mxu0
      %v706 = vadd.f32 0.0, %v705
      %707 = vmatmul.f32.gmra.mxu0 %v553
      %v708 = vpop.f32.mrf.mxu0
      %v709 = vadd.f32 0.0, %v708
      %710 = vmatmul.f32.gmra.mxu0 %v554
      %v711 = vpop.f32.mrf.mxu0
      %v712 = vadd.f32 0.0, %v711
      %713 = vmatmul.f32.gmra.mxu0 %v555
      %v714 = vpop.f32.mrf.mxu0
      %v715 = vadd.f32 0.0, %v714
      %716 = vdwg.mxu0
      %v717 = vadd.f32 %v556, %v622
      %v718 = vadd.f32 %v557, %v625
      %v719 = vadd.f32 %v558, %v628
      %v720 = vadd.f32 %v559, %v631
      %v721 = vadd.f32 %v560, %v634
      %v722 = vadd.f32 %v561, %v637
      %v723 = vadd.f32 %v562, %v640
      %v724 = vadd.f32 %v563, %v643
      %v725 = vadd.f32 %v564, %v646
      %v726 = vadd.f32 %v565, %v649
      %v727 = vadd.f32 %v566, %v652
      %v728 = vadd.f32 %v567, %v655
      %v729 = vadd.f32 %v568, %v658
      %v730 = vadd.f32 %v569, %v661
      %v731 = vadd.f32 %v570, %v664
      %v732 = vadd.f32 %v571, %v667
      %v733 = vadd.f32 %v572, %v670
      %v734 = vadd.f32 %v573, %v673
      %v735 = vadd.f32 %v574, %v676
      %v736 = vadd.f32 %v575, %v679
      %v737 = vadd.f32 %v576, %v682
      %v738 = vadd.f32 %v577, %v685
      %v739 = vadd.f32 %v578, %v688
      %v740 = vadd.f32 %v579, %v691
      %v741 = vadd.f32 %v580, %v694
      %v742 = vadd.f32 %v581, %v697
      %v743 = vadd.f32 %v582, %v700
      %v744 = vadd.f32 %v583, %v703
      %v745 = vadd.f32 %v584, %v706
      %v746 = vadd.f32 %v585, %v709
      %v747 = vadd.f32 %v586, %v712
      %v748 = vadd.f32 %v587, %v715
      %749 = vst [vmem:[#allocation3] sm:$0xff] %v717
      %750 = vst [vmem:[#allocation3 + $0x8] sm:$0xff] %v718
      %751 = vst [vmem:[#allocation3 + $0x10] sm:$0xff] %v719
      %752 = vst [vmem:[#allocation3 + $0x18] sm:$0xff] %v720
      %753 = vst [vmem:[#allocation3 + $0x20] sm:$0xff] %v721
      %754 = vst [vmem:[#allocation3 + $0x28] sm:$0xff] %v722
      %755 = vst [vmem:[#allocation3 + $0x30] sm:$0xff] %v723
      %756 = vst [vmem:[#allocation3 + $0x38] sm:$0xff] %v724
      %757 = vst [vmem:[#allocation3 + $0x40] sm:$0xff] %v725
      %758 = vst [vmem:[#allocation3 + $0x48] sm:$0xff] %v726
      %759 = vst [vmem:[#allocation3 + $0x50] sm:$0xff] %v727
      %760 = vst [vmem:[#allocation3 + $0x58] sm:$0xff] %v728
      %761 = vst [vmem:[#allocation3 + $0x60] sm:$0xff] %v729
      %762 = vst [vmem:[#allocation3 + $0x68] sm:$0xff] %v730
      %763 = vst [vmem:[#allocation3 + $0x70] sm:$0xff] %v731
      %764 = vst [vmem:[#allocation3 + $0x78] sm:$0xff] %v732
      %765 = vst [vmem:[#allocation3 + $0x80] sm:$0xff] %v733
      %766 = vst [vmem:[#allocation3 + $0x88] sm:$0xff] %v734
      %767 = vst [vmem:[#allocation3 + $0x90] sm:$0xff] %v735
      %768 = vst [vmem:[#allocation3 + $0x98] sm:$0xff] %v736
      %769 = vst [vmem:[#allocation3 + $0xa0] sm:$0xff] %v737
      %770 = vst [vmem:[#allocation3 + $0xa8] sm:$0xff] %v738
      %771 = vst [vmem:[#allocation3 + $0xb0] sm:$0xff] %v739
      %772 = vst [vmem:[#allocation3 + $0xb8] sm:$0xff] %v740
      %773 = vst [vmem:[#allocation3 + $0xc0] sm:$0xff] %v741
      %774 = vst [vmem:[#allocation3 + $0xc8] sm:$0xff] %v742
      %775 = vst [vmem:[#allocation3 + $0xd0] sm:$0xff] %v743
      %776 = vst [vmem:[#allocation3 + $0xd8] sm:$0xff] %v744
      %777 = vst [vmem:[#allocation3 + $0xe0] sm:$0xff] %v745
      %778 = vst [vmem:[#allocation3 + $0xe8] sm:$0xff] %v746
      %779 = vst [vmem:[#allocation3 + $0xf0] sm:$0xff] %v747
      %780 = vst [vmem:[#allocation3 + $0xf8] sm:$0xff] %v748
      %v781 = vld [vmem:[#allocation2 + $0x1] sm:$0xff]
      %v782 = vld [vmem:[#allocation2 + $0x9] sm:$0xff]
      %v783 = vld [vmem:[#allocation2 + $0x19] sm:$0xff]
      %v784 = vld [vmem:[#allocation2 + $0x21] sm:$0xff]
      %v785 = vld [vmem:[#allocation2 + $0x31] sm:$0xff]
      %v786 = vld [vmem:[#allocation2 + $0x39] sm:$0xff]
      %v787 = vld [vmem:[#allocation2 + $0x49] sm:$0xff]
      %v788 = vld [vmem:[#allocation2 + $0x51] sm:$0xff]
      %v789 = vld [vmem:[#allocation2 + $0x61] sm:$0xff]
      %v790 = vld [vmem:[#allocation2 + $0x69] sm:$0xff]
      %v791 = vld [vmem:[#allocation2 + $0x79] sm:$0xff]
      %v792 = vld [vmem:[#allocation2 + $0x81] sm:$0xff]
      %v793 = vld [vmem:[#allocation2 + $0x91] sm:$0xff]
      %v794 = vld [vmem:[#allocation2 + $0x99] sm:$0xff]
      %v795 = vld [vmem:[#allocation2 + $0xa9] sm:$0xff]
      %v796 = vld [vmem:[#allocation2 + $0xb1] sm:$0xff]
      %v797 = vld [vmem:[#allocation2 + $0xc1] sm:$0xff]
      %v798 = vld [vmem:[#allocation2 + $0xc9] sm:$0xff]
      %v799 = vld [vmem:[#allocation2 + $0xd9] sm:$0xff]
      %v800 = vld [vmem:[#allocation2 + $0xe1] sm:$0xff]
      %v801 = vld [vmem:[#allocation2 + $0xf1] sm:$0xff]
      %v802 = vld [vmem:[#allocation2 + $0xf9] sm:$0xff]
      %v803 = vld [vmem:[#allocation2 + $0x109] sm:$0xff]
      %v804 = vld [vmem:[#allocation2 + $0x111] sm:$0xff]
      %v805 = vld [vmem:[#allocation2 + $0x121] sm:$0xff]
      %v806 = vld [vmem:[#allocation2 + $0x129] sm:$0xff]
      %v807 = vld [vmem:[#allocation2 + $0x139] sm:$0xff]
      %v808 = vld [vmem:[#allocation2 + $0x141] sm:$0xff]
      %v809 = vld [vmem:[#allocation2 + $0x151] sm:$0xff]
      %v810 = vld [vmem:[#allocation2 + $0x159] sm:$0xff]
      %v811 = vld [vmem:[#allocation2 + $0x169] sm:$0xff]
      %v812 = vld [vmem:[#allocation2 + $0x171] sm:$0xff]
      %v813 = vld [vmem:[#allocation3] sm:$0xff]
      %v814 = vld [vmem:[#allocation3 + $0x8] sm:$0xff]
      %v815 = vld [vmem:[#allocation3 + $0x10] sm:$0xff]
      %v816 = vld [vmem:[#allocation3 + $0x18] sm:$0xff]
      %v817 = vld [vmem:[#allocation3 + $0x20] sm:$0xff]
      %v818 = vld [vmem:[#allocation3 + $0x28] sm:$0xff]
      %v819 = vld [vmem:[#allocation3 + $0x30] sm:$0xff]
      %v820 = vld [vmem:[#allocation3 + $0x38] sm:$0xff]
      %v821 = vld [vmem:[#allocation3 + $0x40] sm:$0xff]
      %v822 = vld [vmem:[#allocation3 + $0x48] sm:$0xff]
      %v823 = vld [vmem:[#allocation3 + $0x50] sm:$0xff]
      %v824 = vld [vmem:[#allocation3 + $0x58] sm:$0xff]
      %v825 = vld [vmem:[#allocation3 + $0x60] sm:$0xff]
      %v826 = vld [vmem:[#allocation3 + $0x68] sm:$0xff]
      %v827 = vld [vmem:[#allocation3 + $0x70] sm:$0xff]
      %v828 = vld [vmem:[#allocation3 + $0x78] sm:$0xff]
      %v829 = vld [vmem:[#allocation3 + $0x80] sm:$0xff]
      %v830 = vld [vmem:[#allocation3 + $0x88] sm:$0xff]
      %v831 = vld [vmem:[#allocation3 + $0x90] sm:$0xff]
      %v832 = vld [vmem:[#allocation3 + $0x98] sm:$0xff]
      %v833 = vld [vmem:[#allocation3 + $0xa0] sm:$0xff]
      %v834 = vld [vmem:[#allocation3 + $0xa8] sm:$0xff]
      %v835 = vld [vmem:[#allocation3 + $0xb0] sm:$0xff]
      %v836 = vld [vmem:[#allocation3 + $0xb8] sm:$0xff]
      %v837 = vld [vmem:[#allocation3 + $0xc0] sm:$0xff]
      %v838 = vld [vmem:[#allocation3 + $0xc8] sm:$0xff]
      %v839 = vld [vmem:[#allocation3 + $0xd0] sm:$0xff]
      %v840 = vld [vmem:[#allocation3 + $0xd8] sm:$0xff]
      %v841 = vld [vmem:[#allocation3 + $0xe0] sm:$0xff]
      %v842 = vld [vmem:[#allocation3 + $0xe8] sm:$0xff]
      %v843 = vld [vmem:[#allocation3 + $0xf0] sm:$0xff]
      %v844 = vld [vmem:[#allocation3 + $0xf8] sm:$0xff]
      %s845 = scalar_lea.vmem %s1, 128
      %v846 = vld [vmem:[%s845] sm:$0xff]
      %v847 = vld [vmem:[%s845 + $0x8] sm:$0xff]
      %v848 = vld [vmem:[%s845 + $0x10] sm:$0xff]
      %v849 = vld [vmem:[%s845 + $0x18] sm:$0xff]
      %v850 = vld [vmem:[%s845 + $0x20] sm:$0xff]
      %v851 = vld [vmem:[%s845 + $0x28] sm:$0xff]
      %v852 = vld [vmem:[%s845 + $0x30] sm:$0xff]
      %v853 = vld [vmem:[%s845 + $0x38] sm:$0xff]
      %v854 = vld [vmem:[%s845 + $0x40] sm:$0xff]
      %v855 = vld [vmem:[%s845 + $0x48] sm:$0xff]
      %v856 = vld [vmem:[%s845 + $0x50] sm:$0xff]
      %v857 = vld [vmem:[%s845 + $0x58] sm:$0xff]
      %v858 = vld [vmem:[%s845 + $0x60] sm:$0xff]
      %v859 = vld [vmem:[%s845 + $0x68] sm:$0xff]
      %v860 = vld [vmem:[%s845 + $0x70] sm:$0xff]
      %v861 = vld [vmem:[%s845 + $0x78] sm:$0xff]
      %862 = vmatpush.msra.mxu0 %v861
      %863 = vmatpush.msra.mxu0 %v860
      %864 = vmatpush.msra.mxu0 %v859
      %865 = vmatpush.msra.mxu0 %v858
      %866 = vmatpush.msra.mxu0 %v857
      %867 = vmatpush.msra.mxu0 %v856
      %868 = vmatpush.msra.mxu0 %v855
      %869 = vmatpush.msra.mxu0 %v854
      %870 = vmatpush.msra.mxu0 %v853
      %871 = vmatpush.msra.mxu0 %v852
      %872 = vmatpush.msra.mxu0 %v851
      %873 = vmatpush.msra.mxu0 %v850
      %874 = vmatpush.msra.mxu0 %v849
      %875 = vmatpush.msra.mxu0 %v848
      %876 = vmatpush.msra.mxu0 %v847
      %877 = vmatpush.msra.mxu0 %v846
      %878 = vmatmul.f32.gmra.mxu0 %v781
      %v879 = vpop.f32.mrf.mxu0
      %v880 = vadd.f32 0.0, %v879
      %881 = vmatmul.f32.gmra.mxu0 %v782
      %v882 = vpop.f32.mrf.mxu0
      %v883 = vadd.f32 0.0, %v882
      %884 = vmatmul.f32.gmra.mxu0 %v783
      %v885 = vpop.f32.mrf.mxu0
      %v886 = vadd.f32 0.0, %v885
      %887 = vmatmul.f32.gmra.mxu0 %v784
      %v888 = vpop.f32.mrf.mxu0
      %v889 = vadd.f32 0.0, %v888
      %890 = vmatmul.f32.gmra.mxu0 %v785
      %v891 = vpop.f32.mrf.mxu0
      %v892 = vadd.f32 0.0, %v891
      %893 = vmatmul.f32.gmra.mxu0 %v786
      %v894 = vpop.f32.mrf.mxu0
      %v895 = vadd.f32 0.0, %v894
      %896 = vmatmul.f32.gmra.mxu0 %v787
      %v897 = vpop.f32.mrf.mxu0
      %v898 = vadd.f32 0.0, %v897
      %899 = vmatmul.f32.gmra.mxu0 %v788
      %v900 = vpop.f32.mrf.mxu0
      %v901 = vadd.f32 0.0, %v900
      %902 = vmatmul.f32.gmra.mxu0 %v789
      %v903 = vpop.f32.mrf.mxu0
      %v904 = vadd.f32 0.0, %v903
      %905 = vmatmul.f32.gmra.mxu0 %v790
      %v906 = vpop.f32.mrf.mxu0
      %v907 = vadd.f32 0.0, %v906
      %908 = vmatmul.f32.gmra.mxu0 %v791
      %v909 = vpop.f32.mrf.mxu0
      %v910 = vadd.f32 0.0, %v909
      %911 = vmatmul.f32.gmra.mxu0 %v792
      %v912 = vpop.f32.mrf.mxu0
      %v913 = vadd.f32 0.0, %v912
      %914 = vmatmul.f32.gmra.mxu0 %v793
      %v915 = vpop.f32.mrf.mxu0
      %v916 = vadd.f32 0.0, %v915
      %917 = vmatmul.f32.gmra.mxu0 %v794
      %v918 = vpop.f32.mrf.mxu0
      %v919 = vadd.f32 0.0, %v918
      %920 = vmatmul.f32.gmra.mxu0 %v795
      %v921 = vpop.f32.mrf.mxu0
      %v922 = vadd.f32 0.0, %v921
      %923 = vmatmul.f32.gmra.mxu0 %v796
      %v924 = vpop.f32.mrf.mxu0
      %v925 = vadd.f32 0.0, %v924
      %926 = vmatmul.f32.gmra.mxu0 %v797
      %v927 = vpop.f32.mrf.mxu0
      %v928 = vadd.f32 0.0, %v927
      %929 = vmatmul.f32.gmra.mxu0 %v798
      %v930 = vpop.f32.mrf.mxu0
      %v931 = vadd.f32 0.0, %v930
      %932 = vmatmul.f32.gmra.mxu0 %v799
      %v933 = vpop.f32.mrf.mxu0
      %v934 = vadd.f32 0.0, %v933
      %935 = vmatmul.f32.gmra.mxu0 %v800
      %v936 = vpop.f32.mrf.mxu0
      %v937 = vadd.f32 0.0, %v936
      %938 = vmatmul.f32.gmra.mxu0 %v801
      %v939 = vpop.f32.mrf.mxu0
      %v940 = vadd.f32 0.0, %v939
      %941 = vmatmul.f32.gmra.mxu0 %v802
      %v942 = vpop.f32.mrf.mxu0
      %v943 = vadd.f32 0.0, %v942
      %944 = vmatmul.f32.gmra.mxu0 %v803
      %v945 = vpop.f32.mrf.mxu0
      %v946 = vadd.f32 0.0, %v945
      %947 = vmatmul.f32.gmra.mxu0 %v804
      %v948 = vpop.f32.mrf.mxu0
      %v949 = vadd.f32 0.0, %v948
      %950 = vmatmul.f32.gmra.mxu0 %v805
      %v951 = vpop.f32.mrf.mxu0
      %v952 = vadd.f32 0.0, %v951
      %953 = vmatmul.f32.gmra.mxu0 %v806
      %v954 = vpop.f32.mrf.mxu0
      %v955 = vadd.f32 0.0, %v954
      %956 = vmatmul.f32.gmra.mxu0 %v807
      %v957 = vpop.f32.mrf.mxu0
      %v958 = vadd.f32 0.0, %v957
      %959 = vmatmul.f32.gmra.mxu0 %v808
      %v960 = vpop.f32.mrf.mxu0
      %v961 = vadd.f32 0.0, %v960
      %962 = vmatmul.f32.gmra.mxu0 %v809
      %v963 = vpop.f32.mrf.mxu0
      %v964 = vadd.f32 0.0, %v963
      %965 = vmatmul.f32.gmra.mxu0 %v810
      %v966 = vpop.f32.mrf.mxu0
      %v967 = vadd.f32 0.0, %v966
      %968 = vmatmul.f32.gmra.mxu0 %v811
      %v969 = vpop.f32.mrf.mxu0
      %v970 = vadd.f32 0.0, %v969
      %971 = vmatmul.f32.gmra.mxu0 %v812
      %v972 = vpop.f32.mrf.mxu0
      %v973 = vadd.f32 0.0, %v972
      %974 = vdwg.mxu0
      %v975 = vadd.f32 %v813, %v880
      %v976 = vadd.f32 %v814, %v883
      %v977 = vadd.f32 %v815, %v886
      %v978 = vadd.f32 %v816, %v889
      %v979 = vadd.f32 %v817, %v892
      %v980 = vadd.f32 %v818, %v895
      %v981 = vadd.f32 %v819, %v898
      %v982 = vadd.f32 %v820, %v901
      %v983 = vadd.f32 %v821, %v904
      %v984 = vadd.f32 %v822, %v907
      %v985 = vadd.f32 %v823, %v910
      %v986 = vadd.f32 %v824, %v913
      %v987 = vadd.f32 %v825, %v916
      %v988 = vadd.f32 %v826, %v919
      %v989 = vadd.f32 %v827, %v922
      %v990 = vadd.f32 %v828, %v925
      %v991 = vadd.f32 %v829, %v928
      %v992 = vadd.f32 %v830, %v931
      %v993 = vadd.f32 %v831, %v934
      %v994 = vadd.f32 %v832, %v937
      %v995 = vadd.f32 %v833, %v940
      %v996 = vadd.f32 %v834, %v943
      %v997 = vadd.f32 %v835, %v946
      %v998 = vadd.f32 %v836, %v949
      %v999 = vadd.f32 %v837, %v952
      %v1000 = vadd.f32 %v838, %v955
      %v1001 = vadd.f32 %v839, %v958
      %v1002 = vadd.f32 %v840, %v961
      %v1003 = vadd.f32 %v841, %v964
      %v1004 = vadd.f32 %v842, %v967
      %v1005 = vadd.f32 %v843, %v970
      %v1006 = vadd.f32 %v844, %v973
      %1007 = vst [vmem:[#allocation3] sm:$0xff] %v975
      %1008 = vst [vmem:[#allocation3 + $0x8] sm:$0xff] %v976
      %1009 = vst [vmem:[#allocation3 + $0x10] sm:$0xff] %v977
      %1010 = vst [vmem:[#allocation3 + $0x18] sm:$0xff] %v978
      %1011 = vst [vmem:[#allocation3 + $0x20] sm:$0xff] %v979
      %1012 = vst [vmem:[#allocation3 + $0x28] sm:$0xff] %v980
      %1013 = vst [vmem:[#allocation3 + $0x30] sm:$0xff] %v981
      %1014 = vst [vmem:[#allocation3 + $0x38] sm:$0xff] %v982
      %1015 = vst [vmem:[#allocation3 + $0x40] sm:$0xff] %v983
      %1016 = vst [vmem:[#allocation3 + $0x48] sm:$0xff] %v984
      %1017 = vst [vmem:[#allocation3 + $0x50] sm:$0xff] %v985
      %1018 = vst [vmem:[#allocation3 + $0x58] sm:$0xff] %v986
      %1019 = vst [vmem:[#allocation3 + $0x60] sm:$0xff] %v987
      %1020 = vst [vmem:[#allocation3 + $0x68] sm:$0xff] %v988
      %1021 = vst [vmem:[#allocation3 + $0x70] sm:$0xff] %v989
      %1022 = vst [vmem:[#allocation3 + $0x78] sm:$0xff] %v990
      %1023 = vst [vmem:[#allocation3 + $0x80] sm:$0xff] %v991
      %1024 = vst [vmem:[#allocation3 + $0x88] sm:$0xff] %v992
      %1025 = vst [vmem:[#allocation3 + $0x90] sm:$0xff] %v993
      %1026 = vst [vmem:[#allocation3 + $0x98] sm:$0xff] %v994
      %1027 = vst [vmem:[#allocation3 + $0xa0] sm:$0xff] %v995
      %1028 = vst [vmem:[#allocation3 + $0xa8] sm:$0xff] %v996
      %1029 = vst [vmem:[#allocation3 + $0xb0] sm:$0xff] %v997
      %1030 = vst [vmem:[#allocation3 + $0xb8] sm:$0xff] %v998
      %1031 = vst [vmem:[#allocation3 + $0xc0] sm:$0xff] %v999
      %1032 = vst [vmem:[#allocation3 + $0xc8] sm:$0xff] %v1000
      %1033 = vst [vmem:[#allocation3 + $0xd0] sm:$0xff] %v1001
      %1034 = vst [vmem:[#allocation3 + $0xd8] sm:$0xff] %v1002
      %1035 = vst [vmem:[#allocation3 + $0xe0] sm:$0xff] %v1003
      %1036 = vst [vmem:[#allocation3 + $0xe8] sm:$0xff] %v1004
      %1037 = vst [vmem:[#allocation3 + $0xf0] sm:$0xff] %v1005
      %1038 = vst [vmem:[#allocation3 + $0xf8] sm:$0xff] %v1006
      %v1039 = vld [vmem:[#allocation2 + $0x2] sm:$0xff]
      %v1040 = vld [vmem:[#allocation2 + $0xa] sm:$0xff]
      %v1041 = vld [vmem:[#allocation2 + $0x1a] sm:$0xff]
      %v1042 = vld [vmem:[#allocation2 + $0x22] sm:$0xff]
      %v1043 = vld [vmem:[#allocation2 + $0x32] sm:$0xff]
      %v1044 = vld [vmem:[#allocation2 + $0x3a] sm:$0xff]
      %v1045 = vld [vmem:[#allocation2 + $0x4a] sm:$0xff]
      %v1046 = vld [vmem:[#allocation2 + $0x52] sm:$0xff]
      %v1047 = vld [vmem:[#allocation2 + $0x62] sm:$0xff]
      %v1048 = vld [vmem:[#allocation2 + $0x6a] sm:$0xff]
      %v1049 = vld [vmem:[#allocation2 + $0x7a] sm:$0xff]
      %v1050 = vld [vmem:[#allocation2 + $0x82] sm:$0xff]
      %v1051 = vld [vmem:[#allocation2 + $0x92] sm:$0xff]
      %v1052 = vld [vmem:[#allocation2 + $0x9a] sm:$0xff]
      %v1053 = vld [vmem:[#allocation2 + $0xaa] sm:$0xff]
      %v1054 = vld [vmem:[#allocation2 + $0xb2] sm:$0xff]
      %v1055 = vld [vmem:[#allocation2 + $0xc2] sm:$0xff]
      %v1056 = vld [vmem:[#allocation2 + $0xca] sm:$0xff]
      %v1057 = vld [vmem:[#allocation2 + $0xda] sm:$0xff]
      %v1058 = vld [vmem:[#allocation2 + $0xe2] sm:$0xff]
      %v1059 = vld [vmem:[#allocation2 + $0xf2] sm:$0xff]
      %v1060 = vld [vmem:[#allocation2 + $0xfa] sm:$0xff]
      %v1061 = vld [vmem:[#allocation2 + $0x10a] sm:$0xff]
      %v1062 = vld [vmem:[#allocation2 + $0x112] sm:$0xff]
      %v1063 = vld [vmem:[#allocation2 + $0x122] sm:$0xff]
      %v1064 = vld [vmem:[#allocation2 + $0x12a] sm:$0xff]
      %v1065 = vld [vmem:[#allocation2 + $0x13a] sm:$0xff]
      %v1066 = vld [vmem:[#allocation2 + $0x142] sm:$0xff]
      %v1067 = vld [vmem:[#allocation2 + $0x152] sm:$0xff]
      %v1068 = vld [vmem:[#allocation2 + $0x15a] sm:$0xff]
      %v1069 = vld [vmem:[#allocation2 + $0x16a] sm:$0xff]
      %v1070 = vld [vmem:[#allocation2 + $0x172] sm:$0xff]
      %v1071 = vld [vmem:[#allocation3] sm:$0xff]
      %v1072 = vld [vmem:[#allocation3 + $0x8] sm:$0xff]
      %v1073 = vld [vmem:[#allocation3 + $0x10] sm:$0xff]
      %v1074 = vld [vmem:[#allocation3 + $0x18] sm:$0xff]
      %v1075 = vld [vmem:[#allocation3 + $0x20] sm:$0xff]
      %v1076 = vld [vmem:[#allocation3 + $0x28] sm:$0xff]
      %v1077 = vld [vmem:[#allocation3 + $0x30] sm:$0xff]
      %v1078 = vld [vmem:[#allocation3 + $0x38] sm:$0xff]
      %v1079 = vld [vmem:[#allocation3 + $0x40] sm:$0xff]
      %v1080 = vld [vmem:[#allocation3 + $0x48] sm:$0xff]
      %v1081 = vld [vmem:[#allocation3 + $0x50] sm:$0xff]
      %v1082 = vld [vmem:[#allocation3 + $0x58] sm:$0xff]
      %v1083 = vld [vmem:[#allocation3 + $0x60] sm:$0xff]
      %v1084 = vld [vmem:[#allocation3 + $0x68] sm:$0xff]
      %v1085 = vld [vmem:[#allocation3 + $0x70] sm:$0xff]
      %v1086 = vld [vmem:[#allocation3 + $0x78] sm:$0xff]
      %v1087 = vld [vmem:[#allocation3 + $0x80] sm:$0xff]
      %v1088 = vld [vmem:[#allocation3 + $0x88] sm:$0xff]
      %v1089 = vld [vmem:[#allocation3 + $0x90] sm:$0xff]
      %v1090 = vld [vmem:[#allocation3 + $0x98] sm:$0xff]
      %v1091 = vld [vmem:[#allocation3 + $0xa0] sm:$0xff]
      %v1092 = vld [vmem:[#allocation3 + $0xa8] sm:$0xff]
      %v1093 = vld [vmem:[#allocation3 + $0xb0] sm:$0xff]
      %v1094 = vld [vmem:[#allocation3 + $0xb8] sm:$0xff]
      %v1095 = vld [vmem:[#allocation3 + $0xc0] sm:$0xff]
      %v1096 = vld [vmem:[#allocation3 + $0xc8] sm:$0xff]
      %v1097 = vld [vmem:[#allocation3 + $0xd0] sm:$0xff]
      %v1098 = vld [vmem:[#allocation3 + $0xd8] sm:$0xff]
      %v1099 = vld [vmem:[#allocation3 + $0xe0] sm:$0xff]
      %v1100 = vld [vmem:[#allocation3 + $0xe8] sm:$0xff]
      %v1101 = vld [vmem:[#allocation3 + $0xf0] sm:$0xff]
      %v1102 = vld [vmem:[#allocation3 + $0xf8] sm:$0xff]
      %s1103 = scalar_lea.vmem %s1, 256
      %v1104 = vld [vmem:[%s1103] sm:$0xff]
      %v1105 = vld [vmem:[%s1103 + $0x8] sm:$0xff]
      %v1106 = vld [vmem:[%s1103 + $0x10] sm:$0xff]
      %v1107 = vld [vmem:[%s1103 + $0x18] sm:$0xff]
      %v1108 = vld [vmem:[%s1103 + $0x20] sm:$0xff]
      %v1109 = vld [vmem:[%s1103 + $0x28] sm:$0xff]
      %v1110 = vld [vmem:[%s1103 + $0x30] sm:$0xff]
      %v1111 = vld [vmem:[%s1103 + $0x38] sm:$0xff]
      %v1112 = vld [vmem:[%s1103 + $0x40] sm:$0xff]
      %v1113 = vld [vmem:[%s1103 + $0x48] sm:$0xff]
      %v1114 = vld [vmem:[%s1103 + $0x50] sm:$0xff]
      %v1115 = vld [vmem:[%s1103 + $0x58] sm:$0xff]
      %v1116 = vld [vmem:[%s1103 + $0x60] sm:$0xff]
      %v1117 = vld [vmem:[%s1103 + $0x68] sm:$0xff]
      %v1118 = vld [vmem:[%s1103 + $0x70] sm:$0xff]
      %v1119 = vld [vmem:[%s1103 + $0x78] sm:$0xff]
      %1120 = vmatpush.msra.mxu0 %v1119
      %1121 = vmatpush.msra.mxu0 %v1118
      %1122 = vmatpush.msra.mxu0 %v1117
      %1123 = vmatpush.msra.mxu0 %v1116
      %1124 = vmatpush.msra.mxu0 %v1115
      %1125 = vmatpush.msra.mxu0 %v1114
      %1126 = vmatpush.msra.mxu0 %v1113
      %1127 = vmatpush.msra.mxu0 %v1112
      %1128 = vmatpush.msra.mxu0 %v1111
      %1129 = vmatpush.msra.mxu0 %v1110
      %1130 = vmatpush.msra.mxu0 %v1109
      %1131 = vmatpush.msra.mxu0 %v1108
      %1132 = vmatpush.msra.mxu0 %v1107
      %1133 = vmatpush.msra.mxu0 %v1106
      %1134 = vmatpush.msra.mxu0 %v1105
      %1135 = vmatpush.msra.mxu0 %v1104
      %1136 = vmatmul.f32.gmra.mxu0 %v1039
      %v1137 = vpop.f32.mrf.mxu0
      %v1138 = vadd.f32 0.0, %v1137
      %1139 = vmatmul.f32.gmra.mxu0 %v1040
      %v1140 = vpop.f32.mrf.mxu0
      %v1141 = vadd.f32 0.0, %v1140
      %1142 = vmatmul.f32.gmra.mxu0 %v1041
      %v1143 = vpop.f32.mrf.mxu0
      %v1144 = vadd.f32 0.0, %v1143
      %1145 = vmatmul.f32.gmra.mxu0 %v1042
      %v1146 = vpop.f32.mrf.mxu0
      %v1147 = vadd.f32 0.0, %v1146
      %1148 = vmatmul.f32.gmra.mxu0 %v1043
      %v1149 = vpop.f32.mrf.mxu0
      %v1150 = vadd.f32 0.0, %v1149
      %1151 = vmatmul.f32.gmra.mxu0 %v1044
      %v1152 = vpop.f32.mrf.mxu0
      %v1153 = vadd.f32 0.0, %v1152
      %1154 = vmatmul.f32.gmra.mxu0 %v1045
      %v1155 = vpop.f32.mrf.mxu0
      %v1156 = vadd.f32 0.0, %v1155
      %1157 = vmatmul.f32.gmra.mxu0 %v1046
      %v1158 = vpop.f32.mrf.mxu0
      %v1159 = vadd.f32 0.0, %v1158
      %1160 = vmatmul.f32.gmra.mxu0 %v1047
      %v1161 = vpop.f32.mrf.mxu0
      %v1162 = vadd.f32 0.0, %v1161
      %1163 = vmatmul.f32.gmra.mxu0 %v1048
      %v1164 = vpop.f32.mrf.mxu0
      %v1165 = vadd.f32 0.0, %v1164
      %1166 = vmatmul.f32.gmra.mxu0 %v1049
      %v1167 = vpop.f32.mrf.mxu0
      %v1168 = vadd.f32 0.0, %v1167
      %1169 = vmatmul.f32.gmra.mxu0 %v1050
      %v1170 = vpop.f32.mrf.mxu0
      %v1171 = vadd.f32 0.0, %v1170
      %1172 = vmatmul.f32.gmra.mxu0 %v1051
      %v1173 = vpop.f32.mrf.mxu0
      %v1174 = vadd.f32 0.0, %v1173
      %1175 = vmatmul.f32.gmra.mxu0 %v1052
      %v1176 = vpop.f32.mrf.mxu0
      %v1177 = vadd.f32 0.0, %v1176
      %1178 = vmatmul.f32.gmra.mxu0 %v1053
      %v1179 = vpop.f32.mrf.mxu0
      %v1180 = vadd.f32 0.0, %v1179
      %1181 = vmatmul.f32.gmra.mxu0 %v1054
      %v1182 = vpop.f32.mrf.mxu0
      %v1183 = vadd.f32 0.0, %v1182
      %1184 = vmatmul.f32.gmra.mxu0 %v1055
      %v1185 = vpop.f32.mrf.mxu0
      %v1186 = vadd.f32 0.0, %v1185
      %1187 = vmatmul.f32.gmra.mxu0 %v1056
      %v1188 = vpop.f32.mrf.mxu0
      %v1189 = vadd.f32 0.0, %v1188
      %1190 = vmatmul.f32.gmra.mxu0 %v1057
      %v1191 = vpop.f32.mrf.mxu0
      %v1192 = vadd.f32 0.0, %v1191
      %1193 = vmatmul.f32.gmra.mxu0 %v1058
      %v1194 = vpop.f32.mrf.mxu0
      %v1195 = vadd.f32 0.0, %v1194
      %1196 = vmatmul.f32.gmra.mxu0 %v1059
      %v1197 = vpop.f32.mrf.mxu0
      %v1198 = vadd.f32 0.0, %v1197
      %1199 = vmatmul.f32.gmra.mxu0 %v1060
      %v1200 = vpop.f32.mrf.mxu0
      %v1201 = vadd.f32 0.0, %v1200
      %1202 = vmatmul.f32.gmra.mxu0 %v1061
      %v1203 = vpop.f32.mrf.mxu0
      %v1204 = vadd.f32 0.0, %v1203
      %1205 = vmatmul.f32.gmra.mxu0 %v1062
      %v1206 = vpop.f32.mrf.mxu0
      %v1207 = vadd.f32 0.0, %v1206
      %1208 = vmatmul.f32.gmra.mxu0 %v1063
      %v1209 = vpop.f32.mrf.mxu0
      %v1210 = vadd.f32 0.0, %v1209
      %1211 = vmatmul.f32.gmra.mxu0 %v1064
      %v1212 = vpop.f32.mrf.mxu0
      %v1213 = vadd.f32 0.0, %v1212
      %1214 = vmatmul.f32.gmra.mxu0 %v1065
      %v1215 = vpop.f32.mrf.mxu0
      %v1216 = vadd.f32 0.0, %v1215
      %1217 = vmatmul.f32.gmra.mxu0 %v1066
      %v1218 = vpop.f32.mrf.mxu0
      %v1219 = vadd.f32 0.0, %v1218
      %1220 = vmatmul.f32.gmra.mxu0 %v1067
      %v1221 = vpop.f32.mrf.mxu0
      %v1222 = vadd.f32 0.0, %v1221
      %1223 = vmatmul.f32.gmra.mxu0 %v1068
      %v1224 = vpop.f32.mrf.mxu0
      %v1225 = vadd.f32 0.0, %v1224
      %1226 = vmatmul.f32.gmra.mxu0 %v1069
      %v1227 = vpop.f32.mrf.mxu0
      %v1228 = vadd.f32 0.0, %v1227
      %1229 = vmatmul.f32.gmra.mxu0 %v1070
      %v1230 = vpop.f32.mrf.mxu0
      %v1231 = vadd.f32 0.0, %v1230
      %1232 = vdwg.mxu0
      %v1233 = vadd.f32 %v1071, %v1138
      %v1234 = vadd.f32 %v1072, %v1141
      %v1235 = vadd.f32 %v1073, %v1144
      %v1236 = vadd.f32 %v1074, %v1147
      %v1237 = vadd.f32 %v1075, %v1150
      %v1238 = vadd.f32 %v1076, %v1153
      %v1239 = vadd.f32 %v1077, %v1156
      %v1240 = vadd.f32 %v1078, %v1159
      %v1241 = vadd.f32 %v1079, %v1162
      %v1242 = vadd.f32 %v1080, %v1165
      %v1243 = vadd.f32 %v1081, %v1168
      %v1244 = vadd.f32 %v1082, %v1171
      %v1245 = vadd.f32 %v1083, %v1174
      %v1246 = vadd.f32 %v1084, %v1177
      %v1247 = vadd.f32 %v1085, %v1180
      %v1248 = vadd.f32 %v1086, %v1183
      %v1249 = vadd.f32 %v1087, %v1186
      %v1250 = vadd.f32 %v1088, %v1189
      %v1251 = vadd.f32 %v1089, %v1192
      %v1252 = vadd.f32 %v1090, %v1195
      %v1253 = vadd.f32 %v1091, %v1198
      %v1254 = vadd.f32 %v1092, %v1201
      %v1255 = vadd.f32 %v1093, %v1204
      %v1256 = vadd.f32 %v1094, %v1207
      %v1257 = vadd.f32 %v1095, %v1210
      %v1258 = vadd.f32 %v1096, %v1213
      %v1259 = vadd.f32 %v1097, %v1216
      %v1260 = vadd.f32 %v1098, %v1219
      %v1261 = vadd.f32 %v1099, %v1222
      %v1262 = vadd.f32 %v1100, %v1225
      %v1263 = vadd.f32 %v1101, %v1228
      %v1264 = vadd.f32 %v1102, %v1231
      %1265 = vst [vmem:[#allocation3] sm:$0xff] %v1233
      %1266 = vst [vmem:[#allocation3 + $0x8] sm:$0xff] %v1234
      %1267 = vst [vmem:[#allocation3 + $0x10] sm:$0xff] %v1235
      %1268 = vst [vmem:[#allocation3 + $0x18] sm:$0xff] %v1236
      %1269 = vst [vmem:[#allocation3 + $0x20] sm:$0xff] %v1237
      %1270 = vst [vmem:[#allocation3 + $0x28] sm:$0xff] %v1238
      %1271 = vst [vmem:[#allocation3 + $0x30] sm:$0xff] %v1239
      %1272 = vst [vmem:[#allocation3 + $0x38] sm:$0xff] %v1240
      %1273 = vst [vmem:[#allocation3 + $0x40] sm:$0xff] %v1241
      %1274 = vst [vmem:[#allocation3 + $0x48] sm:$0xff] %v1242
      %1275 = vst [vmem:[#allocation3 + $0x50] sm:$0xff] %v1243
      %1276 = vst [vmem:[#allocation3 + $0x58] sm:$0xff] %v1244
      %1277 = vst [vmem:[#allocation3 + $0x60] sm:$0xff] %v1245
      %1278 = vst [vmem:[#allocation3 + $0x68] sm:$0xff] %v1246
      %1279 = vst [vmem:[#allocation3 + $0x70] sm:$0xff] %v1247
      %1280 = vst [vmem:[#allocation3 + $0x78] sm:$0xff] %v1248
      %1281 = vst [vmem:[#allocation3 + $0x80] sm:$0xff] %v1249
      %1282 = vst [vmem:[#allocation3 + $0x88] sm:$0xff] %v1250
      %1283 = vst [vmem:[#allocation3 + $0x90] sm:$0xff] %v1251
      %1284 = vst [vmem:[#allocation3 + $0x98] sm:$0xff] %v1252
      %1285 = vst [vmem:[#allocation3 + $0xa0] sm:$0xff] %v1253
      %1286 = vst [vmem:[#allocation3 + $0xa8] sm:$0xff] %v1254
      %1287 = vst [vmem:[#allocation3 + $0xb0] sm:$0xff] %v1255
      %1288 = vst [vmem:[#allocation3 + $0xb8] sm:$0xff] %v1256
      %1289 = vst [vmem:[#allocation3 + $0xc0] sm:$0xff] %v1257
      %1290 = vst [vmem:[#allocation3 + $0xc8] sm:$0xff] %v1258
      %1291 = vst [vmem:[#allocation3 + $0xd0] sm:$0xff] %v1259
      %1292 = vst [vmem:[#allocation3 + $0xd8] sm:$0xff] %v1260
      %1293 = vst [vmem:[#allocation3 + $0xe0] sm:$0xff] %v1261
      %1294 = vst [vmem:[#allocation3 + $0xe8] sm:$0xff] %v1262
      %1295 = vst [vmem:[#allocation3 + $0xf0] sm:$0xff] %v1263
      %1296 = vst [vmem:[#allocation3 + $0xf8] sm:$0xff] %v1264
      %v1297 = vld [vmem:[%s459] sm:$0xff]
      %v1298 = vld [vmem:[%s459 + $0x8] sm:$0xff]
      %v1299 = vld [vmem:[%s459 + $0x18] sm:$0xff]
      %v1300 = vld [vmem:[%s459 + $0x20] sm:$0xff]
      %v1301 = vld [vmem:[%s459 + $0x30] sm:$0xff]
      %v1302 = vld [vmem:[%s459 + $0x38] sm:$0xff]
      %v1303 = vld [vmem:[%s459 + $0x48] sm:$0xff]
      %v1304 = vld [vmem:[%s459 + $0x50] sm:$0xff]
      %v1305 = vld [vmem:[%s459 + $0x60] sm:$0xff]
      %v1306 = vld [vmem:[%s459 + $0x68] sm:$0xff]
      %v1307 = vld [vmem:[%s459 + $0x78] sm:$0xff]
      %v1308 = vld [vmem:[%s459 + $0x80] sm:$0xff]
      %v1309 = vld [vmem:[%s459 + $0x90] sm:$0xff]
      %v1310 = vld [vmem:[%s459 + $0x98] sm:$0xff]
      %v1311 = vld [vmem:[%s459 + $0xa8] sm:$0xff]
      %v1312 = vld [vmem:[%s459 + $0xb0] sm:$0xff]
      %v1313 = vld [vmem:[%s459 + $0xc0] sm:$0xff]
      %v1314 = vld [vmem:[%s459 + $0xc8] sm:$0xff]
      %v1315 = vld [vmem:[%s459 + $0xd8] sm:$0xff]
      %v1316 = vld [vmem:[%s459 + $0xe0] sm:$0xff]
      %v1317 = vld [vmem:[%s459 + $0xf0] sm:$0xff]
      %v1318 = vld [vmem:[%s459 + $0xf8] sm:$0xff]
      %v1319 = vld [vmem:[%s459 + $0x108] sm:$0xff]
      %v1320 = vld [vmem:[%s459 + $0x110] sm:$0xff]
      %v1321 = vld [vmem:[%s459 + $0x120] sm:$0xff]
      %v1322 = vld [vmem:[%s459 + $0x128] sm:$0xff]
      %v1323 = vld [vmem:[%s459 + $0x138] sm:$0xff]
      %v1324 = vld [vmem:[%s459 + $0x140] sm:$0xff]
      %v1325 = vld [vmem:[%s459 + $0x150] sm:$0xff]
      %v1326 = vld [vmem:[%s459 + $0x158] sm:$0xff]
      %v1327 = vld [vmem:[%s459 + $0x168] sm:$0xff]
      %v1328 = vld [vmem:[%s459 + $0x170] sm:$0xff]
      %v1329 = vld [vmem:[#allocation3] sm:$0xff]
      %v1330 = vld [vmem:[#allocation3 + $0x8] sm:$0xff]
      %v1331 = vld [vmem:[#allocation3 + $0x10] sm:$0xff]
      %v1332 = vld [vmem:[#allocation3 + $0x18] sm:$0xff]
      %v1333 = vld [vmem:[#allocation3 + $0x20] sm:$0xff]
      %v1334 = vld [vmem:[#allocation3 + $0x28] sm:$0xff]
      %v1335 = vld [vmem:[#allocation3 + $0x30] sm:$0xff]
      %v1336 = vld [vmem:[#allocation3 + $0x38] sm:$0xff]
      %v1337 = vld [vmem:[#allocation3 + $0x40] sm:$0xff]
      %v1338 = vld [vmem:[#allocation3 + $0x48] sm:$0xff]
      %v1339 = vld [vmem:[#allocation3 + $0x50] sm:$0xff]
      %v1340 = vld [vmem:[#allocation3 + $0x58] sm:$0xff]
      %v1341 = vld [vmem:[#allocation3 + $0x60] sm:$0xff]
      %v1342 = vld [vmem:[#allocation3 + $0x68] sm:$0xff]
      %v1343 = vld [vmem:[#allocation3 + $0x70] sm:$0xff]
      %v1344 = vld [vmem:[#allocation3 + $0x78] sm:$0xff]
      %v1345 = vld [vmem:[#allocation3 + $0x80] sm:$0xff]
      %v1346 = vld [vmem:[#allocation3 + $0x88] sm:$0xff]
      %v1347 = vld [vmem:[#allocation3 + $0x90] sm:$0xff]
      %v1348 = vld [vmem:[#allocation3 + $0x98] sm:$0xff]
      %v1349 = vld [vmem:[#allocation3 + $0xa0] sm:$0xff]
      %v1350 = vld [vmem:[#allocation3 + $0xa8] sm:$0xff]
      %v1351 = vld [vmem:[#allocation3 + $0xb0] sm:$0xff]
      %v1352 = vld [vmem:[#allocation3 + $0xb8] sm:$0xff]
      %v1353 = vld [vmem:[#allocation3 + $0xc0] sm:$0xff]
      %v1354 = vld [vmem:[#allocation3 + $0xc8] sm:$0xff]
      %v1355 = vld [vmem:[#allocation3 + $0xd0] sm:$0xff]
      %v1356 = vld [vmem:[#allocation3 + $0xd8] sm:$0xff]
      %v1357 = vld [vmem:[#allocation3 + $0xe0] sm:$0xff]
      %v1358 = vld [vmem:[#allocation3 + $0xe8] sm:$0xff]
      %v1359 = vld [vmem:[#allocation3 + $0xf0] sm:$0xff]
      %v1360 = vld [vmem:[#allocation3 + $0xf8] sm:$0xff]
      %s1361 = scalar_lea.vmem %s1, 384
      %v1362 = vld [vmem:[%s1361] sm:$0xff]
      %v1363 = vld [vmem:[%s1361 + $0x8] sm:$0xff]
      %v1364 = vld [vmem:[%s1361 + $0x10] sm:$0xff]
      %v1365 = vld [vmem:[%s1361 + $0x18] sm:$0xff]
      %v1366 = vld [vmem:[%s1361 + $0x20] sm:$0xff]
      %v1367 = vld [vmem:[%s1361 + $0x28] sm:$0xff]
      %v1368 = vld [vmem:[%s1361 + $0x30] sm:$0xff]
      %v1369 = vld [vmem:[%s1361 + $0x38] sm:$0xff]
      %v1370 = vld [vmem:[%s1361 + $0x40] sm:$0xff]
      %v1371 = vld [vmem:[%s1361 + $0x48] sm:$0xff]
      %v1372 = vld [vmem:[%s1361 + $0x50] sm:$0xff]
      %v1373 = vld [vmem:[%s1361 + $0x58] sm:$0xff]
      %v1374 = vld [vmem:[%s1361 + $0x60] sm:$0xff]
      %v1375 = vld [vmem:[%s1361 + $0x68] sm:$0xff]
      %v1376 = vld [vmem:[%s1361 + $0x70] sm:$0xff]
      %v1377 = vld [vmem:[%s1361 + $0x78] sm:$0xff]
      %1378 = vmatpush.msra.mxu0 %v1377
      %1379 = vmatpush.msra.mxu0 %v1376
      %1380 = vmatpush.msra.mxu0 %v1375
      %1381 = vmatpush.msra.mxu0 %v1374
      %1382 = vmatpush.msra.mxu0 %v1373
      %1383 = vmatpush.msra.mxu0 %v1372
      %1384 = vmatpush.msra.mxu0 %v1371
      %1385 = vmatpush.msra.mxu0 %v1370
      %1386 = vmatpush.msra.mxu0 %v1369
      %1387 = vmatpush.msra.mxu0 %v1368
      %1388 = vmatpush.msra.mxu0 %v1367
      %1389 = vmatpush.msra.mxu0 %v1366
      %1390 = vmatpush.msra.mxu0 %v1365
      %1391 = vmatpush.msra.mxu0 %v1364
      %1392 = vmatpush.msra.mxu0 %v1363
      %1393 = vmatpush.msra.mxu0 %v1362
      %1394 = vmatmul.f32.gmra.mxu0 %v1297
      %v1395 = vpop.f32.mrf.mxu0
      %v1396 = vadd.f32 0.0, %v1395
      %1397 = vmatmul.f32.gmra.mxu0 %v1298
      %v1398 = vpop.f32.mrf.mxu0
      %v1399 = vadd.f32 0.0, %v1398
      %1400 = vmatmul.f32.gmra.mxu0 %v1299
      %v1401 = vpop.f32.mrf.mxu0
      %v1402 = vadd.f32 0.0, %v1401
      %1403 = vmatmul.f32.gmra.mxu0 %v1300
      %v1404 = vpop.f32.mrf.mxu0
      %v1405 = vadd.f32 0.0, %v1404
      %1406 = vmatmul.f32.gmra.mxu0 %v1301
      %v1407 = vpop.f32.mrf.mxu0
      %v1408 = vadd.f32 0.0, %v1407
      %1409 = vmatmul.f32.gmra.mxu0 %v1302
      %v1410 = vpop.f32.mrf.mxu0
      %v1411 = vadd.f32 0.0, %v1410
      %1412 = vmatmul.f32.gmra.mxu0 %v1303
      %v1413 = vpop.f32.mrf.mxu0
      %v1414 = vadd.f32 0.0, %v1413
      %1415 = vmatmul.f32.gmra.mxu0 %v1304
      %v1416 = vpop.f32.mrf.mxu0
      %v1417 = vadd.f32 0.0, %v1416
      %1418 = vmatmul.f32.gmra.mxu0 %v1305
      %v1419 = vpop.f32.mrf.mxu0
      %v1420 = vadd.f32 0.0, %v1419
      %1421 = vmatmul.f32.gmra.mxu0 %v1306
      %v1422 = vpop.f32.mrf.mxu0
      %v1423 = vadd.f32 0.0, %v1422
      %1424 = vmatmul.f32.gmra.mxu0 %v1307
      %v1425 = vpop.f32.mrf.mxu0
      %v1426 = vadd.f32 0.0, %v1425
      %1427 = vmatmul.f32.gmra.mxu0 %v1308
      %v1428 = vpop.f32.mrf.mxu0
      %v1429 = vadd.f32 0.0, %v1428
      %1430 = vmatmul.f32.gmra.mxu0 %v1309
      %v1431 = vpop.f32.mrf.mxu0
      %v1432 = vadd.f32 0.0, %v1431
      %1433 = vmatmul.f32.gmra.mxu0 %v1310
      %v1434 = vpop.f32.mrf.mxu0
      %v1435 = vadd.f32 0.0, %v1434
      %1436 = vmatmul.f32.gmra.mxu0 %v1311
      %v1437 = vpop.f32.mrf.mxu0
      %v1438 = vadd.f32 0.0, %v1437
      %1439 = vmatmul.f32.gmra.mxu0 %v1312
      %v1440 = vpop.f32.mrf.mxu0
      %v1441 = vadd.f32 0.0, %v1440
      %1442 = vmatmul.f32.gmra.mxu0 %v1313
      %v1443 = vpop.f32.mrf.mxu0
      %v1444 = vadd.f32 0.0, %v1443
      %1445 = vmatmul.f32.gmra.mxu0 %v1314
      %v1446 = vpop.f32.mrf.mxu0
      %v1447 = vadd.f32 0.0, %v1446
      %1448 = vmatmul.f32.gmra.mxu0 %v1315
      %v1449 = vpop.f32.mrf.mxu0
      %v1450 = vadd.f32 0.0, %v1449
      %1451 = vmatmul.f32.gmra.mxu0 %v1316
      %v1452 = vpop.f32.mrf.mxu0
      %v1453 = vadd.f32 0.0, %v1452
      %1454 = vmatmul.f32.gmra.mxu0 %v1317
      %v1455 = vpop.f32.mrf.mxu0
      %v1456 = vadd.f32 0.0, %v1455
      %1457 = vmatmul.f32.gmra.mxu0 %v1318
      %v1458 = vpop.f32.mrf.mxu0
      %v1459 = vadd.f32 0.0, %v1458
      %1460 = vmatmul.f32.gmra.mxu0 %v1319
      %v1461 = vpop.f32.mrf.mxu0
      %v1462 = vadd.f32 0.0, %v1461
      %1463 = vmatmul.f32.gmra.mxu0 %v1320
      %v1464 = vpop.f32.mrf.mxu0
      %v1465 = vadd.f32 0.0, %v1464
      %1466 = vmatmul.f32.gmra.mxu0 %v1321
      %v1467 = vpop.f32.mrf.mxu0
      %v1468 = vadd.f32 0.0, %v1467
      %1469 = vmatmul.f32.gmra.mxu0 %v1322
      %v1470 = vpop.f32.mrf.mxu0
      %v1471 = vadd.f32 0.0, %v1470
      %1472 = vmatmul.f32.gmra.mxu0 %v1323
      %v1473 = vpop.f32.mrf.mxu0
      %v1474 = vadd.f32 0.0, %v1473
      %1475 = vmatmul.f32.gmra.mxu0 %v1324
      %v1476 = vpop.f32.mrf.mxu0
      %v1477 = vadd.f32 0.0, %v1476
      %1478 = vmatmul.f32.gmra.mxu0 %v1325
      %v1479 = vpop.f32.mrf.mxu0
      %v1480 = vadd.f32 0.0, %v1479
      %1481 = vmatmul.f32.gmra.mxu0 %v1326
      %v1482 = vpop.f32.mrf.mxu0
      %v1483 = vadd.f32 0.0, %v1482
      %1484 = vmatmul.f32.gmra.mxu0 %v1327
      %v1485 = vpop.f32.mrf.mxu0
      %v1486 = vadd.f32 0.0, %v1485
      %1487 = vmatmul.f32.gmra.mxu0 %v1328
      %v1488 = vpop.f32.mrf.mxu0
      %v1489 = vadd.f32 0.0, %v1488
      %1490 = vdwg.mxu0
      %v1491 = vadd.f32 %v1329, %v1396
      %v1492 = vadd.f32 %v1330, %v1399
      %v1493 = vadd.f32 %v1331, %v1402
      %v1494 = vadd.f32 %v1332, %v1405
      %v1495 = vadd.f32 %v1333, %v1408
      %v1496 = vadd.f32 %v1334, %v1411
      %v1497 = vadd.f32 %v1335, %v1414
      %v1498 = vadd.f32 %v1336, %v1417
      %v1499 = vadd.f32 %v1337, %v1420
      %v1500 = vadd.f32 %v1338, %v1423
      %v1501 = vadd.f32 %v1339, %v1426
      %v1502 = vadd.f32 %v1340, %v1429
      %v1503 = vadd.f32 %v1341, %v1432
      %v1504 = vadd.f32 %v1342, %v1435
      %v1505 = vadd.f32 %v1343, %v1438
      %v1506 = vadd.f32 %v1344, %v1441
      %v1507 = vadd.f32 %v1345, %v1444
      %v1508 = vadd.f32 %v1346, %v1447
      %v1509 = vadd.f32 %v1347, %v1450
      %v1510 = vadd.f32 %v1348, %v1453
      %v1511 = vadd.f32 %v1349, %v1456
      %v1512 = vadd.f32 %v1350, %v1459
      %v1513 = vadd.f32 %v1351, %v1462
      %v1514 = vadd.f32 %v1352, %v1465
      %v1515 = vadd.f32 %v1353, %v1468
      %v1516 = vadd.f32 %v1354, %v1471
      %v1517 = vadd.f32 %v1355, %v1474
      %v1518 = vadd.f32 %v1356, %v1477
      %v1519 = vadd.f32 %v1357, %v1480
      %v1520 = vadd.f32 %v1358, %v1483
      %v1521 = vadd.f32 %v1359, %v1486
      %v1522 = vadd.f32 %v1360, %v1489
      %1523 = vst [vmem:[#allocation3] sm:$0xff] %v1491
      %1524 = vst [vmem:[#allocation3 + $0x8] sm:$0xff] %v1492
      %1525 = vst [vmem:[#allocation3 + $0x10] sm:$0xff] %v1493
      %1526 = vst [vmem:[#allocation3 + $0x18] sm:$0xff] %v1494
      %1527 = vst [vmem:[#allocation3 + $0x20] sm:$0xff] %v1495
      %1528 = vst [vmem:[#allocation3 + $0x28] sm:$0xff] %v1496
      %1529 = vst [vmem:[#allocation3 + $0x30] sm:$0xff] %v1497
      %1530 = vst [vmem:[#allocation3 + $0x38] sm:$0xff] %v1498
      %1531 = vst [vmem:[#allocation3 + $0x40] sm:$0xff] %v1499
      %1532 = vst [vmem:[#allocation3 + $0x48] sm:$0xff] %v1500
      %1533 = vst [vmem:[#allocation3 + $0x50] sm:$0xff] %v1501
      %1534 = vst [vmem:[#allocation3 + $0x58] sm:$0xff] %v1502
      %1535 = vst [vmem:[#allocation3 + $0x60] sm:$0xff] %v1503
      %1536 = vst [vmem:[#allocation3 + $0x68] sm:$0xff] %v1504
      %1537 = vst [vmem:[#allocation3 + $0x70] sm:$0xff] %v1505
      %1538 = vst [vmem:[#allocation3 + $0x78] sm:$0xff] %v1506
      %1539 = vst [vmem:[#allocation3 + $0x80] sm:$0xff] %v1507
      %1540 = vst [vmem:[#allocation3 + $0x88] sm:$0xff] %v1508
      %1541 = vst [vmem:[#allocation3 + $0x90] sm:$0xff] %v1509
      %1542 = vst [vmem:[#allocation3 + $0x98] sm:$0xff] %v1510
      %1543 = vst [vmem:[#allocation3 + $0xa0] sm:$0xff] %v1511
      %1544 = vst [vmem:[#allocation3 + $0xa8] sm:$0xff] %v1512
      %1545 = vst [vmem:[#allocation3 + $0xb0] sm:$0xff] %v1513
      %1546 = vst [vmem:[#allocation3 + $0xb8] sm:$0xff] %v1514
      %1547 = vst [vmem:[#allocation3 + $0xc0] sm:$0xff] %v1515
      %1548 = vst [vmem:[#allocation3 + $0xc8] sm:$0xff] %v1516
      %1549 = vst [vmem:[#allocation3 + $0xd0] sm:$0xff] %v1517
      %1550 = vst [vmem:[#allocation3 + $0xd8] sm:$0xff] %v1518
      %1551 = vst [vmem:[#allocation3 + $0xe0] sm:$0xff] %v1519
      %1552 = vst [vmem:[#allocation3 + $0xe8] sm:$0xff] %v1520
      %1553 = vst [vmem:[#allocation3 + $0xf0] sm:$0xff] %v1521
      %1554 = vst [vmem:[#allocation3 + $0xf8] sm:$0xff] %v1522
      %v1555 = vld [vmem:[%s459 + $0x1] sm:$0xff]
      %v1556 = vld [vmem:[%s459 + $0x9] sm:$0xff]
      %v1557 = vld [vmem:[%s459 + $0x19] sm:$0xff]
      %v1558 = vld [vmem:[%s459 + $0x21] sm:$0xff]
      %v1559 = vld [vmem:[%s459 + $0x31] sm:$0xff]
      %v1560 = vld [vmem:[%s459 + $0x39] sm:$0xff]
      %v1561 = vld [vmem:[%s459 + $0x49] sm:$0xff]
      %v1562 = vld [vmem:[%s459 + $0x51] sm:$0xff]
      %v1563 = vld [vmem:[%s459 + $0x61] sm:$0xff]
      %v1564 = vld [vmem:[%s459 + $0x69] sm:$0xff]
      %v1565 = vld [vmem:[%s459 + $0x79] sm:$0xff]
      %v1566 = vld [vmem:[%s459 + $0x81] sm:$0xff]
      %v1567 = vld [vmem:[%s459 + $0x91] sm:$0xff]
      %v1568 = vld [vmem:[%s459 + $0x99] sm:$0xff]
      %v1569 = vld [vmem:[%s459 + $0xa9] sm:$0xff]
      %v1570 = vld [vmem:[%s459 + $0xb1] sm:$0xff]
      %v1571 = vld [vmem:[%s459 + $0xc1] sm:$0xff]
      %v1572 = vld [vmem:[%s459 + $0xc9] sm:$0xff]
      %v1573 = vld [vmem:[%s459 + $0xd9] sm:$0xff]
      %v1574 = vld [vmem:[%s459 + $0xe1] sm:$0xff]
      %v1575 = vld [vmem:[%s459 + $0xf1] sm:$0xff]
      %v1576 = vld [vmem:[%s459 + $0xf9] sm:$0xff]
      %v1577 = vld [vmem:[%s459 + $0x109] sm:$0xff]
      %v1578 = vld [vmem:[%s459 + $0x111] sm:$0xff]
      %v1579 = vld [vmem:[%s459 + $0x121] sm:$0xff]
      %v1580 = vld [vmem:[%s459 + $0x129] sm:$0xff]
      %v1581 = vld [vmem:[%s459 + $0x139] sm:$0xff]
      %v1582 = vld [vmem:[%s459 + $0x141] sm:$0xff]
      %v1583 = vld [vmem:[%s459 + $0x151] sm:$0xff]
      %v1584 = vld [vmem:[%s459 + $0x159] sm:$0xff]
      %v1585 = vld [vmem:[%s459 + $0x169] sm:$0xff]
      %v1586 = vld [vmem:[%s459 + $0x171] sm:$0xff]
      %v1587 = vld [vmem:[#allocation3] sm:$0xff]
      %v1588 = vld [vmem:[#allocation3 + $0x8] sm:$0xff]
      %v1589 = vld [vmem:[#allocation3 + $0x10] sm:$0xff]
      %v1590 = vld [vmem:[#allocation3 + $0x18] sm:$0xff]
      %v1591 = vld [vmem:[#allocation3 + $0x20] sm:$0xff]
      %v1592 = vld [vmem:[#allocation3 + $0x28] sm:$0xff]
      %v1593 = vld [vmem:[#allocation3 + $0x30] sm:$0xff]
      %v1594 = vld [vmem:[#allocation3 + $0x38] sm:$0xff]
      %v1595 = vld [vmem:[#allocation3 + $0x40] sm:$0xff]
      %v1596 = vld [vmem:[#allocation3 + $0x48] sm:$0xff]
      %v1597 = vld [vmem:[#allocation3 + $0x50] sm:$0xff]
      %v1598 = vld [vmem:[#allocation3 + $0x58] sm:$0xff]
      %v1599 = vld [vmem:[#allocation3 + $0x60] sm:$0xff]
      %v1600 = vld [vmem:[#allocation3 + $0x68] sm:$0xff]
      %v1601 = vld [vmem:[#allocation3 + $0x70] sm:$0xff]
      %v1602 = vld [vmem:[#allocation3 + $0x78] sm:$0xff]
      %v1603 = vld [vmem:[#allocation3 + $0x80] sm:$0xff]
      %v1604 = vld [vmem:[#allocation3 + $0x88] sm:$0xff]
      %v1605 = vld [vmem:[#allocation3 + $0x90] sm:$0xff]
      %v1606 = vld [vmem:[#allocation3 + $0x98] sm:$0xff]
      %v1607 = vld [vmem:[#allocation3 + $0xa0] sm:$0xff]
      %v1608 = vld [vmem:[#allocation3 + $0xa8] sm:$0xff]
      %v1609 = vld [vmem:[#allocation3 + $0xb0] sm:$0xff]
      %v1610 = vld [vmem:[#allocation3 + $0xb8] sm:$0xff]
      %v1611 = vld [vmem:[#allocation3 + $0xc0] sm:$0xff]
      %v1612 = vld [vmem:[#allocation3 + $0xc8] sm:$0xff]
      %v1613 = vld [vmem:[#allocation3 + $0xd0] sm:$0xff]
      %v1614 = vld [vmem:[#allocation3 + $0xd8] sm:$0xff]
      %v1615 = vld [vmem:[#allocation3 + $0xe0] sm:$0xff]
      %v1616 = vld [vmem:[#allocation3 + $0xe8] sm:$0xff]
      %v1617 = vld [vmem:[#allocation3 + $0xf0] sm:$0xff]
      %v1618 = vld [vmem:[#allocation3 + $0xf8] sm:$0xff]
      %s1619 = scalar_lea.vmem %s1, 512
      %v1620 = vld [vmem:[%s1619] sm:$0xff]
      %v1621 = vld [vmem:[%s1619 + $0x8] sm:$0xff]
      %v1622 = vld [vmem:[%s1619 + $0x10] sm:$0xff]
      %v1623 = vld [vmem:[%s1619 + $0x18] sm:$0xff]
      %v1624 = vld [vmem:[%s1619 + $0x20] sm:$0xff]
      %v1625 = vld [vmem:[%s1619 + $0x28] sm:$0xff]
      %v1626 = vld [vmem:[%s1619 + $0x30] sm:$0xff]
      %v1627 = vld [vmem:[%s1619 + $0x38] sm:$0xff]
      %v1628 = vld [vmem:[%s1619 + $0x40] sm:$0xff]
      %v1629 = vld [vmem:[%s1619 + $0x48] sm:$0xff]
      %v1630 = vld [vmem:[%s1619 + $0x50] sm:$0xff]
      %v1631 = vld [vmem:[%s1619 + $0x58] sm:$0xff]
      %v1632 = vld [vmem:[%s1619 + $0x60] sm:$0xff]
      %v1633 = vld [vmem:[%s1619 + $0x68] sm:$0xff]
      %v1634 = vld [vmem:[%s1619 + $0x70] sm:$0xff]
      %v1635 = vld [vmem:[%s1619 + $0x78] sm:$0xff]
      %1636 = vmatpush.msra.mxu0 %v1635
      %1637 = vmatpush.msra.mxu0 %v1634
      %1638 = vmatpush.msra.mxu0 %v1633
      %1639 = vmatpush.msra.mxu0 %v1632
      %1640 = vmatpush.msra.mxu0 %v1631
      %1641 = vmatpush.msra.mxu0 %v1630
      %1642 = vmatpush.msra.mxu0 %v1629
      %1643 = vmatpush.msra.mxu0 %v1628
      %1644 = vmatpush.msra.mxu0 %v1627
      %1645 = vmatpush.msra.mxu0 %v1626
      %1646 = vmatpush.msra.mxu0 %v1625
      %1647 = vmatpush.msra.mxu0 %v1624
      %1648 = vmatpush.msra.mxu0 %v1623
      %1649 = vmatpush.msra.mxu0 %v1622
      %1650 = vmatpush.msra.mxu0 %v1621
      %1651 = vmatpush.msra.mxu0 %v1620
      %1652 = vmatmul.f32.gmra.mxu0 %v1555
      %v1653 = vpop.f32.mrf.mxu0
      %v1654 = vadd.f32 0.0, %v1653
      %1655 = vmatmul.f32.gmra.mxu0 %v1556
      %v1656 = vpop.f32.mrf.mxu0
      %v1657 = vadd.f32 0.0, %v1656
      %1658 = vmatmul.f32.gmra.mxu0 %v1557
      %v1659 = vpop.f32.mrf.mxu0
      %v1660 = vadd.f32 0.0, %v1659
      %1661 = vmatmul.f32.gmra.mxu0 %v1558
      %v1662 = vpop.f32.mrf.mxu0
      %v1663 = vadd.f32 0.0, %v1662
      %1664 = vmatmul.f32.gmra.mxu0 %v1559
      %v1665 = vpop.f32.mrf.mxu0
      %v1666 = vadd.f32 0.0, %v1665
      %1667 = vmatmul.f32.gmra.mxu0 %v1560
      %v1668 = vpop.f32.mrf.mxu0
      %v1669 = vadd.f32 0.0, %v1668
      %1670 = vmatmul.f32.gmra.mxu0 %v1561
      %v1671 = vpop.f32.mrf.mxu0
      %v1672 = vadd.f32 0.0, %v1671
      %1673 = vmatmul.f32.gmra.mxu0 %v1562
      %v1674 = vpop.f32.mrf.mxu0
      %v1675 = vadd.f32 0.0, %v1674
      %1676 = vmatmul.f32.gmra.mxu0 %v1563
      %v1677 = vpop.f32.mrf.mxu0
      %v1678 = vadd.f32 0.0, %v1677
      %1679 = vmatmul.f32.gmra.mxu0 %v1564
      %v1680 = vpop.f32.mrf.mxu0
      %v1681 = vadd.f32 0.0, %v1680
      %1682 = vmatmul.f32.gmra.mxu0 %v1565
      %v1683 = vpop.f32.mrf.mxu0
      %v1684 = vadd.f32 0.0, %v1683
      %1685 = vmatmul.f32.gmra.mxu0 %v1566
      %v1686 = vpop.f32.mrf.mxu0
      %v1687 = vadd.f32 0.0, %v1686
      %1688 = vmatmul.f32.gmra.mxu0 %v1567
      %v1689 = vpop.f32.mrf.mxu0
      %v1690 = vadd.f32 0.0, %v1689
      %1691 = vmatmul.f32.gmra.mxu0 %v1568
      %v1692 = vpop.f32.mrf.mxu0
      %v1693 = vadd.f32 0.0, %v1692
      %1694 = vmatmul.f32.gmra.mxu0 %v1569
      %v1695 = vpop.f32.mrf.mxu0
      %v1696 = vadd.f32 0.0, %v1695
      %1697 = vmatmul.f32.gmra.mxu0 %v1570
      %v1698 = vpop.f32.mrf.mxu0
      %v1699 = vadd.f32 0.0, %v1698
      %1700 = vmatmul.f32.gmra.mxu0 %v1571
      %v1701 = vpop.f32.mrf.mxu0
      %v1702 = vadd.f32 0.0, %v1701
      %1703 = vmatmul.f32.gmra.mxu0 %v1572
      %v1704 = vpop.f32.mrf.mxu0
      %v1705 = vadd.f32 0.0, %v1704
      %1706 = vmatmul.f32.gmra.mxu0 %v1573
      %v1707 = vpop.f32.mrf.mxu0
      %v1708 = vadd.f32 0.0, %v1707
      %1709 = vmatmul.f32.gmra.mxu0 %v1574
      %v1710 = vpop.f32.mrf.mxu0
      %v1711 = vadd.f32 0.0, %v1710
      %1712 = vmatmul.f32.gmra.mxu0 %v1575
      %v1713 = vpop.f32.mrf.mxu0
      %v1714 = vadd.f32 0.0, %v1713
      %1715 = vmatmul.f32.gmra.mxu0 %v1576
      %v1716 = vpop.f32.mrf.mxu0
      %v1717 = vadd.f32 0.0, %v1716
      %1718 = vmatmul.f32.gmra.mxu0 %v1577
      %v1719 = vpop.f32.mrf.mxu0
      %v1720 = vadd.f32 0.0, %v1719
      %1721 = vmatmul.f32.gmra.mxu0 %v1578
      %v1722 = vpop.f32.mrf.mxu0
      %v1723 = vadd.f32 0.0, %v1722
      %1724 = vmatmul.f32.gmra.mxu0 %v1579
      %v1725 = vpop.f32.mrf.mxu0
      %v1726 = vadd.f32 0.0, %v1725
      %1727 = vmatmul.f32.gmra.mxu0 %v1580
      %v1728 = vpop.f32.mrf.mxu0
      %v1729 = vadd.f32 0.0, %v1728
      %1730 = vmatmul.f32.gmra.mxu0 %v1581
      %v1731 = vpop.f32.mrf.mxu0
      %v1732 = vadd.f32 0.0, %v1731
      %1733 = vmatmul.f32.gmra.mxu0 %v1582
      %v1734 = vpop.f32.mrf.mxu0
      %v1735 = vadd.f32 0.0, %v1734
      %1736 = vmatmul.f32.gmra.mxu0 %v1583
      %v1737 = vpop.f32.mrf.mxu0
      %v1738 = vadd.f32 0.0, %v1737
      %1739 = vmatmul.f32.gmra.mxu0 %v1584
      %v1740 = vpop.f32.mrf.mxu0
      %v1741 = vadd.f32 0.0, %v1740
      %1742 = vmatmul.f32.gmra.mxu0 %v1585
      %v1743 = vpop.f32.mrf.mxu0
      %v1744 = vadd.f32 0.0, %v1743
      %1745 = vmatmul.f32.gmra.mxu0 %v1586
      %v1746 = vpop.f32.mrf.mxu0
      %v1747 = vadd.f32 0.0, %v1746
      %1748 = vdwg.mxu0
      %v1749 = vadd.f32 %v1587, %v1654
      %v1750 = vadd.f32 %v1588, %v1657
      %v1751 = vadd.f32 %v1589, %v1660
      %v1752 = vadd.f32 %v1590, %v1663
      %v1753 = vadd.f32 %v1591, %v1666
      %v1754 = vadd.f32 %v1592, %v1669
      %v1755 = vadd.f32 %v1593, %v1672
      %v1756 = vadd.f32 %v1594, %v1675
      %v1757 = vadd.f32 %v1595, %v1678
      %v1758 = vadd.f32 %v1596, %v1681
      %v1759 = vadd.f32 %v1597, %v1684
      %v1760 = vadd.f32 %v1598, %v1687
      %v1761 = vadd.f32 %v1599, %v1690
      %v1762 = vadd.f32 %v1600, %v1693
      %v1763 = vadd.f32 %v1601, %v1696
      %v1764 = vadd.f32 %v1602, %v1699
      %v1765 = vadd.f32 %v1603, %v1702
      %v1766 = vadd.f32 %v1604, %v1705
      %v1767 = vadd.f32 %v1605, %v1708
      %v1768 = vadd.f32 %v1606, %v1711
      %v1769 = vadd.f32 %v1607, %v1714
      %v1770 = vadd.f32 %v1608, %v1717
      %v1771 = vadd.f32 %v1609, %v1720
      %v1772 = vadd.f32 %v1610, %v1723
      %v1773 = vadd.f32 %v1611, %v1726
      %v1774 = vadd.f32 %v1612, %v1729
      %v1775 = vadd.f32 %v1613, %v1732
      %v1776 = vadd.f32 %v1614, %v1735
      %v1777 = vadd.f32 %v1615, %v1738
      %v1778 = vadd.f32 %v1616, %v1741
      %v1779 = vadd.f32 %v1617, %v1744
      %v1780 = vadd.f32 %v1618, %v1747
      %1781 = vst [vmem:[#allocation3] sm:$0xff] %v1749
      %1782 = vst [vmem:[#allocation3 + $0x8] sm:$0xff] %v1750
      %1783 = vst [vmem:[#allocation3 + $0x10] sm:$0xff] %v1751
      %1784 = vst [vmem:[#allocation3 + $0x18] sm:$0xff] %v1752
      %1785 = vst [vmem:[#allocation3 + $0x20] sm:$0xff] %v1753
      %1786 = vst [vmem:[#allocation3 + $0x28] sm:$0xff] %v1754
      %1787 = vst [vmem:[#allocation3 + $0x30] sm:$0xff] %v1755
      %1788 = vst [vmem:[#allocation3 + $0x38] sm:$0xff] %v1756
      %1789 = vst [vmem:[#allocation3 + $0x40] sm:$0xff] %v1757
      %1790 = vst [vmem:[#allocation3 + $0x48] sm:$0xff] %v1758
      %1791 = vst [vmem:[#allocation3 + $0x50] sm:$0xff] %v1759
      %1792 = vst [vmem:[#allocation3 + $0x58] sm:$0xff] %v1760
      %1793 = vst [vmem:[#allocation3 + $0x60] sm:$0xff] %v1761
      %1794 = vst [vmem:[#allocation3 + $0x68] sm:$0xff] %v1762
      %1795 = vst [vmem:[#allocation3 + $0x70] sm:$0xff] %v1763
      %1796 = vst [vmem:[#allocation3 + $0x78] sm:$0xff] %v1764
      %1797 = vst [vmem:[#allocation3 + $0x80] sm:$0xff] %v1765
      %1798 = vst [vmem:[#allocation3 + $0x88] sm:$0xff] %v1766
      %1799 = vst [vmem:[#allocation3 + $0x90] sm:$0xff] %v1767
      %1800 = vst [vmem:[#allocation3 + $0x98] sm:$0xff] %v1768
      %1801 = vst [vmem:[#allocation3 + $0xa0] sm:$0xff] %v1769
      %1802 = vst [vmem:[#allocation3 + $0xa8] sm:$0xff] %v1770
      %1803 = vst [vmem:[#allocation3 + $0xb0] sm:$0xff] %v1771
      %1804 = vst [vmem:[#allocation3 + $0xb8] sm:$0xff] %v1772
      %1805 = vst [vmem:[#allocation3 + $0xc0] sm:$0xff] %v1773
      %1806 = vst [vmem:[#allocation3 + $0xc8] sm:$0xff] %v1774
      %1807 = vst [vmem:[#allocation3 + $0xd0] sm:$0xff] %v1775
      %1808 = vst [vmem:[#allocation3 + $0xd8] sm:$0xff] %v1776
      %1809 = vst [vmem:[#allocation3 + $0xe0] sm:$0xff] %v1777
      %1810 = vst [vmem:[#allocation3 + $0xe8] sm:$0xff] %v1778
      %1811 = vst [vmem:[#allocation3 + $0xf0] sm:$0xff] %v1779
      %1812 = vst [vmem:[#allocation3 + $0xf8] sm:$0xff] %v1780
      %v1813 = vld [vmem:[%s459 + $0x2] sm:$0xff]
      %v1814 = vld [vmem:[%s459 + $0xa] sm:$0xff]
      %v1815 = vld [vmem:[%s459 + $0x1a] sm:$0xff]
      %v1816 = vld [vmem:[%s459 + $0x22] sm:$0xff]
      %v1817 = vld [vmem:[%s459 + $0x32] sm:$0xff]
      %v1818 = vld [vmem:[%s459 + $0x3a] sm:$0xff]
      %v1819 = vld [vmem:[%s459 + $0x4a] sm:$0xff]
      %v1820 = vld [vmem:[%s459 + $0x52] sm:$0xff]
      %v1821 = vld [vmem:[%s459 + $0x62] sm:$0xff]
      %v1822 = vld [vmem:[%s459 + $0x6a] sm:$0xff]
      %v1823 = vld [vmem:[%s459 + $0x7a] sm:$0xff]
      %v1824 = vld [vmem:[%s459 + $0x82] sm:$0xff]
      %v1825 = vld [vmem:[%s459 + $0x92] sm:$0xff]
      %v1826 = vld [vmem:[%s459 + $0x9a] sm:$0xff]
      %v1827 = vld [vmem:[%s459 + $0xaa] sm:$0xff]
      %v1828 = vld [vmem:[%s459 + $0xb2] sm:$0xff]
      %v1829 = vld [vmem:[%s459 + $0xc2] sm:$0xff]
      %v1830 = vld [vmem:[%s459 + $0xca] sm:$0xff]
      %v1831 = vld [vmem:[%s459 + $0xda] sm:$0xff]
      %v1832 = vld [vmem:[%s459 + $0xe2] sm:$0xff]
      %v1833 = vld [vmem:[%s459 + $0xf2] sm:$0xff]
      %v1834 = vld [vmem:[%s459 + $0xfa] sm:$0xff]
      %v1835 = vld [vmem:[%s459 + $0x10a] sm:$0xff]
      %v1836 = vld [vmem:[%s459 + $0x112] sm:$0xff]
      %v1837 = vld [vmem:[%s459 + $0x122] sm:$0xff]
      %v1838 = vld [vmem:[%s459 + $0x12a] sm:$0xff]
      %v1839 = vld [vmem:[%s459 + $0x13a] sm:$0xff]
      %v1840 = vld [vmem:[%s459 + $0x142] sm:$0xff]
      %v1841 = vld [vmem:[%s459 + $0x152] sm:$0xff]
      %v1842 = vld [vmem:[%s459 + $0x15a] sm:$0xff]
      %v1843 = vld [vmem:[%s459 + $0x16a] sm:$0xff]
      %v1844 = vld [vmem:[%s459 + $0x172] sm:$0xff]
      %v1845 = vld [vmem:[#allocation3] sm:$0xff]
      %v1846 = vld [vmem:[#allocation3 + $0x8] sm:$0xff]
      %v1847 = vld [vmem:[#allocation3 + $0x10] sm:$0xff]
      %v1848 = vld [vmem:[#allocation3 + $0x18] sm:$0xff]
      %v1849 = vld [vmem:[#allocation3 + $0x20] sm:$0xff]
      %v1850 = vld [vmem:[#allocation3 + $0x28] sm:$0xff]
      %v1851 = vld [vmem:[#allocation3 + $0x30] sm:$0xff]
      %v1852 = vld [vmem:[#allocation3 + $0x38] sm:$0xff]
      %v1853 = vld [vmem:[#allocation3 + $0x40] sm:$0xff]
      %v1854 = vld [vmem:[#allocation3 + $0x48] sm:$0xff]
      %v1855 = vld [vmem:[#allocation3 + $0x50] sm:$0xff]
      %v1856 = vld [vmem:[#allocation3 + $0x58] sm:$0xff]
      %v1857 = vld [vmem:[#allocation3 + $0x60] sm:$0xff]
      %v1858 = vld [vmem:[#allocation3 + $0x68] sm:$0xff]
      %v1859 = vld [vmem:[#allocation3 + $0x70] sm:$0xff]
      %v1860 = vld [vmem:[#allocation3 + $0x78] sm:$0xff]
      %v1861 = vld [vmem:[#allocation3 + $0x80] sm:$0xff]
      %v1862 = vld [vmem:[#allocation3 + $0x88] sm:$0xff]
      %v1863 = vld [vmem:[#allocation3 + $0x90] sm:$0xff]
      %v1864 = vld [vmem:[#allocation3 + $0x98] sm:$0xff]
      %v1865 = vld [vmem:[#allocation3 + $0xa0] sm:$0xff]
      %v1866 = vld [vmem:[#allocation3 + $0xa8] sm:$0xff]
      %v1867 = vld [vmem:[#allocation3 + $0xb0] sm:$0xff]
      %v1868 = vld [vmem:[#allocation3 + $0xb8] sm:$0xff]
      %v1869 = vld [vmem:[#allocation3 + $0xc0] sm:$0xff]
      %v1870 = vld [vmem:[#allocation3 + $0xc8] sm:$0xff]
      %v1871 = vld [vmem:[#allocation3 + $0xd0] sm:$0xff]
      %v1872 = vld [vmem:[#allocation3 + $0xd8] sm:$0xff]
      %v1873 = vld [vmem:[#allocation3 + $0xe0] sm:$0xff]
      %v1874 = vld [vmem:[#allocation3 + $0xe8] sm:$0xff]
      %v1875 = vld [vmem:[#allocation3 + $0xf0] sm:$0xff]
      %v1876 = vld [vmem:[#allocation3 + $0xf8] sm:$0xff]
      %s1877 = scalar_lea.vmem %s1, 640
      %v1878 = vld [vmem:[%s1877] sm:$0xff]
      %v1879 = vld [vmem:[%s1877 + $0x8] sm:$0xff]
      %v1880 = vld [vmem:[%s1877 + $0x10] sm:$0xff]
      %v1881 = vld [vmem:[%s1877 + $0x18] sm:$0xff]
      %v1882 = vld [vmem:[%s1877 + $0x20] sm:$0xff]
      %v1883 = vld [vmem:[%s1877 + $0x28] sm:$0xff]
      %v1884 = vld [vmem:[%s1877 + $0x30] sm:$0xff]
      %v1885 = vld [vmem:[%s1877 + $0x38] sm:$0xff]
      %v1886 = vld [vmem:[%s1877 + $0x40] sm:$0xff]
      %v1887 = vld [vmem:[%s1877 + $0x48] sm:$0xff]
      %v1888 = vld [vmem:[%s1877 + $0x50] sm:$0xff]
      %v1889 = vld [vmem:[%s1877 + $0x58] sm:$0xff]
      %v1890 = vld [vmem:[%s1877 + $0x60] sm:$0xff]
      %v1891 = vld [vmem:[%s1877 + $0x68] sm:$0xff]
      %v1892 = vld [vmem:[%s1877 + $0x70] sm:$0xff]
      %v1893 = vld [vmem:[%s1877 + $0x78] sm:$0xff]
      %1894 = vmatpush.msra.mxu0 %v1893
      %1895 = vmatpush.msra.mxu0 %v1892
      %1896 = vmatpush.msra.mxu0 %v1891
      %1897 = vmatpush.msra.mxu0 %v1890
      %1898 = vmatpush.msra.mxu0 %v1889
      %1899 = vmatpush.msra.mxu0 %v1888
      %1900 = vmatpush.msra.mxu0 %v1887
      %1901 = vmatpush.msra.mxu0 %v1886
      %1902 = vmatpush.msra.mxu0 %v1885
      %1903 = vmatpush.msra.mxu0 %v1884
      %1904 = vmatpush.msra.mxu0 %v1883
      %1905 = vmatpush.msra.mxu0 %v1882
      %1906 = vmatpush.msra.mxu0 %v1881
      %1907 = vmatpush.msra.mxu0 %v1880
      %1908 = vmatpush.msra.mxu0 %v1879
      %1909 = vmatpush.msra.mxu0 %v1878
      %1910 = vmatmul.f32.gmra.mxu0 %v1813
      %v1911 = vpop.f32.mrf.mxu0
      %v1912 = vadd.f32 0.0, %v1911
      %1913 = vmatmul.f32.gmra.mxu0 %v1814
      %v1914 = vpop.f32.mrf.mxu0
      %v1915 = vadd.f32 0.0, %v1914
      %1916 = vmatmul.f32.gmra.mxu0 %v1815
      %v1917 = vpop.f32.mrf.mxu0
      %v1918 = vadd.f32 0.0, %v1917
      %1919 = vmatmul.f32.gmra.mxu0 %v1816
      %v1920 = vpop.f32.mrf.mxu0
      %v1921 = vadd.f32 0.0, %v1920
      %1922 = vmatmul.f32.gmra.mxu0 %v1817
      %v1923 = vpop.f32.mrf.mxu0
      %v1924 = vadd.f32 0.0, %v1923
      %1925 = vmatmul.f32.gmra.mxu0 %v1818
      %v1926 = vpop.f32.mrf.mxu0
      %v1927 = vadd.f32 0.0, %v1926
      %1928 = vmatmul.f32.gmra.mxu0 %v1819
      %v1929 = vpop.f32.mrf.mxu0
      %v1930 = vadd.f32 0.0, %v1929
      %1931 = vmatmul.f32.gmra.mxu0 %v1820
      %v1932 = vpop.f32.mrf.mxu0
      %v1933 = vadd.f32 0.0, %v1932
      %1934 = vmatmul.f32.gmra.mxu0 %v1821
      %v1935 = vpop.f32.mrf.mxu0
      %v1936 = vadd.f32 0.0, %v1935
      %1937 = vmatmul.f32.gmra.mxu0 %v1822
      %v1938 = vpop.f32.mrf.mxu0
      %v1939 = vadd.f32 0.0, %v1938
      %1940 = vmatmul.f32.gmra.mxu0 %v1823
      %v1941 = vpop.f32.mrf.mxu0
      %v1942 = vadd.f32 0.0, %v1941
      %1943 = vmatmul.f32.gmra.mxu0 %v1824
      %v1944 = vpop.f32.mrf.mxu0
      %v1945 = vadd.f32 0.0, %v1944
      %1946 = vmatmul.f32.gmra.mxu0 %v1825
      %v1947 = vpop.f32.mrf.mxu0
      %v1948 = vadd.f32 0.0, %v1947
      %1949 = vmatmul.f32.gmra.mxu0 %v1826
      %v1950 = vpop.f32.mrf.mxu0
      %v1951 = vadd.f32 0.0, %v1950
      %1952 = vmatmul.f32.gmra.mxu0 %v1827
      %v1953 = vpop.f32.mrf.mxu0
      %v1954 = vadd.f32 0.0, %v1953
      %1955 = vmatmul.f32.gmra.mxu0 %v1828
      %v1956 = vpop.f32.mrf.mxu0
      %v1957 = vadd.f32 0.0, %v1956
      %1958 = vmatmul.f32.gmra.mxu0 %v1829
      %v1959 = vpop.f32.mrf.mxu0
      %v1960 = vadd.f32 0.0, %v1959
      %1961 = vmatmul.f32.gmra.mxu0 %v1830
      %v1962 = vpop.f32.mrf.mxu0
      %v1963 = vadd.f32 0.0, %v1962
      %1964 = vmatmul.f32.gmra.mxu0 %v1831
      %v1965 = vpop.f32.mrf.mxu0
      %v1966 = vadd.f32 0.0, %v1965
      %1967 = vmatmul.f32.gmra.mxu0 %v1832
      %v1968 = vpop.f32.mrf.mxu0
      %v1969 = vadd.f32 0.0, %v1968
      %1970 = vmatmul.f32.gmra.mxu0 %v1833
      %v1971 = vpop.f32.mrf.mxu0
      %v1972 = vadd.f32 0.0, %v1971
      %1973 = vmatmul.f32.gmra.mxu0 %v1834
      %v1974 = vpop.f32.mrf.mxu0
      %v1975 = vadd.f32 0.0, %v1974
      %1976 = vmatmul.f32.gmra.mxu0 %v1835
      %v1977 = vpop.f32.mrf.mxu0
      %v1978 = vadd.f32 0.0, %v1977
      %1979 = vmatmul.f32.gmra.mxu0 %v1836
      %v1980 = vpop.f32.mrf.mxu0
      %v1981 = vadd.f32 0.0, %v1980
      %1982 = vmatmul.f32.gmra.mxu0 %v1837
      %v1983 = vpop.f32.mrf.mxu0
      %v1984 = vadd.f32 0.0, %v1983
      %1985 = vmatmul.f32.gmra.mxu0 %v1838
      %v1986 = vpop.f32.mrf.mxu0
      %v1987 = vadd.f32 0.0, %v1986
      %1988 = vmatmul.f32.gmra.mxu0 %v1839
      %v1989 = vpop.f32.mrf.mxu0
      %v1990 = vadd.f32 0.0, %v1989
      %1991 = vmatmul.f32.gmra.mxu0 %v1840
      %v1992 = vpop.f32.mrf.mxu0
      %v1993 = vadd.f32 0.0, %v1992
      %1994 = vmatmul.f32.gmra.mxu0 %v1841
      %v1995 = vpop.f32.mrf.mxu0
      %v1996 = vadd.f32 0.0, %v1995
      %1997 = vmatmul.f32.gmra.mxu0 %v1842
      %v1998 = vpop.f32.mrf.mxu0
      %v1999 = vadd.f32 0.0, %v1998
      %2000 = vmatmul.f32.gmra.mxu0 %v1843
      %v2001 = vpop.f32.mrf.mxu0
      %v2002 = vadd.f32 0.0, %v2001
      %2003 = vmatmul.f32.gmra.mxu0 %v1844
      %v2004 = vpop.f32.mrf.mxu0
      %v2005 = vadd.f32 0.0, %v2004
      %2006 = vdwg.mxu0
      %v2007 = vadd.f32 %v1845, %v1912
      %v2008 = vadd.f32 %v1846, %v1915
      %v2009 = vadd.f32 %v1847, %v1918
      %v2010 = vadd.f32 %v1848, %v1921
      %v2011 = vadd.f32 %v1849, %v1924
      %v2012 = vadd.f32 %v1850, %v1927
      %v2013 = vadd.f32 %v1851, %v1930
      %v2014 = vadd.f32 %v1852, %v1933
      %v2015 = vadd.f32 %v1853, %v1936
      %v2016 = vadd.f32 %v1854, %v1939
      %v2017 = vadd.f32 %v1855, %v1942
      %v2018 = vadd.f32 %v1856, %v1945
      %v2019 = vadd.f32 %v1857, %v1948
      %v2020 = vadd.f32 %v1858, %v1951
      %v2021 = vadd.f32 %v1859, %v1954
      %v2022 = vadd.f32 %v1860, %v1957
      %v2023 = vadd.f32 %v1861, %v1960
      %v2024 = vadd.f32 %v1862, %v1963
      %v2025 = vadd.f32 %v1863, %v1966
      %v2026 = vadd.f32 %v1864, %v1969
      %v2027 = vadd.f32 %v1865, %v1972
      %v2028 = vadd.f32 %v1866, %v1975
      %v2029 = vadd.f32 %v1867, %v1978
      %v2030 = vadd.f32 %v1868, %v1981
      %v2031 = vadd.f32 %v1869, %v1984
      %v2032 = vadd.f32 %v1870, %v1987
      %v2033 = vadd.f32 %v1871, %v1990
      %v2034 = vadd.f32 %v1872, %v1993
      %v2035 = vadd.f32 %v1873, %v1996
      %v2036 = vadd.f32 %v1874, %v1999
      %v2037 = vadd.f32 %v1875, %v2002
      %v2038 = vadd.f32 %v1876, %v2005
      %2039 = vst [vmem:[#allocation3] sm:$0xff] %v2007
      %2040 = vst [vmem:[#allocation3 + $0x8] sm:$0xff] %v2008
      %2041 = vst [vmem:[#allocation3 + $0x10] sm:$0xff] %v2009
      %2042 = vst [vmem:[#allocation3 + $0x18] sm:$0xff] %v2010
      %2043 = vst [vmem:[#allocation3 + $0x20] sm:$0xff] %v2011
      %2044 = vst [vmem:[#allocation3 + $0x28] sm:$0xff] %v2012
      %2045 = vst [vmem:[#allocation3 + $0x30] sm:$0xff] %v2013
      %2046 = vst [vmem:[#allocation3 + $0x38] sm:$0xff] %v2014
      %2047 = vst [vmem:[#allocation3 + $0x40] sm:$0xff] %v2015
      %2048 = vst [vmem:[#allocation3 + $0x48] sm:$0xff] %v2016
      %2049 = vst [vmem:[#allocation3 + $0x50] sm:$0xff] %v2017
      %2050 = vst [vmem:[#allocation3 + $0x58] sm:$0xff] %v2018
      %2051 = vst [vmem:[#allocation3 + $0x60] sm:$0xff] %v2019
      %2052 = vst [vmem:[#allocation3 + $0x68] sm:$0xff] %v2020
      %2053 = vst [vmem:[#allocation3 + $0x70] sm:$0xff] %v2021
      %2054 = vst [vmem:[#allocation3 + $0x78] sm:$0xff] %v2022
      %2055 = vst [vmem:[#allocation3 + $0x80] sm:$0xff] %v2023
      %2056 = vst [vmem:[#allocation3 + $0x88] sm:$0xff] %v2024
      %2057 = vst [vmem:[#allocation3 + $0x90] sm:$0xff] %v2025
      %2058 = vst [vmem:[#allocation3 + $0x98] sm:$0xff] %v2026
      %2059 = vst [vmem:[#allocation3 + $0xa0] sm:$0xff] %v2027
      %2060 = vst [vmem:[#allocation3 + $0xa8] sm:$0xff] %v2028
      %2061 = vst [vmem:[#allocation3 + $0xb0] sm:$0xff] %v2029
      %2062 = vst [vmem:[#allocation3 + $0xb8] sm:$0xff] %v2030
      %2063 = vst [vmem:[#allocation3 + $0xc0] sm:$0xff] %v2031
      %2064 = vst [vmem:[#allocation3 + $0xc8] sm:$0xff] %v2032
      %2065 = vst [vmem:[#allocation3 + $0xd0] sm:$0xff] %v2033
      %2066 = vst [vmem:[#allocation3 + $0xd8] sm:$0xff] %v2034
      %2067 = vst [vmem:[#allocation3 + $0xe0] sm:$0xff] %v2035
      %2068 = vst [vmem:[#allocation3 + $0xe8] sm:$0xff] %v2036
      %2069 = vst [vmem:[#allocation3 + $0xf0] sm:$0xff] %v2037
      %2070 = vst [vmem:[#allocation3 + $0xf8] sm:$0xff] %v2038
      %s2071 = scalar_lea.vmem [#allocation2], 48
      %v2072 = vld [vmem:[%s2071] sm:$0xff]
      %v2073 = vld [vmem:[%s2071 + $0x8] sm:$0xff]
      %v2074 = vld [vmem:[%s2071 + $0x18] sm:$0xff]
      %v2075 = vld [vmem:[%s2071 + $0x20] sm:$0xff]
      %v2076 = vld [vmem:[%s2071 + $0x30] sm:$0xff]
      %v2077 = vld [vmem:[%s2071 + $0x38] sm:$0xff]
      %v2078 = vld [vmem:[%s2071 + $0x48] sm:$0xff]
      %v2079 = vld [vmem:[%s2071 + $0x50] sm:$0xff]
      %v2080 = vld [vmem:[%s2071 + $0x60] sm:$0xff]
      %v2081 = vld [vmem:[%s2071 + $0x68] sm:$0xff]
      %v2082 = vld [vmem:[%s2071 + $0x78] sm:$0xff]
      %v2083 = vld [vmem:[%s2071 + $0x80] sm:$0xff]
      %v2084 = vld [vmem:[%s2071 + $0x90] sm:$0xff]
      %v2085 = vld [vmem:[%s2071 + $0x98] sm:$0xff]
      %v2086 = vld [vmem:[%s2071 + $0xa8] sm:$0xff]
      %v2087 = vld [vmem:[%s2071 + $0xb0] sm:$0xff]
      %v2088 = vld [vmem:[%s2071 + $0xc0] sm:$0xff]
      %v2089 = vld [vmem:[%s2071 + $0xc8] sm:$0xff]
      %v2090 = vld [vmem:[%s2071 + $0xd8] sm:$0xff]
      %v2091 = vld [vmem:[%s2071 + $0xe0] sm:$0xff]
      %v2092 = vld [vmem:[%s2071 + $0xf0] sm:$0xff]
      %v2093 = vld [vmem:[%s2071 + $0xf8] sm:$0xff]
      %v2094 = vld [vmem:[%s2071 + $0x108] sm:$0xff]
      %v2095 = vld [vmem:[%s2071 + $0x110] sm:$0xff]
      %v2096 = vld [vmem:[%s2071 + $0x120] sm:$0xff]
      %v2097 = vld [vmem:[%s2071 + $0x128] sm:$0xff]
      %v2098 = vld [vmem:[%s2071 + $0x138] sm:$0xff]
      %v2099 = vld [vmem:[%s2071 + $0x140] sm:$0xff]
      %v2100 = vld [vmem:[%s2071 + $0x150] sm:$0xff]
      %v2101 = vld [vmem:[%s2071 + $0x158] sm:$0xff]
      %v2102 = vld [vmem:[%s2071 + $0x168] sm:$0xff]
      %v2103 = vld [vmem:[%s2071 + $0x170] sm:$0xff]
      %v2104 = vld [vmem:[#allocation3] sm:$0xff]
      %v2105 = vld [vmem:[#allocation3 + $0x8] sm:$0xff]
      %v2106 = vld [vmem:[#allocation3 + $0x10] sm:$0xff]
      %v2107 = vld [vmem:[#allocation3 + $0x18] sm:$0xff]
      %v2108 = vld [vmem:[#allocation3 + $0x20] sm:$0xff]
      %v2109 = vld [vmem:[#allocation3 + $0x28] sm:$0xff]
      %v2110 = vld [vmem:[#allocation3 + $0x30] sm:$0xff]
      %v2111 = vld [vmem:[#allocation3 + $0x38] sm:$0xff]
      %v2112 = vld [vmem:[#allocation3 + $0x40] sm:$0xff]
      %v2113 = vld [vmem:[#allocation3 + $0x48] sm:$0xff]
      %v2114 = vld [vmem:[#allocation3 + $0x50] sm:$0xff]
      %v2115 = vld [vmem:[#allocation3 + $0x58] sm:$0xff]
      %v2116 = vld [vmem:[#allocation3 + $0x60] sm:$0xff]
      %v2117 = vld [vmem:[#allocation3 + $0x68] sm:$0xff]
      %v2118 = vld [vmem:[#allocation3 + $0x70] sm:$0xff]
      %v2119 = vld [vmem:[#allocation3 + $0x78] sm:$0xff]
      %v2120 = vld [vmem:[#allocation3 + $0x80] sm:$0xff]
      %v2121 = vld [vmem:[#allocation3 + $0x88] sm:$0xff]
      %v2122 = vld [vmem:[#allocation3 + $0x90] sm:$0xff]
      %v2123 = vld [vmem:[#allocation3 + $0x98] sm:$0xff]
      %v2124 = vld [vmem:[#allocation3 + $0xa0] sm:$0xff]
      %v2125 = vld [vmem:[#allocation3 + $0xa8] sm:$0xff]
      %v2126 = vld [vmem:[#allocation3 + $0xb0] sm:$0xff]
      %v2127 = vld [vmem:[#allocation3 + $0xb8] sm:$0xff]
      %v2128 = vld [vmem:[#allocation3 + $0xc0] sm:$0xff]
      %v2129 = vld [vmem:[#allocation3 + $0xc8] sm:$0xff]
      %v2130 = vld [vmem:[#allocation3 + $0xd0] sm:$0xff]
      %v2131 = vld [vmem:[#allocation3 + $0xd8] sm:$0xff]
      %v2132 = vld [vmem:[#allocation3 + $0xe0] sm:$0xff]
      %v2133 = vld [vmem:[#allocation3 + $0xe8] sm:$0xff]
      %v2134 = vld [vmem:[#allocation3 + $0xf0] sm:$0xff]
      %v2135 = vld [vmem:[#allocation3 + $0xf8] sm:$0xff]
      %s2136 = scalar_lea.vmem %s1, 768
      %v2137 = vld [vmem:[%s2136] sm:$0xff]
      %v2138 = vld [vmem:[%s2136 + $0x8] sm:$0xff]
      %v2139 = vld [vmem:[%s2136 + $0x10] sm:$0xff]
      %v2140 = vld [vmem:[%s2136 + $0x18] sm:$0xff]
      %v2141 = vld [vmem:[%s2136 + $0x20] sm:$0xff]
      %v2142 = vld [vmem:[%s2136 + $0x28] sm:$0xff]
      %v2143 = vld [vmem:[%s2136 + $0x30] sm:$0xff]
      %v2144 = vld [vmem:[%s2136 + $0x38] sm:$0xff]
      %v2145 = vld [vmem:[%s2136 + $0x40] sm:$0xff]
      %v2146 = vld [vmem:[%s2136 + $0x48] sm:$0xff]
      %v2147 = vld [vmem:[%s2136 + $0x50] sm:$0xff]
      %v2148 = vld [vmem:[%s2136 + $0x58] sm:$0xff]
      %v2149 = vld [vmem:[%s2136 + $0x60] sm:$0xff]
      %v2150 = vld [vmem:[%s2136 + $0x68] sm:$0xff]
      %v2151 = vld [vmem:[%s2136 + $0x70] sm:$0xff]
      %v2152 = vld [vmem:[%s2136 + $0x78] sm:$0xff]
      %2153 = vmatpush.msra.mxu0 %v2152
      %2154 = vmatpush.msra.mxu0 %v2151
      %2155 = vmatpush.msra.mxu0 %v2150
      %2156 = vmatpush.msra.mxu0 %v2149
      %2157 = vmatpush.msra.mxu0 %v2148
      %2158 = vmatpush.msra.mxu0 %v2147
      %2159 = vmatpush.msra.mxu0 %v2146
      %2160 = vmatpush.msra.mxu0 %v2145
      %2161 = vmatpush.msra.mxu0 %v2144
      %2162 = vmatpush.msra.mxu0 %v2143
      %2163 = vmatpush.msra.mxu0 %v2142
      %2164 = vmatpush.msra.mxu0 %v2141
      %2165 = vmatpush.msra.mxu0 %v2140
      %2166 = vmatpush.msra.mxu0 %v2139
      %2167 = vmatpush.msra.mxu0 %v2138
      %2168 = vmatpush.msra.mxu0 %v2137
      %2169 = vmatmul.f32.gmra.mxu0 %v2072
      %v2170 = vpop.f32.mrf.mxu0
      %v2171 = vadd.f32 0.0, %v2170
      %2172 = vmatmul.f32.gmra.mxu0 %v2073
      %v2173 = vpop.f32.mrf.mxu0
      %v2174 = vadd.f32 0.0, %v2173
      %2175 = vmatmul.f32.gmra.mxu0 %v2074
      %v2176 = vpop.f32.mrf.mxu0
      %v2177 = vadd.f32 0.0, %v2176
      %2178 = vmatmul.f32.gmra.mxu0 %v2075
      %v2179 = vpop.f32.mrf.mxu0
      %v2180 = vadd.f32 0.0, %v2179
      %2181 = vmatmul.f32.gmra.mxu0 %v2076
      %v2182 = vpop.f32.mrf.mxu0
      %v2183 = vadd.f32 0.0, %v2182
      %2184 = vmatmul.f32.gmra.mxu0 %v2077
      %v2185 = vpop.f32.mrf.mxu0
      %v2186 = vadd.f32 0.0, %v2185
      %2187 = vmatmul.f32.gmra.mxu0 %v2078
      %v2188 = vpop.f32.mrf.mxu0
      %v2189 = vadd.f32 0.0, %v2188
      %2190 = vmatmul.f32.gmra.mxu0 %v2079
      %v2191 = vpop.f32.mrf.mxu0
      %v2192 = vadd.f32 0.0, %v2191
      %2193 = vmatmul.f32.gmra.mxu0 %v2080
      %v2194 = vpop.f32.mrf.mxu0
      %v2195 = vadd.f32 0.0, %v2194
      %2196 = vmatmul.f32.gmra.mxu0 %v2081
      %v2197 = vpop.f32.mrf.mxu0
      %v2198 = vadd.f32 0.0, %v2197
      %2199 = vmatmul.f32.gmra.mxu0 %v2082
      %v2200 = vpop.f32.mrf.mxu0
      %v2201 = vadd.f32 0.0, %v2200
      %2202 = vmatmul.f32.gmra.mxu0 %v2083
      %v2203 = vpop.f32.mrf.mxu0
      %v2204 = vadd.f32 0.0, %v2203
      %2205 = vmatmul.f32.gmra.mxu0 %v2084
      %v2206 = vpop.f32.mrf.mxu0
      %v2207 = vadd.f32 0.0, %v2206
      %2208 = vmatmul.f32.gmra.mxu0 %v2085
      %v2209 = vpop.f32.mrf.mxu0
      %v2210 = vadd.f32 0.0, %v2209
      %2211 = vmatmul.f32.gmra.mxu0 %v2086
      %v2212 = vpop.f32.mrf.mxu0
      %v2213 = vadd.f32 0.0, %v2212
      %2214 = vmatmul.f32.gmra.mxu0 %v2087
      %v2215 = vpop.f32.mrf.mxu0
      %v2216 = vadd.f32 0.0, %v2215
      %2217 = vmatmul.f32.gmra.mxu0 %v2088
      %v2218 = vpop.f32.mrf.mxu0
      %v2219 = vadd.f32 0.0, %v2218
      %2220 = vmatmul.f32.gmra.mxu0 %v2089
      %v2221 = vpop.f32.mrf.mxu0
      %v2222 = vadd.f32 0.0, %v2221
      %2223 = vmatmul.f32.gmra.mxu0 %v2090
      %v2224 = vpop.f32.mrf.mxu0
      %v2225 = vadd.f32 0.0, %v2224
      %2226 = vmatmul.f32.gmra.mxu0 %v2091
      %v2227 = vpop.f32.mrf.mxu0
      %v2228 = vadd.f32 0.0, %v2227
      %2229 = vmatmul.f32.gmra.mxu0 %v2092
      %v2230 = vpop.f32.mrf.mxu0
      %v2231 = vadd.f32 0.0, %v2230
      %2232 = vmatmul.f32.gmra.mxu0 %v2093
      %v2233 = vpop.f32.mrf.mxu0
      %v2234 = vadd.f32 0.0, %v2233
      %2235 = vmatmul.f32.gmra.mxu0 %v2094
      %v2236 = vpop.f32.mrf.mxu0
      %v2237 = vadd.f32 0.0, %v2236
      %2238 = vmatmul.f32.gmra.mxu0 %v2095
      %v2239 = vpop.f32.mrf.mxu0
      %v2240 = vadd.f32 0.0, %v2239
      %2241 = vmatmul.f32.gmra.mxu0 %v2096
      %v2242 = vpop.f32.mrf.mxu0
      %v2243 = vadd.f32 0.0, %v2242
      %2244 = vmatmul.f32.gmra.mxu0 %v2097
      %v2245 = vpop.f32.mrf.mxu0
      %v2246 = vadd.f32 0.0, %v2245
      %2247 = vmatmul.f32.gmra.mxu0 %v2098
      %v2248 = vpop.f32.mrf.mxu0
      %v2249 = vadd.f32 0.0, %v2248
      %2250 = vmatmul.f32.gmra.mxu0 %v2099
      %v2251 = vpop.f32.mrf.mxu0
      %v2252 = vadd.f32 0.0, %v2251
      %2253 = vmatmul.f32.gmra.mxu0 %v2100
      %v2254 = vpop.f32.mrf.mxu0
      %v2255 = vadd.f32 0.0, %v2254
      %2256 = vmatmul.f32.gmra.mxu0 %v2101
      %v2257 = vpop.f32.mrf.mxu0
      %v2258 = vadd.f32 0.0, %v2257
      %2259 = vmatmul.f32.gmra.mxu0 %v2102
      %v2260 = vpop.f32.mrf.mxu0
      %v2261 = vadd.f32 0.0, %v2260
      %2262 = vmatmul.f32.gmra.mxu0 %v2103
      %v2263 = vpop.f32.mrf.mxu0
      %v2264 = vadd.f32 0.0, %v2263
      %2265 = vdwg.mxu0
      %v2266 = vadd.f32 %v2104, %v2171
      %v2267 = vadd.f32 %v2105, %v2174
      %v2268 = vadd.f32 %v2106, %v2177
      %v2269 = vadd.f32 %v2107, %v2180
      %v2270 = vadd.f32 %v2108, %v2183
      %v2271 = vadd.f32 %v2109, %v2186
      %v2272 = vadd.f32 %v2110, %v2189
      %v2273 = vadd.f32 %v2111, %v2192
      %v2274 = vadd.f32 %v2112, %v2195
      %v2275 = vadd.f32 %v2113, %v2198
      %v2276 = vadd.f32 %v2114, %v2201
      %v2277 = vadd.f32 %v2115, %v2204
      %v2278 = vadd.f32 %v2116, %v2207
      %v2279 = vadd.f32 %v2117, %v2210
      %v2280 = vadd.f32 %v2118, %v2213
      %v2281 = vadd.f32 %v2119, %v2216
      %v2282 = vadd.f32 %v2120, %v2219
      %v2283 = vadd.f32 %v2121, %v2222
      %v2284 = vadd.f32 %v2122, %v2225
      %v2285 = vadd.f32 %v2123, %v2228
      %v2286 = vadd.f32 %v2124, %v2231
      %v2287 = vadd.f32 %v2125, %v2234
      %v2288 = vadd.f32 %v2126, %v2237
      %v2289 = vadd.f32 %v2127, %v2240
      %v2290 = vadd.f32 %v2128, %v2243
      %v2291 = vadd.f32 %v2129, %v2246
      %v2292 = vadd.f32 %v2130, %v2249
      %v2293 = vadd.f32 %v2131, %v2252
      %v2294 = vadd.f32 %v2132, %v2255
      %v2295 = vadd.f32 %v2133, %v2258
      %v2296 = vadd.f32 %v2134, %v2261
      %v2297 = vadd.f32 %v2135, %v2264
      %2298 = vst [vmem:[#allocation3] sm:$0xff] %v2266
      %2299 = vst [vmem:[#allocation3 + $0x8] sm:$0xff] %v2267
      %2300 = vst [vmem:[#allocation3 + $0x10] sm:$0xff] %v2268
      %2301 = vst [vmem:[#allocation3 + $0x18] sm:$0xff] %v2269
      %2302 = vst [vmem:[#allocation3 + $0x20] sm:$0xff] %v2270
      %2303 = vst [vmem:[#allocation3 + $0x28] sm:$0xff] %v2271
      %2304 = vst [vmem:[#allocation3 + $0x30] sm:$0xff] %v2272
      %2305 = vst [vmem:[#allocation3 + $0x38] sm:$0xff] %v2273
      %2306 = vst [vmem:[#allocation3 + $0x40] sm:$0xff] %v2274
      %2307 = vst [vmem:[#allocation3 + $0x48] sm:$0xff] %v2275
      %2308 = vst [vmem:[#allocation3 + $0x50] sm:$0xff] %v2276
      %2309 = vst [vmem:[#allocation3 + $0x58] sm:$0xff] %v2277
      %2310 = vst [vmem:[#allocation3 + $0x60] sm:$0xff] %v2278
      %2311 = vst [vmem:[#allocation3 + $0x68] sm:$0xff] %v2279
      %2312 = vst [vmem:[#allocation3 + $0x70] sm:$0xff] %v2280
      %2313 = vst [vmem:[#allocation3 + $0x78] sm:$0xff] %v2281
      %2314 = vst [vmem:[#allocation3 + $0x80] sm:$0xff] %v2282
      %2315 = vst [vmem:[#allocation3 + $0x88] sm:$0xff] %v2283
      %2316 = vst [vmem:[#allocation3 + $0x90] sm:$0xff] %v2284
      %2317 = vst [vmem:[#allocation3 + $0x98] sm:$0xff] %v2285
      %2318 = vst [vmem:[#allocation3 + $0xa0] sm:$0xff] %v2286
      %2319 = vst [vmem:[#allocation3 + $0xa8] sm:$0xff] %v2287
      %2320 = vst [vmem:[#allocation3 + $0xb0] sm:$0xff] %v2288
      %2321 = vst [vmem:[#allocation3 + $0xb8] sm:$0xff] %v2289
      %2322 = vst [vmem:[#allocation3 + $0xc0] sm:$0xff] %v2290
      %2323 = vst [vmem:[#allocation3 + $0xc8] sm:$0xff] %v2291
      %2324 = vst [vmem:[#allocation3 + $0xd0] sm:$0xff] %v2292
      %2325 = vst [vmem:[#allocation3 + $0xd8] sm:$0xff] %v2293
      %2326 = vst [vmem:[#allocation3 + $0xe0] sm:$0xff] %v2294
      %2327 = vst [vmem:[#allocation3 + $0xe8] sm:$0xff] %v2295
      %2328 = vst [vmem:[#allocation3 + $0xf0] sm:$0xff] %v2296
      %2329 = vst [vmem:[#allocation3 + $0xf8] sm:$0xff] %v2297
      %v2330 = vld [vmem:[%s2071 + $0x1] sm:$0xff]
      %v2331 = vld [vmem:[%s2071 + $0x9] sm:$0xff]
      %v2332 = vld [vmem:[%s2071 + $0x19] sm:$0xff]
      %v2333 = vld [vmem:[%s2071 + $0x21] sm:$0xff]
      %v2334 = vld [vmem:[%s2071 + $0x31] sm:$0xff]
      %v2335 = vld [vmem:[%s2071 + $0x39] sm:$0xff]
      %v2336 = vld [vmem:[%s2071 + $0x49] sm:$0xff]
      %v2337 = vld [vmem:[%s2071 + $0x51] sm:$0xff]
      %v2338 = vld [vmem:[%s2071 + $0x61] sm:$0xff]
      %v2339 = vld [vmem:[%s2071 + $0x69] sm:$0xff]
      %v2340 = vld [vmem:[%s2071 + $0x79] sm:$0xff]
      %v2341 = vld [vmem:[%s2071 + $0x81] sm:$0xff]
      %v2342 = vld [vmem:[%s2071 + $0x91] sm:$0xff]
      %v2343 = vld [vmem:[%s2071 + $0x99] sm:$0xff]
      %v2344 = vld [vmem:[%s2071 + $0xa9] sm:$0xff]
      %v2345 = vld [vmem:[%s2071 + $0xb1] sm:$0xff]
      %v2346 = vld [vmem:[%s2071 + $0xc1] sm:$0xff]
      %v2347 = vld [vmem:[%s2071 + $0xc9] sm:$0xff]
      %v2348 = vld [vmem:[%s2071 + $0xd9] sm:$0xff]
      %v2349 = vld [vmem:[%s2071 + $0xe1] sm:$0xff]
      %v2350 = vld [vmem:[%s2071 + $0xf1] sm:$0xff]
      %v2351 = vld [vmem:[%s2071 + $0xf9] sm:$0xff]
      %v2352 = vld [vmem:[%s2071 + $0x109] sm:$0xff]
      %v2353 = vld [vmem:[%s2071 + $0x111] sm:$0xff]
      %v2354 = vld [vmem:[%s2071 + $0x121] sm:$0xff]
      %v2355 = vld [vmem:[%s2071 + $0x129] sm:$0xff]
      %v2356 = vld [vmem:[%s2071 + $0x139] sm:$0xff]
      %v2357 = vld [vmem:[%s2071 + $0x141] sm:$0xff]
      %v2358 = vld [vmem:[%s2071 + $0x151] sm:$0xff]
      %v2359 = vld [vmem:[%s2071 + $0x159] sm:$0xff]
      %v2360 = vld [vmem:[%s2071 + $0x169] sm:$0xff]
      %v2361 = vld [vmem:[%s2071 + $0x171] sm:$0xff]
      %v2362 = vld [vmem:[#allocation3] sm:$0xff]
      %v2363 = vld [vmem:[#allocation3 + $0x8] sm:$0xff]
      %v2364 = vld [vmem:[#allocation3 + $0x10] sm:$0xff]
      %v2365 = vld [vmem:[#allocation3 + $0x18] sm:$0xff]
      %v2366 = vld [vmem:[#allocation3 + $0x20] sm:$0xff]
      %v2367 = vld [vmem:[#allocation3 + $0x28] sm:$0xff]
      %v2368 = vld [vmem:[#allocation3 + $0x30] sm:$0xff]
      %v2369 = vld [vmem:[#allocation3 + $0x38] sm:$0xff]
      %v2370 = vld [vmem:[#allocation3 + $0x40] sm:$0xff]
      %v2371 = vld [vmem:[#allocation3 + $0x48] sm:$0xff]
      %v2372 = vld [vmem:[#allocation3 + $0x50] sm:$0xff]
      %v2373 = vld [vmem:[#allocation3 + $0x58] sm:$0xff]
      %v2374 = vld [vmem:[#allocation3 + $0x60] sm:$0xff]
      %v2375 = vld [vmem:[#allocation3 + $0x68] sm:$0xff]
      %v2376 = vld [vmem:[#allocation3 + $0x70] sm:$0xff]
      %v2377 = vld [vmem:[#allocation3 + $0x78] sm:$0xff]
      %v2378 = vld [vmem:[#allocation3 + $0x80] sm:$0xff]
      %v2379 = vld [vmem:[#allocation3 + $0x88] sm:$0xff]
      %v2380 = vld [vmem:[#allocation3 + $0x90] sm:$0xff]
      %v2381 = vld [vmem:[#allocation3 + $0x98] sm:$0xff]
      %v2382 = vld [vmem:[#allocation3 + $0xa0] sm:$0xff]
      %v2383 = vld [vmem:[#allocation3 + $0xa8] sm:$0xff]
      %v2384 = vld [vmem:[#allocation3 + $0xb0] sm:$0xff]
      %v2385 = vld [vmem:[#allocation3 + $0xb8] sm:$0xff]
      %v2386 = vld [vmem:[#allocation3 + $0xc0] sm:$0xff]
      %v2387 = vld [vmem:[#allocation3 + $0xc8] sm:$0xff]
      %v2388 = vld [vmem:[#allocation3 + $0xd0] sm:$0xff]
      %v2389 = vld [vmem:[#allocation3 + $0xd8] sm:$0xff]
      %v2390 = vld [vmem:[#allocation3 + $0xe0] sm:$0xff]
      %v2391 = vld [vmem:[#allocation3 + $0xe8] sm:$0xff]
      %v2392 = vld [vmem:[#allocation3 + $0xf0] sm:$0xff]
      %v2393 = vld [vmem:[#allocation3 + $0xf8] sm:$0xff]
      %s2394 = scalar_lea.vmem %s1, 896
      %v2395 = vld [vmem:[%s2394] sm:$0xff]
      %v2396 = vld [vmem:[%s2394 + $0x8] sm:$0xff]
      %v2397 = vld [vmem:[%s2394 + $0x10] sm:$0xff]
      %v2398 = vld [vmem:[%s2394 + $0x18] sm:$0xff]
      %v2399 = vld [vmem:[%s2394 + $0x20] sm:$0xff]
      %v2400 = vld [vmem:[%s2394 + $0x28] sm:$0xff]
      %v2401 = vld [vmem:[%s2394 + $0x30] sm:$0xff]
      %v2402 = vld [vmem:[%s2394 + $0x38] sm:$0xff]
      %v2403 = vld [vmem:[%s2394 + $0x40] sm:$0xff]
      %v2404 = vld [vmem:[%s2394 + $0x48] sm:$0xff]
      %v2405 = vld [vmem:[%s2394 + $0x50] sm:$0xff]
      %v2406 = vld [vmem:[%s2394 + $0x58] sm:$0xff]
      %v2407 = vld [vmem:[%s2394 + $0x60] sm:$0xff]
      %v2408 = vld [vmem:[%s2394 + $0x68] sm:$0xff]
      %v2409 = vld [vmem:[%s2394 + $0x70] sm:$0xff]
      %v2410 = vld [vmem:[%s2394 + $0x78] sm:$0xff]
      %2411 = vmatpush.msra.mxu0 %v2410
      %2412 = vmatpush.msra.mxu0 %v2409
      %2413 = vmatpush.msra.mxu0 %v2408
      %2414 = vmatpush.msra.mxu0 %v2407
      %2415 = vmatpush.msra.mxu0 %v2406
      %2416 = vmatpush.msra.mxu0 %v2405
      %2417 = vmatpush.msra.mxu0 %v2404
      %2418 = vmatpush.msra.mxu0 %v2403
      %2419 = vmatpush.msra.mxu0 %v2402
      %2420 = vmatpush.msra.mxu0 %v2401
      %2421 = vmatpush.msra.mxu0 %v2400
      %2422 = vmatpush.msra.mxu0 %v2399
      %2423 = vmatpush.msra.mxu0 %v2398
      %2424 = vmatpush.msra.mxu0 %v2397
      %2425 = vmatpush.msra.mxu0 %v2396
      %2426 = vmatpush.msra.mxu0 %v2395
      %2427 = vmatmul.f32.gmra.mxu0 %v2330
      %v2428 = vpop.f32.mrf.mxu0
      %v2429 = vadd.f32 0.0, %v2428
      %2430 = vmatmul.f32.gmra.mxu0 %v2331
      %v2431 = vpop.f32.mrf.mxu0
      %v2432 = vadd.f32 0.0, %v2431
      %2433 = vmatmul.f32.gmra.mxu0 %v2332
      %v2434 = vpop.f32.mrf.mxu0
      %v2435 = vadd.f32 0.0, %v2434
      %2436 = vmatmul.f32.gmra.mxu0 %v2333
      %v2437 = vpop.f32.mrf.mxu0
      %v2438 = vadd.f32 0.0, %v2437
      %2439 = vmatmul.f32.gmra.mxu0 %v2334
      %v2440 = vpop.f32.mrf.mxu0
      %v2441 = vadd.f32 0.0, %v2440
      %2442 = vmatmul.f32.gmra.mxu0 %v2335
      %v2443 = vpop.f32.mrf.mxu0
      %v2444 = vadd.f32 0.0, %v2443
      %2445 = vmatmul.f32.gmra.mxu0 %v2336
      %v2446 = vpop.f32.mrf.mxu0
      %v2447 = vadd.f32 0.0, %v2446
      %2448 = vmatmul.f32.gmra.mxu0 %v2337
      %v2449 = vpop.f32.mrf.mxu0
      %v2450 = vadd.f32 0.0, %v2449
      %2451 = vmatmul.f32.gmra.mxu0 %v2338
      %v2452 = vpop.f32.mrf.mxu0
      %v2453 = vadd.f32 0.0, %v2452
      %2454 = vmatmul.f32.gmra.mxu0 %v2339
      %v2455 = vpop.f32.mrf.mxu0
      %v2456 = vadd.f32 0.0, %v2455
      %2457 = vmatmul.f32.gmra.mxu0 %v2340
      %v2458 = vpop.f32.mrf.mxu0
      %v2459 = vadd.f32 0.0, %v2458
      %2460 = vmatmul.f32.gmra.mxu0 %v2341
      %v2461 = vpop.f32.mrf.mxu0
      %v2462 = vadd.f32 0.0, %v2461
      %2463 = vmatmul.f32.gmra.mxu0 %v2342
      %v2464 = vpop.f32.mrf.mxu0
      %v2465 = vadd.f32 0.0, %v2464
      %2466 = vmatmul.f32.gmra.mxu0 %v2343
      %v2467 = vpop.f32.mrf.mxu0
      %v2468 = vadd.f32 0.0, %v2467
      %2469 = vmatmul.f32.gmra.mxu0 %v2344
      %v2470 = vpop.f32.mrf.mxu0
      %v2471 = vadd.f32 0.0, %v2470
      %2472 = vmatmul.f32.gmra.mxu0 %v2345
      %v2473 = vpop.f32.mrf.mxu0
      %v2474 = vadd.f32 0.0, %v2473
      %2475 = vmatmul.f32.gmra.mxu0 %v2346
      %v2476 = vpop.f32.mrf.mxu0
      %v2477 = vadd.f32 0.0, %v2476
      %2478 = vmatmul.f32.gmra.mxu0 %v2347
      %v2479 = vpop.f32.mrf.mxu0
      %v2480 = vadd.f32 0.0, %v2479
      %2481 = vmatmul.f32.gmra.mxu0 %v2348
      %v2482 = vpop.f32.mrf.mxu0
      %v2483 = vadd.f32 0.0, %v2482
      %2484 = vmatmul.f32.gmra.mxu0 %v2349
      %v2485 = vpop.f32.mrf.mxu0
      %v2486 = vadd.f32 0.0, %v2485
      %2487 = vmatmul.f32.gmra.mxu0 %v2350
      %v2488 = vpop.f32.mrf.mxu0
      %v2489 = vadd.f32 0.0, %v2488
      %2490 = vmatmul.f32.gmra.mxu0 %v2351
      %v2491 = vpop.f32.mrf.mxu0
      %v2492 = vadd.f32 0.0, %v2491
      %2493 = vmatmul.f32.gmra.mxu0 %v2352
      %v2494 = vpop.f32.mrf.mxu0
      %v2495 = vadd.f32 0.0, %v2494
      %2496 = vmatmul.f32.gmra.mxu0 %v2353
      %v2497 = vpop.f32.mrf.mxu0
      %v2498 = vadd.f32 0.0, %v2497
      %2499 = vmatmul.f32.gmra.mxu0 %v2354
      %v2500 = vpop.f32.mrf.mxu0
      %v2501 = vadd.f32 0.0, %v2500
      %2502 = vmatmul.f32.gmra.mxu0 %v2355
      %v2503 = vpop.f32.mrf.mxu0
      %v2504 = vadd.f32 0.0, %v2503
      %2505 = vmatmul.f32.gmra.mxu0 %v2356
      %v2506 = vpop.f32.mrf.mxu0
      %v2507 = vadd.f32 0.0, %v2506
      %2508 = vmatmul.f32.gmra.mxu0 %v2357
      %v2509 = vpop.f32.mrf.mxu0
      %v2510 = vadd.f32 0.0, %v2509
      %2511 = vmatmul.f32.gmra.mxu0 %v2358
      %v2512 = vpop.f32.mrf.mxu0
      %v2513 = vadd.f32 0.0, %v2512
      %2514 = vmatmul.f32.gmra.mxu0 %v2359
      %v2515 = vpop.f32.mrf.mxu0
      %v2516 = vadd.f32 0.0, %v2515
      %2517 = vmatmul.f32.gmra.mxu0 %v2360
      %v2518 = vpop.f32.mrf.mxu0
      %v2519 = vadd.f32 0.0, %v2518
      %2520 = vmatmul.f32.gmra.mxu0 %v2361
      %v2521 = vpop.f32.mrf.mxu0
      %v2522 = vadd.f32 0.0, %v2521
      %2523 = vdwg.mxu0
      %v2524 = vadd.f32 %v2362, %v2429
      %v2525 = vadd.f32 %v2363, %v2432
      %v2526 = vadd.f32 %v2364, %v2435
      %v2527 = vadd.f32 %v2365, %v2438
      %v2528 = vadd.f32 %v2366, %v2441
      %v2529 = vadd.f32 %v2367, %v2444
      %v2530 = vadd.f32 %v2368, %v2447
      %v2531 = vadd.f32 %v2369, %v2450
      %v2532 = vadd.f32 %v2370, %v2453
      %v2533 = vadd.f32 %v2371, %v2456
      %v2534 = vadd.f32 %v2372, %v2459
      %v2535 = vadd.f32 %v2373, %v2462
      %v2536 = vadd.f32 %v2374, %v2465
      %v2537 = vadd.f32 %v2375, %v2468
      %v2538 = vadd.f32 %v2376, %v2471
      %v2539 = vadd.f32 %v2377, %v2474
      %v2540 = vadd.f32 %v2378, %v2477
      %v2541 = vadd.f32 %v2379, %v2480
      %v2542 = vadd.f32 %v2380, %v2483
      %v2543 = vadd.f32 %v2381, %v2486
      %v2544 = vadd.f32 %v2382, %v2489
      %v2545 = vadd.f32 %v2383, %v2492
      %v2546 = vadd.f32 %v2384, %v2495
      %v2547 = vadd.f32 %v2385, %v2498
      %v2548 = vadd.f32 %v2386, %v2501
      %v2549 = vadd.f32 %v2387, %v2504
      %v2550 = vadd.f32 %v2388, %v2507
      %v2551 = vadd.f32 %v2389, %v2510
      %v2552 = vadd.f32 %v2390, %v2513
      %v2553 = vadd.f32 %v2391, %v2516
      %v2554 = vadd.f32 %v2392, %v2519
      %v2555 = vadd.f32 %v2393, %v2522
      %2556 = vst [vmem:[#allocation3] sm:$0xff] %v2524
      %2557 = vst [vmem:[#allocation3 + $0x8] sm:$0xff] %v2525
      %2558 = vst [vmem:[#allocation3 + $0x10] sm:$0xff] %v2526
      %2559 = vst [vmem:[#allocation3 + $0x18] sm:$0xff] %v2527
      %2560 = vst [vmem:[#allocation3 + $0x20] sm:$0xff] %v2528
      %2561 = vst [vmem:[#allocation3 + $0x28] sm:$0xff] %v2529
      %2562 = vst [vmem:[#allocation3 + $0x30] sm:$0xff] %v2530
      %2563 = vst [vmem:[#allocation3 + $0x38] sm:$0xff] %v2531
      %2564 = vst [vmem:[#allocation3 + $0x40] sm:$0xff] %v2532
      %2565 = vst [vmem:[#allocation3 + $0x48] sm:$0xff] %v2533
      %2566 = vst [vmem:[#allocation3 + $0x50] sm:$0xff] %v2534
      %2567 = vst [vmem:[#allocation3 + $0x58] sm:$0xff] %v2535
      %2568 = vst [vmem:[#allocation3 + $0x60] sm:$0xff] %v2536
      %2569 = vst [vmem:[#allocation3 + $0x68] sm:$0xff] %v2537
      %2570 = vst [vmem:[#allocation3 + $0x70] sm:$0xff] %v2538
      %2571 = vst [vmem:[#allocation3 + $0x78] sm:$0xff] %v2539
      %2572 = vst [vmem:[#allocation3 + $0x80] sm:$0xff] %v2540
      %2573 = vst [vmem:[#allocation3 + $0x88] sm:$0xff] %v2541
      %2574 = vst [vmem:[#allocation3 + $0x90] sm:$0xff] %v2542
      %2575 = vst [vmem:[#allocation3 + $0x98] sm:$0xff] %v2543
      %2576 = vst [vmem:[#allocation3 + $0xa0] sm:$0xff] %v2544
      %2577 = vst [vmem:[#allocation3 + $0xa8] sm:$0xff] %v2545
      %2578 = vst [vmem:[#allocation3 + $0xb0] sm:$0xff] %v2546
      %2579 = vst [vmem:[#allocation3 + $0xb8] sm:$0xff] %v2547
      %2580 = vst [vmem:[#allocation3 + $0xc0] sm:$0xff] %v2548
      %2581 = vst [vmem:[#allocation3 + $0xc8] sm:$0xff] %v2549
      %2582 = vst [vmem:[#allocation3 + $0xd0] sm:$0xff] %v2550
      %2583 = vst [vmem:[#allocation3 + $0xd8] sm:$0xff] %v2551
      %2584 = vst [vmem:[#allocation3 + $0xe0] sm:$0xff] %v2552
      %2585 = vst [vmem:[#allocation3 + $0xe8] sm:$0xff] %v2553
      %2586 = vst [vmem:[#allocation3 + $0xf0] sm:$0xff] %v2554
      %2587 = vst [vmem:[#allocation3 + $0xf8] sm:$0xff] %v2555
      %v2588 = vld [vmem:[%s2071 + $0x2] sm:$0xff]
      %v2589 = vld [vmem:[%s2071 + $0xa] sm:$0xff]
      %v2590 = vld [vmem:[%s2071 + $0x1a] sm:$0xff]
      %v2591 = vld [vmem:[%s2071 + $0x22] sm:$0xff]
      %v2592 = vld [vmem:[%s2071 + $0x32] sm:$0xff]
      %v2593 = vld [vmem:[%s2071 + $0x3a] sm:$0xff]
      %v2594 = vld [vmem:[%s2071 + $0x4a] sm:$0xff]
      %v2595 = vld [vmem:[%s2071 + $0x52] sm:$0xff]
      %v2596 = vld [vmem:[%s2071 + $0x62] sm:$0xff]
      %v2597 = vld [vmem:[%s2071 + $0x6a] sm:$0xff]
      %v2598 = vld [vmem:[%s2071 + $0x7a] sm:$0xff]
      %v2599 = vld [vmem:[%s2071 + $0x82] sm:$0xff]
      %v2600 = vld [vmem:[%s2071 + $0x92] sm:$0xff]
      %v2601 = vld [vmem:[%s2071 + $0x9a] sm:$0xff]
      %v2602 = vld [vmem:[%s2071 + $0xaa] sm:$0xff]
      %v2603 = vld [vmem:[%s2071 + $0xb2] sm:$0xff]
      %v2604 = vld [vmem:[%s2071 + $0xc2] sm:$0xff]
      %v2605 = vld [vmem:[%s2071 + $0xca] sm:$0xff]
      %v2606 = vld [vmem:[%s2071 + $0xda] sm:$0xff]
      %v2607 = vld [vmem:[%s2071 + $0xe2] sm:$0xff]
      %v2608 = vld [vmem:[%s2071 + $0xf2] sm:$0xff]
      %v2609 = vld [vmem:[%s2071 + $0xfa] sm:$0xff]
      %v2610 = vld [vmem:[%s2071 + $0x10a] sm:$0xff]
      %v2611 = vld [vmem:[%s2071 + $0x112] sm:$0xff]
      %v2612 = vld [vmem:[%s2071 + $0x122] sm:$0xff]
      %v2613 = vld [vmem:[%s2071 + $0x12a] sm:$0xff]
      %v2614 = vld [vmem:[%s2071 + $0x13a] sm:$0xff]
      %v2615 = vld [vmem:[%s2071 + $0x142] sm:$0xff]
      %v2616 = vld [vmem:[%s2071 + $0x152] sm:$0xff]
      %v2617 = vld [vmem:[%s2071 + $0x15a] sm:$0xff]
      %v2618 = vld [vmem:[%s2071 + $0x16a] sm:$0xff]
      %v2619 = vld [vmem:[%s2071 + $0x172] sm:$0xff]
      %v2620 = vld [vmem:[#allocation3] sm:$0xff]
      %v2621 = vld [vmem:[#allocation3 + $0x8] sm:$0xff]
      %v2622 = vld [vmem:[#allocation3 + $0x10] sm:$0xff]
      %v2623 = vld [vmem:[#allocation3 + $0x18] sm:$0xff]
      %v2624 = vld [vmem:[#allocation3 + $0x20] sm:$0xff]
      %v2625 = vld [vmem:[#allocation3 + $0x28] sm:$0xff]
      %v2626 = vld [vmem:[#allocation3 + $0x30] sm:$0xff]
      %v2627 = vld [vmem:[#allocation3 + $0x38] sm:$0xff]
      %v2628 = vld [vmem:[#allocation3 + $0x40] sm:$0xff]
      %v2629 = vld [vmem:[#allocation3 + $0x48] sm:$0xff]
      %v2630 = vld [vmem:[#allocation3 + $0x50] sm:$0xff]
      %v2631 = vld [vmem:[#allocation3 + $0x58] sm:$0xff]
      %v2632 = vld [vmem:[#allocation3 + $0x60] sm:$0xff]
      %v2633 = vld [vmem:[#allocation3 + $0x68] sm:$0xff]
      %v2634 = vld [vmem:[#allocation3 + $0x70] sm:$0xff]
      %v2635 = vld [vmem:[#allocation3 + $0x78] sm:$0xff]
      %v2636 = vld [vmem:[#allocation3 + $0x80] sm:$0xff]
      %v2637 = vld [vmem:[#allocation3 + $0x88] sm:$0xff]
      %v2638 = vld [vmem:[#allocation3 + $0x90] sm:$0xff]
      %v2639 = vld [vmem:[#allocation3 + $0x98] sm:$0xff]
      %v2640 = vld [vmem:[#allocation3 + $0xa0] sm:$0xff]
      %v2641 = vld [vmem:[#allocation3 + $0xa8] sm:$0xff]
      %v2642 = vld [vmem:[#allocation3 + $0xb0] sm:$0xff]
      %v2643 = vld [vmem:[#allocation3 + $0xb8] sm:$0xff]
      %v2644 = vld [vmem:[#allocation3 + $0xc0] sm:$0xff]
      %v2645 = vld [vmem:[#allocation3 + $0xc8] sm:$0xff]
      %v2646 = vld [vmem:[#allocation3 + $0xd0] sm:$0xff]
      %v2647 = vld [vmem:[#allocation3 + $0xd8] sm:$0xff]
      %v2648 = vld [vmem:[#allocation3 + $0xe0] sm:$0xff]
      %v2649 = vld [vmem:[#allocation3 + $0xe8] sm:$0xff]
      %v2650 = vld [vmem:[#allocation3 + $0xf0] sm:$0xff]
      %v2651 = vld [vmem:[#allocation3 + $0xf8] sm:$0xff]
      %s2652 = scalar_lea.vmem %s1, 1024
      %v2653 = vld [vmem:[%s2652] sm:$0xff]
      %v2654 = vld [vmem:[%s2652 + $0x8] sm:$0xff]
      %v2655 = vld [vmem:[%s2652 + $0x10] sm:$0xff]
      %v2656 = vld [vmem:[%s2652 + $0x18] sm:$0xff]
      %v2657 = vld [vmem:[%s2652 + $0x20] sm:$0xff]
      %v2658 = vld [vmem:[%s2652 + $0x28] sm:$0xff]
      %v2659 = vld [vmem:[%s2652 + $0x30] sm:$0xff]
      %v2660 = vld [vmem:[%s2652 + $0x38] sm:$0xff]
      %v2661 = vld [vmem:[%s2652 + $0x40] sm:$0xff]
      %v2662 = vld [vmem:[%s2652 + $0x48] sm:$0xff]
      %v2663 = vld [vmem:[%s2652 + $0x50] sm:$0xff]
      %v2664 = vld [vmem:[%s2652 + $0x58] sm:$0xff]
      %v2665 = vld [vmem:[%s2652 + $0x60] sm:$0xff]
      %v2666 = vld [vmem:[%s2652 + $0x68] sm:$0xff]
      %v2667 = vld [vmem:[%s2652 + $0x70] sm:$0xff]
      %v2668 = vld [vmem:[%s2652 + $0x78] sm:$0xff]
      %2669 = vmatpush.msra.mxu0 %v2668
      %2670 = vmatpush.msra.mxu0 %v2667
      %2671 = vmatpush.msra.mxu0 %v2666
      %2672 = vmatpush.msra.mxu0 %v2665
      %2673 = vmatpush.msra.mxu0 %v2664
      %2674 = vmatpush.msra.mxu0 %v2663
      %2675 = vmatpush.msra.mxu0 %v2662
      %2676 = vmatpush.msra.mxu0 %v2661
      %2677 = vmatpush.msra.mxu0 %v2660
      %2678 = vmatpush.msra.mxu0 %v2659
      %2679 = vmatpush.msra.mxu0 %v2658
      %2680 = vmatpush.msra.mxu0 %v2657
      %2681 = vmatpush.msra.mxu0 %v2656
      %2682 = vmatpush.msra.mxu0 %v2655
      %2683 = vmatpush.msra.mxu0 %v2654
      %2684 = vmatpush.msra.mxu0 %v2653
      %2685 = vmatmul.f32.gmra.mxu0 %v2588
      %v2686 = vpop.f32.mrf.mxu0
      %v2687 = vadd.f32 0.0, %v2686
      %2688 = vmatmul.f32.gmra.mxu0 %v2589
      %v2689 = vpop.f32.mrf.mxu0
      %v2690 = vadd.f32 0.0, %v2689
      %2691 = vmatmul.f32.gmra.mxu0 %v2590
      %v2692 = vpop.f32.mrf.mxu0
      %v2693 = vadd.f32 0.0, %v2692
      %2694 = vmatmul.f32.gmra.mxu0 %v2591
      %v2695 = vpop.f32.mrf.mxu0
      %v2696 = vadd.f32 0.0, %v2695
      %2697 = vmatmul.f32.gmra.mxu0 %v2592
      %v2698 = vpop.f32.mrf.mxu0
      %v2699 = vadd.f32 0.0, %v2698
      %2700 = vmatmul.f32.gmra.mxu0 %v2593
      %v2701 = vpop.f32.mrf.mxu0
      %v2702 = vadd.f32 0.0, %v2701
      %2703 = vmatmul.f32.gmra.mxu0 %v2594
      %v2704 = vpop.f32.mrf.mxu0
      %v2705 = vadd.f32 0.0, %v2704
      %2706 = vmatmul.f32.gmra.mxu0 %v2595
      %v2707 = vpop.f32.mrf.mxu0
      %v2708 = vadd.f32 0.0, %v2707
      %2709 = vmatmul.f32.gmra.mxu0 %v2596
      %v2710 = vpop.f32.mrf.mxu0
      %v2711 = vadd.f32 0.0, %v2710
      %2712 = vmatmul.f32.gmra.mxu0 %v2597
      %v2713 = vpop.f32.mrf.mxu0
      %v2714 = vadd.f32 0.0, %v2713
      %2715 = vmatmul.f32.gmra.mxu0 %v2598
      %v2716 = vpop.f32.mrf.mxu0
      %v2717 = vadd.f32 0.0, %v2716
      %2718 = vmatmul.f32.gmra.mxu0 %v2599
      %v2719 = vpop.f32.mrf.mxu0
      %v2720 = vadd.f32 0.0, %v2719
      %2721 = vmatmul.f32.gmra.mxu0 %v2600
      %v2722 = vpop.f32.mrf.mxu0
      %v2723 = vadd.f32 0.0, %v2722
      %2724 = vmatmul.f32.gmra.mxu0 %v2601
      %v2725 = vpop.f32.mrf.mxu0
      %v2726 = vadd.f32 0.0, %v2725
      %2727 = vmatmul.f32.gmra.mxu0 %v2602
      %v2728 = vpop.f32.mrf.mxu0
      %v2729 = vadd.f32 0.0, %v2728
      %2730 = vmatmul.f32.gmra.mxu0 %v2603
      %v2731 = vpop.f32.mrf.mxu0
      %v2732 = vadd.f32 0.0, %v2731
      %2733 = vmatmul.f32.gmra.mxu0 %v2604
      %v2734 = vpop.f32.mrf.mxu0
      %v2735 = vadd.f32 0.0, %v2734
      %2736 = vmatmul.f32.gmra.mxu0 %v2605
      %v2737 = vpop.f32.mrf.mxu0
      %v2738 = vadd.f32 0.0, %v2737
      %2739 = vmatmul.f32.gmra.mxu0 %v2606
      %v2740 = vpop.f32.mrf.mxu0
      %v2741 = vadd.f32 0.0, %v2740
      %2742 = vmatmul.f32.gmra.mxu0 %v2607
      %v2743 = vpop.f32.mrf.mxu0
      %v2744 = vadd.f32 0.0, %v2743
      %2745 = vmatmul.f32.gmra.mxu0 %v2608
      %v2746 = vpop.f32.mrf.mxu0
      %v2747 = vadd.f32 0.0, %v2746
      %2748 = vmatmul.f32.gmra.mxu0 %v2609
      %v2749 = vpop.f32.mrf.mxu0
      %v2750 = vadd.f32 0.0, %v2749
      %2751 = vmatmul.f32.gmra.mxu0 %v2610
      %v2752 = vpop.f32.mrf.mxu0
      %v2753 = vadd.f32 0.0, %v2752
      %2754 = vmatmul.f32.gmra.mxu0 %v2611
      %v2755 = vpop.f32.mrf.mxu0
      %v2756 = vadd.f32 0.0, %v2755
      %2757 = vmatmul.f32.gmra.mxu0 %v2612
      %v2758 = vpop.f32.mrf.mxu0
      %v2759 = vadd.f32 0.0, %v2758
      %2760 = vmatmul.f32.gmra.mxu0 %v2613
      %v2761 = vpop.f32.mrf.mxu0
      %v2762 = vadd.f32 0.0, %v2761
      %2763 = vmatmul.f32.gmra.mxu0 %v2614
      %v2764 = vpop.f32.mrf.mxu0
      %v2765 = vadd.f32 0.0, %v2764
      %2766 = vmatmul.f32.gmra.mxu0 %v2615
      %v2767 = vpop.f32.mrf.mxu0
      %v2768 = vadd.f32 0.0, %v2767
      %2769 = vmatmul.f32.gmra.mxu0 %v2616
      %v2770 = vpop.f32.mrf.mxu0
      %v2771 = vadd.f32 0.0, %v2770
      %2772 = vmatmul.f32.gmra.mxu0 %v2617
      %v2773 = vpop.f32.mrf.mxu0
      %v2774 = vadd.f32 0.0, %v2773
      %2775 = vmatmul.f32.gmra.mxu0 %v2618
      %v2776 = vpop.f32.mrf.mxu0
      %v2777 = vadd.f32 0.0, %v2776
      %2778 = vmatmul.f32.gmra.mxu0 %v2619
      %v2779 = vpop.f32.mrf.mxu0
      %v2780 = vadd.f32 0.0, %v2779
      %2781 = vdwg.mxu0
      %v2782 = vadd.f32 %v2620, %v2687
      %v2783 = vadd.f32 %v2621, %v2690
      %v2784 = vadd.f32 %v2622, %v2693
      %v2785 = vadd.f32 %v2623, %v2696
      %v2786 = vadd.f32 %v2624, %v2699
      %v2787 = vadd.f32 %v2625, %v2702
      %v2788 = vadd.f32 %v2626, %v2705
      %v2789 = vadd.f32 %v2627, %v2708
      %v2790 = vadd.f32 %v2628, %v2711
      %v2791 = vadd.f32 %v2629, %v2714
      %v2792 = vadd.f32 %v2630, %v2717
      %v2793 = vadd.f32 %v2631, %v2720
      %v2794 = vadd.f32 %v2632, %v2723
      %v2795 = vadd.f32 %v2633, %v2726
      %v2796 = vadd.f32 %v2634, %v2729
      %v2797 = vadd.f32 %v2635, %v2732
      %v2798 = vadd.f32 %v2636, %v2735
      %v2799 = vadd.f32 %v2637, %v2738
      %v2800 = vadd.f32 %v2638, %v2741
      %v2801 = vadd.f32 %v2639, %v2744
      %v2802 = vadd.f32 %v2640, %v2747
      %v2803 = vadd.f32 %v2641, %v2750
      %v2804 = vadd.f32 %v2642, %v2753
      %v2805 = vadd.f32 %v2643, %v2756
      %v2806 = vadd.f32 %v2644, %v2759
      %v2807 = vadd.f32 %v2645, %v2762
      %v2808 = vadd.f32 %v2646, %v2765
      %v2809 = vadd.f32 %v2647, %v2768
      %v2810 = vadd.f32 %v2648, %v2771
      %v2811 = vadd.f32 %v2649, %v2774
      %v2812 = vadd.f32 %v2650, %v2777
      %v2813 = vadd.f32 %v2651, %v2780
      %2814 = vst [vmem:[#allocation3] sm:$0xff] %v2782
      %2815 = vst [vmem:[#allocation3 + $0x8] sm:$0xff] %v2783
      %2816 = vst [vmem:[#allocation3 + $0x10] sm:$0xff] %v2784
      %2817 = vst [vmem:[#allocation3 + $0x18] sm:$0xff] %v2785
      %2818 = vst [vmem:[#allocation3 + $0x20] sm:$0xff] %v2786
      %2819 = vst [vmem:[#allocation3 + $0x28] sm:$0xff] %v2787
      %2820 = vst [vmem:[#allocation3 + $0x30] sm:$0xff] %v2788
      %2821 = vst [vmem:[#allocation3 + $0x38] sm:$0xff] %v2789
      %2822 = vst [vmem:[#allocation3 + $0x40] sm:$0xff] %v2790
      %2823 = vst [vmem:[#allocation3 + $0x48] sm:$0xff] %v2791
      %2824 = vst [vmem:[#allocation3 + $0x50] sm:$0xff] %v2792
      %2825 = vst [vmem:[#allocation3 + $0x58] sm:$0xff] %v2793
      %2826 = vst [vmem:[#allocation3 + $0x60] sm:$0xff] %v2794
      %2827 = vst [vmem:[#allocation3 + $0x68] sm:$0xff] %v2795
      %2828 = vst [vmem:[#allocation3 + $0x70] sm:$0xff] %v2796
      %2829 = vst [vmem:[#allocation3 + $0x78] sm:$0xff] %v2797
      %2830 = vst [vmem:[#allocation3 + $0x80] sm:$0xff] %v2798
      %2831 = vst [vmem:[#allocation3 + $0x88] sm:$0xff] %v2799
      %2832 = vst [vmem:[#allocation3 + $0x90] sm:$0xff] %v2800
      %2833 = vst [vmem:[#allocation3 + $0x98] sm:$0xff] %v2801
      %2834 = vst [vmem:[#allocation3 + $0xa0] sm:$0xff] %v2802
      %2835 = vst [vmem:[#allocation3 + $0xa8] sm:$0xff] %v2803
      %2836 = vst [vmem:[#allocation3 + $0xb0] sm:$0xff] %v2804
      %2837 = vst [vmem:[#allocation3 + $0xb8] sm:$0xff] %v2805
      %2838 = vst [vmem:[#allocation3 + $0xc0] sm:$0xff] %v2806
      %2839 = vst [vmem:[#allocation3 + $0xc8] sm:$0xff] %v2807
      %2840 = vst [vmem:[#allocation3 + $0xd0] sm:$0xff] %v2808
      %2841 = vst [vmem:[#allocation3 + $0xd8] sm:$0xff] %v2809
      %2842 = vst [vmem:[#allocation3 + $0xe0] sm:$0xff] %v2810
      %2843 = vst [vmem:[#allocation3 + $0xe8] sm:$0xff] %v2811
      %2844 = vst [vmem:[#allocation3 + $0xf0] sm:$0xff] %v2812
      %2845 = vst [vmem:[#allocation3 + $0xf8] sm:$0xff] %v2813
      %v2846 = vld [vmem:[#allocation3] sm:$0xff]
      %v2847 = vld [vmem:[#allocation3 + $0x8] sm:$0xff]
      %v2848 = vld [vmem:[#allocation3 + $0x10] sm:$0xff]
      %v2849 = vld [vmem:[#allocation3 + $0x18] sm:$0xff]
      %v2850 = vld [vmem:[#allocation3 + $0x20] sm:$0xff]
      %v2851 = vld [vmem:[#allocation3 + $0x28] sm:$0xff]
      %v2852 = vld [vmem:[#allocation3 + $0x30] sm:$0xff]
      %v2853 = vld [vmem:[#allocation3 + $0x38] sm:$0xff]
      %v2854 = vld [vmem:[#allocation3 + $0x40] sm:$0xff]
      %v2855 = vld [vmem:[#allocation3 + $0x48] sm:$0xff]
      %v2856 = vld [vmem:[#allocation3 + $0x50] sm:$0xff]
      %v2857 = vld [vmem:[#allocation3 + $0x58] sm:$0xff]
      %v2858 = vld [vmem:[#allocation3 + $0x60] sm:$0xff]
      %v2859 = vld [vmem:[#allocation3 + $0x68] sm:$0xff]
      %v2860 = vld [vmem:[#allocation3 + $0x70] sm:$0xff]
      %v2861 = vld [vmem:[#allocation3 + $0x78] sm:$0xff]
      %v2862 = vld [vmem:[#allocation3 + $0x80] sm:$0xff]
      %v2863 = vld [vmem:[#allocation3 + $0x88] sm:$0xff]
      %v2864 = vld [vmem:[#allocation3 + $0x90] sm:$0xff]
      %v2865 = vld [vmem:[#allocation3 + $0x98] sm:$0xff]
      %v2866 = vld [vmem:[#allocation3 + $0xa0] sm:$0xff]
      %v2867 = vld [vmem:[#allocation3 + $0xa8] sm:$0xff]
      %v2868 = vld [vmem:[#allocation3 + $0xb0] sm:$0xff]
      %v2869 = vld [vmem:[#allocation3 + $0xb8] sm:$0xff]
      %v2870 = vld [vmem:[#allocation3 + $0xc0] sm:$0xff]
      %v2871 = vld [vmem:[#allocation3 + $0xc8] sm:$0xff]
      %v2872 = vld [vmem:[#allocation3 + $0xd0] sm:$0xff]
      %v2873 = vld [vmem:[#allocation3 + $0xd8] sm:$0xff]
      %v2874 = vld [vmem:[#allocation3 + $0xe0] sm:$0xff]
      %v2875 = vld [vmem:[#allocation3 + $0xe8] sm:$0xff]
      %v2876 = vld [vmem:[#allocation3 + $0xf0] sm:$0xff]
      %v2877 = vld [vmem:[#allocation3 + $0xf8] sm:$0xff]
      %2878 = vst [vmem:[%s262] sm:$0xff] %v2846
      %2879 = vst [vmem:[%s262 + $0x8] sm:$0xff] %v2847
      %2880 = vst [vmem:[%s262 + $0x10] sm:$0xff] %v2848
      %2881 = vst [vmem:[%s262 + $0x18] sm:$0xff] %v2849
      %2882 = vst [vmem:[%s262 + $0x20] sm:$0xff] %v2850
      %2883 = vst [vmem:[%s262 + $0x28] sm:$0xff] %v2851
      %2884 = vst [vmem:[%s262 + $0x30] sm:$0xff] %v2852
      %2885 = vst [vmem:[%s262 + $0x38] sm:$0xff] %v2853
      %2886 = vst [vmem:[%s262 + $0x40] sm:$0xff] %v2854
      %2887 = vst [vmem:[%s262 + $0x48] sm:$0xff] %v2855
      %2888 = vst [vmem:[%s262 + $0x50] sm:$0xff] %v2856
      %2889 = vst [vmem:[%s262 + $0x58] sm:$0xff] %v2857
      %2890 = vst [vmem:[%s262 + $0x60] sm:$0xff] %v2858
      %2891 = vst [vmem:[%s262 + $0x68] sm:$0xff] %v2859
      %2892 = vst [vmem:[%s262 + $0x70] sm:$0xff] %v2860
      %2893 = vst [vmem:[%s262 + $0x78] sm:$0xff] %v2861
      %2894 = vst [vmem:[%s262 + $0x80] sm:$0xff] %v2862
      %2895 = vst [vmem:[%s262 + $0x88] sm:$0xff] %v2863
      %2896 = vst [vmem:[%s262 + $0x90] sm:$0xff] %v2864
      %2897 = vst [vmem:[%s262 + $0x98] sm:$0xff] %v2865
      %2898 = vst [vmem:[%s262 + $0xa0] sm:$0xff] %v2866
      %2899 = vst [vmem:[%s262 + $0xa8] sm:$0xff] %v2867
      %2900 = vst [vmem:[%s262 + $0xb0] sm:$0xff] %v2868
      %2901 = vst [vmem:[%s262 + $0xb8] sm:$0xff] %v2869
      %2902 = vst [vmem:[%s262 + $0xc0] sm:$0xff] %v2870
      %2903 = vst [vmem:[%s262 + $0xc8] sm:$0xff] %v2871
      %2904 = vst [vmem:[%s262 + $0xd0] sm:$0xff] %v2872
      %2905 = vst [vmem:[%s262 + $0xd8] sm:$0xff] %v2873
      %2906 = vst [vmem:[%s262 + $0xe0] sm:$0xff] %v2874
      %2907 = vst [vmem:[%s262 + $0xe8] sm:$0xff] %v2875
      %2908 = vst [vmem:[%s262 + $0xf0] sm:$0xff] %v2876
      %2909 = vst [vmem:[%s262 + $0xf8] sm:$0xff] %v2877
      %v2910 = vadd.f32 %v2846, %v2847
      %v2911 = vadd.f32 %v2910, %v2848
      %v2912 = vadd.f32 %v2911, %v2849
      %v2913 = vadd.f32 %v2912, %v2850
      %v2914 = vadd.f32 %v2913, %v2851
      %v2915 = vadd.f32 %v2914, %v2852
      %v2916 = vadd.f32 %v2915, %v2853
      %v2917 = vadd.f32 %v2916, %v2854
      %v2918 = vadd.f32 %v2917, %v2855
      %v2919 = vadd.f32 %v2918, %v2856
      %v2920 = vadd.f32 %v2919, %v2857
      %v2921 = vadd.f32 %v2920, %v2858
      %v2922 = vadd.f32 %v2921, %v2859
      %v2923 = vadd.f32 %v2922, %v2860
      %v2924 = vadd.f32 %v2923, %v2861
      %v2925 = vadd.f32 %v2924, %v2862
      %v2926 = vadd.f32 %v2925, %v2863
      %v2927 = vadd.f32 %v2926, %v2864
      %v2928 = vadd.f32 %v2927, %v2865
      %v2929 = vadd.f32 %v2928, %v2866
      %v2930 = vadd.f32 %v2929, %v2867
      %v2931 = vadd.f32 %v2930, %v2868
      %v2932 = vadd.f32 %v2931, %v2869
      %v2933 = vadd.f32 %v2932, %v2870
      %v2934 = vadd.f32 %v2933, %v2871
      %v2935 = vadd.f32 %v2934, %v2872
      %v2936 = vadd.f32 %v2935, %v2873
      %v2937 = vadd.f32 %v2936, %v2874
      %v2938 = vadd.f32 %v2937, %v2875
      %v2939 = vadd.f32 %v2938, %v2876
      %v2940 = vadd.f32 %v2939, %v2877
      %v2941 = vrot.slane %v2940, 4
      %v2942 = vadd.f32 %v2940, %v2941
      %v2943 = vrot.slane %v2942, 2
      %v2944 = vadd.f32 %v2942, %v2943
      %v2945 = vrot.slane %v2944, 1
      %v2946 = vadd.f32 %v2944, %v2945
      %2947 = vst [vmem:[%s265] sm:$0x1] %v2946
      %v2948 = vmul.f32 %v2846, %v2846
      %v2949 = vmul.f32 %v2847, %v2847
      %v2950 = vmul.f32 %v2848, %v2848
      %v2951 = vmul.f32 %v2849, %v2849
      %v2952 = vmul.f32 %v2850, %v2850
      %v2953 = vmul.f32 %v2851, %v2851
      %v2954 = vmul.f32 %v2852, %v2852
      %v2955 = vmul.f32 %v2853, %v2853
      %v2956 = vmul.f32 %v2854, %v2854
      %v2957 = vmul.f32 %v2855, %v2855
      %v2958 = vmul.f32 %v2856, %v2856
      %v2959 = vmul.f32 %v2857, %v2857
      %v2960 = vmul.f32 %v2858, %v2858
      %v2961 = vmul.f32 %v2859, %v2859
      %v2962 = vmul.f32 %v2860, %v2860
      %v2963 = vmul.f32 %v2861, %v2861
      %v2964 = vmul.f32 %v2862, %v2862
      %v2965 = vmul.f32 %v2863, %v2863
      %v2966 = vmul.f32 %v2864, %v2864
      %v2967 = vmul.f32 %v2865, %v2865
      %v2968 = vmul.f32 %v2866, %v2866
      %v2969 = vmul.f32 %v2867, %v2867
      %v2970 = vmul.f32 %v2868, %v2868
      %v2971 = vmul.f32 %v2869, %v2869
      %v2972 = vmul.f32 %v2870, %v2870
      %v2973 = vmul.f32 %v2871, %v2871
      %v2974 = vmul.f32 %v2872, %v2872
      %v2975 = vmul.f32 %v2873, %v2873
      %v2976 = vmul.f32 %v2874, %v2874
      %v2977 = vmul.f32 %v2875, %v2875
      %v2978 = vmul.f32 %v2876, %v2876
      %v2979 = vmul.f32 %v2877, %v2877
      %v2980 = vadd.f32 %v2948, %v2949
      %v2981 = vadd.f32 %v2980, %v2950
      %v2982 = vadd.f32 %v2981, %v2951
      %v2983 = vadd.f32 %v2982, %v2952
      %v2984 = vadd.f32 %v2983, %v2953
      %v2985 = vadd.f32 %v2984, %v2954
      %v2986 = vadd.f32 %v2985, %v2955
      %v2987 = vadd.f32 %v2986, %v2956
      %v2988 = vadd.f32 %v2987, %v2957
      %v2989 = vadd.f32 %v2988, %v2958
      %v2990 = vadd.f32 %v2989, %v2959
      %v2991 = vadd.f32 %v2990, %v2960
      %v2992 = vadd.f32 %v2991, %v2961
      %v2993 = vadd.f32 %v2992, %v2962
      %v2994 = vadd.f32 %v2993, %v2963
      %v2995 = vadd.f32 %v2994, %v2964
      %v2996 = vadd.f32 %v2995, %v2965
      %v2997 = vadd.f32 %v2996, %v2966
      %v2998 = vadd.f32 %v2997, %v2967
      %v2999 = vadd.f32 %v2998, %v2968
      %v3000 = vadd.f32 %v2999, %v2969
      %v3001 = vadd.f32 %v3000, %v2970
      %v3002 = vadd.f32 %v3001, %v2971
      %v3003 = vadd.f32 %v3002, %v2972
      %v3004 = vadd.f32 %v3003, %v2973
      %v3005 = vadd.f32 %v3004, %v2974
      %v3006 = vadd.f32 %v3005, %v2975
      %v3007 = vadd.f32 %v3006, %v2976
      %v3008 = vadd.f32 %v3007, %v2977
      %v3009 = vadd.f32 %v3008, %v2978
      %v3010 = vadd.f32 %v3009, %v2979
      %v3011 = vrot.slane %v3010, 4
      %v3012 = vadd.f32 %v3010, %v3011
      %v3013 = vrot.slane %v3012, 2
      %v3014 = vadd.f32 %v3012, %v3013
      %v3015 = vrot.slane %v3014, 1
      %v3016 = vadd.f32 %v3014, %v3015
      %3017 = vst [vmem:[%s268] sm:$0x1] %v3016
      %p3018 = scmp.lt.s32.totalorder %s18, 1
      %s3019 = scalar_select %p3018, %s18, 1
      %s3020 = smul.addr %s3019, 32
      %s3021 = smul.addr %s3020, 8
      %s3022 = scalar_lea.vmem %s4, %s3021
      %p3023 = scmp.lt.s32.totalorder %s18, 1
      %s3024 = scalar_select %p3023, %s18, 1
      %s3025 = scalar_lea.vmem %s5, %s3024
      %p3026 = scmp.lt.s32.totalorder %s18, 1
      %s3027 = scalar_select %p3026, %s18, 1
      %s3028 = scalar_lea.vmem %s6, %s3027
      // Predicated region
      $region37: #{inconv_forward.4} parent=35 // pred_check
        %p3029 = pneg %p125
      $region38: #{inconv_forward.4} parent=35 // pred_check_branch
        %3031 = sbr.rel (%p3029) target = $region40
      $region39: #{inconv_forward.4} parent=35 // pred_region
        _
      $region40: #{inconv_forward.4} parent=35 // pred_fallthru
        _
      // Predicated region
      $region41: #{inconv_forward.4} parent=35 // pred_check
        %p3032 = pneg %p151
      $region42: #{inconv_forward.4} parent=35 // pred_check_branch
        %3034 = sbr.rel (%p3032) target = $region44
      $region43: #{inconv_forward.4} parent=35 // pred_region
        _
      $region44: #{inconv_forward.4} parent=35 // pred_fallthru
        _
      // Predicated region
      $region45: #{inconv_forward.4} parent=35 // pred_check
        %p3035 = pneg %p177
      $region46: #{inconv_forward.4} parent=35 // pred_check_branch
        %3037 = sbr.rel (%p3035) target = $region48
      $region47: #{inconv_forward.4} parent=35 // pred_region
        _
      $region48: #{inconv_forward.4} parent=35 // pred_fallthru
        _
    $region36: #{inconv_forward.4} parent=5 // pred_fallthru
      _
    %p3038 = scmp.le.s32.totalorder 2, %s13
    // Predicated region
    $region49: #{inconv_forward.4} parent=5 // pred_check
      %p3039 = pneg %p3038
    $region50: #{inconv_forward.4} parent=5 // pred_check_branch
      %3041 = sbr.rel (%p3039) target = $region52
    $region51: #{inconv_forward.4} parent=5 // pred_region
      %s3042 = ssub.s32 %s13, 2
      // Predicated region
      $region53: #{inconv_forward.4} parent=51 // pred_check
        %p3043 = pneg %p131
      $region54: #{inconv_forward.4} parent=51 // pred_check_branch
        %3045 = sbr.rel (%p3043) target = $region56
      $region55: #{inconv_forward.4} parent=51 // pred_region
        %p3046 = scmp.lt.s32.totalorder %s19, 1
        %s3047 = scalar_select %p3046, %s19, 1
        %s3048 = smul.addr %s3047, 32
        %s3049 = smul.addr %s3048, 8
        %s3050 = scalar_lea.vmem %s4, %s3049
      $region56: #{inconv_forward.4} parent=51 // pred_fallthru
        _
      // Predicated region
      $region57: #{inconv_forward.4} parent=51 // pred_check
        %p3051 = pneg %p157
      $region58: #{inconv_forward.4} parent=51 // pred_check_branch
        %3053 = sbr.rel (%p3051) target = $region60
      $region59: #{inconv_forward.4} parent=51 // pred_region
        %p3054 = scmp.lt.s32.totalorder %s19, 1
        %s3055 = scalar_select %p3054, %s19, 1
        %s3056 = scalar_lea.vmem %s5, %s3055
      $region60: #{inconv_forward.4} parent=51 // pred_fallthru
        _
      // Predicated region
      $region61: #{inconv_forward.4} parent=51 // pred_check
        %p3057 = pneg %p183
      $region62: #{inconv_forward.4} parent=51 // pred_check_branch
        %3059 = sbr.rel (%p3057) target = $region64
      $region63: #{inconv_forward.4} parent=51 // pred_region
        %p3060 = scmp.lt.s32.totalorder %s19, 1
        %s3061 = scalar_select %p3060, %s19, 1
        %s3062 = scalar_lea.vmem %s6, %s3061
      $region64: #{inconv_forward.4} parent=51 // pred_fallthru
        _
    $region52: #{inconv_forward.4} parent=5 // pred_fallthru
      _
  $region6: #{inconv_forward.4} parent=0 // loop_footer
    %s17 = sadd.s32 1, %s13
  $region7: #{inconv_forward.4} parent=0 // loop_footer_branch
    %12 = sbr.rel target = $region3
  $region8: #{inconv_forward.4} parent=0 // loop_exit
    _

// kernel: inconv_forward.3
$region0: #{inconv_forward.3}
  #allocation0 [shape = 'u32[]', space=smem, size = 0x4, offset = 0x4, fixed_abs, tag = 'smem constant byte address 0x4 - core index']
  #allocation1 [shape = 'u32[72,128]{1,0:T(1,128)}', space=vmem, size = 0x9000, scoped, tag = 'internal scratch']
  #allocation2 [shape = 'f32[18,18,4]{2,1,0:T(8,128)}', space=vmem, size = 0x36000, scoped, tag = 'scratch operand']
  #allocation3 [shape = 'f32[256,128]{1,0:T(8,128)}', space=vmem, size = 0x20000, scoped, tag = 'scratch operand']
  %s0 = inlined_call_operand.vmem [shape: f32[2,16,16,4], index: 0, kind: input, shape index: {}]
  %s1 = inlined_call_operand.vmem [shape: f32[9,4,128], index: 1, kind: input, shape index: {}]
  %s2 = inlined_call_operand.vmem [shape: f32[1,4], index: 2, kind: input, shape index: {}]
  %s3 = inlined_call_operand.vmem [shape: f32[1,4], index: 3, kind: input, shape index: {}]
  %s4 = inlined_call_operand.vmem [shape: f32[2,16,16,128], index: 4, kind: output, shape index: {0}]
  %s5 = inlined_call_operand.vmem [shape: f32[2,1,128], index: 5, kind: output, shape index: {1}]
  %s6 = inlined_call_operand.vmem [shape: f32[2,1,128], index: 6, kind: output, shape index: {2}]
  %7 = xla_tuple %s4, %s5, %s6
  %s8 = sld [smem:[#allocation0]]
  $region65: #{inconv_forward.3} parent=0
    _
  %s10 = ssub.s32 1, %s8
  %s11 = scalar_select 0, %s10, %s8
  loop: start=0, step=1, limit=4
  $region2: #{inconv_forward.3} parent=0 // loop_pre_header
    _
  $region3: #{inconv_forward.3} parent=0 // loop_header
    %s13 = sphi 0, %s17
    %p14 = scmp.ge.s32.totalorder %s13, 4
    %s23 = sphi 0, %s25
    %s26 = sphi 0, %s23
    %s27 = sphi 0, %s26
    %s43 = sphi 0, %s27
    %s47 = sphi 0, %s47
    %s49 = sphi 0, %s47
    %s50 = sphi 0, %s49
    %s64 = sphi 0, %s50
    %s68 = sphi 0, %s68
    %s70 = sphi 0, %s68
    %s71 = sphi 0, %s70
    %s85 = sphi 0, %s71
    %s89 = sphi 0, %s89
    %s91 = sphi 0, %s89
    %s92 = sphi 0, %s91
    %s106 = sphi 0, %s92
    %s112 = sphi 0, %s114
    %s115 = sphi 0, %s112
    %s116 = sphi 0, %s115
    %s132 = sphi 0, %s116
    %s138 = sphi 0, %s140
    %s141 = sphi 0, %s138
    %s142 = sphi 0, %s141
    %s158 = sphi 0, %s142
    %s164 = sphi 0, %s166
    %s167 = sphi 0, %s164
    %s168 = sphi 0, %s167
    %s184 = sphi 0, %s168
  $region4: #{inconv_forward.3} parent=0 // loop_header_branch
    %16 = sbr.rel (%p14) target = $region8
  $region5: #{inconv_forward.3} parent=0 // loop_body
    %s18 = ssub.s32 %s13, 1
    %s19 = ssub.s32 %s13, 2
    %s20 = sadd.s32 %s13, 1
    %s21 = ssub.s32 %s13, %s20
    %p22 = scmp.eq.s32.totalorder %s21, 0
    %s24 = sadd.s32 %s23, 1
    %s25 = scalar_select %p22, %s23, %s24
    %p28 = pneg %p22
    %p29 = scmp.eq.s32.totalorder %s13, 1
    %p30 = por %p28, %p29
    %p31 = scmp.ne.s32.totalorder %s23, %s26
    %p32 = scmp.eq.s32.totalorder %s13, 0
    %p33 = por %p31, %p32
    %p34 = scmp.ne.s32.totalorder %s23, %s26
    %p35 = scmp.eq.s32.totalorder %s18, 1
    %p36 = por %p34, %p35
    %p37 = scmp.ne.s32.totalorder %s26, %s27
    %p38 = scmp.eq.s32.totalorder %s18, 0
    %p39 = por %p37, %p38
    %p40 = scmp.ne.s32.totalorder %s26, %s27
    %p41 = scmp.eq.s32.totalorder %s19, 1
    %p42 = por %p40, %p41
    %p44 = scmp.ne.s32.totalorder %s27, %s43
    %p45 = scmp.eq.s32.totalorder %s19, 0
    %p46 = por %p44, %p45
    %s48 = sadd.s32 %s47, 1
    %p51 = scmp.eq.s32.totalorder %s13, 1
    %p52 = scmp.ne.s32.totalorder %s47, %s49
    %p53 = scmp.eq.s32.totalorder %s13, 0
    %p54 = por %p52, %p53
    %p55 = scmp.ne.s32.totalorder %s47, %s49
    %p56 = scmp.eq.s32.totalorder %s18, 1
    %p57 = por %p55, %p56
    %p58 = scmp.ne.s32.totalorder %s49, %s50
    %p59 = scmp.eq.s32.totalorder %s18, 0
    %p60 = por %p58, %p59
    %p61 = scmp.ne.s32.totalorder %s49, %s50
    %p62 = scmp.eq.s32.totalorder %s19, 1
    %p63 = por %p61, %p62
    %p65 = scmp.ne.s32.totalorder %s50, %s64
    %p66 = scmp.eq.s32.totalorder %s19, 0
    %p67 = por %p65, %p66
    %s69 = sadd.s32 %s68, 1
    %p72 = scmp.eq.s32.totalorder %s13, 1
    %p73 = scmp.ne.s32.totalorder %s68, %s70
    %p74 = scmp.eq.s32.totalorder %s13, 0
    %p75 = por %p73, %p74
    %p76 = scmp.ne.s32.totalorder %s68, %s70
    %p77 = scmp.eq.s32.totalorder %s18, 1
    %p78 = por %p76, %p77
    %p79 = scmp.ne.s32.totalorder %s70, %s71
    %p80 = scmp.eq.s32.totalorder %s18, 0
    %p81 = por %p79, %p80
    %p82 = scmp.ne.s32.totalorder %s70, %s71
    %p83 = scmp.eq.s32.totalorder %s19, 1
    %p84 = por %p82, %p83
    %p86 = scmp.ne.s32.totalorder %s71, %s85
    %p87 = scmp.eq.s32.totalorder %s19, 0
    %p88 = por %p86, %p87
    %s90 = sadd.s32 %s89, 1
    %p93 = scmp.eq.s32.totalorder %s13, 1
    %p94 = scmp.ne.s32.totalorder %s89, %s91
    %p95 = scmp.eq.s32.totalorder %s13, 0
    %p96 = por %p94, %p95
    %p97 = scmp.ne.s32.totalorder %s89, %s91
    %p98 = scmp.eq.s32.totalorder %s18, 1
    %p99 = por %p97, %p98
    %p100 = scmp.ne.s32.totalorder %s91, %s92
    %p101 = scmp.eq.s32.totalorder %s18, 0
    %p102 = por %p100, %p101
    %p103 = scmp.ne.s32.totalorder %s91, %s92
    %p104 = scmp.eq.s32.totalorder %s19, 1
    %p105 = por %p103, %p104
    %p107 = scmp.ne.s32.totalorder %s92, %s106
    %p108 = scmp.eq.s32.totalorder %s19, 0
    %p109 = por %p107, %p108
    %s110 = ssub.s32 %s13, %s20
    %p111 = scmp.eq.s32.totalorder %s110, 0
    %s113 = sadd.s32 %s112, 1
    %s114 = scalar_select %p111, %s112, %s113
    %p117 = pneg %p111
    %p118 = scmp.eq.s32.totalorder %s13, 1
    %p119 = por %p117, %p118
    %p120 = scmp.ne.s32.totalorder %s112, %s115
    %p121 = scmp.eq.s32.totalorder %s13, 0
    %p122 = por %p120, %p121
    %p123 = scmp.ne.s32.totalorder %s112, %s115
    %p124 = scmp.eq.s32.totalorder %s18, 1
    %p125 = por %p123, %p124
    %p126 = scmp.ne.s32.totalorder %s115, %s116
    %p127 = scmp.eq.s32.totalorder %s18, 0
    %p128 = por %p126, %p127
    %p129 = scmp.ne.s32.totalorder %s115, %s116
    %p130 = scmp.eq.s32.totalorder %s19, 1
    %p131 = por %p129, %p130
    %p133 = scmp.ne.s32.totalorder %s116, %s132
    %p134 = scmp.eq.s32.totalorder %s19, 0
    %p135 = por %p133, %p134
    %s136 = ssub.s32 %s13, %s20
    %p137 = scmp.eq.s32.totalorder %s136, 0
    %s139 = sadd.s32 %s138, 1
    %s140 = scalar_select %p137, %s138, %s139
    %p143 = pneg %p137
    %p144 = scmp.eq.s32.totalorder %s13, 1
    %p145 = por %p143, %p144
    %p146 = scmp.ne.s32.totalorder %s138, %s141
    %p147 = scmp.eq.s32.totalorder %s13, 0
    %p148 = por %p146, %p147
    %p149 = scmp.ne.s32.totalorder %s138, %s141
    %p150 = scmp.eq.s32.totalorder %s18, 1
    %p151 = por %p149, %p150
    %p152 = scmp.ne.s32.totalorder %s141, %s142
    %p153 = scmp.eq.s32.totalorder %s18, 0
    %p154 = por %p152, %p153
    %p155 = scmp.ne.s32.totalorder %s141, %s142
    %p156 = scmp.eq.s32.totalorder %s19, 1
    %p157 = por %p155, %p156
    %p159 = scmp.ne.s32.totalorder %s142, %s158
    %p160 = scmp.eq.s32.totalorder %s19, 0
    %p161 = por %p159, %p160
    %s162 = ssub.s32 %s13, %s20
    %p163 = scmp.eq.s32.totalorder %s162, 0
    %s165 = sadd.s32 %s164, 1
    %s166 = scalar_select %p163, %s164, %s165
    %p169 = pneg %p163
    %p170 = scmp.eq.s32.totalorder %s13, 1
    %p171 = por %p169, %p170
    %p172 = scmp.ne.s32.totalorder %s164, %s167
    %p173 = scmp.eq.s32.totalorder %s13, 0
    %p174 = por %p172, %p173
    %p175 = scmp.ne.s32.totalorder %s164, %s167
    %p176 = scmp.eq.s32.totalorder %s18, 1
    %p177 = por %p175, %p176
    %p178 = scmp.ne.s32.totalorder %s167, %s168
    %p179 = scmp.eq.s32.totalorder %s18, 0
    %p180 = por %p178, %p179
    %p181 = scmp.ne.s32.totalorder %s167, %s168
    %p182 = scmp.eq.s32.totalorder %s19, 1
    %p183 = por %p181, %p182
    %p185 = scmp.ne.s32.totalorder %s168, %s184
    %p186 = scmp.eq.s32.totalorder %s19, 0
    %p187 = por %p185, %p186
    %p188 = scmp.le.s32.totalorder 1, %s13
    %p189 = scmp.lt.s32.totalorder %s13, 3
    %p190 = pnand %p188, %p189
    %p191 = pneg %p190
    // Predicated region
    $region9: #{inconv_forward.3} parent=5 // pred_check
      _
    $region10: #{inconv_forward.3} parent=5 // pred_check_branch
      %193 = sbr.rel (%p190) target = $region12
    $region11: #{inconv_forward.3} parent=5 // pred_region
      %s194 = ssub.s32 %s13, 1
      // Predicated region
      $region13: #{inconv_forward.3} parent=11 // pred_check
        %p195 = pneg %p60
      $region14: #{inconv_forward.3} parent=11 // pred_check_branch
        %197 = sbr.rel (%p195) target = $region16
      $region15: #{inconv_forward.3} parent=11 // pred_region
        _
      $region16: #{inconv_forward.3} parent=11 // pred_fallthru
        _
      // Predicated region
      $region17: #{inconv_forward.3} parent=11 // pred_check
        %p198 = pneg %p81
      $region18: #{inconv_forward.3} parent=11 // pred_check_branch
        %200 = sbr.rel (%p198) target = $region20
      $region19: #{inconv_forward.3} parent=11 // pred_region
        _
      $region20: #{inconv_forward.3} parent=11 // pred_fallthru
        _
      // Predicated region
      $region21: #{inconv_forward.3} parent=11 // pred_check
        %p201 = pneg %p102
      $region22: #{inconv_forward.3} parent=11 // pred_check_branch
        %203 = sbr.rel (%p201) target = $region24
      $region23: #{inconv_forward.3} parent=11 // pred_region
        _
      $region24: #{inconv_forward.3} parent=11 // pred_fallthru
        _
    $region12: #{inconv_forward.3} parent=5 // pred_fallthru
      _
    %p204 = scmp.lt.s32.totalorder %s13, 2
    // Predicated region
    $region25: #{inconv_forward.3} parent=5 // pred_check
      %p205 = pneg %p204
    $region26: #{inconv_forward.3} parent=5 // pred_check_branch
      %207 = sbr.rel (%p205) target = $region28
    $region27: #{inconv_forward.3} parent=5 // pred_region
      // Predicated region
      $region29: #{inconv_forward.3} parent=27 // pred_check
        %p208 = pneg %p33
      $region30: #{inconv_forward.3} parent=27 // pred_check_branch
        %210 = sbr.rel (%p208) target = $region32
      $region31: #{inconv_forward.3} parent=27 // pred_region
        %p211 = scmp.lt.s32.totalorder %s13, 1
        %s212 = scalar_select %p211, %s13, 1
        %s213 = smul.addr %s212, 32
        %s214 = smul.addr %s213, 8
        %s215 = scalar_lea.vmem %s0, %s214
      $region32: #{inconv_forward.3} parent=27 // pred_fallthru
        _
    $region28: #{inconv_forward.3} parent=5 // pred_fallthru
      _
    %p216 = scmp.le.s32.totalorder 1, %s13
    %p217 = scmp.lt.s32.totalorder %s13, 3
    %p218 = pnand %p216, %p217
    %p219 = pneg %p218
    // Predicated region
    $region33: #{inconv_forward.3} parent=5 // pred_check
      _
    $region34: #{inconv_forward.3} parent=5 // pred_check_branch
      %221 = sbr.rel (%p218) target = $region36
    $region35: #{inconv_forward.3} parent=5 // pred_region
      %s222 = ssub.s32 %s13, 1
      %p223 = scmp.lt.s32.totalorder %s18, 1
      %s224 = scalar_select %p223, %s18, 1
      %s225 = smul.addr %s224, 32
      %s226 = smul.addr %s225, 8
      %s227 = scalar_lea.vmem %s0, %s226
      %p228 = pneg %p39
      %p229 = pneg %p36
      %p230 = pneg %p60
      %p231 = pneg %p57
      %p232 = pneg %p81
      %p233 = pneg %p78
      %p234 = pneg %p102
      %p235 = pneg %p99
      %p236 = pneg %p128
      %p237 = pneg %p125
      %p238 = scmp.lt.s32.totalorder %s18, 1
      %s239 = scalar_select %p238, %s18, 1
      %s240 = smul.addr %s239, 32
      %s241 = smul.addr %s240, 8
      %s242 = scalar_lea.vmem %s4, %s241
      %p243 = pneg %p154
      %p244 = pneg %p151
      %p245 = scmp.lt.s32.totalorder %s18, 1
      %s246 = scalar_select %p245, %s18, 1
      %s247 = scalar_lea.vmem %s5, %s246
      %p248 = pneg %p180
      %p249 = pneg %p177
      %p250 = scmp.lt.s32.totalorder %s18, 1
      %s251 = scalar_select %p250, %s18, 1
      %s252 = scalar_lea.vmem %s6, %s251
      %p253 = scmp.lt.s32.totalorder %s18, 1
      %s254 = scalar_select %p253, %s18, 1
      %s255 = smul.addr %s254, 32
      %s256 = smul.addr %s255, 8
      %s257 = scalar_lea.vmem %s0, %s256
      %p258 = scmp.lt.s32.totalorder %s18, 1
      %s259 = scalar_select %p258, %s18, 1
      %s260 = smul.addr %s259, 32
      %s261 = smul.addr %s260, 8
      %s262 = scalar_lea.vmem %s4, %s261
      %p263 = scmp.lt.s32.totalorder %s18, 1
      %s264 = scalar_select %p263, %s18, 1
      %s265 = scalar_lea.vmem %s5, %s264
      %p266 = scmp.lt.s32.totalorder %s18, 1
      %s267 = scalar_select %p266, %s18, 1
      %s268 = scalar_lea.vmem %s6, %s267
      %v269 = vld [vmem:[%s257] sm:$0xff]
      %v270 = vld [vmem:[%s257 + $0x8] sm:$0xff]
      %v271 = vld [vmem:[%s257 + $0x10] sm:$0xff]
      %v272 = vld [vmem:[%s257 + $0x18] sm:$0xff]
      %v273 = vld [vmem:[%s257 + $0x20] sm:$0xff]
      %v274 = vld [vmem:[%s257 + $0x28] sm:$0xff]
      %v275 = vld [vmem:[%s257 + $0x30] sm:$0xff]
      %v276 = vld [vmem:[%s257 + $0x38] sm:$0xff]
      %v277 = vld [vmem:[%s257 + $0x40] sm:$0xff]
      %v278 = vld [vmem:[%s257 + $0x48] sm:$0xff]
      %v279 = vld [vmem:[%s257 + $0x50] sm:$0xff]
      %v280 = vld [vmem:[%s257 + $0x58] sm:$0xff]
      %v281 = vld [vmem:[%s257 + $0x60] sm:$0xff]
      %v282 = vld [vmem:[%s257 + $0x68] sm:$0xff]
      %v283 = vld [vmem:[%s257 + $0x70] sm:$0xff]
      %v284 = vld [vmem:[%s257 + $0x78] sm:$0xff]
      %v285 = vld [vmem:[%s257 + $0x80] sm:$0xff]
      %v286 = vld [vmem:[%s257 + $0x88] sm:$0xff]
      %v287 = vld [vmem:[%s257 + $0x90] sm:$0xff]
      %v288 = vld [vmem:[%s257 + $0x98] sm:$0xff]
      %v289 = vld [vmem:[%s257 + $0xa0] sm:$0xff]
      %v290 = vld [vmem:[%s257 + $0xa8] sm:$0xff]
      %v291 = vld [vmem:[%s257 + $0xb0] sm:$0xff]
      %v292 = vld [vmem:[%s257 + $0xb8] sm:$0xff]
      %v293 = vld [vmem:[%s257 + $0xc0] sm:$0xff]
      %v294 = vld [vmem:[%s257 + $0xc8] sm:$0xff]
      %v295 = vld [vmem:[%s257 + $0xd0] sm:$0xff]
      %v296 = vld [vmem:[%s257 + $0xd8] sm:$0xff]
      %v297 = vld [vmem:[%s257 + $0xe0] sm:$0xff]
      %v298 = vld [vmem:[%s257 + $0xe8] sm:$0xff]
      %v299 = vld [vmem:[%s257 + $0xf0] sm:$0xff]
      %v300 = vld [vmem:[%s257 + $0xf8] sm:$0xff]
      %vm301 = vcmask 31744
      %302 = vst.msk [vmem:[#allocation2] sm:$0xff] %vm301, 0.0
      %303 = vst.msk [vmem:[#allocation2 + $0x8] sm:$0xff] %vm301, 0.0
      %vm304 = vcmask 25600
      %305 = vst.msk [vmem:[#allocation2 + $0x10] sm:$0x3] %vm304, 0.0
      %306 = vst.msk [vmem:[#allocation2 + $0x18] sm:$0xff] %vm301, 0.0
      %307 = vst.msk [vmem:[#allocation2 + $0x20] sm:$0xff] %vm301, 0.0
      %308 = vst.msk [vmem:[#allocation2 + $0x28] sm:$0x3] %vm304, 0.0
      %309 = vst.msk [vmem:[#allocation2 + $0x30] sm:$0xff] %vm301, 0.0
      %310 = vst.msk [vmem:[#allocation2 + $0x38] sm:$0xff] %vm301, 0.0
      %311 = vst.msk [vmem:[#allocation2 + $0x40] sm:$0x3] %vm304, 0.0
      %312 = vst.msk [vmem:[#allocation2 + $0x48] sm:$0xff] %vm301, 0.0
      %313 = vst.msk [vmem:[#allocation2 + $0x50] sm:$0xff] %vm301, 0.0
      %314 = vst.msk [vmem:[#allocation2 + $0x58] sm:$0x3] %vm304, 0.0
      %315 = vst.msk [vmem:[#allocation2 + $0x60] sm:$0xff] %vm301, 0.0
      %316 = vst.msk [vmem:[#allocation2 + $0x68] sm:$0xff] %vm301, 0.0
      %317 = vst.msk [vmem:[#allocation2 + $0x70] sm:$0x3] %vm304, 0.0
      %318 = vst.msk [vmem:[#allocation2 + $0x78] sm:$0xff] %vm301, 0.0
      %319 = vst.msk [vmem:[#allocation2 + $0x80] sm:$0xff] %vm301, 0.0
      %320 = vst.msk [vmem:[#allocation2 + $0x88] sm:$0x3] %vm304, 0.0
      %321 = vst.msk [vmem:[#allocation2 + $0x90] sm:$0xff] %vm301, 0.0
      %322 = vst.msk [vmem:[#allocation2 + $0x98] sm:$0xff] %vm301, 0.0
      %323 = vst.msk [vmem:[#allocation2 + $0xa0] sm:$0x3] %vm304, 0.0
      %324 = vst.msk [vmem:[#allocation2 + $0xa8] sm:$0xff] %vm301, 0.0
      %325 = vst.msk [vmem:[#allocation2 + $0xb0] sm:$0xff] %vm301, 0.0
      %326 = vst.msk [vmem:[#allocation2 + $0xb8] sm:$0x3] %vm304, 0.0
      %327 = vst.msk [vmem:[#allocation2 + $0xc0] sm:$0xff] %vm301, 0.0
      %328 = vst.msk [vmem:[#allocation2 + $0xc8] sm:$0xff] %vm301, 0.0
      %329 = vst.msk [vmem:[#allocation2 + $0xd0] sm:$0x3] %vm304, 0.0
      %330 = vst.msk [vmem:[#allocation2 + $0xd8] sm:$0xff] %vm301, 0.0
      %331 = vst.msk [vmem:[#allocation2 + $0xe0] sm:$0xff] %vm301, 0.0
      %332 = vst.msk [vmem:[#allocation2 + $0xe8] sm:$0x3] %vm304, 0.0
      %333 = vst.msk [vmem:[#allocation2 + $0xf0] sm:$0xff] %vm301, 0.0
      %334 = vst.msk [vmem:[#allocation2 + $0xf8] sm:$0xff] %vm301, 0.0
      %335 = vst.msk [vmem:[#allocation2 + $0x100] sm:$0x3] %vm304, 0.0
      %336 = vst.msk [vmem:[#allocation2 + $0x108] sm:$0xff] %vm301, 0.0
      %337 = vst.msk [vmem:[#allocation2 + $0x110] sm:$0xff] %vm301, 0.0
      %338 = vst.msk [vmem:[#allocation2 + $0x118] sm:$0x3] %vm304, 0.0
      %339 = vst.msk [vmem:[#allocation2 + $0x120] sm:$0xff] %vm301, 0.0
      %340 = vst.msk [vmem:[#allocation2 + $0x128] sm:$0xff] %vm301, 0.0
      %341 = vst.msk [vmem:[#allocation2 + $0x130] sm:$0x3] %vm304, 0.0
      %342 = vst.msk [vmem:[#allocation2 + $0x138] sm:$0xff] %vm301, 0.0
      %343 = vst.msk [vmem:[#allocation2 + $0x140] sm:$0xff] %vm301, 0.0
      %344 = vst.msk [vmem:[#allocation2 + $0x148] sm:$0x3] %vm304, 0.0
      %345 = vst.msk [vmem:[#allocation2 + $0x150] sm:$0xff] %vm301, 0.0
      %346 = vst.msk [vmem:[#allocation2 + $0x158] sm:$0xff] %vm301, 0.0
      %347 = vst.msk [vmem:[#allocation2 + $0x160] sm:$0x3] %vm304, 0.0
      %348 = vst.msk [vmem:[#allocation2 + $0x168] sm:$0xff] %vm301, 0.0
      %349 = vst.msk [vmem:[#allocation2 + $0x170] sm:$0xff] %vm301, 0.0
      %350 = vst.msk [vmem:[#allocation2 + $0x178] sm:$0x3] %vm304, 0.0
      %351 = vst.msk [vmem:[#allocation2 + $0x180] sm:$0xff] %vm301, 0.0
      %352 = vst.msk [vmem:[#allocation2 + $0x188] sm:$0xff] %vm301, 0.0
      %353 = vst.msk [vmem:[#allocation2 + $0x190] sm:$0x3] %vm304, 0.0
      %354 = vst.msk [vmem:[#allocation2 + $0x198] sm:$0xff] %vm301, 0.0
      %355 = vst.msk [vmem:[#allocation2 + $0x1a0] sm:$0xff] %vm301, 0.0
      %356 = vst.msk [vmem:[#allocation2 + $0x1a8] sm:$0x3] %vm304, 0.0
      %s357 = scalar_lea.vmem [#allocation2], 24
      %358 = vst.msk [vmem:[%s357 + $0x1] sm:$0xff] %vm301, %v269
      %359 = vst.msk [vmem:[%s357 + $0x9] sm:$0xff] %vm301, %v270
      %360 = vst.msk [vmem:[%s357 + $0x19] sm:$0xff] %vm301, %v271
      %361 = vst.msk [vmem:[%s357 + $0x21] sm:$0xff] %vm301, %v272
      %362 = vst.msk [vmem:[%s357 + $0x31] sm:$0xff] %vm301, %v273
      %363 = vst.msk [vmem:[%s357 + $0x39] sm:$0xff] %vm301, %v274
      %364 = vst.msk [vmem:[%s357 + $0x49] sm:$0xff] %vm301, %v275
      %365 = vst.msk [vmem:[%s357 + $0x51] sm:$0xff] %vm301, %v276
      %366 = vst.msk [vmem:[%s357 + $0x61] sm:$0xff] %vm301, %v277
      %367 = vst.msk [vmem:[%s357 + $0x69] sm:$0xff] %vm301, %v278
      %368 = vst.msk [vmem:[%s357 + $0x79] sm:$0xff] %vm301, %v279
      %369 = vst.msk [vmem:[%s357 + $0x81] sm:$0xff] %vm301, %v280
      %370 = vst.msk [vmem:[%s357 + $0x91] sm:$0xff] %vm301, %v281
      %371 = vst.msk [vmem:[%s357 + $0x99] sm:$0xff] %vm301, %v282
      %372 = vst.msk [vmem:[%s357 + $0xa9] sm:$0xff] %vm301, %v283
      %373 = vst.msk [vmem:[%s357 + $0xb1] sm:$0xff] %vm301, %v284
      %374 = vst.msk [vmem:[%s357 + $0xc1] sm:$0xff] %vm301, %v285
      %375 = vst.msk [vmem:[%s357 + $0xc9] sm:$0xff] %vm301, %v286
      %376 = vst.msk [vmem:[%s357 + $0xd9] sm:$0xff] %vm301, %v287
      %377 = vst.msk [vmem:[%s357 + $0xe1] sm:$0xff] %vm301, %v288
      %378 = vst.msk [vmem:[%s357 + $0xf1] sm:$0xff] %vm301, %v289
      %379 = vst.msk [vmem:[%s357 + $0xf9] sm:$0xff] %vm301, %v290
      %380 = vst.msk [vmem:[%s357 + $0x109] sm:$0xff] %vm301, %v291
      %381 = vst.msk [vmem:[%s357 + $0x111] sm:$0xff] %vm301, %v292
      %382 = vst.msk [vmem:[%s357 + $0x121] sm:$0xff] %vm301, %v293
      %383 = vst.msk [vmem:[%s357 + $0x129] sm:$0xff] %vm301, %v294
      %384 = vst.msk [vmem:[%s357 + $0x139] sm:$0xff] %vm301, %v295
      %385 = vst.msk [vmem:[%s357 + $0x141] sm:$0xff] %vm301, %v296
      %386 = vst.msk [vmem:[%s357 + $0x151] sm:$0xff] %vm301, %v297
      %387 = vst.msk [vmem:[%s357 + $0x159] sm:$0xff] %vm301, %v298
      %388 = vst.msk [vmem:[%s357 + $0x169] sm:$0xff] %vm301, %v299
      %389 = vst.msk [vmem:[%s357 + $0x171] sm:$0xff] %vm301, %v300
      %390 = vst [vmem:[#allocation3] sm:$0xff] 0.0
      %391 = vst [vmem:[#allocation3 + $0x8] sm:$0xff] 0.0
      %392 = vst [vmem:[#allocation3 + $0x10] sm:$0xff] 0.0
      %393 = vst [vmem:[#allocation3 + $0x18] sm:$0xff] 0.0
      %394 = vst [vmem:[#allocation3 + $0x20] sm:$0xff] 0.0
      %395 = vst [vmem:[#allocation3 + $0x28] sm:$0xff] 0.0
      %396 = vst [vmem:[#allocation3 + $0x30] sm:$0xff] 0.0
      %397 = vst [vmem:[#allocation3 + $0x38] sm:$0xff] 0.0
      %398 = vst [vmem:[#allocation3 + $0x40] sm:$0xff] 0.0
      %399 = vst [vmem:[#allocation3 + $0x48] sm:$0xff] 0.0
      %400 = vst [vmem:[#allocation3 + $0x50] sm:$0xff] 0.0
      %401 = vst [vmem:[#allocation3 + $0x58] sm:$0xff] 0.0
      %402 = vst [vmem:[#allocation3 + $0x60] sm:$0xff] 0.0
      %403 = vst [vmem:[#allocation3 + $0x68] sm:$0xff] 0.0
      %404 = vst [vmem:[#allocation3 + $0x70] sm:$0xff] 0.0
      %405 = vst [vmem:[#allocation3 + $0x78] sm:$0xff] 0.0
      %406 = vst [vmem:[#allocation3 + $0x80] sm:$0xff] 0.0
      %407 = vst [vmem:[#allocation3 + $0x88] sm:$0xff] 0.0
      %408 = vst [vmem:[#allocation3 + $0x90] sm:$0xff] 0.0
      %409 = vst [vmem:[#allocation3 + $0x98] sm:$0xff] 0.0
      %410 = vst [vmem:[#allocation3 + $0xa0] sm:$0xff] 0.0
      %411 = vst [vmem:[#allocation3 + $0xa8] sm:$0xff] 0.0
      %412 = vst [vmem:[#allocation3 + $0xb0] sm:$0xff] 0.0
      %413 = vst [vmem:[#allocation3 + $0xb8] sm:$0xff] 0.0
      %414 = vst [vmem:[#allocation3 + $0xc0] sm:$0xff] 0.0
      %415 = vst [vmem:[#allocation3 + $0xc8] sm:$0xff] 0.0
      %416 = vst [vmem:[#allocation3 + $0xd0] sm:$0xff] 0.0
      %417 = vst [vmem:[#allocation3 + $0xd8] sm:$0xff] 0.0
      %418 = vst [vmem:[#allocation3 + $0xe0] sm:$0xff] 0.0
      %419 = vst [vmem:[#allocation3 + $0xe8] sm:$0xff] 0.0
      %420 = vst [vmem:[#allocation3 + $0xf0] sm:$0xff] 0.0
      %421 = vst [vmem:[#allocation3 + $0xf8] sm:$0xff] 0.0
      %v422 = vld [vmem:[#allocation2] sm:$0xff]
      %v423 = vld [vmem:[#allocation2 + $0x8] sm:$0xff]
      %v424 = vld [vmem:[#allocation2 + $0x18] sm:$0xff]
      %v425 = vld [vmem:[#allocation2 + $0x20] sm:$0xff]
      %v426 = vld [vmem:[#allocation2 + $0x30] sm:$0xff]
      %v427 = vld [vmem:[#allocation2 + $0x38] sm:$0xff]
      %v428 = vld [vmem:[#allocation2 + $0x48] sm:$0xff]
      %v429 = vld [vmem:[#allocation2 + $0x50] sm:$0xff]
      %v430 = vld [vmem:[#allocation2 + $0x60] sm:$0xff]
      %v431 = vld [vmem:[#allocation2 + $0x68] sm:$0xff]
      %v432 = vld [vmem:[#allocation2 + $0x78] sm:$0xff]
      %v433 = vld [vmem:[#allocation2 + $0x80] sm:$0xff]
      %v434 = vld [vmem:[#allocation2 + $0x90] sm:$0xff]
      %v435 = vld [vmem:[#allocation2 + $0x98] sm:$0xff]
      %v436 = vld [vmem:[#allocation2 + $0xa8] sm:$0xff]
      %v437 = vld [vmem:[#allocation2 + $0xb0] sm:$0xff]
      %v438 = vld [vmem:[#allocation2 + $0xc0] sm:$0xff]
      %v439 = vld [vmem:[#allocation2 + $0xc8] sm:$0xff]
      %v440 = vld [vmem:[#allocation2 + $0xd8] sm:$0xff]
      %v441 = vld [vmem:[#allocation2 + $0xe0] sm:$0xff]
      %v442 = vld [vmem:[#allocation2 + $0xf0] sm:$0xff]
      %v443 = vld [vmem:[#allocation2 + $0xf8] sm:$0xff]
      %v444 = vld [vmem:[#allocation2 + $0x108] sm:$0xff]
      %v445 = vld [vmem:[#allocation2 + $0x110] sm:$0xff]
      %v446 = vld [vmem:[#allocation2 + $0x120] sm:$0xff]
      %v447 = vld [vmem:[#allocation2 + $0x128] sm:$0xff]
      %v448 = vld [vmem:[#allocation2 + $0x138] sm:$0xff]
      %v449 = vld [vmem:[#allocation2 + $0x140] sm:$0xff]
      %v450 = vld [vmem:[#allocation2 + $0x150] sm:$0xff]
      %v451 = vld [vmem:[#allocation2 + $0x158] sm:$0xff]
      %v452 = vld [vmem:[#allocation2 + $0x168] sm:$0xff]
      %v453 = vld [vmem:[#allocation2 + $0x170] sm:$0xff]
      %v454 = vld [vmem:[#allocation3] sm:$0xff]
      %v455 = vld [vmem:[#allocation3 + $0x8] sm:$0xff]
      %v456 = vld [vmem:[#allocation3 + $0x10] sm:$0xff]
      %v457 = vld [vmem:[#allocation3 + $0x18] sm:$0xff]
      %v458 = vld [vmem:[#allocation3 + $0x20] sm:$0xff]
      %v459 = vld [vmem:[#allocation3 + $0x28] sm:$0xff]
      %v460 = vld [vmem:[#allocation3 + $0x30] sm:$0xff]
      %v461 = vld [vmem:[#allocation3 + $0x38] sm:$0xff]
      %v462 = vld [vmem:[#allocation3 + $0x40] sm:$0xff]
      %v463 = vld [vmem:[#allocation3 + $0x48] sm:$0xff]
      %v464 = vld [vmem:[#allocation3 + $0x50] sm:$0xff]
      %v465 = vld [vmem:[#allocation3 + $0x58] sm:$0xff]
      %v466 = vld [vmem:[#allocation3 + $0x60] sm:$0xff]
      %v467 = vld [vmem:[#allocation3 + $0x68] sm:$0xff]
      %v468 = vld [vmem:[#allocation3 + $0x70] sm:$0xff]
      %v469 = vld [vmem:[#allocation3 + $0x78] sm:$0xff]
      %v470 = vld [vmem:[#allocation3 + $0x80] sm:$0xff]
      %v471 = vld [vmem:[#allocation3 + $0x88] sm:$0xff]
      %v472 = vld [vmem:[#allocation3 + $0x90] sm:$0xff]
      %v473 = vld [vmem:[#allocation3 + $0x98] sm:$0xff]
      %v474 = vld [vmem:[#allocation3 + $0xa0] sm:$0xff]
      %v475 = vld [vmem:[#allocation3 + $0xa8] sm:$0xff]
      %v476 = vld [vmem:[#allocation3 + $0xb0] sm:$0xff]
      %v477 = vld [vmem:[#allocation3 + $0xb8] sm:$0xff]
      %v478 = vld [vmem:[#allocation3 + $0xc0] sm:$0xff]
      %v479 = vld [vmem:[#allocation3 + $0xc8] sm:$0xff]
      %v480 = vld [vmem:[#allocation3 + $0xd0] sm:$0xff]
      %v481 = vld [vmem:[#allocation3 + $0xd8] sm:$0xff]
      %v482 = vld [vmem:[#allocation3 + $0xe0] sm:$0xff]
      %v483 = vld [vmem:[#allocation3 + $0xe8] sm:$0xff]
      %v484 = vld [vmem:[#allocation3 + $0xf0] sm:$0xff]
      %v485 = vld [vmem:[#allocation3 + $0xf8] sm:$0xff]
      %v486 = vld [vmem:[%s1] sm:$0xf]
      %v488 = vsel %vm301, %v422, 0
      %v491 = vsel %vm301, %v423, 0
      %v494 = vsel %vm301, %v424, 0
      %v497 = vsel %vm301, %v425, 0
      %v500 = vsel %vm301, %v426, 0
      %v503 = vsel %vm301, %v427, 0
      %v506 = vsel %vm301, %v428, 0
      %v509 = vsel %vm301, %v429, 0
      %v512 = vsel %vm301, %v430, 0
      %v515 = vsel %vm301, %v431, 0
      %v518 = vsel %vm301, %v432, 0
      %v521 = vsel %vm301, %v433, 0
      %v524 = vsel %vm301, %v434, 0
      %v527 = vsel %vm301, %v435, 0
      %v530 = vsel %vm301, %v436, 0
      %v533 = vsel %vm301, %v437, 0
      %v536 = vsel %vm301, %v438, 0
      %v539 = vsel %vm301, %v439, 0
      %v542 = vsel %vm301, %v440, 0
      %v545 = vsel %vm301, %v441, 0
      %v548 = vsel %vm301, %v442, 0
      %v551 = vsel %vm301, %v443, 0
      %v554 = vsel %vm301, %v444, 0
      %v557 = vsel %vm301, %v445, 0
      %v560 = vsel %vm301, %v446, 0
      %v563 = vsel %vm301, %v447, 0
      %v566 = vsel %vm301, %v448, 0
      %v569 = vsel %vm301, %v449, 0
      %v572 = vsel %vm301, %v450, 0
      %v575 = vsel %vm301, %v451, 0
      %v578 = vsel %vm301, %v452, 0
      %v581 = vsel %vm301, %v453, 0
      %vm583 = vcmask 1043456
      %v585 = vsel %vm583, %v486, 0
      %587 = vmatpush.msra.mxu0 0.0
      %588 = vmatpush.msra.mxu0 0.0
      %589 = vmatpush.msra.mxu0 0.0
      %590 = vmatpush.msra.mxu0 0.0
      %591 = vmatpush.msra.mxu0 0.0
      %592 = vmatpush.msra.mxu0 0.0
      %593 = vmatpush.msra.mxu0 0.0
      %594 = vmatpush.msra.mxu0 0.0
      %595 = vmatpush.msra.mxu0 0.0
      %596 = vmatpush.msra.mxu0 0.0
      %597 = vmatpush.msra.mxu0 0.0
      %598 = vmatpush.msra.mxu0 0.0
      %599 = vmatpush.msra.mxu0 0.0
      %600 = vmatpush.msra.mxu0 0.0
      %601 = vmatpush.msra.mxu0 0.0
      %602 = vmatpush.msra.mxu0 %v585
      %603 = vmatmul.f32.gmra.mxu0 %v488
      %v604 = vpop.f32.mrf.mxu0
      %v605 = vadd.f32 0.0, %v604
      %606 = vmatmul.f32.gmra.mxu0 %v491
      %v607 = vpop.f32.mrf.mxu0
      %v608 = vadd.f32 0.0, %v607
      %609 = vmatmul.f32.gmra.mxu0 %v494
      %v610 = vpop.f32.mrf.mxu0
      %v611 = vadd.f32 0.0, %v610
      %612 = vmatmul.f32.gmra.mxu0 %v497
      %v613 = vpop.f32.mrf.mxu0
      %v614 = vadd.f32 0.0, %v613
      %615 = vmatmul.f32.gmra.mxu0 %v500
      %v616 = vpop.f32.mrf.mxu0
      %v617 = vadd.f32 0.0, %v616
      %618 = vmatmul.f32.gmra.mxu0 %v503
      %v619 = vpop.f32.mrf.mxu0
      %v620 = vadd.f32 0.0, %v619
      %621 = vmatmul.f32.gmra.mxu0 %v506
      %v622 = vpop.f32.mrf.mxu0
      %v623 = vadd.f32 0.0, %v622
      %624 = vmatmul.f32.gmra.mxu0 %v509
      %v625 = vpop.f32.mrf.mxu0
      %v626 = vadd.f32 0.0, %v625
      %627 = vmatmul.f32.gmra.mxu0 %v512
      %v628 = vpop.f32.mrf.mxu0
      %v629 = vadd.f32 0.0, %v628
      %630 = vmatmul.f32.gmra.mxu0 %v515
      %v631 = vpop.f32.mrf.mxu0
      %v632 = vadd.f32 0.0, %v631
      %633 = vmatmul.f32.gmra.mxu0 %v518
      %v634 = vpop.f32.mrf.mxu0
      %v635 = vadd.f32 0.0, %v634
      %636 = vmatmul.f32.gmra.mxu0 %v521
      %v637 = vpop.f32.mrf.mxu0
      %v638 = vadd.f32 0.0, %v637
      %639 = vmatmul.f32.gmra.mxu0 %v524
      %v640 = vpop.f32.mrf.mxu0
      %v641 = vadd.f32 0.0, %v640
      %642 = vmatmul.f32.gmra.mxu0 %v527
      %v643 = vpop.f32.mrf.mxu0
      %v644 = vadd.f32 0.0, %v643
      %645 = vmatmul.f32.gmra.mxu0 %v530
      %v646 = vpop.f32.mrf.mxu0
      %v647 = vadd.f32 0.0, %v646
      %648 = vmatmul.f32.gmra.mxu0 %v533
      %v649 = vpop.f32.mrf.mxu0
      %v650 = vadd.f32 0.0, %v649
      %651 = vmatmul.f32.gmra.mxu0 %v536
      %v652 = vpop.f32.mrf.mxu0
      %v653 = vadd.f32 0.0, %v652
      %654 = vmatmul.f32.gmra.mxu0 %v539
      %v655 = vpop.f32.mrf.mxu0
      %v656 = vadd.f32 0.0, %v655
      %657 = vmatmul.f32.gmra.mxu0 %v542
      %v658 = vpop.f32.mrf.mxu0
      %v659 = vadd.f32 0.0, %v658
      %660 = vmatmul.f32.gmra.mxu0 %v545
      %v661 = vpop.f32.mrf.mxu0
      %v662 = vadd.f32 0.0, %v661
      %663 = vmatmul.f32.gmra.mxu0 %v548
      %v664 = vpop.f32.mrf.mxu0
      %v665 = vadd.f32 0.0, %v664
      %666 = vmatmul.f32.gmra.mxu0 %v551
      %v667 = vpop.f32.mrf.mxu0
      %v668 = vadd.f32 0.0, %v667
      %669 = vmatmul.f32.gmra.mxu0 %v554
      %v670 = vpop.f32.mrf.mxu0
      %v671 = vadd.f32 0.0, %v670
      %672 = vmatmul.f32.gmra.mxu0 %v557
      %v673 = vpop.f32.mrf.mxu0
      %v674 = vadd.f32 0.0, %v673
      %675 = vmatmul.f32.gmra.mxu0 %v560
      %v676 = vpop.f32.mrf.mxu0
      %v677 = vadd.f32 0.0, %v676
      %678 = vmatmul.f32.gmra.mxu0 %v563
      %v679 = vpop.f32.mrf.mxu0
      %v680 = vadd.f32 0.0, %v679
      %681 = vmatmul.f32.gmra.mxu0 %v566
      %v682 = vpop.f32.mrf.mxu0
      %v683 = vadd.f32 0.0, %v682
      %684 = vmatmul.f32.gmra.mxu0 %v569
      %v685 = vpop.f32.mrf.mxu0
      %v686 = vadd.f32 0.0, %v685
      %687 = vmatmul.f32.gmra.mxu0 %v572
      %v688 = vpop.f32.mrf.mxu0
      %v689 = vadd.f32 0.0, %v688
      %690 = vmatmul.f32.gmra.mxu0 %v575
      %v691 = vpop.f32.mrf.mxu0
      %v692 = vadd.f32 0.0, %v691
      %693 = vmatmul.f32.gmra.mxu0 %v578
      %v694 = vpop.f32.mrf.mxu0
      %v695 = vadd.f32 0.0, %v694
      %696 = vmatmul.f32.gmra.mxu0 %v581
      %v697 = vpop.f32.mrf.mxu0
      %v698 = vadd.f32 0.0, %v697
      %699 = vdwg.mxu0
      %v700 = vadd.f32 %v454, %v605
      %v701 = vadd.f32 %v455, %v608
      %v702 = vadd.f32 %v456, %v611
      %v703 = vadd.f32 %v457, %v614
      %v704 = vadd.f32 %v458, %v617
      %v705 = vadd.f32 %v459, %v620
      %v706 = vadd.f32 %v460, %v623
      %v707 = vadd.f32 %v461, %v626
      %v708 = vadd.f32 %v462, %v629
      %v709 = vadd.f32 %v463, %v632
      %v710 = vadd.f32 %v464, %v635
      %v711 = vadd.f32 %v465, %v638
      %v712 = vadd.f32 %v466, %v641
      %v713 = vadd.f32 %v467, %v644
      %v714 = vadd.f32 %v468, %v647
      %v715 = vadd.f32 %v469, %v650
      %v716 = vadd.f32 %v470, %v653
      %v717 = vadd.f32 %v471, %v656
      %v718 = vadd.f32 %v472, %v659
      %v719 = vadd.f32 %v473, %v662
      %v720 = vadd.f32 %v474, %v665
      %v721 = vadd.f32 %v475, %v668
      %v722 = vadd.f32 %v476, %v671
      %v723 = vadd.f32 %v477, %v674
      %v724 = vadd.f32 %v478, %v677
      %v725 = vadd.f32 %v479, %v680
      %v726 = vadd.f32 %v480, %v683
      %v727 = vadd.f32 %v481, %v686
      %v728 = vadd.f32 %v482, %v689
      %v729 = vadd.f32 %v483, %v692
      %v730 = vadd.f32 %v484, %v695
      %v731 = vadd.f32 %v485, %v698
      %732 = vst [vmem:[#allocation3] sm:$0xff] %v700
      %733 = vst [vmem:[#allocation3 + $0x8] sm:$0xff] %v701
      %734 = vst [vmem:[#allocation3 + $0x10] sm:$0xff] %v702
      %735 = vst [vmem:[#allocation3 + $0x18] sm:$0xff] %v703
      %736 = vst [vmem:[#allocation3 + $0x20] sm:$0xff] %v704
      %737 = vst [vmem:[#allocation3 + $0x28] sm:$0xff] %v705
      %738 = vst [vmem:[#allocation3 + $0x30] sm:$0xff] %v706
      %739 = vst [vmem:[#allocation3 + $0x38] sm:$0xff] %v707
      %740 = vst [vmem:[#allocation3 + $0x40] sm:$0xff] %v708
      %741 = vst [vmem:[#allocation3 + $0x48] sm:$0xff] %v709
      %742 = vst [vmem:[#allocation3 + $0x50] sm:$0xff] %v710
      %743 = vst [vmem:[#allocation3 + $0x58] sm:$0xff] %v711
      %744 = vst [vmem:[#allocation3 + $0x60] sm:$0xff] %v712
      %745 = vst [vmem:[#allocation3 + $0x68] sm:$0xff] %v713
      %746 = vst [vmem:[#allocation3 + $0x70] sm:$0xff] %v714
      %747 = vst [vmem:[#allocation3 + $0x78] sm:$0xff] %v715
      %748 = vst [vmem:[#allocation3 + $0x80] sm:$0xff] %v716
      %749 = vst [vmem:[#allocation3 + $0x88] sm:$0xff] %v717
      %750 = vst [vmem:[#allocation3 + $0x90] sm:$0xff] %v718
      %751 = vst [vmem:[#allocation3 + $0x98] sm:$0xff] %v719
      %752 = vst [vmem:[#allocation3 + $0xa0] sm:$0xff] %v720
      %753 = vst [vmem:[#allocation3 + $0xa8] sm:$0xff] %v721
      %754 = vst [vmem:[#allocation3 + $0xb0] sm:$0xff] %v722
      %755 = vst [vmem:[#allocation3 + $0xb8] sm:$0xff] %v723
      %756 = vst [vmem:[#allocation3 + $0xc0] sm:$0xff] %v724
      %757 = vst [vmem:[#allocation3 + $0xc8] sm:$0xff] %v725
      %758 = vst [vmem:[#allocation3 + $0xd0] sm:$0xff] %v726
      %759 = vst [vmem:[#allocation3 + $0xd8] sm:$0xff] %v727
      %760 = vst [vmem:[#allocation3 + $0xe0] sm:$0xff] %v728
      %761 = vst [vmem:[#allocation3 + $0xe8] sm:$0xff] %v729
      %762 = vst [vmem:[#allocation3 + $0xf0] sm:$0xff] %v730
      %763 = vst [vmem:[#allocation3 + $0xf8] sm:$0xff] %v731
      %v764 = vld [vmem:[#allocation2 + $0x1] sm:$0xff]
      %v765 = vld [vmem:[#allocation2 + $0x9] sm:$0xff]
      %v766 = vld [vmem:[#allocation2 + $0x19] sm:$0xff]
      %v767 = vld [vmem:[#allocation2 + $0x21] sm:$0xff]
      %v768 = vld [vmem:[#allocation2 + $0x31] sm:$0xff]
      %v769 = vld [vmem:[#allocation2 + $0x39] sm:$0xff]
      %v770 = vld [vmem:[#allocation2 + $0x49] sm:$0xff]
      %v771 = vld [vmem:[#allocation2 + $0x51] sm:$0xff]
      %v772 = vld [vmem:[#allocation2 + $0x61] sm:$0xff]
      %v773 = vld [vmem:[#allocation2 + $0x69] sm:$0xff]
      %v774 = vld [vmem:[#allocation2 + $0x79] sm:$0xff]
      %v775 = vld [vmem:[#allocation2 + $0x81] sm:$0xff]
      %v776 = vld [vmem:[#allocation2 + $0x91] sm:$0xff]
      %v777 = vld [vmem:[#allocation2 + $0x99] sm:$0xff]
      %v778 = vld [vmem:[#allocation2 + $0xa9] sm:$0xff]
      %v779 = vld [vmem:[#allocation2 + $0xb1] sm:$0xff]
      %v780 = vld [vmem:[#allocation2 + $0xc1] sm:$0xff]
      %v781 = vld [vmem:[#allocation2 + $0xc9] sm:$0xff]
      %v782 = vld [vmem:[#allocation2 + $0xd9] sm:$0xff]
      %v783 = vld [vmem:[#allocation2 + $0xe1] sm:$0xff]
      %v784 = vld [vmem:[#allocation2 + $0xf1] sm:$0xff]
      %v785 = vld [vmem:[#allocation2 + $0xf9] sm:$0xff]
      %v786 = vld [vmem:[#allocation2 + $0x109] sm:$0xff]
      %v787 = vld [vmem:[#allocation2 + $0x111] sm:$0xff]
      %v788 = vld [vmem:[#allocation2 + $0x121] sm:$0xff]
      %v789 = vld [vmem:[#allocation2 + $0x129] sm:$0xff]
      %v790 = vld [vmem:[#allocation2 + $0x139] sm:$0xff]
      %v791 = vld [vmem:[#allocation2 + $0x141] sm:$0xff]
      %v792 = vld [vmem:[#allocation2 + $0x151] sm:$0xff]
      %v793 = vld [vmem:[#allocation2 + $0x159] sm:$0xff]
      %v794 = vld [vmem:[#allocation2 + $0x169] sm:$0xff]
      %v795 = vld [vmem:[#allocation2 + $0x171] sm:$0xff]
      %v796 = vld [vmem:[#allocation3] sm:$0xff]
      %v797 = vld [vmem:[#allocation3 + $0x8] sm:$0xff]
      %v798 = vld [vmem:[#allocation3 + $0x10] sm:$0xff]
      %v799 = vld [vmem:[#allocation3 + $0x18] sm:$0xff]
      %v800 = vld [vmem:[#allocation3 + $0x20] sm:$0xff]
      %v801 = vld [vmem:[#allocation3 + $0x28] sm:$0xff]
      %v802 = vld [vmem:[#allocation3 + $0x30] sm:$0xff]
      %v803 = vld [vmem:[#allocation3 + $0x38] sm:$0xff]
      %v804 = vld [vmem:[#allocation3 + $0x40] sm:$0xff]
      %v805 = vld [vmem:[#allocation3 + $0x48] sm:$0xff]
      %v806 = vld [vmem:[#allocation3 + $0x50] sm:$0xff]
      %v807 = vld [vmem:[#allocation3 + $0x58] sm:$0xff]
      %v808 = vld [vmem:[#allocation3 + $0x60] sm:$0xff]
      %v809 = vld [vmem:[#allocation3 + $0x68] sm:$0xff]
      %v810 = vld [vmem:[#allocation3 + $0x70] sm:$0xff]
      %v811 = vld [vmem:[#allocation3 + $0x78] sm:$0xff]
      %v812 = vld [vmem:[#allocation3 + $0x80] sm:$0xff]
      %v813 = vld [vmem:[#allocation3 + $0x88] sm:$0xff]
      %v814 = vld [vmem:[#allocation3 + $0x90] sm:$0xff]
      %v815 = vld [vmem:[#allocation3 + $0x98] sm:$0xff]
      %v816 = vld [vmem:[#allocation3 + $0xa0] sm:$0xff]
      %v817 = vld [vmem:[#allocation3 + $0xa8] sm:$0xff]
      %v818 = vld [vmem:[#allocation3 + $0xb0] sm:$0xff]
      %v819 = vld [vmem:[#allocation3 + $0xb8] sm:$0xff]
      %v820 = vld [vmem:[#allocation3 + $0xc0] sm:$0xff]
      %v821 = vld [vmem:[#allocation3 + $0xc8] sm:$0xff]
      %v822 = vld [vmem:[#allocation3 + $0xd0] sm:$0xff]
      %v823 = vld [vmem:[#allocation3 + $0xd8] sm:$0xff]
      %v824 = vld [vmem:[#allocation3 + $0xe0] sm:$0xff]
      %v825 = vld [vmem:[#allocation3 + $0xe8] sm:$0xff]
      %v826 = vld [vmem:[#allocation3 + $0xf0] sm:$0xff]
      %v827 = vld [vmem:[#allocation3 + $0xf8] sm:$0xff]
      %s828 = scalar_lea.vmem %s1, 4
      %v829 = vld [vmem:[%s828] sm:$0xf]
      %v831 = vsel %vm301, %v764, 0
      %v834 = vsel %vm301, %v765, 0
      %v837 = vsel %vm301, %v766, 0
      %v840 = vsel %vm301, %v767, 0
      %v843 = vsel %vm301, %v768, 0
      %v846 = vsel %vm301, %v769, 0
      %v849 = vsel %vm301, %v770, 0
      %v852 = vsel %vm301, %v771, 0
      %v855 = vsel %vm301, %v772, 0
      %v858 = vsel %vm301, %v773, 0
      %v861 = vsel %vm301, %v774, 0
      %v864 = vsel %vm301, %v775, 0
      %v867 = vsel %vm301, %v776, 0
      %v870 = vsel %vm301, %v777, 0
      %v873 = vsel %vm301, %v778, 0
      %v876 = vsel %vm301, %v779, 0
      %v879 = vsel %vm301, %v780, 0
      %v882 = vsel %vm301, %v781, 0
      %v885 = vsel %vm301, %v782, 0
      %v888 = vsel %vm301, %v783, 0
      %v891 = vsel %vm301, %v784, 0
      %v894 = vsel %vm301, %v785, 0
      %v897 = vsel %vm301, %v786, 0
      %v900 = vsel %vm301, %v787, 0
      %v903 = vsel %vm301, %v788, 0
      %v906 = vsel %vm301, %v789, 0
      %v909 = vsel %vm301, %v790, 0
      %v912 = vsel %vm301, %v791, 0
      %v915 = vsel %vm301, %v792, 0
      %v918 = vsel %vm301, %v793, 0
      %v921 = vsel %vm301, %v794, 0
      %v924 = vsel %vm301, %v795, 0
      %v927 = vsel %vm583, %v829, 0
      %929 = vmatpush.msra.mxu0 0.0
      %930 = vmatpush.msra.mxu0 0.0
      %931 = vmatpush.msra.mxu0 0.0
      %932 = vmatpush.msra.mxu0 0.0
      %933 = vmatpush.msra.mxu0 0.0
      %934 = vmatpush.msra.mxu0 0.0
      %935 = vmatpush.msra.mxu0 0.0
      %936 = vmatpush.msra.mxu0 0.0
      %937 = vmatpush.msra.mxu0 0.0
      %938 = vmatpush.msra.mxu0 0.0
      %939 = vmatpush.msra.mxu0 0.0
      %940 = vmatpush.msra.mxu0 0.0
      %941 = vmatpush.msra.mxu0 0.0
      %942 = vmatpush.msra.mxu0 0.0
      %943 = vmatpush.msra.mxu0 0.0
      %944 = vmatpush.msra.mxu0 %v927
      %945 = vmatmul.f32.gmra.mxu0 %v831
      %v946 = vpop.f32.mrf.mxu0
      %v947 = vadd.f32 0.0, %v946
      %948 = vmatmul.f32.gmra.mxu0 %v834
      %v949 = vpop.f32.mrf.mxu0
      %v950 = vadd.f32 0.0, %v949
      %951 = vmatmul.f32.gmra.mxu0 %v837
      %v952 = vpop.f32.mrf.mxu0
      %v953 = vadd.f32 0.0, %v952
      %954 = vmatmul.f32.gmra.mxu0 %v840
      %v955 = vpop.f32.mrf.mxu0
      %v956 = vadd.f32 0.0, %v955
      %957 = vmatmul.f32.gmra.mxu0 %v843
      %v958 = vpop.f32.mrf.mxu0
      %v959 = vadd.f32 0.0, %v958
      %960 = vmatmul.f32.gmra.mxu0 %v846
      %v961 = vpop.f32.mrf.mxu0
      %v962 = vadd.f32 0.0, %v961
      %963 = vmatmul.f32.gmra.mxu0 %v849
      %v964 = vpop.f32.mrf.mxu0
      %v965 = vadd.f32 0.0, %v964
      %966 = vmatmul.f32.gmra.mxu0 %v852
      %v967 = vpop.f32.mrf.mxu0
      %v968 = vadd.f32 0.0, %v967
      %969 = vmatmul.f32.gmra.mxu0 %v855
      %v970 = vpop.f32.mrf.mxu0
      %v971 = vadd.f32 0.0, %v970
      %972 = vmatmul.f32.gmra.mxu0 %v858
      %v973 = vpop.f32.mrf.mxu0
      %v974 = vadd.f32 0.0, %v973
      %975 = vmatmul.f32.gmra.mxu0 %v861
      %v976 = vpop.f32.mrf.mxu0
      %v977 = vadd.f32 0.0, %v976
      %978 = vmatmul.f32.gmra.mxu0 %v864
      %v979 = vpop.f32.mrf.mxu0
      %v980 = vadd.f32 0.0, %v979
      %981 = vmatmul.f32.gmra.mxu0 %v867
      %v982 = vpop.f32.mrf.mxu0
      %v983 = vadd.f32 0.0, %v982
      %984 = vmatmul.f32.gmra.mxu0 %v870
      %v985 = vpop.f32.mrf.mxu0
      %v986 = vadd.f32 0.0, %v985
      %987 = vmatmul.f32.gmra.mxu0 %v873
      %v988 = vpop.f32.mrf.mxu0
      %v989 = vadd.f32 0.0, %v988
      %990 = vmatmul.f32.gmra.mxu0 %v876
      %v991 = vpop.f32.mrf.mxu0
      %v992 = vadd.f32 0.0, %v991
      %993 = vmatmul.f32.gmra.mxu0 %v879
      %v994 = vpop.f32.mrf.mxu0
      %v995 = vadd.f32 0.0, %v994
      %996 = vmatmul.f32.gmra.mxu0 %v882
      %v997 = vpop.f32.mrf.mxu0
      %v998 = vadd.f32 0.0, %v997
      %999 = vmatmul.f32.gmra.mxu0 %v885
      %v1000 = vpop.f32.mrf.mxu0
      %v1001 = vadd.f32 0.0, %v1000
      %1002 = vmatmul.f32.gmra.mxu0 %v888
      %v1003 = vpop.f32.mrf.mxu0
      %v1004 = vadd.f32 0.0, %v1003
      %1005 = vmatmul.f32.gmra.mxu0 %v891
      %v1006 = vpop.f32.mrf.mxu0
      %v1007 = vadd.f32 0.0, %v1006
      %1008 = vmatmul.f32.gmra.mxu0 %v894
      %v1009 = vpop.f32.mrf.mxu0
      %v1010 = vadd.f32 0.0, %v1009
      %1011 = vmatmul.f32.gmra.mxu0 %v897
      %v1012 = vpop.f32.mrf.mxu0
      %v1013 = vadd.f32 0.0, %v1012
      %1014 = vmatmul.f32.gmra.mxu0 %v900
      %v1015 = vpop.f32.mrf.mxu0
      %v1016 = vadd.f32 0.0, %v1015
      %1017 = vmatmul.f32.gmra.mxu0 %v903
      %v1018 = vpop.f32.mrf.mxu0
      %v1019 = vadd.f32 0.0, %v1018
      %1020 = vmatmul.f32.gmra.mxu0 %v906
      %v1021 = vpop.f32.mrf.mxu0
      %v1022 = vadd.f32 0.0, %v1021
      %1023 = vmatmul.f32.gmra.mxu0 %v909
      %v1024 = vpop.f32.mrf.mxu0
      %v1025 = vadd.f32 0.0, %v1024
      %1026 = vmatmul.f32.gmra.mxu0 %v912
      %v1027 = vpop.f32.mrf.mxu0
      %v1028 = vadd.f32 0.0, %v1027
      %1029 = vmatmul.f32.gmra.mxu0 %v915
      %v1030 = vpop.f32.mrf.mxu0
      %v1031 = vadd.f32 0.0, %v1030
      %1032 = vmatmul.f32.gmra.mxu0 %v918
      %v1033 = vpop.f32.mrf.mxu0
      %v1034 = vadd.f32 0.0, %v1033
      %1035 = vmatmul.f32.gmra.mxu0 %v921
      %v1036 = vpop.f32.mrf.mxu0
      %v1037 = vadd.f32 0.0, %v1036
      %1038 = vmatmul.f32.gmra.mxu0 %v924
      %v1039 = vpop.f32.mrf.mxu0
      %v1040 = vadd.f32 0.0, %v1039
      %1041 = vdwg.mxu0
      %v1042 = vadd.f32 %v796, %v947
      %v1043 = vadd.f32 %v797, %v950
      %v1044 = vadd.f32 %v798, %v953
      %v1045 = vadd.f32 %v799, %v956
      %v1046 = vadd.f32 %v800, %v959
      %v1047 = vadd.f32 %v801, %v962
      %v1048 = vadd.f32 %v802, %v965
      %v1049 = vadd.f32 %v803, %v968
      %v1050 = vadd.f32 %v804, %v971
      %v1051 = vadd.f32 %v805, %v974
      %v1052 = vadd.f32 %v806, %v977
      %v1053 = vadd.f32 %v807, %v980
      %v1054 = vadd.f32 %v808, %v983
      %v1055 = vadd.f32 %v809, %v986
      %v1056 = vadd.f32 %v810, %v989
      %v1057 = vadd.f32 %v811, %v992
      %v1058 = vadd.f32 %v812, %v995
      %v1059 = vadd.f32 %v813, %v998
      %v1060 = vadd.f32 %v814, %v1001
      %v1061 = vadd.f32 %v815, %v1004
      %v1062 = vadd.f32 %v816, %v1007
      %v1063 = vadd.f32 %v817, %v1010
      %v1064 = vadd.f32 %v818, %v1013
      %v1065 = vadd.f32 %v819, %v1016
      %v1066 = vadd.f32 %v820, %v1019
      %v1067 = vadd.f32 %v821, %v1022
      %v1068 = vadd.f32 %v822, %v1025
      %v1069 = vadd.f32 %v823, %v1028
      %v1070 = vadd.f32 %v824, %v1031
      %v1071 = vadd.f32 %v825, %v1034
      %v1072 = vadd.f32 %v826, %v1037
      %v1073 = vadd.f32 %v827, %v1040
      %1074 = vst [vmem:[#allocation3] sm:$0xff] %v1042
      %1075 = vst [vmem:[#allocation3 + $0x8] sm:$0xff] %v1043
      %1076 = vst [vmem:[#allocation3 + $0x10] sm:$0xff] %v1044
      %1077 = vst [vmem:[#allocation3 + $0x18] sm:$0xff] %v1045
      %1078 = vst [vmem:[#allocation3 + $0x20] sm:$0xff] %v1046
      %1079 = vst [vmem:[#allocation3 + $0x28] sm:$0xff] %v1047
      %1080 = vst [vmem:[#allocation3 + $0x30] sm:$0xff] %v1048
      %1081 = vst [vmem:[#allocation3 + $0x38] sm:$0xff] %v1049
      %1082 = vst [vmem:[#allocation3 + $0x40] sm:$0xff] %v1050
      %1083 = vst [vmem:[#allocation3 + $0x48] sm:$0xff] %v1051
      %1084 = vst [vmem:[#allocation3 + $0x50] sm:$0xff] %v1052
      %1085 = vst [vmem:[#allocation3 + $0x58] sm:$0xff] %v1053
      %1086 = vst [vmem:[#allocation3 + $0x60] sm:$0xff] %v1054
      %1087 = vst [vmem:[#allocation3 + $0x68] sm:$0xff] %v1055
      %1088 = vst [vmem:[#allocation3 + $0x70] sm:$0xff] %v1056
      %1089 = vst [vmem:[#allocation3 + $0x78] sm:$0xff] %v1057
      %1090 = vst [vmem:[#allocation3 + $0x80] sm:$0xff] %v1058
      %1091 = vst [vmem:[#allocation3 + $0x88] sm:$0xff] %v1059
      %1092 = vst [vmem:[#allocation3 + $0x90] sm:$0xff] %v1060
      %1093 = vst [vmem:[#allocation3 + $0x98] sm:$0xff] %v1061
      %1094 = vst [vmem:[#allocation3 + $0xa0] sm:$0xff] %v1062
      %1095 = vst [vmem:[#allocation3 + $0xa8] sm:$0xff] %v1063
      %1096 = vst [vmem:[#allocation3 + $0xb0] sm:$0xff] %v1064
      %1097 = vst [vmem:[#allocation3 + $0xb8] sm:$0xff] %v1065
      %1098 = vst [vmem:[#allocation3 + $0xc0] sm:$0xff] %v1066
      %1099 = vst [vmem:[#allocation3 + $0xc8] sm:$0xff] %v1067
      %1100 = vst [vmem:[#allocation3 + $0xd0] sm:$0xff] %v1068
      %1101 = vst [vmem:[#allocation3 + $0xd8] sm:$0xff] %v1069
      %1102 = vst [vmem:[#allocation3 + $0xe0] sm:$0xff] %v1070
      %1103 = vst [vmem:[#allocation3 + $0xe8] sm:$0xff] %v1071
      %1104 = vst [vmem:[#allocation3 + $0xf0] sm:$0xff] %v1072
      %1105 = vst [vmem:[#allocation3 + $0xf8] sm:$0xff] %v1073
      %v1106 = vld [vmem:[#allocation2 + $0x2] sm:$0xff]
      %v1107 = vld [vmem:[#allocation2 + $0xa] sm:$0xff]
      %v1108 = vld [vmem:[#allocation2 + $0x1a] sm:$0xff]
      %v1109 = vld [vmem:[#allocation2 + $0x22] sm:$0xff]
      %v1110 = vld [vmem:[#allocation2 + $0x32] sm:$0xff]
      %v1111 = vld [vmem:[#allocation2 + $0x3a] sm:$0xff]
      %v1112 = vld [vmem:[#allocation2 + $0x4a] sm:$0xff]
      %v1113 = vld [vmem:[#allocation2 + $0x52] sm:$0xff]
      %v1114 = vld [vmem:[#allocation2 + $0x62] sm:$0xff]
      %v1115 = vld [vmem:[#allocation2 + $0x6a] sm:$0xff]
      %v1116 = vld [vmem:[#allocation2 + $0x7a] sm:$0xff]
      %v1117 = vld [vmem:[#allocation2 + $0x82] sm:$0xff]
      %v1118 = vld [vmem:[#allocation2 + $0x92] sm:$0xff]
      %v1119 = vld [vmem:[#allocation2 + $0x9a] sm:$0xff]
      %v1120 = vld [vmem:[#allocation2 + $0xaa] sm:$0xff]
      %v1121 = vld [vmem:[#allocation2 + $0xb2] sm:$0xff]
      %v1122 = vld [vmem:[#allocation2 + $0xc2] sm:$0xff]
      %v1123 = vld [vmem:[#allocation2 + $0xca] sm:$0xff]
      %v1124 = vld [vmem:[#allocation2 + $0xda] sm:$0xff]
      %v1125 = vld [vmem:[#allocation2 + $0xe2] sm:$0xff]
      %v1126 = vld [vmem:[#allocation2 + $0xf2] sm:$0xff]
      %v1127 = vld [vmem:[#allocation2 + $0xfa] sm:$0xff]
      %v1128 = vld [vmem:[#allocation2 + $0x10a] sm:$0xff]
      %v1129 = vld [vmem:[#allocation2 + $0x112] sm:$0xff]
      %v1130 = vld [vmem:[#allocation2 + $0x122] sm:$0xff]
      %v1131 = vld [vmem:[#allocation2 + $0x12a] sm:$0xff]
      %v1132 = vld [vmem:[#allocation2 + $0x13a] sm:$0xff]
      %v1133 = vld [vmem:[#allocation2 + $0x142] sm:$0xff]
      %v1134 = vld [vmem:[#allocation2 + $0x152] sm:$0xff]
      %v1135 = vld [vmem:[#allocation2 + $0x15a] sm:$0xff]
      %v1136 = vld [vmem:[#allocation2 + $0x16a] sm:$0xff]
      %v1137 = vld [vmem:[#allocation2 + $0x172] sm:$0xff]
      %v1138 = vld [vmem:[#allocation3] sm:$0xff]
      %v1139 = vld [vmem:[#allocation3 + $0x8] sm:$0xff]
      %v1140 = vld [vmem:[#allocation3 + $0x10] sm:$0xff]
      %v1141 = vld [vmem:[#allocation3 + $0x18] sm:$0xff]
      %v1142 = vld [vmem:[#allocation3 + $0x20] sm:$0xff]
      %v1143 = vld [vmem:[#allocation3 + $0x28] sm:$0xff]
      %v1144 = vld [vmem:[#allocation3 + $0x30] sm:$0xff]
      %v1145 = vld [vmem:[#allocation3 + $0x38] sm:$0xff]
      %v1146 = vld [vmem:[#allocation3 + $0x40] sm:$0xff]
      %v1147 = vld [vmem:[#allocation3 + $0x48] sm:$0xff]
      %v1148 = vld [vmem:[#allocation3 + $0x50] sm:$0xff]
      %v1149 = vld [vmem:[#allocation3 + $0x58] sm:$0xff]
      %v1150 = vld [vmem:[#allocation3 + $0x60] sm:$0xff]
      %v1151 = vld [vmem:[#allocation3 + $0x68] sm:$0xff]
      %v1152 = vld [vmem:[#allocation3 + $0x70] sm:$0xff]
      %v1153 = vld [vmem:[#allocation3 + $0x78] sm:$0xff]
      %v1154 = vld [vmem:[#allocation3 + $0x80] sm:$0xff]
      %v1155 = vld [vmem:[#allocation3 + $0x88] sm:$0xff]
      %v1156 = vld [vmem:[#allocation3 + $0x90] sm:$0xff]
      %v1157 = vld [vmem:[#allocation3 + $0x98] sm:$0xff]
      %v1158 = vld [vmem:[#allocation3 + $0xa0] sm:$0xff]
      %v1159 = vld [vmem:[#allocation3 + $0xa8] sm:$0xff]
      %v1160 = vld [vmem:[#allocation3 + $0xb0] sm:$0xff]
      %v1161 = vld [vmem:[#allocation3 + $0xb8] sm:$0xff]
      %v1162 = vld [vmem:[#allocation3 + $0xc0] sm:$0xff]
      %v1163 = vld [vmem:[#allocation3 + $0xc8] sm:$0xff]
      %v1164 = vld [vmem:[#allocation3 + $0xd0] sm:$0xff]
      %v1165 = vld [vmem:[#allocation3 + $0xd8] sm:$0xff]
      %v1166 = vld [vmem:[#allocation3 + $0xe0] sm:$0xff]
      %v1167 = vld [vmem:[#allocation3 + $0xe8] sm:$0xff]
      %v1168 = vld [vmem:[#allocation3 + $0xf0] sm:$0xff]
      %v1169 = vld [vmem:[#allocation3 + $0xf8] sm:$0xff]
      %s1170 = scalar_lea.vmem %s1, 8
      %v1171 = vld [vmem:[%s1170] sm:$0xf]
      %v1173 = vsel %vm301, %v1106, 0
      %v1176 = vsel %vm301, %v1107, 0
      %v1179 = vsel %vm301, %v1108, 0
      %v1182 = vsel %vm301, %v1109, 0
      %v1185 = vsel %vm301, %v1110, 0
      %v1188 = vsel %vm301, %v1111, 0
      %v1191 = vsel %vm301, %v1112, 0
      %v1194 = vsel %vm301, %v1113, 0
      %v1197 = vsel %vm301, %v1114, 0
      %v1200 = vsel %vm301, %v1115, 0
      %v1203 = vsel %vm301, %v1116, 0
      %v1206 = vsel %vm301, %v1117, 0
      %v1209 = vsel %vm301, %v1118, 0
      %v1212 = vsel %vm301, %v1119, 0
      %v1215 = vsel %vm301, %v1120, 0
      %v1218 = vsel %vm301, %v1121, 0
      %v1221 = vsel %vm301, %v1122, 0
      %v1224 = vsel %vm301, %v1123, 0
      %v1227 = vsel %vm301, %v1124, 0
      %v1230 = vsel %vm301, %v1125, 0
      %v1233 = vsel %vm301, %v1126, 0
      %v1236 = vsel %vm301, %v1127, 0
      %v1239 = vsel %vm301, %v1128, 0
      %v1242 = vsel %vm301, %v1129, 0
      %v1245 = vsel %vm301, %v1130, 0
      %v1248 = vsel %vm301, %v1131, 0
      %v1251 = vsel %vm301, %v1132, 0
      %v1254 = vsel %vm301, %v1133, 0
      %v1257 = vsel %vm301, %v1134, 0
      %v1260 = vsel %vm301, %v1135, 0
      %v1263 = vsel %vm301, %v1136, 0
      %v1266 = vsel %vm301, %v1137, 0
      %v1269 = vsel %vm583, %v1171, 0
      %1271 = vmatpush.msra.mxu0 0.0
      %1272 = vmatpush.msra.mxu0 0.0
      %1273 = vmatpush.msra.mxu0 0.0
      %1274 = vmatpush.msra.mxu0 0.0
      %1275 = vmatpush.msra.mxu0 0.0
      %1276 = vmatpush.msra.mxu0 0.0
      %1277 = vmatpush.msra.mxu0 0.0
      %1278 = vmatpush.msra.mxu0 0.0
      %1279 = vmatpush.msra.mxu0 0.0
      %1280 = vmatpush.msra.mxu0 0.0
      %1281 = vmatpush.msra.mxu0 0.0
      %1282 = vmatpush.msra.mxu0 0.0
      %1283 = vmatpush.msra.mxu0 0.0
      %1284 = vmatpush.msra.mxu0 0.0
      %1285 = vmatpush.msra.mxu0 0.0
      %1286 = vmatpush.msra.mxu0 %v1269
      %1287 = vmatmul.f32.gmra.mxu0 %v1173
      %v1288 = vpop.f32.mrf.mxu0
      %v1289 = vadd.f32 0.0, %v1288
      %1290 = vmatmul.f32.gmra.mxu0 %v1176
      %v1291 = vpop.f32.mrf.mxu0
      %v1292 = vadd.f32 0.0, %v1291
      %1293 = vmatmul.f32.gmra.mxu0 %v1179
      %v1294 = vpop.f32.mrf.mxu0
      %v1295 = vadd.f32 0.0, %v1294
      %1296 = vmatmul.f32.gmra.mxu0 %v1182
      %v1297 = vpop.f32.mrf.mxu0
      %v1298 = vadd.f32 0.0, %v1297
      %1299 = vmatmul.f32.gmra.mxu0 %v1185
      %v1300 = vpop.f32.mrf.mxu0
      %v1301 = vadd.f32 0.0, %v1300
      %1302 = vmatmul.f32.gmra.mxu0 %v1188
      %v1303 = vpop.f32.mrf.mxu0
      %v1304 = vadd.f32 0.0, %v1303
      %1305 = vmatmul.f32.gmra.mxu0 %v1191
      %v1306 = vpop.f32.mrf.mxu0
      %v1307 = vadd.f32 0.0, %v1306
      %1308 = vmatmul.f32.gmra.mxu0 %v1194
      %v1309 = vpop.f32.mrf.mxu0
      %v1310 = vadd.f32 0.0, %v1309
      %1311 = vmatmul.f32.gmra.mxu0 %v1197
      %v1312 = vpop.f32.mrf.mxu0
      %v1313 = vadd.f32 0.0, %v1312
      %1314 = vmatmul.f32.gmra.mxu0 %v1200
      %v1315 = vpop.f32.mrf.mxu0
      %v1316 = vadd.f32 0.0, %v1315
      %1317 = vmatmul.f32.gmra.mxu0 %v1203
      %v1318 = vpop.f32.mrf.mxu0
      %v1319 = vadd.f32 0.0, %v1318
      %1320 = vmatmul.f32.gmra.mxu0 %v1206
      %v1321 = vpop.f32.mrf.mxu0
      %v1322 = vadd.f32 0.0, %v1321
      %1323 = vmatmul.f32.gmra.mxu0 %v1209
      %v1324 = vpop.f32.mrf.mxu0
      %v1325 = vadd.f32 0.0, %v1324
      %1326 = vmatmul.f32.gmra.mxu0 %v1212
      %v1327 = vpop.f32.mrf.mxu0
      %v1328 = vadd.f32 0.0, %v1327
      %1329 = vmatmul.f32.gmra.mxu0 %v1215
      %v1330 = vpop.f32.mrf.mxu0
      %v1331 = vadd.f32 0.0, %v1330
      %1332 = vmatmul.f32.gmra.mxu0 %v1218
      %v1333 = vpop.f32.mrf.mxu0
      %v1334 = vadd.f32 0.0, %v1333
      %1335 = vmatmul.f32.gmra.mxu0 %v1221
      %v1336 = vpop.f32.mrf.mxu0
      %v1337 = vadd.f32 0.0, %v1336
      %1338 = vmatmul.f32.gmra.mxu0 %v1224
      %v1339 = vpop.f32.mrf.mxu0
      %v1340 = vadd.f32 0.0, %v1339
      %1341 = vmatmul.f32.gmra.mxu0 %v1227
      %v1342 = vpop.f32.mrf.mxu0
      %v1343 = vadd.f32 0.0, %v1342
      %1344 = vmatmul.f32.gmra.mxu0 %v1230
      %v1345 = vpop.f32.mrf.mxu0
      %v1346 = vadd.f32 0.0, %v1345
      %1347 = vmatmul.f32.gmra.mxu0 %v1233
      %v1348 = vpop.f32.mrf.mxu0
      %v1349 = vadd.f32 0.0, %v1348
      %1350 = vmatmul.f32.gmra.mxu0 %v1236
      %v1351 = vpop.f32.mrf.mxu0
      %v1352 = vadd.f32 0.0, %v1351
      %1353 = vmatmul.f32.gmra.mxu0 %v1239
      %v1354 = vpop.f32.mrf.mxu0
      %v1355 = vadd.f32 0.0, %v1354
      %1356 = vmatmul.f32.gmra.mxu0 %v1242
      %v1357 = vpop.f32.mrf.mxu0
      %v1358 = vadd.f32 0.0, %v1357
      %1359 = vmatmul.f32.gmra.mxu0 %v1245
      %v1360 = vpop.f32.mrf.mxu0
      %v1361 = vadd.f32 0.0, %v1360
      %1362 = vmatmul.f32.gmra.mxu0 %v1248
      %v1363 = vpop.f32.mrf.mxu0
      %v1364 = vadd.f32 0.0, %v1363
      %1365 = vmatmul.f32.gmra.mxu0 %v1251
      %v1366 = vpop.f32.mrf.mxu0
      %v1367 = vadd.f32 0.0, %v1366
      %1368 = vmatmul.f32.gmra.mxu0 %v1254
      %v1369 = vpop.f32.mrf.mxu0
      %v1370 = vadd.f32 0.0, %v1369
      %1371 = vmatmul.f32.gmra.mxu0 %v1257
      %v1372 = vpop.f32.mrf.mxu0
      %v1373 = vadd.f32 0.0, %v1372
      %1374 = vmatmul.f32.gmra.mxu0 %v1260
      %v1375 = vpop.f32.mrf.mxu0
      %v1376 = vadd.f32 0.0, %v1375
      %1377 = vmatmul.f32.gmra.mxu0 %v1263
      %v1378 = vpop.f32.mrf.mxu0
      %v1379 = vadd.f32 0.0, %v1378
      %1380 = vmatmul.f32.gmra.mxu0 %v1266
      %v1381 = vpop.f32.mrf.mxu0
      %v1382 = vadd.f32 0.0, %v1381
      %1383 = vdwg.mxu0
      %v1384 = vadd.f32 %v1138, %v1289
      %v1385 = vadd.f32 %v1139, %v1292
      %v1386 = vadd.f32 %v1140, %v1295
      %v1387 = vadd.f32 %v1141, %v1298
      %v1388 = vadd.f32 %v1142, %v1301
      %v1389 = vadd.f32 %v1143, %v1304
      %v1390 = vadd.f32 %v1144, %v1307
      %v1391 = vadd.f32 %v1145, %v1310
      %v1392 = vadd.f32 %v1146, %v1313
      %v1393 = vadd.f32 %v1147, %v1316
      %v1394 = vadd.f32 %v1148, %v1319
      %v1395 = vadd.f32 %v1149, %v1322
      %v1396 = vadd.f32 %v1150, %v1325
      %v1397 = vadd.f32 %v1151, %v1328
      %v1398 = vadd.f32 %v1152, %v1331
      %v1399 = vadd.f32 %v1153, %v1334
      %v1400 = vadd.f32 %v1154, %v1337
      %v1401 = vadd.f32 %v1155, %v1340
      %v1402 = vadd.f32 %v1156, %v1343
      %v1403 = vadd.f32 %v1157, %v1346
      %v1404 = vadd.f32 %v1158, %v1349
      %v1405 = vadd.f32 %v1159, %v1352
      %v1406 = vadd.f32 %v1160, %v1355
      %v1407 = vadd.f32 %v1161, %v1358
      %v1408 = vadd.f32 %v1162, %v1361
      %v1409 = vadd.f32 %v1163, %v1364
      %v1410 = vadd.f32 %v1164, %v1367
      %v1411 = vadd.f32 %v1165, %v1370
      %v1412 = vadd.f32 %v1166, %v1373
      %v1413 = vadd.f32 %v1167, %v1376
      %v1414 = vadd.f32 %v1168, %v1379
      %v1415 = vadd.f32 %v1169, %v1382
      %1416 = vst [vmem:[#allocation3] sm:$0xff] %v1384
      %1417 = vst [vmem:[#allocation3 + $0x8] sm:$0xff] %v1385
      %1418 = vst [vmem:[#allocation3 + $0x10] sm:$0xff] %v1386
      %1419 = vst [vmem:[#allocation3 + $0x18] sm:$0xff] %v1387
      %1420 = vst [vmem:[#allocation3 + $0x20] sm:$0xff] %v1388
      %1421 = vst [vmem:[#allocation3 + $0x28] sm:$0xff] %v1389
      %1422 = vst [vmem:[#allocation3 + $0x30] sm:$0xff] %v1390
      %1423 = vst [vmem:[#allocation3 + $0x38] sm:$0xff] %v1391
      %1424 = vst [vmem:[#allocation3 + $0x40] sm:$0xff] %v1392
      %1425 = vst [vmem:[#allocation3 + $0x48] sm:$0xff] %v1393
      %1426 = vst [vmem:[#allocation3 + $0x50] sm:$0xff] %v1394
      %1427 = vst [vmem:[#allocation3 + $0x58] sm:$0xff] %v1395
      %1428 = vst [vmem:[#allocation3 + $0x60] sm:$0xff] %v1396
      %1429 = vst [vmem:[#allocation3 + $0x68] sm:$0xff] %v1397
      %1430 = vst [vmem:[#allocation3 + $0x70] sm:$0xff] %v1398
      %1431 = vst [vmem:[#allocation3 + $0x78] sm:$0xff] %v1399
      %1432 = vst [vmem:[#allocation3 + $0x80] sm:$0xff] %v1400
      %1433 = vst [vmem:[#allocation3 + $0x88] sm:$0xff] %v1401
      %1434 = vst [vmem:[#allocation3 + $0x90] sm:$0xff] %v1402
      %1435 = vst [vmem:[#allocation3 + $0x98] sm:$0xff] %v1403
      %1436 = vst [vmem:[#allocation3 + $0xa0] sm:$0xff] %v1404
      %1437 = vst [vmem:[#allocation3 + $0xa8] sm:$0xff] %v1405
      %1438 = vst [vmem:[#allocation3 + $0xb0] sm:$0xff] %v1406
      %1439 = vst [vmem:[#allocation3 + $0xb8] sm:$0xff] %v1407
      %1440 = vst [vmem:[#allocation3 + $0xc0] sm:$0xff] %v1408
      %1441 = vst [vmem:[#allocation3 + $0xc8] sm:$0xff] %v1409
      %1442 = vst [vmem:[#allocation3 + $0xd0] sm:$0xff] %v1410
      %1443 = vst [vmem:[#allocation3 + $0xd8] sm:$0xff] %v1411
      %1444 = vst [vmem:[#allocation3 + $0xe0] sm:$0xff] %v1412
      %1445 = vst [vmem:[#allocation3 + $0xe8] sm:$0xff] %v1413
      %1446 = vst [vmem:[#allocation3 + $0xf0] sm:$0xff] %v1414
      %1447 = vst [vmem:[#allocation3 + $0xf8] sm:$0xff] %v1415
      %v1448 = vld [vmem:[%s357] sm:$0xff]
      %v1449 = vld [vmem:[%s357 + $0x8] sm:$0xff]
      %v1450 = vld [vmem:[%s357 + $0x18] sm:$0xff]
      %v1451 = vld [vmem:[%s357 + $0x20] sm:$0xff]
      %v1452 = vld [vmem:[%s357 + $0x30] sm:$0xff]
      %v1453 = vld [vmem:[%s357 + $0x38] sm:$0xff]
      %v1454 = vld [vmem:[%s357 + $0x48] sm:$0xff]
      %v1455 = vld [vmem:[%s357 + $0x50] sm:$0xff]
      %v1456 = vld [vmem:[%s357 + $0x60] sm:$0xff]
      %v1457 = vld [vmem:[%s357 + $0x68] sm:$0xff]
      %v1458 = vld [vmem:[%s357 + $0x78] sm:$0xff]
      %v1459 = vld [vmem:[%s357 + $0x80] sm:$0xff]
      %v1460 = vld [vmem:[%s357 + $0x90] sm:$0xff]
      %v1461 = vld [vmem:[%s357 + $0x98] sm:$0xff]
      %v1462 = vld [vmem:[%s357 + $0xa8] sm:$0xff]
      %v1463 = vld [vmem:[%s357 + $0xb0] sm:$0xff]
      %v1464 = vld [vmem:[%s357 + $0xc0] sm:$0xff]
      %v1465 = vld [vmem:[%s357 + $0xc8] sm:$0xff]
      %v1466 = vld [vmem:[%s357 + $0xd8] sm:$0xff]
      %v1467 = vld [vmem:[%s357 + $0xe0] sm:$0xff]
      %v1468 = vld [vmem:[%s357 + $0xf0] sm:$0xff]
      %v1469 = vld [vmem:[%s357 + $0xf8] sm:$0xff]
      %v1470 = vld [vmem:[%s357 + $0x108] sm:$0xff]
      %v1471 = vld [vmem:[%s357 + $0x110] sm:$0xff]
      %v1472 = vld [vmem:[%s357 + $0x120] sm:$0xff]
      %v1473 = vld [vmem:[%s357 + $0x128] sm:$0xff]
      %v1474 = vld [vmem:[%s357 + $0x138] sm:$0xff]
      %v1475 = vld [vmem:[%s357 + $0x140] sm:$0xff]
      %v1476 = vld [vmem:[%s357 + $0x150] sm:$0xff]
      %v1477 = vld [vmem:[%s357 + $0x158] sm:$0xff]
      %v1478 = vld [vmem:[%s357 + $0x168] sm:$0xff]
      %v1479 = vld [vmem:[%s357 + $0x170] sm:$0xff]
      %v1480 = vld [vmem:[#allocation3] sm:$0xff]
      %v1481 = vld [vmem:[#allocation3 + $0x8] sm:$0xff]
      %v1482 = vld [vmem:[#allocation3 + $0x10] sm:$0xff]
      %v1483 = vld [vmem:[#allocation3 + $0x18] sm:$0xff]
      %v1484 = vld [vmem:[#allocation3 + $0x20] sm:$0xff]
      %v1485 = vld [vmem:[#allocation3 + $0x28] sm:$0xff]
      %v1486 = vld [vmem:[#allocation3 + $0x30] sm:$0xff]
      %v1487 = vld [vmem:[#allocation3 + $0x38] sm:$0xff]
      %v1488 = vld [vmem:[#allocation3 + $0x40] sm:$0xff]
      %v1489 = vld [vmem:[#allocation3 + $0x48] sm:$0xff]
      %v1490 = vld [vmem:[#allocation3 + $0x50] sm:$0xff]
      %v1491 = vld [vmem:[#allocation3 + $0x58] sm:$0xff]
      %v1492 = vld [vmem:[#allocation3 + $0x60] sm:$0xff]
      %v1493 = vld [vmem:[#allocation3 + $0x68] sm:$0xff]
      %v1494 = vld [vmem:[#allocation3 + $0x70] sm:$0xff]
      %v1495 = vld [vmem:[#allocation3 + $0x78] sm:$0xff]
      %v1496 = vld [vmem:[#allocation3 + $0x80] sm:$0xff]
      %v1497 = vld [vmem:[#allocation3 + $0x88] sm:$0xff]
      %v1498 = vld [vmem:[#allocation3 + $0x90] sm:$0xff]
      %v1499 = vld [vmem:[#allocation3 + $0x98] sm:$0xff]
      %v1500 = vld [vmem:[#allocation3 + $0xa0] sm:$0xff]
      %v1501 = vld [vmem:[#allocation3 + $0xa8] sm:$0xff]
      %v1502 = vld [vmem:[#allocation3 + $0xb0] sm:$0xff]
      %v1503 = vld [vmem:[#allocation3 + $0xb8] sm:$0xff]
      %v1504 = vld [vmem:[#allocation3 + $0xc0] sm:$0xff]
      %v1505 = vld [vmem:[#allocation3 + $0xc8] sm:$0xff]
      %v1506 = vld [vmem:[#allocation3 + $0xd0] sm:$0xff]
      %v1507 = vld [vmem:[#allocation3 + $0xd8] sm:$0xff]
      %v1508 = vld [vmem:[#allocation3 + $0xe0] sm:$0xff]
      %v1509 = vld [vmem:[#allocation3 + $0xe8] sm:$0xff]
      %v1510 = vld [vmem:[#allocation3 + $0xf0] sm:$0xff]
      %v1511 = vld [vmem:[#allocation3 + $0xf8] sm:$0xff]
      %s1512 = scalar_lea.vmem %s1, 12
      %v1513 = vld [vmem:[%s1512] sm:$0xf]
      %v1515 = vsel %vm301, %v1448, 0
      %v1518 = vsel %vm301, %v1449, 0
      %v1521 = vsel %vm301, %v1450, 0
      %v1524 = vsel %vm301, %v1451, 0
      %v1527 = vsel %vm301, %v1452, 0
      %v1530 = vsel %vm301, %v1453, 0
      %v1533 = vsel %vm301, %v1454, 0
      %v1536 = vsel %vm301, %v1455, 0
      %v1539 = vsel %vm301, %v1456, 0
      %v1542 = vsel %vm301, %v1457, 0
      %v1545 = vsel %vm301, %v1458, 0
      %v1548 = vsel %vm301, %v1459, 0
      %v1551 = vsel %vm301, %v1460, 0
      %v1554 = vsel %vm301, %v1461, 0
      %v1557 = vsel %vm301, %v1462, 0
      %v1560 = vsel %vm301, %v1463, 0
      %v1563 = vsel %vm301, %v1464, 0
      %v1566 = vsel %vm301, %v1465, 0
      %v1569 = vsel %vm301, %v1466, 0
      %v1572 = vsel %vm301, %v1467, 0
      %v1575 = vsel %vm301, %v1468, 0
      %v1578 = vsel %vm301, %v1469, 0
      %v1581 = vsel %vm301, %v1470, 0
      %v1584 = vsel %vm301, %v1471, 0
      %v1587 = vsel %vm301, %v1472, 0
      %v1590 = vsel %vm301, %v1473, 0
      %v1593 = vsel %vm301, %v1474, 0
      %v1596 = vsel %vm301, %v1475, 0
      %v1599 = vsel %vm301, %v1476, 0
      %v1602 = vsel %vm301, %v1477, 0
      %v1605 = vsel %vm301, %v1478, 0
      %v1608 = vsel %vm301, %v1479, 0
      %v1611 = vsel %vm583, %v1513, 0
      %1613 = vmatpush.msra.mxu0 0.0
      %1614 = vmatpush.msra.mxu0 0.0
      %1615 = vmatpush.msra.mxu0 0.0
      %1616 = vmatpush.msra.mxu0 0.0
      %1617 = vmatpush.msra.mxu0 0.0
      %1618 = vmatpush.msra.mxu0 0.0
      %1619 = vmatpush.msra.mxu0 0.0
      %1620 = vmatpush.msra.mxu0 0.0
      %1621 = vmatpush.msra.mxu0 0.0
      %1622 = vmatpush.msra.mxu0 0.0
      %1623 = vmatpush.msra.mxu0 0.0
      %1624 = vmatpush.msra.mxu0 0.0
      %1625 = vmatpush.msra.mxu0 0.0
      %1626 = vmatpush.msra.mxu0 0.0
      %1627 = vmatpush.msra.mxu0 0.0
      %1628 = vmatpush.msra.mxu0 %v1611
      %1629 = vmatmul.f32.gmra.mxu0 %v1515
      %v1630 = vpop.f32.mrf.mxu0
      %v1631 = vadd.f32 0.0, %v1630
      %1632 = vmatmul.f32.gmra.mxu0 %v1518
      %v1633 = vpop.f32.mrf.mxu0
      %v1634 = vadd.f32 0.0, %v1633
      %1635 = vmatmul.f32.gmra.mxu0 %v1521
      %v1636 = vpop.f32.mrf.mxu0
      %v1637 = vadd.f32 0.0, %v1636
      %1638 = vmatmul.f32.gmra.mxu0 %v1524
      %v1639 = vpop.f32.mrf.mxu0
      %v1640 = vadd.f32 0.0, %v1639
      %1641 = vmatmul.f32.gmra.mxu0 %v1527
      %v1642 = vpop.f32.mrf.mxu0
      %v1643 = vadd.f32 0.0, %v1642
      %1644 = vmatmul.f32.gmra.mxu0 %v1530
      %v1645 = vpop.f32.mrf.mxu0
      %v1646 = vadd.f32 0.0, %v1645
      %1647 = vmatmul.f32.gmra.mxu0 %v1533
      %v1648 = vpop.f32.mrf.mxu0
      %v1649 = vadd.f32 0.0, %v1648
      %1650 = vmatmul.f32.gmra.mxu0 %v1536
      %v1651 = vpop.f32.mrf.mxu0
      %v1652 = vadd.f32 0.0, %v1651
      %1653 = vmatmul.f32.gmra.mxu0 %v1539
      %v1654 = vpop.f32.mrf.mxu0
      %v1655 = vadd.f32 0.0, %v1654
      %1656 = vmatmul.f32.gmra.mxu0 %v1542
      %v1657 = vpop.f32.mrf.mxu0
      %v1658 = vadd.f32 0.0, %v1657
      %1659 = vmatmul.f32.gmra.mxu0 %v1545
      %v1660 = vpop.f32.mrf.mxu0
      %v1661 = vadd.f32 0.0, %v1660
      %1662 = vmatmul.f32.gmra.mxu0 %v1548
      %v1663 = vpop.f32.mrf.mxu0
      %v1664 = vadd.f32 0.0, %v1663
      %1665 = vmatmul.f32.gmra.mxu0 %v1551
      %v1666 = vpop.f32.mrf.mxu0
      %v1667 = vadd.f32 0.0, %v1666
      %1668 = vmatmul.f32.gmra.mxu0 %v1554
      %v1669 = vpop.f32.mrf.mxu0
      %v1670 = vadd.f32 0.0, %v1669
      %1671 = vmatmul.f32.gmra.mxu0 %v1557
      %v1672 = vpop.f32.mrf.mxu0
      %v1673 = vadd.f32 0.0, %v1672
      %1674 = vmatmul.f32.gmra.mxu0 %v1560
      %v1675 = vpop.f32.mrf.mxu0
      %v1676 = vadd.f32 0.0, %v1675
      %1677 = vmatmul.f32.gmra.mxu0 %v1563
      %v1678 = vpop.f32.mrf.mxu0
      %v1679 = vadd.f32 0.0, %v1678
      %1680 = vmatmul.f32.gmra.mxu0 %v1566
      %v1681 = vpop.f32.mrf.mxu0
      %v1682 = vadd.f32 0.0, %v1681
      %1683 = vmatmul.f32.gmra.mxu0 %v1569
      %v1684 = vpop.f32.mrf.mxu0
      %v1685 = vadd.f32 0.0, %v1684
      %1686 = vmatmul.f32.gmra.mxu0 %v1572
      %v1687 = vpop.f32.mrf.mxu0
      %v1688 = vadd.f32 0.0, %v1687
      %1689 = vmatmul.f32.gmra.mxu0 %v1575
      %v1690 = vpop.f32.mrf.mxu0
      %v1691 = vadd.f32 0.0, %v1690
      %1692 = vmatmul.f32.gmra.mxu0 %v1578
      %v1693 = vpop.f32.mrf.mxu0
      %v1694 = vadd.f32 0.0, %v1693
      %1695 = vmatmul.f32.gmra.mxu0 %v1581
      %v1696 = vpop.f32.mrf.mxu0
      %v1697 = vadd.f32 0.0, %v1696
      %1698 = vmatmul.f32.gmra.mxu0 %v1584
      %v1699 = vpop.f32.mrf.mxu0
      %v1700 = vadd.f32 0.0, %v1699
      %1701 = vmatmul.f32.gmra.mxu0 %v1587
      %v1702 = vpop.f32.mrf.mxu0
      %v1703 = vadd.f32 0.0, %v1702
      %1704 = vmatmul.f32.gmra.mxu0 %v1590
      %v1705 = vpop.f32.mrf.mxu0
      %v1706 = vadd.f32 0.0, %v1705
      %1707 = vmatmul.f32.gmra.mxu0 %v1593
      %v1708 = vpop.f32.mrf.mxu0
      %v1709 = vadd.f32 0.0, %v1708
      %1710 = vmatmul.f32.gmra.mxu0 %v1596
      %v1711 = vpop.f32.mrf.mxu0
      %v1712 = vadd.f32 0.0, %v1711
      %1713 = vmatmul.f32.gmra.mxu0 %v1599
      %v1714 = vpop.f32.mrf.mxu0
      %v1715 = vadd.f32 0.0, %v1714
      %1716 = vmatmul.f32.gmra.mxu0 %v1602
      %v1717 = vpop.f32.mrf.mxu0
      %v1718 = vadd.f32 0.0, %v1717
      %1719 = vmatmul.f32.gmra.mxu0 %v1605
      %v1720 = vpop.f32.mrf.mxu0
      %v1721 = vadd.f32 0.0, %v1720
      %1722 = vmatmul.f32.gmra.mxu0 %v1608
      %v1723 = vpop.f32.mrf.mxu0
      %v1724 = vadd.f32 0.0, %v1723
      %1725 = vdwg.mxu0
      %v1726 = vadd.f32 %v1480, %v1631
      %v1727 = vadd.f32 %v1481, %v1634
      %v1728 = vadd.f32 %v1482, %v1637
      %v1729 = vadd.f32 %v1483, %v1640
      %v1730 = vadd.f32 %v1484, %v1643
      %v1731 = vadd.f32 %v1485, %v1646
      %v1732 = vadd.f32 %v1486, %v1649
      %v1733 = vadd.f32 %v1487, %v1652
      %v1734 = vadd.f32 %v1488, %v1655
      %v1735 = vadd.f32 %v1489, %v1658
      %v1736 = vadd.f32 %v1490, %v1661
      %v1737 = vadd.f32 %v1491, %v1664
      %v1738 = vadd.f32 %v1492, %v1667
      %v1739 = vadd.f32 %v1493, %v1670
      %v1740 = vadd.f32 %v1494, %v1673
      %v1741 = vadd.f32 %v1495, %v1676
      %v1742 = vadd.f32 %v1496, %v1679
      %v1743 = vadd.f32 %v1497, %v1682
      %v1744 = vadd.f32 %v1498, %v1685
      %v1745 = vadd.f32 %v1499, %v1688
      %v1746 = vadd.f32 %v1500, %v1691
      %v1747 = vadd.f32 %v1501, %v1694
      %v1748 = vadd.f32 %v1502, %v1697
      %v1749 = vadd.f32 %v1503, %v1700
      %v1750 = vadd.f32 %v1504, %v1703
      %v1751 = vadd.f32 %v1505, %v1706
      %v1752 = vadd.f32 %v1506, %v1709
      %v1753 = vadd.f32 %v1507, %v1712
      %v1754 = vadd.f32 %v1508, %v1715
      %v1755 = vadd.f32 %v1509, %v1718
      %v1756 = vadd.f32 %v1510, %v1721
      %v1757 = vadd.f32 %v1511, %v1724
      %1758 = vst [vmem:[#allocation3] sm:$0xff] %v1726
      %1759 = vst [vmem:[#allocation3 + $0x8] sm:$0xff] %v1727
      %1760 = vst [vmem:[#allocation3 + $0x10] sm:$0xff] %v1728
      %1761 = vst [vmem:[#allocation3 + $0x18] sm:$0xff] %v1729
      %1762 = vst [vmem:[#allocation3 + $0x20] sm:$0xff] %v1730
      %1763 = vst [vmem:[#allocation3 + $0x28] sm:$0xff] %v1731
      %1764 = vst [vmem:[#allocation3 + $0x30] sm:$0xff] %v1732
      %1765 = vst [vmem:[#allocation3 + $0x38] sm:$0xff] %v1733
      %1766 = vst [vmem:[#allocation3 + $0x40] sm:$0xff] %v1734
      %1767 = vst [vmem:[#allocation3 + $0x48] sm:$0xff] %v1735
      %1768 = vst [vmem:[#allocation3 + $0x50] sm:$0xff] %v1736
      %1769 = vst [vmem:[#allocation3 + $0x58] sm:$0xff] %v1737
      %1770 = vst [vmem:[#allocation3 + $0x60] sm:$0xff] %v1738
      %1771 = vst [vmem:[#allocation3 + $0x68] sm:$0xff] %v1739
      %1772 = vst [vmem:[#allocation3 + $0x70] sm:$0xff] %v1740
      %1773 = vst [vmem:[#allocation3 + $0x78] sm:$0xff] %v1741
      %1774 = vst [vmem:[#allocation3 + $0x80] sm:$0xff] %v1742
      %1775 = vst [vmem:[#allocation3 + $0x88] sm:$0xff] %v1743
      %1776 = vst [vmem:[#allocation3 + $0x90] sm:$0xff] %v1744
      %1777 = vst [vmem:[#allocation3 + $0x98] sm:$0xff] %v1745
      %1778 = vst [vmem:[#allocation3 + $0xa0] sm:$0xff] %v1746
      %1779 = vst [vmem:[#allocation3 + $0xa8] sm:$0xff] %v1747
      %1780 = vst [vmem:[#allocation3 + $0xb0] sm:$0xff] %v1748
      %1781 = vst [vmem:[#allocation3 + $0xb8] sm:$0xff] %v1749
      %1782 = vst [vmem:[#allocation3 + $0xc0] sm:$0xff] %v1750
      %1783 = vst [vmem:[#allocation3 + $0xc8] sm:$0xff] %v1751
      %1784 = vst [vmem:[#allocation3 + $0xd0] sm:$0xff] %v1752
      %1785 = vst [vmem:[#allocation3 + $0xd8] sm:$0xff] %v1753
      %1786 = vst [vmem:[#allocation3 + $0xe0] sm:$0xff] %v1754
      %1787 = vst [vmem:[#allocation3 + $0xe8] sm:$0xff] %v1755
      %1788 = vst [vmem:[#allocation3 + $0xf0] sm:$0xff] %v1756
      %1789 = vst [vmem:[#allocation3 + $0xf8] sm:$0xff] %v1757
      %v1790 = vld [vmem:[%s357 + $0x1] sm:$0xff]
      %v1791 = vld [vmem:[%s357 + $0x9] sm:$0xff]
      %v1792 = vld [vmem:[%s357 + $0x19] sm:$0xff]
      %v1793 = vld [vmem:[%s357 + $0x21] sm:$0xff]
      %v1794 = vld [vmem:[%s357 + $0x31] sm:$0xff]
      %v1795 = vld [vmem:[%s357 + $0x39] sm:$0xff]
      %v1796 = vld [vmem:[%s357 + $0x49] sm:$0xff]
      %v1797 = vld [vmem:[%s357 + $0x51] sm:$0xff]
      %v1798 = vld [vmem:[%s357 + $0x61] sm:$0xff]
      %v1799 = vld [vmem:[%s357 + $0x69] sm:$0xff]
      %v1800 = vld [vmem:[%s357 + $0x79] sm:$0xff]
      %v1801 = vld [vmem:[%s357 + $0x81] sm:$0xff]
      %v1802 = vld [vmem:[%s357 + $0x91] sm:$0xff]
      %v1803 = vld [vmem:[%s357 + $0x99] sm:$0xff]
      %v1804 = vld [vmem:[%s357 + $0xa9] sm:$0xff]
      %v1805 = vld [vmem:[%s357 + $0xb1] sm:$0xff]
      %v1806 = vld [vmem:[%s357 + $0xc1] sm:$0xff]
      %v1807 = vld [vmem:[%s357 + $0xc9] sm:$0xff]
      %v1808 = vld [vmem:[%s357 + $0xd9] sm:$0xff]
      %v1809 = vld [vmem:[%s357 + $0xe1] sm:$0xff]
      %v1810 = vld [vmem:[%s357 + $0xf1] sm:$0xff]
      %v1811 = vld [vmem:[%s357 + $0xf9] sm:$0xff]
      %v1812 = vld [vmem:[%s357 + $0x109] sm:$0xff]
      %v1813 = vld [vmem:[%s357 + $0x111] sm:$0xff]
      %v1814 = vld [vmem:[%s357 + $0x121] sm:$0xff]
      %v1815 = vld [vmem:[%s357 + $0x129] sm:$0xff]
      %v1816 = vld [vmem:[%s357 + $0x139] sm:$0xff]
      %v1817 = vld [vmem:[%s357 + $0x141] sm:$0xff]
      %v1818 = vld [vmem:[%s357 + $0x151] sm:$0xff]
      %v1819 = vld [vmem:[%s357 + $0x159] sm:$0xff]
      %v1820 = vld [vmem:[%s357 + $0x169] sm:$0xff]
      %v1821 = vld [vmem:[%s357 + $0x171] sm:$0xff]
      %v1822 = vld [vmem:[#allocation3] sm:$0xff]
      %v1823 = vld [vmem:[#allocation3 + $0x8] sm:$0xff]
      %v1824 = vld [vmem:[#allocation3 + $0x10] sm:$0xff]
      %v1825 = vld [vmem:[#allocation3 + $0x18] sm:$0xff]
      %v1826 = vld [vmem:[#allocation3 + $0x20] sm:$0xff]
      %v1827 = vld [vmem:[#allocation3 + $0x28] sm:$0xff]
      %v1828 = vld [vmem:[#allocation3 + $0x30] sm:$0xff]
      %v1829 = vld [vmem:[#allocation3 + $0x38] sm:$0xff]
      %v1830 = vld [vmem:[#allocation3 + $0x40] sm:$0xff]
      %v1831 = vld [vmem:[#allocation3 + $0x48] sm:$0xff]
      %v1832 = vld [vmem:[#allocation3 + $0x50] sm:$0xff]
      %v1833 = vld [vmem:[#allocation3 + $0x58] sm:$0xff]
      %v1834 = vld [vmem:[#allocation3 + $0x60] sm:$0xff]
      %v1835 = vld [vmem:[#allocation3 + $0x68] sm:$0xff]
      %v1836 = vld [vmem:[#allocation3 + $0x70] sm:$0xff]
      %v1837 = vld [vmem:[#allocation3 + $0x78] sm:$0xff]
      %v1838 = vld [vmem:[#allocation3 + $0x80] sm:$0xff]
      %v1839 = vld [vmem:[#allocation3 + $0x88] sm:$0xff]
      %v1840 = vld [vmem:[#allocation3 + $0x90] sm:$0xff]
      %v1841 = vld [vmem:[#allocation3 + $0x98] sm:$0xff]
      %v1842 = vld [vmem:[#allocation3 + $0xa0] sm:$0xff]
      %v1843 = vld [vmem:[#allocation3 + $0xa8] sm:$0xff]
      %v1844 = vld [vmem:[#allocation3 + $0xb0] sm:$0xff]
      %v1845 = vld [vmem:[#allocation3 + $0xb8] sm:$0xff]
      %v1846 = vld [vmem:[#allocation3 + $0xc0] sm:$0xff]
      %v1847 = vld [vmem:[#allocation3 + $0xc8] sm:$0xff]
      %v1848 = vld [vmem:[#allocation3 + $0xd0] sm:$0xff]
      %v1849 = vld [vmem:[#allocation3 + $0xd8] sm:$0xff]
      %v1850 = vld [vmem:[#allocation3 + $0xe0] sm:$0xff]
      %v1851 = vld [vmem:[#allocation3 + $0xe8] sm:$0xff]
      %v1852 = vld [vmem:[#allocation3 + $0xf0] sm:$0xff]
      %v1853 = vld [vmem:[#allocation3 + $0xf8] sm:$0xff]
      %s1854 = scalar_lea.vmem %s1, 16
      %v1855 = vld [vmem:[%s1854] sm:$0xf]
      %v1857 = vsel %vm301, %v1790, 0
      %v1860 = vsel %vm301, %v1791, 0
      %v1863 = vsel %vm301, %v1792, 0
      %v1866 = vsel %vm301, %v1793, 0
      %v1869 = vsel %vm301, %v1794, 0
      %v1872 = vsel %vm301, %v1795, 0
      %v1875 = vsel %vm301, %v1796, 0
      %v1878 = vsel %vm301, %v1797, 0
      %v1881 = vsel %vm301, %v1798, 0
      %v1884 = vsel %vm301, %v1799, 0
      %v1887 = vsel %vm301, %v1800, 0
      %v1890 = vsel %vm301, %v1801, 0
      %v1893 = vsel %vm301, %v1802, 0
      %v1896 = vsel %vm301, %v1803, 0
      %v1899 = vsel %vm301, %v1804, 0
      %v1902 = vsel %vm301, %v1805, 0
      %v1905 = vsel %vm301, %v1806, 0
      %v1908 = vsel %vm301, %v1807, 0
      %v1911 = vsel %vm301, %v1808, 0
      %v1914 = vsel %vm301, %v1809, 0
      %v1917 = vsel %vm301, %v1810, 0
      %v1920 = vsel %vm301, %v1811, 0
      %v1923 = vsel %vm301, %v1812, 0
      %v1926 = vsel %vm301, %v1813, 0
      %v1929 = vsel %vm301, %v1814, 0
      %v1932 = vsel %vm301, %v1815, 0
      %v1935 = vsel %vm301, %v1816, 0
      %v1938 = vsel %vm301, %v1817, 0
      %v1941 = vsel %vm301, %v1818, 0
      %v1944 = vsel %vm301, %v1819, 0
      %v1947 = vsel %vm301, %v1820, 0
      %v1950 = vsel %vm301, %v1821, 0
      %v1953 = vsel %vm583, %v1855, 0
      %1955 = vmatpush.msra.mxu0 0.0
      %1956 = vmatpush.msra.mxu0 0.0
      %1957 = vmatpush.msra.mxu0 0.0
      %1958 = vmatpush.msra.mxu0 0.0
      %1959 = vmatpush.msra.mxu0 0.0
      %1960 = vmatpush.msra.mxu0 0.0
      %1961 = vmatpush.msra.mxu0 0.0
      %1962 = vmatpush.msra.mxu0 0.0
      %1963 = vmatpush.msra.mxu0 0.0
      %1964 = vmatpush.msra.mxu0 0.0
      %1965 = vmatpush.msra.mxu0 0.0
      %1966 = vmatpush.msra.mxu0 0.0
      %1967 = vmatpush.msra.mxu0 0.0
      %1968 = vmatpush.msra.mxu0 0.0
      %1969 = vmatpush.msra.mxu0 0.0
      %1970 = vmatpush.msra.mxu0 %v1953
      %1971 = vmatmul.f32.gmra.mxu0 %v1857
      %v1972 = vpop.f32.mrf.mxu0
      %v1973 = vadd.f32 0.0, %v1972
      %1974 = vmatmul.f32.gmra.mxu0 %v1860
      %v1975 = vpop.f32.mrf.mxu0
      %v1976 = vadd.f32 0.0, %v1975
      %1977 = vmatmul.f32.gmra.mxu0 %v1863
      %v1978 = vpop.f32.mrf.mxu0
      %v1979 = vadd.f32 0.0, %v1978
      %1980 = vmatmul.f32.gmra.mxu0 %v1866
      %v1981 = vpop.f32.mrf.mxu0
      %v1982 = vadd.f32 0.0, %v1981
      %1983 = vmatmul.f32.gmra.mxu0 %v1869
      %v1984 = vpop.f32.mrf.mxu0
      %v1985 = vadd.f32 0.0, %v1984
      %1986 = vmatmul.f32.gmra.mxu0 %v1872
      %v1987 = vpop.f32.mrf.mxu0
      %v1988 = vadd.f32 0.0, %v1987
      %1989 = vmatmul.f32.gmra.mxu0 %v1875
      %v1990 = vpop.f32.mrf.mxu0
      %v1991 = vadd.f32 0.0, %v1990
      %1992 = vmatmul.f32.gmra.mxu0 %v1878
      %v1993 = vpop.f32.mrf.mxu0
      %v1994 = vadd.f32 0.0, %v1993
      %1995 = vmatmul.f32.gmra.mxu0 %v1881
      %v1996 = vpop.f32.mrf.mxu0
      %v1997 = vadd.f32 0.0, %v1996
      %1998 = vmatmul.f32.gmra.mxu0 %v1884
      %v1999 = vpop.f32.mrf.mxu0
      %v2000 = vadd.f32 0.0, %v1999
      %2001 = vmatmul.f32.gmra.mxu0 %v1887
      %v2002 = vpop.f32.mrf.mxu0
      %v2003 = vadd.f32 0.0, %v2002
      %2004 = vmatmul.f32.gmra.mxu0 %v1890
      %v2005 = vpop.f32.mrf.mxu0
      %v2006 = vadd.f32 0.0, %v2005
      %2007 = vmatmul.f32.gmra.mxu0 %v1893
      %v2008 = vpop.f32.mrf.mxu0
      %v2009 = vadd.f32 0.0, %v2008
      %2010 = vmatmul.f32.gmra.mxu0 %v1896
      %v2011 = vpop.f32.mrf.mxu0
      %v2012 = vadd.f32 0.0, %v2011
      %2013 = vmatmul.f32.gmra.mxu0 %v1899
      %v2014 = vpop.f32.mrf.mxu0
      %v2015 = vadd.f32 0.0, %v2014
      %2016 = vmatmul.f32.gmra.mxu0 %v1902
      %v2017 = vpop.f32.mrf.mxu0
      %v2018 = vadd.f32 0.0, %v2017
      %2019 = vmatmul.f32.gmra.mxu0 %v1905
      %v2020 = vpop.f32.mrf.mxu0
      %v2021 = vadd.f32 0.0, %v2020
      %2022 = vmatmul.f32.gmra.mxu0 %v1908
      %v2023 = vpop.f32.mrf.mxu0
      %v2024 = vadd.f32 0.0, %v2023
      %2025 = vmatmul.f32.gmra.mxu0 %v1911
      %v2026 = vpop.f32.mrf.mxu0
      %v2027 = vadd.f32 0.0, %v2026
      %2028 = vmatmul.f32.gmra.mxu0 %v1914
      %v2029 = vpop.f32.mrf.mxu0
      %v2030 = vadd.f32 0.0, %v2029
      %2031 = vmatmul.f32.gmra.mxu0 %v1917
      %v2032 = vpop.f32.mrf.mxu0
      %v2033 = vadd.f32 0.0, %v2032
      %2034 = vmatmul.f32.gmra.mxu0 %v1920
      %v2035 = vpop.f32.mrf.mxu0
      %v2036 = vadd.f32 0.0, %v2035
      %2037 = vmatmul.f32.gmra.mxu0 %v1923
      %v2038 = vpop.f32.mrf.mxu0
      %v2039 = vadd.f32 0.0, %v2038
      %2040 = vmatmul.f32.gmra.mxu0 %v1926
      %v2041 = vpop.f32.mrf.mxu0
      %v2042 = vadd.f32 0.0, %v2041
      %2043 = vmatmul.f32.gmra.mxu0 %v1929
      %v2044 = vpop.f32.mrf.mxu0
      %v2045 = vadd.f32 0.0, %v2044
      %2046 = vmatmul.f32.gmra.mxu0 %v1932
      %v2047 = vpop.f32.mrf.mxu0
      %v2048 = vadd.f32 0.0, %v2047
      %2049 = vmatmul.f32.gmra.mxu0 %v1935
      %v2050 = vpop.f32.mrf.mxu0
      %v2051 = vadd.f32 0.0, %v2050
      %2052 = vmatmul.f32.gmra.mxu0 %v1938
      %v2053 = vpop.f32.mrf.mxu0
      %v2054 = vadd.f32 0.0, %v2053
      %2055 = vmatmul.f32.gmra.mxu0 %v1941
      %v2056 = vpop.f32.mrf.mxu0
      %v2057 = vadd.f32 0.0, %v2056
      %2058 = vmatmul.f32.gmra.mxu0 %v1944
      %v2059 = vpop.f32.mrf.mxu0
      %v2060 = vadd.f32 0.0, %v2059
      %2061 = vmatmul.f32.gmra.mxu0 %v1947
      %v2062 = vpop.f32.mrf.mxu0
      %v2063 = vadd.f32 0.0, %v2062
      %2064 = vmatmul.f32.gmra.mxu0 %v1950
      %v2065 = vpop.f32.mrf.mxu0
      %v2066 = vadd.f32 0.0, %v2065
      %2067 = vdwg.mxu0
      %v2068 = vadd.f32 %v1822, %v1973
      %v2069 = vadd.f32 %v1823, %v1976
      %v2070 = vadd.f32 %v1824, %v1979
      %v2071 = vadd.f32 %v1825, %v1982
      %v2072 = vadd.f32 %v1826, %v1985
      %v2073 = vadd.f32 %v1827, %v1988
      %v2074 = vadd.f32 %v1828, %v1991
      %v2075 = vadd.f32 %v1829, %v1994
      %v2076 = vadd.f32 %v1830, %v1997
      %v2077 = vadd.f32 %v1831, %v2000
      %v2078 = vadd.f32 %v1832, %v2003
      %v2079 = vadd.f32 %v1833, %v2006
      %v2080 = vadd.f32 %v1834, %v2009
      %v2081 = vadd.f32 %v1835, %v2012
      %v2082 = vadd.f32 %v1836, %v2015
      %v2083 = vadd.f32 %v1837, %v2018
      %v2084 = vadd.f32 %v1838, %v2021
      %v2085 = vadd.f32 %v1839, %v2024
      %v2086 = vadd.f32 %v1840, %v2027
      %v2087 = vadd.f32 %v1841, %v2030
      %v2088 = vadd.f32 %v1842, %v2033
      %v2089 = vadd.f32 %v1843, %v2036
      %v2090 = vadd.f32 %v1844, %v2039
      %v2091 = vadd.f32 %v1845, %v2042
      %v2092 = vadd.f32 %v1846, %v2045
      %v2093 = vadd.f32 %v1847, %v2048
      %v2094 = vadd.f32 %v1848, %v2051
      %v2095 = vadd.f32 %v1849, %v2054
      %v2096 = vadd.f32 %v1850, %v2057
      %v2097 = vadd.f32 %v1851, %v2060
      %v2098 = vadd.f32 %v1852, %v2063
      %v2099 = vadd.f32 %v1853, %v2066
      %2100 = vst [vmem:[#allocation3] sm:$0xff] %v2068
      %2101 = vst [vmem:[#allocation3 + $0x8] sm:$0xff] %v2069
      %2102 = vst [vmem:[#allocation3 + $0x10] sm:$0xff] %v2070
      %2103 = vst [vmem:[#allocation3 + $0x18] sm:$0xff] %v2071
      %2104 = vst [vmem:[#allocation3 + $0x20] sm:$0xff] %v2072
      %2105 = vst [vmem:[#allocation3 + $0x28] sm:$0xff] %v2073
      %2106 = vst [vmem:[#allocation3 + $0x30] sm:$0xff] %v2074
      %2107 = vst [vmem:[#allocation3 + $0x38] sm:$0xff] %v2075
      %2108 = vst [vmem:[#allocation3 + $0x40] sm:$0xff] %v2076
      %2109 = vst [vmem:[#allocation3 + $0x48] sm:$0xff] %v2077
      %2110 = vst [vmem:[#allocation3 + $0x50] sm:$0xff] %v2078
      %2111 = vst [vmem:[#allocation3 + $0x58] sm:$0xff] %v2079
      %2112 = vst [vmem:[#allocation3 + $0x60] sm:$0xff] %v2080
      %2113 = vst [vmem:[#allocation3 + $0x68] sm:$0xff] %v2081
      %2114 = vst [vmem:[#allocation3 + $0x70] sm:$0xff] %v2082
      %2115 = vst [vmem:[#allocation3 + $0x78] sm:$0xff] %v2083
      %2116 = vst [vmem:[#allocation3 + $0x80] sm:$0xff] %v2084
      %2117 = vst [vmem:[#allocation3 + $0x88] sm:$0xff] %v2085
      %2118 = vst [vmem:[#allocation3 + $0x90] sm:$0xff] %v2086
      %2119 = vst [vmem:[#allocation3 + $0x98] sm:$0xff] %v2087
      %2120 = vst [vmem:[#allocation3 + $0xa0] sm:$0xff] %v2088
      %2121 = vst [vmem:[#allocation3 + $0xa8] sm:$0xff] %v2089
      %2122 = vst [vmem:[#allocation3 + $0xb0] sm:$0xff] %v2090
      %2123 = vst [vmem:[#allocation3 + $0xb8] sm:$0xff] %v2091
      %2124 = vst [vmem:[#allocation3 + $0xc0] sm:$0xff] %v2092
      %2125 = vst [vmem:[#allocation3 + $0xc8] sm:$0xff] %v2093
      %2126 = vst [vmem:[#allocation3 + $0xd0] sm:$0xff] %v2094
      %2127 = vst [vmem:[#allocation3 + $0xd8] sm:$0xff] %v2095
      %2128 = vst [vmem:[#allocation3 + $0xe0] sm:$0xff] %v2096
      %2129 = vst [vmem:[#allocation3 + $0xe8] sm:$0xff] %v2097
      %2130 = vst [vmem:[#allocation3 + $0xf0] sm:$0xff] %v2098
      %2131 = vst [vmem:[#allocation3 + $0xf8] sm:$0xff] %v2099
      %v2132 = vld [vmem:[%s357 + $0x2] sm:$0xff]
      %v2133 = vld [vmem:[%s357 + $0xa] sm:$0xff]
      %v2134 = vld [vmem:[%s357 + $0x1a] sm:$0xff]
      %v2135 = vld [vmem:[%s357 + $0x22] sm:$0xff]
      %v2136 = vld [vmem:[%s357 + $0x32] sm:$0xff]
      %v2137 = vld [vmem:[%s357 + $0x3a] sm:$0xff]
      %v2138 = vld [vmem:[%s357 + $0x4a] sm:$0xff]
      %v2139 = vld [vmem:[%s357 + $0x52] sm:$0xff]
      %v2140 = vld [vmem:[%s357 + $0x62] sm:$0xff]
      %v2141 = vld [vmem:[%s357 + $0x6a] sm:$0xff]
      %v2142 = vld [vmem:[%s357 + $0x7a] sm:$0xff]
      %v2143 = vld [vmem:[%s357 + $0x82] sm:$0xff]
      %v2144 = vld [vmem:[%s357 + $0x92] sm:$0xff]
      %v2145 = vld [vmem:[%s357 + $0x9a] sm:$0xff]
      %v2146 = vld [vmem:[%s357 + $0xaa] sm:$0xff]
      %v2147 = vld [vmem:[%s357 + $0xb2] sm:$0xff]
      %v2148 = vld [vmem:[%s357 + $0xc2] sm:$0xff]
      %v2149 = vld [vmem:[%s357 + $0xca] sm:$0xff]
      %v2150 = vld [vmem:[%s357 + $0xda] sm:$0xff]
      %v2151 = vld [vmem:[%s357 + $0xe2] sm:$0xff]
      %v2152 = vld [vmem:[%s357 + $0xf2] sm:$0xff]
      %v2153 = vld [vmem:[%s357 + $0xfa] sm:$0xff]
      %v2154 = vld [vmem:[%s357 + $0x10a] sm:$0xff]
      %v2155 = vld [vmem:[%s357 + $0x112] sm:$0xff]
      %v2156 = vld [vmem:[%s357 + $0x122] sm:$0xff]
      %v2157 = vld [vmem:[%s357 + $0x12a] sm:$0xff]
      %v2158 = vld [vmem:[%s357 + $0x13a] sm:$0xff]
      %v2159 = vld [vmem:[%s357 + $0x142] sm:$0xff]
      %v2160 = vld [vmem:[%s357 + $0x152] sm:$0xff]
      %v2161 = vld [vmem:[%s357 + $0x15a] sm:$0xff]
      %v2162 = vld [vmem:[%s357 + $0x16a] sm:$0xff]
      %v2163 = vld [vmem:[%s357 + $0x172] sm:$0xff]
      %v2164 = vld [vmem:[#allocation3] sm:$0xff]
      %v2165 = vld [vmem:[#allocation3 + $0x8] sm:$0xff]
      %v2166 = vld [vmem:[#allocation3 + $0x10] sm:$0xff]
      %v2167 = vld [vmem:[#allocation3 + $0x18] sm:$0xff]
      %v2168 = vld [vmem:[#allocation3 + $0x20] sm:$0xff]
      %v2169 = vld [vmem:[#allocation3 + $0x28] sm:$0xff]
      %v2170 = vld [vmem:[#allocation3 + $0x30] sm:$0xff]
      %v2171 = vld [vmem:[#allocation3 + $0x38] sm:$0xff]
      %v2172 = vld [vmem:[#allocation3 + $0x40] sm:$0xff]
      %v2173 = vld [vmem:[#allocation3 + $0x48] sm:$0xff]
      %v2174 = vld [vmem:[#allocation3 + $0x50] sm:$0xff]
      %v2175 = vld [vmem:[#allocation3 + $0x58] sm:$0xff]
      %v2176 = vld [vmem:[#allocation3 + $0x60] sm:$0xff]
      %v2177 = vld [vmem:[#allocation3 + $0x68] sm:$0xff]
      %v2178 = vld [vmem:[#allocation3 + $0x70] sm:$0xff]
      %v2179 = vld [vmem:[#allocation3 + $0x78] sm:$0xff]
      %v2180 = vld [vmem:[#allocation3 + $0x80] sm:$0xff]
      %v2181 = vld [vmem:[#allocation3 + $0x88] sm:$0xff]
      %v2182 = vld [vmem:[#allocation3 + $0x90] sm:$0xff]
      %v2183 = vld [vmem:[#allocation3 + $0x98] sm:$0xff]
      %v2184 = vld [vmem:[#allocation3 + $0xa0] sm:$0xff]
      %v2185 = vld [vmem:[#allocation3 + $0xa8] sm:$0xff]
      %v2186 = vld [vmem:[#allocation3 + $0xb0] sm:$0xff]
      %v2187 = vld [vmem:[#allocation3 + $0xb8] sm:$0xff]
      %v2188 = vld [vmem:[#allocation3 + $0xc0] sm:$0xff]
      %v2189 = vld [vmem:[#allocation3 + $0xc8] sm:$0xff]
      %v2190 = vld [vmem:[#allocation3 + $0xd0] sm:$0xff]
      %v2191 = vld [vmem:[#allocation3 + $0xd8] sm:$0xff]
      %v2192 = vld [vmem:[#allocation3 + $0xe0] sm:$0xff]
      %v2193 = vld [vmem:[#allocation3 + $0xe8] sm:$0xff]
      %v2194 = vld [vmem:[#allocation3 + $0xf0] sm:$0xff]
      %v2195 = vld [vmem:[#allocation3 + $0xf8] sm:$0xff]
      %s2196 = scalar_lea.vmem %s1, 20
      %v2197 = vld [vmem:[%s2196] sm:$0xf]
      %v2199 = vsel %vm301, %v2132, 0
      %v2202 = vsel %vm301, %v2133, 0
      %v2205 = vsel %vm301, %v2134, 0
      %v2208 = vsel %vm301, %v2135, 0
      %v2211 = vsel %vm301, %v2136, 0
      %v2214 = vsel %vm301, %v2137, 0
      %v2217 = vsel %vm301, %v2138, 0
      %v2220 = vsel %vm301, %v2139, 0
      %v2223 = vsel %vm301, %v2140, 0
      %v2226 = vsel %vm301, %v2141, 0
      %v2229 = vsel %vm301, %v2142, 0
      %v2232 = vsel %vm301, %v2143, 0
      %v2235 = vsel %vm301, %v2144, 0
      %v2238 = vsel %vm301, %v2145, 0
      %v2241 = vsel %vm301, %v2146, 0
      %v2244 = vsel %vm301, %v2147, 0
      %v2247 = vsel %vm301, %v2148, 0
      %v2250 = vsel %vm301, %v2149, 0
      %v2253 = vsel %vm301, %v2150, 0
      %v2256 = vsel %vm301, %v2151, 0
      %v2259 = vsel %vm301, %v2152, 0
      %v2262 = vsel %vm301, %v2153, 0
      %v2265 = vsel %vm301, %v2154, 0
      %v2268 = vsel %vm301, %v2155, 0
      %v2271 = vsel %vm301, %v2156, 0
      %v2274 = vsel %vm301, %v2157, 0
      %v2277 = vsel %vm301, %v2158, 0
      %v2280 = vsel %vm301, %v2159, 0
      %v2283 = vsel %vm301, %v2160, 0
      %v2286 = vsel %vm301, %v2161, 0
      %v2289 = vsel %vm301, %v2162, 0
      %v2292 = vsel %vm301, %v2163, 0
      %v2295 = vsel %vm583, %v2197, 0
      %2297 = vmatpush.msra.mxu0 0.0
      %2298 = vmatpush.msra.mxu0 0.0
      %2299 = vmatpush.msra.mxu0 0.0
      %2300 = vmatpush.msra.mxu0 0.0
      %2301 = vmatpush.msra.mxu0 0.0
      %2302 = vmatpush.msra.mxu0 0.0
      %2303 = vmatpush.msra.mxu0 0.0
      %2304 = vmatpush.msra.mxu0 0.0
      %2305 = vmatpush.msra.mxu0 0.0
      %2306 = vmatpush.msra.mxu0 0.0
      %2307 = vmatpush.msra.mxu0 0.0
      %2308 = vmatpush.msra.mxu0 0.0
      %2309 = vmatpush.msra.mxu0 0.0
      %2310 = vmatpush.msra.mxu0 0.0
      %2311 = vmatpush.msra.mxu0 0.0
      %2312 = vmatpush.msra.mxu0 %v2295
      %2313 = vmatmul.f32.gmra.mxu0 %v2199
      %v2314 = vpop.f32.mrf.mxu0
      %v2315 = vadd.f32 0.0, %v2314
      %2316 = vmatmul.f32.gmra.mxu0 %v2202
      %v2317 = vpop.f32.mrf.mxu0
      %v2318 = vadd.f32 0.0, %v2317
      %2319 = vmatmul.f32.gmra.mxu0 %v2205
      %v2320 = vpop.f32.mrf.mxu0
      %v2321 = vadd.f32 0.0, %v2320
      %2322 = vmatmul.f32.gmra.mxu0 %v2208
      %v2323 = vpop.f32.mrf.mxu0
      %v2324 = vadd.f32 0.0, %v2323
      %2325 = vmatmul.f32.gmra.mxu0 %v2211
      %v2326 = vpop.f32.mrf.mxu0
      %v2327 = vadd.f32 0.0, %v2326
      %2328 = vmatmul.f32.gmra.mxu0 %v2214
      %v2329 = vpop.f32.mrf.mxu0
      %v2330 = vadd.f32 0.0, %v2329
      %2331 = vmatmul.f32.gmra.mxu0 %v2217
      %v2332 = vpop.f32.mrf.mxu0
      %v2333 = vadd.f32 0.0, %v2332
      %2334 = vmatmul.f32.gmra.mxu0 %v2220
      %v2335 = vpop.f32.mrf.mxu0
      %v2336 = vadd.f32 0.0, %v2335
      %2337 = vmatmul.f32.gmra.mxu0 %v2223
      %v2338 = vpop.f32.mrf.mxu0
      %v2339 = vadd.f32 0.0, %v2338
      %2340 = vmatmul.f32.gmra.mxu0 %v2226
      %v2341 = vpop.f32.mrf.mxu0
      %v2342 = vadd.f32 0.0, %v2341
      %2343 = vmatmul.f32.gmra.mxu0 %v2229
      %v2344 = vpop.f32.mrf.mxu0
      %v2345 = vadd.f32 0.0, %v2344
      %2346 = vmatmul.f32.gmra.mxu0 %v2232
      %v2347 = vpop.f32.mrf.mxu0
      %v2348 = vadd.f32 0.0, %v2347
      %2349 = vmatmul.f32.gmra.mxu0 %v2235
      %v2350 = vpop.f32.mrf.mxu0
      %v2351 = vadd.f32 0.0, %v2350
      %2352 = vmatmul.f32.gmra.mxu0 %v2238
      %v2353 = vpop.f32.mrf.mxu0
      %v2354 = vadd.f32 0.0, %v2353
      %2355 = vmatmul.f32.gmra.mxu0 %v2241
      %v2356 = vpop.f32.mrf.mxu0
      %v2357 = vadd.f32 0.0, %v2356
      %2358 = vmatmul.f32.gmra.mxu0 %v2244
      %v2359 = vpop.f32.mrf.mxu0
      %v2360 = vadd.f32 0.0, %v2359
      %2361 = vmatmul.f32.gmra.mxu0 %v2247
      %v2362 = vpop.f32.mrf.mxu0
      %v2363 = vadd.f32 0.0, %v2362
      %2364 = vmatmul.f32.gmra.mxu0 %v2250
      %v2365 = vpop.f32.mrf.mxu0
      %v2366 = vadd.f32 0.0, %v2365
      %2367 = vmatmul.f32.gmra.mxu0 %v2253
      %v2368 = vpop.f32.mrf.mxu0
      %v2369 = vadd.f32 0.0, %v2368
      %2370 = vmatmul.f32.gmra.mxu0 %v2256
      %v2371 = vpop.f32.mrf.mxu0
      %v2372 = vadd.f32 0.0, %v2371
      %2373 = vmatmul.f32.gmra.mxu0 %v2259
      %v2374 = vpop.f32.mrf.mxu0
      %v2375 = vadd.f32 0.0, %v2374
      %2376 = vmatmul.f32.gmra.mxu0 %v2262
      %v2377 = vpop.f32.mrf.mxu0
      %v2378 = vadd.f32 0.0, %v2377
      %2379 = vmatmul.f32.gmra.mxu0 %v2265
      %v2380 = vpop.f32.mrf.mxu0
      %v2381 = vadd.f32 0.0, %v2380
      %2382 = vmatmul.f32.gmra.mxu0 %v2268
      %v2383 = vpop.f32.mrf.mxu0
      %v2384 = vadd.f32 0.0, %v2383
      %2385 = vmatmul.f32.gmra.mxu0 %v2271
      %v2386 = vpop.f32.mrf.mxu0
      %v2387 = vadd.f32 0.0, %v2386
      %2388 = vmatmul.f32.gmra.mxu0 %v2274
      %v2389 = vpop.f32.mrf.mxu0
      %v2390 = vadd.f32 0.0, %v2389
      %2391 = vmatmul.f32.gmra.mxu0 %v2277
      %v2392 = vpop.f32.mrf.mxu0
      %v2393 = vadd.f32 0.0, %v2392
      %2394 = vmatmul.f32.gmra.mxu0 %v2280
      %v2395 = vpop.f32.mrf.mxu0
      %v2396 = vadd.f32 0.0, %v2395
      %2397 = vmatmul.f32.gmra.mxu0 %v2283
      %v2398 = vpop.f32.mrf.mxu0
      %v2399 = vadd.f32 0.0, %v2398
      %2400 = vmatmul.f32.gmra.mxu0 %v2286
      %v2401 = vpop.f32.mrf.mxu0
      %v2402 = vadd.f32 0.0, %v2401
      %2403 = vmatmul.f32.gmra.mxu0 %v2289
      %v2404 = vpop.f32.mrf.mxu0
      %v2405 = vadd.f32 0.0, %v2404
      %2406 = vmatmul.f32.gmra.mxu0 %v2292
      %v2407 = vpop.f32.mrf.mxu0
      %v2408 = vadd.f32 0.0, %v2407
      %2409 = vdwg.mxu0
      %v2410 = vadd.f32 %v2164, %v2315
      %v2411 = vadd.f32 %v2165, %v2318
      %v2412 = vadd.f32 %v2166, %v2321
      %v2413 = vadd.f32 %v2167, %v2324
      %v2414 = vadd.f32 %v2168, %v2327
      %v2415 = vadd.f32 %v2169, %v2330
      %v2416 = vadd.f32 %v2170, %v2333
      %v2417 = vadd.f32 %v2171, %v2336
      %v2418 = vadd.f32 %v2172, %v2339
      %v2419 = vadd.f32 %v2173, %v2342
      %v2420 = vadd.f32 %v2174, %v2345
      %v2421 = vadd.f32 %v2175, %v2348
      %v2422 = vadd.f32 %v2176, %v2351
      %v2423 = vadd.f32 %v2177, %v2354
      %v2424 = vadd.f32 %v2178, %v2357
      %v2425 = vadd.f32 %v2179, %v2360
      %v2426 = vadd.f32 %v2180, %v2363
      %v2427 = vadd.f32 %v2181, %v2366
      %v2428 = vadd.f32 %v2182, %v2369
      %v2429 = vadd.f32 %v2183, %v2372
      %v2430 = vadd.f32 %v2184, %v2375
      %v2431 = vadd.f32 %v2185, %v2378
      %v2432 = vadd.f32 %v2186, %v2381
      %v2433 = vadd.f32 %v2187, %v2384
      %v2434 = vadd.f32 %v2188, %v2387
      %v2435 = vadd.f32 %v2189, %v2390
      %v2436 = vadd.f32 %v2190, %v2393
      %v2437 = vadd.f32 %v2191, %v2396
      %v2438 = vadd.f32 %v2192, %v2399
      %v2439 = vadd.f32 %v2193, %v2402
      %v2440 = vadd.f32 %v2194, %v2405
      %v2441 = vadd.f32 %v2195, %v2408
      %2442 = vst [vmem:[#allocation3] sm:$0xff] %v2410
      %2443 = vst [vmem:[#allocation3 + $0x8] sm:$0xff] %v2411
      %2444 = vst [vmem:[#allocation3 + $0x10] sm:$0xff] %v2412
      %2445 = vst [vmem:[#allocation3 + $0x18] sm:$0xff] %v2413
      %2446 = vst [vmem:[#allocation3 + $0x20] sm:$0xff] %v2414
      %2447 = vst [vmem:[#allocation3 + $0x28] sm:$0xff] %v2415
      %2448 = vst [vmem:[#allocation3 + $0x30] sm:$0xff] %v2416
      %2449 = vst [vmem:[#allocation3 + $0x38] sm:$0xff] %v2417
      %2450 = vst [vmem:[#allocation3 + $0x40] sm:$0xff] %v2418
      %2451 = vst [vmem:[#allocation3 + $0x48] sm:$0xff] %v2419
      %2452 = vst [vmem:[#allocation3 + $0x50] sm:$0xff] %v2420
      %2453 = vst [vmem:[#allocation3 + $0x58] sm:$0xff] %v2421
      %2454 = vst [vmem:[#allocation3 + $0x60] sm:$0xff] %v2422
      %2455 = vst [vmem:[#allocation3 + $0x68] sm:$0xff] %v2423
      %2456 = vst [vmem:[#allocation3 + $0x70] sm:$0xff] %v2424
      %2457 = vst [vmem:[#allocation3 + $0x78] sm:$0xff] %v2425
      %2458 = vst [vmem:[#allocation3 + $0x80] sm:$0xff] %v2426
      %2459 = vst [vmem:[#allocation3 + $0x88] sm:$0xff] %v2427
      %2460 = vst [vmem:[#allocation3 + $0x90] sm:$0xff] %v2428
      %2461 = vst [vmem:[#allocation3 + $0x98] sm:$0xff] %v2429
      %2462 = vst [vmem:[#allocation3 + $0xa0] sm:$0xff] %v2430
      %2463 = vst [vmem:[#allocation3 + $0xa8] sm:$0xff] %v2431
      %2464 = vst [vmem:[#allocation3 + $0xb0] sm:$0xff] %v2432
      %2465 = vst [vmem:[#allocation3 + $0xb8] sm:$0xff] %v2433
      %2466 = vst [vmem:[#allocation3 + $0xc0] sm:$0xff] %v2434
      %2467 = vst [vmem:[#allocation3 + $0xc8] sm:$0xff] %v2435
      %2468 = vst [vmem:[#allocation3 + $0xd0] sm:$0xff] %v2436
      %2469 = vst [vmem:[#allocation3 + $0xd8] sm:$0xff] %v2437
      %2470 = vst [vmem:[#allocation3 + $0xe0] sm:$0xff] %v2438
      %2471 = vst [vmem:[#allocation3 + $0xe8] sm:$0xff] %v2439
      %2472 = vst [vmem:[#allocation3 + $0xf0] sm:$0xff] %v2440
      %2473 = vst [vmem:[#allocation3 + $0xf8] sm:$0xff] %v2441
      %s2474 = scalar_lea.vmem [#allocation2], 48
      %v2475 = vld [vmem:[%s2474] sm:$0xff]
      %v2476 = vld [vmem:[%s2474 + $0x8] sm:$0xff]
      %v2477 = vld [vmem:[%s2474 + $0x18] sm:$0xff]
      %v2478 = vld [vmem:[%s2474 + $0x20] sm:$0xff]
      %v2479 = vld [vmem:[%s2474 + $0x30] sm:$0xff]
      %v2480 = vld [vmem:[%s2474 + $0x38] sm:$0xff]
      %v2481 = vld [vmem:[%s2474 + $0x48] sm:$0xff]
      %v2482 = vld [vmem:[%s2474 + $0x50] sm:$0xff]
      %v2483 = vld [vmem:[%s2474 + $0x60] sm:$0xff]
      %v2484 = vld [vmem:[%s2474 + $0x68] sm:$0xff]
      %v2485 = vld [vmem:[%s2474 + $0x78] sm:$0xff]
      %v2486 = vld [vmem:[%s2474 + $0x80] sm:$0xff]
      %v2487 = vld [vmem:[%s2474 + $0x90] sm:$0xff]
      %v2488 = vld [vmem:[%s2474 + $0x98] sm:$0xff]
      %v2489 = vld [vmem:[%s2474 + $0xa8] sm:$0xff]
      %v2490 = vld [vmem:[%s2474 + $0xb0] sm:$0xff]
      %v2491 = vld [vmem:[%s2474 + $0xc0] sm:$0xff]
      %v2492 = vld [vmem:[%s2474 + $0xc8] sm:$0xff]
      %v2493 = vld [vmem:[%s2474 + $0xd8] sm:$0xff]
      %v2494 = vld [vmem:[%s2474 + $0xe0] sm:$0xff]
      %v2495 = vld [vmem:[%s2474 + $0xf0] sm:$0xff]
      %v2496 = vld [vmem:[%s2474 + $0xf8] sm:$0xff]
      %v2497 = vld [vmem:[%s2474 + $0x108] sm:$0xff]
      %v2498 = vld [vmem:[%s2474 + $0x110] sm:$0xff]
      %v2499 = vld [vmem:[%s2474 + $0x120] sm:$0xff]
      %v2500 = vld [vmem:[%s2474 + $0x128] sm:$0xff]
      %v2501 = vld [vmem:[%s2474 + $0x138] sm:$0xff]
      %v2502 = vld [vmem:[%s2474 + $0x140] sm:$0xff]
      %v2503 = vld [vmem:[%s2474 + $0x150] sm:$0xff]
      %v2504 = vld [vmem:[%s2474 + $0x158] sm:$0xff]
      %v2505 = vld [vmem:[%s2474 + $0x168] sm:$0xff]
      %v2506 = vld [vmem:[%s2474 + $0x170] sm:$0xff]
      %v2507 = vld [vmem:[#allocation3] sm:$0xff]
      %v2508 = vld [vmem:[#allocation3 + $0x8] sm:$0xff]
      %v2509 = vld [vmem:[#allocation3 + $0x10] sm:$0xff]
      %v2510 = vld [vmem:[#allocation3 + $0x18] sm:$0xff]
      %v2511 = vld [vmem:[#allocation3 + $0x20] sm:$0xff]
      %v2512 = vld [vmem:[#allocation3 + $0x28] sm:$0xff]
      %v2513 = vld [vmem:[#allocation3 + $0x30] sm:$0xff]
      %v2514 = vld [vmem:[#allocation3 + $0x38] sm:$0xff]
      %v2515 = vld [vmem:[#allocation3 + $0x40] sm:$0xff]
      %v2516 = vld [vmem:[#allocation3 + $0x48] sm:$0xff]
      %v2517 = vld [vmem:[#allocation3 + $0x50] sm:$0xff]
      %v2518 = vld [vmem:[#allocation3 + $0x58] sm:$0xff]
      %v2519 = vld [vmem:[#allocation3 + $0x60] sm:$0xff]
      %v2520 = vld [vmem:[#allocation3 + $0x68] sm:$0xff]
      %v2521 = vld [vmem:[#allocation3 + $0x70] sm:$0xff]
      %v2522 = vld [vmem:[#allocation3 + $0x78] sm:$0xff]
      %v2523 = vld [vmem:[#allocation3 + $0x80] sm:$0xff]
      %v2524 = vld [vmem:[#allocation3 + $0x88] sm:$0xff]
      %v2525 = vld [vmem:[#allocation3 + $0x90] sm:$0xff]
      %v2526 = vld [vmem:[#allocation3 + $0x98] sm:$0xff]
      %v2527 = vld [vmem:[#allocation3 + $0xa0] sm:$0xff]
      %v2528 = vld [vmem:[#allocation3 + $0xa8] sm:$0xff]
      %v2529 = vld [vmem:[#allocation3 + $0xb0] sm:$0xff]
      %v2530 = vld [vmem:[#allocation3 + $0xb8] sm:$0xff]
      %v2531 = vld [vmem:[#allocation3 + $0xc0] sm:$0xff]
      %v2532 = vld [vmem:[#allocation3 + $0xc8] sm:$0xff]
      %v2533 = vld [vmem:[#allocation3 + $0xd0] sm:$0xff]
      %v2534 = vld [vmem:[#allocation3 + $0xd8] sm:$0xff]
      %v2535 = vld [vmem:[#allocation3 + $0xe0] sm:$0xff]
      %v2536 = vld [vmem:[#allocation3 + $0xe8] sm:$0xff]
      %v2537 = vld [vmem:[#allocation3 + $0xf0] sm:$0xff]
      %v2538 = vld [vmem:[#allocation3 + $0xf8] sm:$0xff]
      %s2539 = scalar_lea.vmem %s1, 24
      %v2540 = vld [vmem:[%s2539] sm:$0xf]
      %v2542 = vsel %vm301, %v2475, 0
      %v2545 = vsel %vm301, %v2476, 0
      %v2548 = vsel %vm301, %v2477, 0
      %v2551 = vsel %vm301, %v2478, 0
      %v2554 = vsel %vm301, %v2479, 0
      %v2557 = vsel %vm301, %v2480, 0
      %v2560 = vsel %vm301, %v2481, 0
      %v2563 = vsel %vm301, %v2482, 0
      %v2566 = vsel %vm301, %v2483, 0
      %v2569 = vsel %vm301, %v2484, 0
      %v2572 = vsel %vm301, %v2485, 0
      %v2575 = vsel %vm301, %v2486, 0
      %v2578 = vsel %vm301, %v2487, 0
      %v2581 = vsel %vm301, %v2488, 0
      %v2584 = vsel %vm301, %v2489, 0
      %v2587 = vsel %vm301, %v2490, 0
      %v2590 = vsel %vm301, %v2491, 0
      %v2593 = vsel %vm301, %v2492, 0
      %v2596 = vsel %vm301, %v2493, 0
      %v2599 = vsel %vm301, %v2494, 0
      %v2602 = vsel %vm301, %v2495, 0
      %v2605 = vsel %vm301, %v2496, 0
      %v2608 = vsel %vm301, %v2497, 0
      %v2611 = vsel %vm301, %v2498, 0
      %v2614 = vsel %vm301, %v2499, 0
      %v2617 = vsel %vm301, %v2500, 0
      %v2620 = vsel %vm301, %v2501, 0
      %v2623 = vsel %vm301, %v2502, 0
      %v2626 = vsel %vm301, %v2503, 0
      %v2629 = vsel %vm301, %v2504, 0
      %v2632 = vsel %vm301, %v2505, 0
      %v2635 = vsel %vm301, %v2506, 0
      %v2638 = vsel %vm583, %v2540, 0
      %2640 = vmatpush.msra.mxu0 0.0
      %2641 = vmatpush.msra.mxu0 0.0
      %2642 = vmatpush.msra.mxu0 0.0
      %2643 = vmatpush.msra.mxu0 0.0
      %2644 = vmatpush.msra.mxu0 0.0
      %2645 = vmatpush.msra.mxu0 0.0
      %2646 = vmatpush.msra.mxu0 0.0
      %2647 = vmatpush.msra.mxu0 0.0
      %2648 = vmatpush.msra.mxu0 0.0
      %2649 = vmatpush.msra.mxu0 0.0
      %2650 = vmatpush.msra.mxu0 0.0
      %2651 = vmatpush.msra.mxu0 0.0
      %2652 = vmatpush.msra.mxu0 0.0
      %2653 = vmatpush.msra.mxu0 0.0
      %2654 = vmatpush.msra.mxu0 0.0
      %2655 = vmatpush.msra.mxu0 %v2638
      %2656 = vmatmul.f32.gmra.mxu0 %v2542
      %v2657 = vpop.f32.mrf.mxu0
      %v2658 = vadd.f32 0.0, %v2657
      %2659 = vmatmul.f32.gmra.mxu0 %v2545
      %v2660 = vpop.f32.mrf.mxu0
      %v2661 = vadd.f32 0.0, %v2660
      %2662 = vmatmul.f32.gmra.mxu0 %v2548
      %v2663 = vpop.f32.mrf.mxu0
      %v2664 = vadd.f32 0.0, %v2663
      %2665 = vmatmul.f32.gmra.mxu0 %v2551
      %v2666 = vpop.f32.mrf.mxu0
      %v2667 = vadd.f32 0.0, %v2666
      %2668 = vmatmul.f32.gmra.mxu0 %v2554
      %v2669 = vpop.f32.mrf.mxu0
      %v2670 = vadd.f32 0.0, %v2669
      %2671 = vmatmul.f32.gmra.mxu0 %v2557
      %v2672 = vpop.f32.mrf.mxu0
      %v2673 = vadd.f32 0.0, %v2672
      %2674 = vmatmul.f32.gmra.mxu0 %v2560
      %v2675 = vpop.f32.mrf.mxu0
      %v2676 = vadd.f32 0.0, %v2675
      %2677 = vmatmul.f32.gmra.mxu0 %v2563
      %v2678 = vpop.f32.mrf.mxu0
      %v2679 = vadd.f32 0.0, %v2678
      %2680 = vmatmul.f32.gmra.mxu0 %v2566
      %v2681 = vpop.f32.mrf.mxu0
      %v2682 = vadd.f32 0.0, %v2681
      %2683 = vmatmul.f32.gmra.mxu0 %v2569
      %v2684 = vpop.f32.mrf.mxu0
      %v2685 = vadd.f32 0.0, %v2684
      %2686 = vmatmul.f32.gmra.mxu0 %v2572
      %v2687 = vpop.f32.mrf.mxu0
      %v2688 = vadd.f32 0.0, %v2687
      %2689 = vmatmul.f32.gmra.mxu0 %v2575
      %v2690 = vpop.f32.mrf.mxu0
      %v2691 = vadd.f32 0.0, %v2690
      %2692 = vmatmul.f32.gmra.mxu0 %v2578
      %v2693 = vpop.f32.mrf.mxu0
      %v2694 = vadd.f32 0.0, %v2693
      %2695 = vmatmul.f32.gmra.mxu0 %v2581
      %v2696 = vpop.f32.mrf.mxu0
      %v2697 = vadd.f32 0.0, %v2696
      %2698 = vmatmul.f32.gmra.mxu0 %v2584
      %v2699 = vpop.f32.mrf.mxu0
      %v2700 = vadd.f32 0.0, %v2699
      %2701 = vmatmul.f32.gmra.mxu0 %v2587
      %v2702 = vpop.f32.mrf.mxu0
      %v2703 = vadd.f32 0.0, %v2702
      %2704 = vmatmul.f32.gmra.mxu0 %v2590
      %v2705 = vpop.f32.mrf.mxu0
      %v2706 = vadd.f32 0.0, %v2705
      %2707 = vmatmul.f32.gmra.mxu0 %v2593
      %v2708 = vpop.f32.mrf.mxu0
      %v2709 = vadd.f32 0.0, %v2708
      %2710 = vmatmul.f32.gmra.mxu0 %v2596
      %v2711 = vpop.f32.mrf.mxu0
      %v2712 = vadd.f32 0.0, %v2711
      %2713 = vmatmul.f32.gmra.mxu0 %v2599
      %v2714 = vpop.f32.mrf.mxu0
      %v2715 = vadd.f32 0.0, %v2714
      %2716 = vmatmul.f32.gmra.mxu0 %v2602
      %v2717 = vpop.f32.mrf.mxu0
      %v2718 = vadd.f32 0.0, %v2717
      %2719 = vmatmul.f32.gmra.mxu0 %v2605
      %v2720 = vpop.f32.mrf.mxu0
      %v2721 = vadd.f32 0.0, %v2720
      %2722 = vmatmul.f32.gmra.mxu0 %v2608
      %v2723 = vpop.f32.mrf.mxu0
      %v2724 = vadd.f32 0.0, %v2723
      %2725 = vmatmul.f32.gmra.mxu0 %v2611
      %v2726 = vpop.f32.mrf.mxu0
      %v2727 = vadd.f32 0.0, %v2726
      %2728 = vmatmul.f32.gmra.mxu0 %v2614
      %v2729 = vpop.f32.mrf.mxu0
      %v2730 = vadd.f32 0.0, %v2729
      %2731 = vmatmul.f32.gmra.mxu0 %v2617
      %v2732 = vpop.f32.mrf.mxu0
      %v2733 = vadd.f32 0.0, %v2732
      %2734 = vmatmul.f32.gmra.mxu0 %v2620
      %v2735 = vpop.f32.mrf.mxu0
      %v2736 = vadd.f32 0.0, %v2735
      %2737 = vmatmul.f32.gmra.mxu0 %v2623
      %v2738 = vpop.f32.mrf.mxu0
      %v2739 = vadd.f32 0.0, %v2738
      %2740 = vmatmul.f32.gmra.mxu0 %v2626
      %v2741 = vpop.f32.mrf.mxu0
      %v2742 = vadd.f32 0.0, %v2741
      %2743 = vmatmul.f32.gmra.mxu0 %v2629
      %v2744 = vpop.f32.mrf.mxu0
      %v2745 = vadd.f32 0.0, %v2744
      %2746 = vmatmul.f32.gmra.mxu0 %v2632
      %v2747 = vpop.f32.mrf.mxu0
      %v2748 = vadd.f32 0.0, %v2747
      %2749 = vmatmul.f32.gmra.mxu0 %v2635
      %v2750 = vpop.f32.mrf.mxu0
      %v2751 = vadd.f32 0.0, %v2750
      %2752 = vdwg.mxu0
      %v2753 = vadd.f32 %v2507, %v2658
      %v2754 = vadd.f32 %v2508, %v2661
      %v2755 = vadd.f32 %v2509, %v2664
      %v2756 = vadd.f32 %v2510, %v2667
      %v2757 = vadd.f32 %v2511, %v2670
      %v2758 = vadd.f32 %v2512, %v2673
      %v2759 = vadd.f32 %v2513, %v2676
      %v2760 = vadd.f32 %v2514, %v2679
      %v2761 = vadd.f32 %v2515, %v2682
      %v2762 = vadd.f32 %v2516, %v2685
      %v2763 = vadd.f32 %v2517, %v2688
      %v2764 = vadd.f32 %v2518, %v2691
      %v2765 = vadd.f32 %v2519, %v2694
      %v2766 = vadd.f32 %v2520, %v2697
      %v2767 = vadd.f32 %v2521, %v2700
      %v2768 = vadd.f32 %v2522, %v2703
      %v2769 = vadd.f32 %v2523, %v2706
      %v2770 = vadd.f32 %v2524, %v2709
      %v2771 = vadd.f32 %v2525, %v2712
      %v2772 = vadd.f32 %v2526, %v2715
      %v2773 = vadd.f32 %v2527, %v2718
      %v2774 = vadd.f32 %v2528, %v2721
      %v2775 = vadd.f32 %v2529, %v2724
      %v2776 = vadd.f32 %v2530, %v2727
      %v2777 = vadd.f32 %v2531, %v2730
      %v2778 = vadd.f32 %v2532, %v2733
      %v2779 = vadd.f32 %v2533, %v2736
      %v2780 = vadd.f32 %v2534, %v2739
      %v2781 = vadd.f32 %v2535, %v2742
      %v2782 = vadd.f32 %v2536, %v2745
      %v2783 = vadd.f32 %v2537, %v2748
      %v2784 = vadd.f32 %v2538, %v2751
      %2785 = vst [vmem:[#allocation3] sm:$0xff] %v2753
      %2786 = vst [vmem:[#allocation3 + $0x8] sm:$0xff] %v2754
      %2787 = vst [vmem:[#allocation3 + $0x10] sm:$0xff] %v2755
      %2788 = vst [vmem:[#allocation3 + $0x18] sm:$0xff] %v2756
      %2789 = vst [vmem:[#allocation3 + $0x20] sm:$0xff] %v2757
      %2790 = vst [vmem:[#allocation3 + $0x28] sm:$0xff] %v2758
      %2791 = vst [vmem:[#allocation3 + $0x30] sm:$0xff] %v2759
      %2792 = vst [vmem:[#allocation3 + $0x38] sm:$0xff] %v2760
      %2793 = vst [vmem:[#allocation3 + $0x40] sm:$0xff] %v2761
      %2794 = vst [vmem:[#allocation3 + $0x48] sm:$0xff] %v2762
      %2795 = vst [vmem:[#allocation3 + $0x50] sm:$0xff] %v2763
      %2796 = vst [vmem:[#allocation3 + $0x58] sm:$0xff] %v2764
      %2797 = vst [vmem:[#allocation3 + $0x60] sm:$0xff] %v2765
      %2798 = vst [vmem:[#allocation3 + $0x68] sm:$0xff] %v2766
      %2799 = vst [vmem:[#allocation3 + $0x70] sm:$0xff] %v2767
      %2800 = vst [vmem:[#allocation3 + $0x78] sm:$0xff] %v2768
      %2801 = vst [vmem:[#allocation3 + $0x80] sm:$0xff] %v2769
      %2802 = vst [vmem:[#allocation3 + $0x88] sm:$0xff] %v2770
      %2803 = vst [vmem:[#allocation3 + $0x90] sm:$0xff] %v2771
      %2804 = vst [vmem:[#allocation3 + $0x98] sm:$0xff] %v2772
      %2805 = vst [vmem:[#allocation3 + $0xa0] sm:$0xff] %v2773
      %2806 = vst [vmem:[#allocation3 + $0xa8] sm:$0xff] %v2774
      %2807 = vst [vmem:[#allocation3 + $0xb0] sm:$0xff] %v2775
      %2808 = vst [vmem:[#allocation3 + $0xb8] sm:$0xff] %v2776
      %2809 = vst [vmem:[#allocation3 + $0xc0] sm:$0xff] %v2777
      %2810 = vst [vmem:[#allocation3 + $0xc8] sm:$0xff] %v2778
      %2811 = vst [vmem:[#allocation3 + $0xd0] sm:$0xff] %v2779
      %2812 = vst [vmem:[#allocation3 + $0xd8] sm:$0xff] %v2780
      %2813 = vst [vmem:[#allocation3 + $0xe0] sm:$0xff] %v2781
      %2814 = vst [vmem:[#allocation3 + $0xe8] sm:$0xff] %v2782
      %2815 = vst [vmem:[#allocation3 + $0xf0] sm:$0xff] %v2783
      %2816 = vst [vmem:[#allocation3 + $0xf8] sm:$0xff] %v2784
      %v2817 = vld [vmem:[%s2474 + $0x1] sm:$0xff]
      %v2818 = vld [vmem:[%s2474 + $0x9] sm:$0xff]
      %v2819 = vld [vmem:[%s2474 + $0x19] sm:$0xff]
      %v2820 = vld [vmem:[%s2474 + $0x21] sm:$0xff]
      %v2821 = vld [vmem:[%s2474 + $0x31] sm:$0xff]
      %v2822 = vld [vmem:[%s2474 + $0x39] sm:$0xff]
      %v2823 = vld [vmem:[%s2474 + $0x49] sm:$0xff]
      %v2824 = vld [vmem:[%s2474 + $0x51] sm:$0xff]
      %v2825 = vld [vmem:[%s2474 + $0x61] sm:$0xff]
      %v2826 = vld [vmem:[%s2474 + $0x69] sm:$0xff]
      %v2827 = vld [vmem:[%s2474 + $0x79] sm:$0xff]
      %v2828 = vld [vmem:[%s2474 + $0x81] sm:$0xff]
      %v2829 = vld [vmem:[%s2474 + $0x91] sm:$0xff]
      %v2830 = vld [vmem:[%s2474 + $0x99] sm:$0xff]
      %v2831 = vld [vmem:[%s2474 + $0xa9] sm:$0xff]
      %v2832 = vld [vmem:[%s2474 + $0xb1] sm:$0xff]
      %v2833 = vld [vmem:[%s2474 + $0xc1] sm:$0xff]
      %v2834 = vld [vmem:[%s2474 + $0xc9] sm:$0xff]
      %v2835 = vld [vmem:[%s2474 + $0xd9] sm:$0xff]
      %v2836 = vld [vmem:[%s2474 + $0xe1] sm:$0xff]
      %v2837 = vld [vmem:[%s2474 + $0xf1] sm:$0xff]
      %v2838 = vld [vmem:[%s2474 + $0xf9] sm:$0xff]
      %v2839 = vld [vmem:[%s2474 + $0x109] sm:$0xff]
      %v2840 = vld [vmem:[%s2474 + $0x111] sm:$0xff]
      %v2841 = vld [vmem:[%s2474 + $0x121] sm:$0xff]
      %v2842 = vld [vmem:[%s2474 + $0x129] sm:$0xff]
      %v2843 = vld [vmem:[%s2474 + $0x139] sm:$0xff]
      %v2844 = vld [vmem:[%s2474 + $0x141] sm:$0xff]
      %v2845 = vld [vmem:[%s2474 + $0x151] sm:$0xff]
      %v2846 = vld [vmem:[%s2474 + $0x159] sm:$0xff]
      %v2847 = vld [vmem:[%s2474 + $0x169] sm:$0xff]
      %v2848 = vld [vmem:[%s2474 + $0x171] sm:$0xff]
      %v2849 = vld [vmem:[#allocation3] sm:$0xff]
      %v2850 = vld [vmem:[#allocation3 + $0x8] sm:$0xff]
      %v2851 = vld [vmem:[#allocation3 + $0x10] sm:$0xff]
      %v2852 = vld [vmem:[#allocation3 + $0x18] sm:$0xff]
      %v2853 = vld [vmem:[#allocation3 + $0x20] sm:$0xff]
      %v2854 = vld [vmem:[#allocation3 + $0x28] sm:$0xff]
      %v2855 = vld [vmem:[#allocation3 + $0x30] sm:$0xff]
      %v2856 = vld [vmem:[#allocation3 + $0x38] sm:$0xff]
      %v2857 = vld [vmem:[#allocation3 + $0x40] sm:$0xff]
      %v2858 = vld [vmem:[#allocation3 + $0x48] sm:$0xff]
      %v2859 = vld [vmem:[#allocation3 + $0x50] sm:$0xff]
      %v2860 = vld [vmem:[#allocation3 + $0x58] sm:$0xff]
      %v2861 = vld [vmem:[#allocation3 + $0x60] sm:$0xff]
      %v2862 = vld [vmem:[#allocation3 + $0x68] sm:$0xff]
      %v2863 = vld [vmem:[#allocation3 + $0x70] sm:$0xff]
      %v2864 = vld [vmem:[#allocation3 + $0x78] sm:$0xff]
      %v2865 = vld [vmem:[#allocation3 + $0x80] sm:$0xff]
      %v2866 = vld [vmem:[#allocation3 + $0x88] sm:$0xff]
      %v2867 = vld [vmem:[#allocation3 + $0x90] sm:$0xff]
      %v2868 = vld [vmem:[#allocation3 + $0x98] sm:$0xff]
      %v2869 = vld [vmem:[#allocation3 + $0xa0] sm:$0xff]
      %v2870 = vld [vmem:[#allocation3 + $0xa8] sm:$0xff]
      %v2871 = vld [vmem:[#allocation3 + $0xb0] sm:$0xff]
      %v2872 = vld [vmem:[#allocation3 + $0xb8] sm:$0xff]
      %v2873 = vld [vmem:[#allocation3 + $0xc0] sm:$0xff]
      %v2874 = vld [vmem:[#allocation3 + $0xc8] sm:$0xff]
      %v2875 = vld [vmem:[#allocation3 + $0xd0] sm:$0xff]
      %v2876 = vld [vmem:[#allocation3 + $0xd8] sm:$0xff]
      %v2877 = vld [vmem:[#allocation3 + $0xe0] sm:$0xff]
      %v2878 = vld [vmem:[#allocation3 + $0xe8] sm:$0xff]
      %v2879 = vld [vmem:[#allocation3 + $0xf0] sm:$0xff]
      %v2880 = vld [vmem:[#allocation3 + $0xf8] sm:$0xff]
      %s2881 = scalar_lea.vmem %s1, 28
      %v2882 = vld [vmem:[%s2881] sm:$0xf]
      %v2884 = vsel %vm301, %v2817, 0
      %v2887 = vsel %vm301, %v2818, 0
      %v2890 = vsel %vm301, %v2819, 0
      %v2893 = vsel %vm301, %v2820, 0
      %v2896 = vsel %vm301, %v2821, 0
      %v2899 = vsel %vm301, %v2822, 0
      %v2902 = vsel %vm301, %v2823, 0
      %v2905 = vsel %vm301, %v2824, 0
      %v2908 = vsel %vm301, %v2825, 0
      %v2911 = vsel %vm301, %v2826, 0
      %v2914 = vsel %vm301, %v2827, 0
      %v2917 = vsel %vm301, %v2828, 0
      %v2920 = vsel %vm301, %v2829, 0
      %v2923 = vsel %vm301, %v2830, 0
      %v2926 = vsel %vm301, %v2831, 0
      %v2929 = vsel %vm301, %v2832, 0
      %v2932 = vsel %vm301, %v2833, 0
      %v2935 = vsel %vm301, %v2834, 0
      %v2938 = vsel %vm301, %v2835, 0
      %v2941 = vsel %vm301, %v2836, 0
      %v2944 = vsel %vm301, %v2837, 0
      %v2947 = vsel %vm301, %v2838, 0
      %v2950 = vsel %vm301, %v2839, 0
      %v2953 = vsel %vm301, %v2840, 0
      %v2956 = vsel %vm301, %v2841, 0
      %v2959 = vsel %vm301, %v2842, 0
      %v2962 = vsel %vm301, %v2843, 0
      %v2965 = vsel %vm301, %v2844, 0
      %v2968 = vsel %vm301, %v2845, 0
      %v2971 = vsel %vm301, %v2846, 0
      %v2974 = vsel %vm301, %v2847, 0
      %v2977 = vsel %vm301, %v2848, 0
      %v2980 = vsel %vm583, %v2882, 0
      %2982 = vmatpush.msra.mxu0 0.0
      %2983 = vmatpush.msra.mxu0 0.0
      %2984 = vmatpush.msra.mxu0 0.0
      %2985 = vmatpush.msra.mxu0 0.0
      %2986 = vmatpush.msra.mxu0 0.0
      %2987 = vmatpush.msra.mxu0 0.0
      %2988 = vmatpush.msra.mxu0 0.0
      %2989 = vmatpush.msra.mxu0 0.0
      %2990 = vmatpush.msra.mxu0 0.0
      %2991 = vmatpush.msra.mxu0 0.0
      %2992 = vmatpush.msra.mxu0 0.0
      %2993 = vmatpush.msra.mxu0 0.0
      %2994 = vmatpush.msra.mxu0 0.0
      %2995 = vmatpush.msra.mxu0 0.0
      %2996 = vmatpush.msra.mxu0 0.0
      %2997 = vmatpush.msra.mxu0 %v2980
      %2998 = vmatmul.f32.gmra.mxu0 %v2884
      %v2999 = vpop.f32.mrf.mxu0
      %v3000 = vadd.f32 0.0, %v2999
      %3001 = vmatmul.f32.gmra.mxu0 %v2887
      %v3002 = vpop.f32.mrf.mxu0
      %v3003 = vadd.f32 0.0, %v3002
      %3004 = vmatmul.f32.gmra.mxu0 %v2890
      %v3005 = vpop.f32.mrf.mxu0
      %v3006 = vadd.f32 0.0, %v3005
      %3007 = vmatmul.f32.gmra.mxu0 %v2893
      %v3008 = vpop.f32.mrf.mxu0
      %v3009 = vadd.f32 0.0, %v3008
      %3010 = vmatmul.f32.gmra.mxu0 %v2896
      %v3011 = vpop.f32.mrf.mxu0
      %v3012 = vadd.f32 0.0, %v3011
      %3013 = vmatmul.f32.gmra.mxu0 %v2899
      %v3014 = vpop.f32.mrf.mxu0
      %v3015 = vadd.f32 0.0, %v3014
      %3016 = vmatmul.f32.gmra.mxu0 %v2902
      %v3017 = vpop.f32.mrf.mxu0
      %v3018 = vadd.f32 0.0, %v3017
      %3019 = vmatmul.f32.gmra.mxu0 %v2905
      %v3020 = vpop.f32.mrf.mxu0
      %v3021 = vadd.f32 0.0, %v3020
      %3022 = vmatmul.f32.gmra.mxu0 %v2908
      %v3023 = vpop.f32.mrf.mxu0
      %v3024 = vadd.f32 0.0, %v3023
      %3025 = vmatmul.f32.gmra.mxu0 %v2911
      %v3026 = vpop.f32.mrf.mxu0
      %v3027 = vadd.f32 0.0, %v3026
      %3028 = vmatmul.f32.gmra.mxu0 %v2914
      %v3029 = vpop.f32.mrf.mxu0
      %v3030 = vadd.f32 0.0, %v3029
      %3031 = vmatmul.f32.gmra.mxu0 %v2917
      %v3032 = vpop.f32.mrf.mxu0
      %v3033 = vadd.f32 0.0, %v3032
      %3034 = vmatmul.f32.gmra.mxu0 %v2920
      %v3035 = vpop.f32.mrf.mxu0
      %v3036 = vadd.f32 0.0, %v3035
      %3037 = vmatmul.f32.gmra.mxu0 %v2923
      %v3038 = vpop.f32.mrf.mxu0
      %v3039 = vadd.f32 0.0, %v3038
      %3040 = vmatmul.f32.gmra.mxu0 %v2926
      %v3041 = vpop.f32.mrf.mxu0
      %v3042 = vadd.f32 0.0, %v3041
      %3043 = vmatmul.f32.gmra.mxu0 %v2929
      %v3044 = vpop.f32.mrf.mxu0
      %v3045 = vadd.f32 0.0, %v3044
      %3046 = vmatmul.f32.gmra.mxu0 %v2932
      %v3047 = vpop.f32.mrf.mxu0
      %v3048 = vadd.f32 0.0, %v3047
      %3049 = vmatmul.f32.gmra.mxu0 %v2935
      %v3050 = vpop.f32.mrf.mxu0
      %v3051 = vadd.f32 0.0, %v3050
      %3052 = vmatmul.f32.gmra.mxu0 %v2938
      %v3053 = vpop.f32.mrf.mxu0
      %v3054 = vadd.f32 0.0, %v3053
      %3055 = vmatmul.f32.gmra.mxu0 %v2941
      %v3056 = vpop.f32.mrf.mxu0
      %v3057 = vadd.f32 0.0, %v3056
      %3058 = vmatmul.f32.gmra.mxu0 %v2944
      %v3059 = vpop.f32.mrf.mxu0
      %v3060 = vadd.f32 0.0, %v3059
      %3061 = vmatmul.f32.gmra.mxu0 %v2947
      %v3062 = vpop.f32.mrf.mxu0
      %v3063 = vadd.f32 0.0, %v3062
      %3064 = vmatmul.f32.gmra.mxu0 %v2950
      %v3065 = vpop.f32.mrf.mxu0
      %v3066 = vadd.f32 0.0, %v3065
      %3067 = vmatmul.f32.gmra.mxu0 %v2953
      %v3068 = vpop.f32.mrf.mxu0
      %v3069 = vadd.f32 0.0, %v3068
      %3070 = vmatmul.f32.gmra.mxu0 %v2956
      %v3071 = vpop.f32.mrf.mxu0
      %v3072 = vadd.f32 0.0, %v3071
      %3073 = vmatmul.f32.gmra.mxu0 %v2959
      %v3074 = vpop.f32.mrf.mxu0
      %v3075 = vadd.f32 0.0, %v3074
      %3076 = vmatmul.f32.gmra.mxu0 %v2962
      %v3077 = vpop.f32.mrf.mxu0
      %v3078 = vadd.f32 0.0, %v3077
      %3079 = vmatmul.f32.gmra.mxu0 %v2965
      %v3080 = vpop.f32.mrf.mxu0
      %v3081 = vadd.f32 0.0, %v3080
      %3082 = vmatmul.f32.gmra.mxu0 %v2968
      %v3083 = vpop.f32.mrf.mxu0
      %v3084 = vadd.f32 0.0, %v3083
      %3085 = vmatmul.f32.gmra.mxu0 %v2971
      %v3086 = vpop.f32.mrf.mxu0
      %v3087 = vadd.f32 0.0, %v3086
      %3088 = vmatmul.f32.gmra.mxu0 %v2974
      %v3089 = vpop.f32.mrf.mxu0
      %v3090 = vadd.f32 0.0, %v3089
      %3091 = vmatmul.f32.gmra.mxu0 %v2977
      %v3092 = vpop.f32.mrf.mxu0
      %v3093 = vadd.f32 0.0, %v3092
      %3094 = vdwg.mxu0
      %v3095 = vadd.f32 %v2849, %v3000
      %v3096 = vadd.f32 %v2850, %v3003
      %v3097 = vadd.f32 %v2851, %v3006
      %v3098 = vadd.f32 %v2852, %v3009
      %v3099 = vadd.f32 %v2853, %v3012
      %v3100 = vadd.f32 %v2854, %v3015
      %v3101 = vadd.f32 %v2855, %v3018
      %v3102 = vadd.f32 %v2856, %v3021
      %v3103 = vadd.f32 %v2857, %v3024
      %v3104 = vadd.f32 %v2858, %v3027
      %v3105 = vadd.f32 %v2859, %v3030
      %v3106 = vadd.f32 %v2860, %v3033
      %v3107 = vadd.f32 %v2861, %v3036
      %v3108 = vadd.f32 %v2862, %v3039
      %v3109 = vadd.f32 %v2863, %v3042
      %v3110 = vadd.f32 %v2864, %v3045
      %v3111 = vadd.f32 %v2865, %v3048
      %v3112 = vadd.f32 %v2866, %v3051
      %v3113 = vadd.f32 %v2867, %v3054
      %v3114 = vadd.f32 %v2868, %v3057
      %v3115 = vadd.f32 %v2869, %v3060
      %v3116 = vadd.f32 %v2870, %v3063
      %v3117 = vadd.f32 %v2871, %v3066
      %v3118 = vadd.f32 %v2872, %v3069
      %v3119 = vadd.f32 %v2873, %v3072
      %v3120 = vadd.f32 %v2874, %v3075
      %v3121 = vadd.f32 %v2875, %v3078
      %v3122 = vadd.f32 %v2876, %v3081
      %v3123 = vadd.f32 %v2877, %v3084
      %v3124 = vadd.f32 %v2878, %v3087
      %v3125 = vadd.f32 %v2879, %v3090
      %v3126 = vadd.f32 %v2880, %v3093
      %3127 = vst [vmem:[#allocation3] sm:$0xff] %v3095
      %3128 = vst [vmem:[#allocation3 + $0x8] sm:$0xff] %v3096
      %3129 = vst [vmem:[#allocation3 + $0x10] sm:$0xff] %v3097
      %3130 = vst [vmem:[#allocation3 + $0x18] sm:$0xff] %v3098
      %3131 = vst [vmem:[#allocation3 + $0x20] sm:$0xff] %v3099
      %3132 = vst [vmem:[#allocation3 + $0x28] sm:$0xff] %v3100
      %3133 = vst [vmem:[#allocation3 + $0x30] sm:$0xff] %v3101
      %3134 = vst [vmem:[#allocation3 + $0x38] sm:$0xff] %v3102
      %3135 = vst [vmem:[#allocation3 + $0x40] sm:$0xff] %v3103
      %3136 = vst [vmem:[#allocation3 + $0x48] sm:$0xff] %v3104
      %3137 = vst [vmem:[#allocation3 + $0x50] sm:$0xff] %v3105
      %3138 = vst [vmem:[#allocation3 + $0x58] sm:$0xff] %v3106
      %3139 = vst [vmem:[#allocation3 + $0x60] sm:$0xff] %v3107
      %3140 = vst [vmem:[#allocation3 + $0x68] sm:$0xff] %v3108
      %3141 = vst [vmem:[#allocation3 + $0x70] sm:$0xff] %v3109
      %3142 = vst [vmem:[#allocation3 + $0x78] sm:$0xff] %v3110
      %3143 = vst [vmem:[#allocation3 + $0x80] sm:$0xff] %v3111
      %3144 = vst [vmem:[#allocation3 + $0x88] sm:$0xff] %v3112
      %3145 = vst [vmem:[#allocation3 + $0x90] sm:$0xff] %v3113
      %3146 = vst [vmem:[#allocation3 + $0x98] sm:$0xff] %v3114
      %3147 = vst [vmem:[#allocation3 + $0xa0] sm:$0xff] %v3115
      %3148 = vst [vmem:[#allocation3 + $0xa8] sm:$0xff] %v3116
      %3149 = vst [vmem:[#allocation3 + $0xb0] sm:$0xff] %v3117
      %3150 = vst [vmem:[#allocation3 + $0xb8] sm:$0xff] %v3118
      %3151 = vst [vmem:[#allocation3 + $0xc0] sm:$0xff] %v3119
      %3152 = vst [vmem:[#allocation3 + $0xc8] sm:$0xff] %v3120
      %3153 = vst [vmem:[#allocation3 + $0xd0] sm:$0xff] %v3121
      %3154 = vst [vmem:[#allocation3 + $0xd8] sm:$0xff] %v3122
      %3155 = vst [vmem:[#allocation3 + $0xe0] sm:$0xff] %v3123
      %3156 = vst [vmem:[#allocation3 + $0xe8] sm:$0xff] %v3124
      %3157 = vst [vmem:[#allocation3 + $0xf0] sm:$0xff] %v3125
      %3158 = vst [vmem:[#allocation3 + $0xf8] sm:$0xff] %v3126
      %v3159 = vld [vmem:[%s2474 + $0x2] sm:$0xff]
      %v3160 = vld [vmem:[%s2474 + $0xa] sm:$0xff]
      %v3161 = vld [vmem:[%s2474 + $0x1a] sm:$0xff]
      %v3162 = vld [vmem:[%s2474 + $0x22] sm:$0xff]
      %v3163 = vld [vmem:[%s2474 + $0x32] sm:$0xff]
      %v3164 = vld [vmem:[%s2474 + $0x3a] sm:$0xff]
      %v3165 = vld [vmem:[%s2474 + $0x4a] sm:$0xff]
      %v3166 = vld [vmem:[%s2474 + $0x52] sm:$0xff]
      %v3167 = vld [vmem:[%s2474 + $0x62] sm:$0xff]
      %v3168 = vld [vmem:[%s2474 + $0x6a] sm:$0xff]
      %v3169 = vld [vmem:[%s2474 + $0x7a] sm:$0xff]
      %v3170 = vld [vmem:[%s2474 + $0x82] sm:$0xff]
      %v3171 = vld [vmem:[%s2474 + $0x92] sm:$0xff]
      %v3172 = vld [vmem:[%s2474 + $0x9a] sm:$0xff]
      %v3173 = vld [vmem:[%s2474 + $0xaa] sm:$0xff]
      %v3174 = vld [vmem:[%s2474 + $0xb2] sm:$0xff]
      %v3175 = vld [vmem:[%s2474 + $0xc2] sm:$0xff]
      %v3176 = vld [vmem:[%s2474 + $0xca] sm:$0xff]
      %v3177 = vld [vmem:[%s2474 + $0xda] sm:$0xff]
      %v3178 = vld [vmem:[%s2474 + $0xe2] sm:$0xff]
      %v3179 = vld [vmem:[%s2474 + $0xf2] sm:$0xff]
      %v3180 = vld [vmem:[%s2474 + $0xfa] sm:$0xff]
      %v3181 = vld [vmem:[%s2474 + $0x10a] sm:$0xff]
      %v3182 = vld [vmem:[%s2474 + $0x112] sm:$0xff]
      %v3183 = vld [vmem:[%s2474 + $0x122] sm:$0xff]
      %v3184 = vld [vmem:[%s2474 + $0x12a] sm:$0xff]
      %v3185 = vld [vmem:[%s2474 + $0x13a] sm:$0xff]
      %v3186 = vld [vmem:[%s2474 + $0x142] sm:$0xff]
      %v3187 = vld [vmem:[%s2474 + $0x152] sm:$0xff]
      %v3188 = vld [vmem:[%s2474 + $0x15a] sm:$0xff]
      %v3189 = vld [vmem:[%s2474 + $0x16a] sm:$0xff]
      %v3190 = vld [vmem:[%s2474 + $0x172] sm:$0xff]
      %v3191 = vld [vmem:[#allocation3] sm:$0xff]
      %v3192 = vld [vmem:[#allocation3 + $0x8] sm:$0xff]
      %v3193 = vld [vmem:[#allocation3 + $0x10] sm:$0xff]
      %v3194 = vld [vmem:[#allocation3 + $0x18] sm:$0xff]
      %v3195 = vld [vmem:[#allocation3 + $0x20] sm:$0xff]
      %v3196 = vld [vmem:[#allocation3 + $0x28] sm:$0xff]
      %v3197 = vld [vmem:[#allocation3 + $0x30] sm:$0xff]
      %v3198 = vld [vmem:[#allocation3 + $0x38] sm:$0xff]
      %v3199 = vld [vmem:[#allocation3 + $0x40] sm:$0xff]
      %v3200 = vld [vmem:[#allocation3 + $0x48] sm:$0xff]
      %v3201 = vld [vmem:[#allocation3 + $0x50] sm:$0xff]
      %v3202 = vld [vmem:[#allocation3 + $0x58] sm:$0xff]
      %v3203 = vld [vmem:[#allocation3 + $0x60] sm:$0xff]
      %v3204 = vld [vmem:[#allocation3 + $0x68] sm:$0xff]
      %v3205 = vld [vmem:[#allocation3 + $0x70] sm:$0xff]
      %v3206 = vld [vmem:[#allocation3 + $0x78] sm:$0xff]
      %v3207 = vld [vmem:[#allocation3 + $0x80] sm:$0xff]
      %v3208 = vld [vmem:[#allocation3 + $0x88] sm:$0xff]
      %v3209 = vld [vmem:[#allocation3 + $0x90] sm:$0xff]
      %v3210 = vld [vmem:[#allocation3 + $0x98] sm:$0xff]
      %v3211 = vld [vmem:[#allocation3 + $0xa0] sm:$0xff]
      %v3212 = vld [vmem:[#allocation3 + $0xa8] sm:$0xff]
      %v3213 = vld [vmem:[#allocation3 + $0xb0] sm:$0xff]
      %v3214 = vld [vmem:[#allocation3 + $0xb8] sm:$0xff]
      %v3215 = vld [vmem:[#allocation3 + $0xc0] sm:$0xff]
      %v3216 = vld [vmem:[#allocation3 + $0xc8] sm:$0xff]
      %v3217 = vld [vmem:[#allocation3 + $0xd0] sm:$0xff]
      %v3218 = vld [vmem:[#allocation3 + $0xd8] sm:$0xff]
      %v3219 = vld [vmem:[#allocation3 + $0xe0] sm:$0xff]
      %v3220 = vld [vmem:[#allocation3 + $0xe8] sm:$0xff]
      %v3221 = vld [vmem:[#allocation3 + $0xf0] sm:$0xff]
      %v3222 = vld [vmem:[#allocation3 + $0xf8] sm:$0xff]
      %s3223 = scalar_lea.vmem %s1, 32
      %v3224 = vld [vmem:[%s3223] sm:$0xf]
      %v3226 = vsel %vm301, %v3159, 0
      %v3229 = vsel %vm301, %v3160, 0
      %v3232 = vsel %vm301, %v3161, 0
      %v3235 = vsel %vm301, %v3162, 0
      %v3238 = vsel %vm301, %v3163, 0
      %v3241 = vsel %vm301, %v3164, 0
      %v3244 = vsel %vm301, %v3165, 0
      %v3247 = vsel %vm301, %v3166, 0
      %v3250 = vsel %vm301, %v3167, 0
      %v3253 = vsel %vm301, %v3168, 0
      %v3256 = vsel %vm301, %v3169, 0
      %v3259 = vsel %vm301, %v3170, 0
      %v3262 = vsel %vm301, %v3171, 0
      %v3265 = vsel %vm301, %v3172, 0
      %v3268 = vsel %vm301, %v3173, 0
      %v3271 = vsel %vm301, %v3174, 0
      %v3274 = vsel %vm301, %v3175, 0
      %v3277 = vsel %vm301, %v3176, 0
      %v3280 = vsel %vm301, %v3177, 0
      %v3283 = vsel %vm301, %v3178, 0
      %v3286 = vsel %vm301, %v3179, 0
      %v3289 = vsel %vm301, %v3180, 0
      %v3292 = vsel %vm301, %v3181, 0
      %v3295 = vsel %vm301, %v3182, 0
      %v3298 = vsel %vm301, %v3183, 0
      %v3301 = vsel %vm301, %v3184, 0
      %v3304 = vsel %vm301, %v3185, 0
      %v3307 = vsel %vm301, %v3186, 0
      %v3310 = vsel %vm301, %v3187, 0
      %v3313 = vsel %vm301, %v3188, 0
      %v3316 = vsel %vm301, %v3189, 0
      %v3319 = vsel %vm301, %v3190, 0
      %v3322 = vsel %vm583, %v3224, 0
      %3324 = vmatpush.msra.mxu0 0.0
      %3325 = vmatpush.msra.mxu0 0.0
      %3326 = vmatpush.msra.mxu0 0.0
      %3327 = vmatpush.msra.mxu0 0.0
      %3328 = vmatpush.msra.mxu0 0.0
      %3329 = vmatpush.msra.mxu0 0.0
      %3330 = vmatpush.msra.mxu0 0.0
      %3331 = vmatpush.msra.mxu0 0.0
      %3332 = vmatpush.msra.mxu0 0.0
      %3333 = vmatpush.msra.mxu0 0.0
      %3334 = vmatpush.msra.mxu0 0.0
      %3335 = vmatpush.msra.mxu0 0.0
      %3336 = vmatpush.msra.mxu0 0.0
      %3337 = vmatpush.msra.mxu0 0.0
      %3338 = vmatpush.msra.mxu0 0.0
      %3339 = vmatpush.msra.mxu0 %v3322
      %3340 = vmatmul.f32.gmra.mxu0 %v3226
      %v3341 = vpop.f32.mrf.mxu0
      %v3342 = vadd.f32 0.0, %v3341
      %3343 = vmatmul.f32.gmra.mxu0 %v3229
      %v3344 = vpop.f32.mrf.mxu0
      %v3345 = vadd.f32 0.0, %v3344
      %3346 = vmatmul.f32.gmra.mxu0 %v3232
      %v3347 = vpop.f32.mrf.mxu0
      %v3348 = vadd.f32 0.0, %v3347
      %3349 = vmatmul.f32.gmra.mxu0 %v3235
      %v3350 = vpop.f32.mrf.mxu0
      %v3351 = vadd.f32 0.0, %v3350
      %3352 = vmatmul.f32.gmra.mxu0 %v3238
      %v3353 = vpop.f32.mrf.mxu0
      %v3354 = vadd.f32 0.0, %v3353
      %3355 = vmatmul.f32.gmra.mxu0 %v3241
      %v3356 = vpop.f32.mrf.mxu0
      %v3357 = vadd.f32 0.0, %v3356
      %3358 = vmatmul.f32.gmra.mxu0 %v3244
      %v3359 = vpop.f32.mrf.mxu0
      %v3360 = vadd.f32 0.0, %v3359
      %3361 = vmatmul.f32.gmra.mxu0 %v3247
      %v3362 = vpop.f32.mrf.mxu0
      %v3363 = vadd.f32 0.0, %v3362
      %3364 = vmatmul.f32.gmra.mxu0 %v3250
      %v3365 = vpop.f32.mrf.mxu0
      %v3366 = vadd.f32 0.0, %v3365
      %3367 = vmatmul.f32.gmra.mxu0 %v3253
      %v3368 = vpop.f32.mrf.mxu0
      %v3369 = vadd.f32 0.0, %v3368
      %3370 = vmatmul.f32.gmra.mxu0 %v3256
      %v3371 = vpop.f32.mrf.mxu0
      %v3372 = vadd.f32 0.0, %v3371
      %3373 = vmatmul.f32.gmra.mxu0 %v3259
      %v3374 = vpop.f32.mrf.mxu0
      %v3375 = vadd.f32 0.0, %v3374
      %3376 = vmatmul.f32.gmra.mxu0 %v3262
      %v3377 = vpop.f32.mrf.mxu0
      %v3378 = vadd.f32 0.0, %v3377
      %3379 = vmatmul.f32.gmra.mxu0 %v3265
      %v3380 = vpop.f32.mrf.mxu0
      %v3381 = vadd.f32 0.0, %v3380
      %3382 = vmatmul.f32.gmra.mxu0 %v3268
      %v3383 = vpop.f32.mrf.mxu0
      %v3384 = vadd.f32 0.0, %v3383
      %3385 = vmatmul.f32.gmra.mxu0 %v3271
      %v3386 = vpop.f32.mrf.mxu0
      %v3387 = vadd.f32 0.0, %v3386
      %3388 = vmatmul.f32.gmra.mxu0 %v3274
      %v3389 = vpop.f32.mrf.mxu0
      %v3390 = vadd.f32 0.0, %v3389
      %3391 = vmatmul.f32.gmra.mxu0 %v3277
      %v3392 = vpop.f32.mrf.mxu0
      %v3393 = vadd.f32 0.0, %v3392
      %3394 = vmatmul.f32.gmra.mxu0 %v3280
      %v3395 = vpop.f32.mrf.mxu0
      %v3396 = vadd.f32 0.0, %v3395
      %3397 = vmatmul.f32.gmra.mxu0 %v3283
      %v3398 = vpop.f32.mrf.mxu0
      %v3399 = vadd.f32 0.0, %v3398
      %3400 = vmatmul.f32.gmra.mxu0 %v3286
      %v3401 = vpop.f32.mrf.mxu0
      %v3402 = vadd.f32 0.0, %v3401
      %3403 = vmatmul.f32.gmra.mxu0 %v3289
      %v3404 = vpop.f32.mrf.mxu0
      %v3405 = vadd.f32 0.0, %v3404
      %3406 = vmatmul.f32.gmra.mxu0 %v3292
      %v3407 = vpop.f32.mrf.mxu0
      %v3408 = vadd.f32 0.0, %v3407
      %3409 = vmatmul.f32.gmra.mxu0 %v3295
      %v3410 = vpop.f32.mrf.mxu0
      %v3411 = vadd.f32 0.0, %v3410
      %3412 = vmatmul.f32.gmra.mxu0 %v3298
      %v3413 = vpop.f32.mrf.mxu0
      %v3414 = vadd.f32 0.0, %v3413
      %3415 = vmatmul.f32.gmra.mxu0 %v3301
      %v3416 = vpop.f32.mrf.mxu0
      %v3417 = vadd.f32 0.0, %v3416
      %3418 = vmatmul.f32.gmra.mxu0 %v3304
      %v3419 = vpop.f32.mrf.mxu0
      %v3420 = vadd.f32 0.0, %v3419
      %3421 = vmatmul.f32.gmra.mxu0 %v3307
      %v3422 = vpop.f32.mrf.mxu0
      %v3423 = vadd.f32 0.0, %v3422
      %3424 = vmatmul.f32.gmra.mxu0 %v3310
      %v3425 = vpop.f32.mrf.mxu0
      %v3426 = vadd.f32 0.0, %v3425
      %3427 = vmatmul.f32.gmra.mxu0 %v3313
      %v3428 = vpop.f32.mrf.mxu0
      %v3429 = vadd.f32 0.0, %v3428
      %3430 = vmatmul.f32.gmra.mxu0 %v3316
      %v3431 = vpop.f32.mrf.mxu0
      %v3432 = vadd.f32 0.0, %v3431
      %3433 = vmatmul.f32.gmra.mxu0 %v3319
      %v3434 = vpop.f32.mrf.mxu0
      %v3435 = vadd.f32 0.0, %v3434
      %3436 = vdwg.mxu0
      %v3437 = vadd.f32 %v3191, %v3342
      %v3438 = vadd.f32 %v3192, %v3345
      %v3439 = vadd.f32 %v3193, %v3348
      %v3440 = vadd.f32 %v3194, %v3351
      %v3441 = vadd.f32 %v3195, %v3354
      %v3442 = vadd.f32 %v3196, %v3357
      %v3443 = vadd.f32 %v3197, %v3360
      %v3444 = vadd.f32 %v3198, %v3363
      %v3445 = vadd.f32 %v3199, %v3366
      %v3446 = vadd.f32 %v3200, %v3369
      %v3447 = vadd.f32 %v3201, %v3372
      %v3448 = vadd.f32 %v3202, %v3375
      %v3449 = vadd.f32 %v3203, %v3378
      %v3450 = vadd.f32 %v3204, %v3381
      %v3451 = vadd.f32 %v3205, %v3384
      %v3452 = vadd.f32 %v3206, %v3387
      %v3453 = vadd.f32 %v3207, %v3390
      %v3454 = vadd.f32 %v3208, %v3393
      %v3455 = vadd.f32 %v3209, %v3396
      %v3456 = vadd.f32 %v3210, %v3399
      %v3457 = vadd.f32 %v3211, %v3402
      %v3458 = vadd.f32 %v3212, %v3405
      %v3459 = vadd.f32 %v3213, %v3408
      %v3460 = vadd.f32 %v3214, %v3411
      %v3461 = vadd.f32 %v3215, %v3414
      %v3462 = vadd.f32 %v3216, %v3417
      %v3463 = vadd.f32 %v3217, %v3420
      %v3464 = vadd.f32 %v3218, %v3423
      %v3465 = vadd.f32 %v3219, %v3426
      %v3466 = vadd.f32 %v3220, %v3429
      %v3467 = vadd.f32 %v3221, %v3432
      %v3468 = vadd.f32 %v3222, %v3435
      %3469 = vst [vmem:[#allocation3] sm:$0xff] %v3437
      %3470 = vst [vmem:[#allocation3 + $0x8] sm:$0xff] %v3438
      %3471 = vst [vmem:[#allocation3 + $0x10] sm:$0xff] %v3439
      %3472 = vst [vmem:[#allocation3 + $0x18] sm:$0xff] %v3440
      %3473 = vst [vmem:[#allocation3 + $0x20] sm:$0xff] %v3441
      %3474 = vst [vmem:[#allocation3 + $0x28] sm:$0xff] %v3442
      %3475 = vst [vmem:[#allocation3 + $0x30] sm:$0xff] %v3443
      %3476 = vst [vmem:[#allocation3 + $0x38] sm:$0xff] %v3444
      %3477 = vst [vmem:[#allocation3 + $0x40] sm:$0xff] %v3445
      %3478 = vst [vmem:[#allocation3 + $0x48] sm:$0xff] %v3446
      %3479 = vst [vmem:[#allocation3 + $0x50] sm:$0xff] %v3447
      %3480 = vst [vmem:[#allocation3 + $0x58] sm:$0xff] %v3448
      %3481 = vst [vmem:[#allocation3 + $0x60] sm:$0xff] %v3449
      %3482 = vst [vmem:[#allocation3 + $0x68] sm:$0xff] %v3450
      %3483 = vst [vmem:[#allocation3 + $0x70] sm:$0xff] %v3451
      %3484 = vst [vmem:[#allocation3 + $0x78] sm:$0xff] %v3452
      %3485 = vst [vmem:[#allocation3 + $0x80] sm:$0xff] %v3453
      %3486 = vst [vmem:[#allocation3 + $0x88] sm:$0xff] %v3454
      %3487 = vst [vmem:[#allocation3 + $0x90] sm:$0xff] %v3455
      %3488 = vst [vmem:[#allocation3 + $0x98] sm:$0xff] %v3456
      %3489 = vst [vmem:[#allocation3 + $0xa0] sm:$0xff] %v3457
      %3490 = vst [vmem:[#allocation3 + $0xa8] sm:$0xff] %v3458
      %3491 = vst [vmem:[#allocation3 + $0xb0] sm:$0xff] %v3459
      %3492 = vst [vmem:[#allocation3 + $0xb8] sm:$0xff] %v3460
      %3493 = vst [vmem:[#allocation3 + $0xc0] sm:$0xff] %v3461
      %3494 = vst [vmem:[#allocation3 + $0xc8] sm:$0xff] %v3462
      %3495 = vst [vmem:[#allocation3 + $0xd0] sm:$0xff] %v3463
      %3496 = vst [vmem:[#allocation3 + $0xd8] sm:$0xff] %v3464
      %3497 = vst [vmem:[#allocation3 + $0xe0] sm:$0xff] %v3465
      %3498 = vst [vmem:[#allocation3 + $0xe8] sm:$0xff] %v3466
      %3499 = vst [vmem:[#allocation3 + $0xf0] sm:$0xff] %v3467
      %3500 = vst [vmem:[#allocation3 + $0xf8] sm:$0xff] %v3468
      %v3501 = vld [vmem:[#allocation3] sm:$0xff]
      %v3502 = vld [vmem:[#allocation3 + $0x8] sm:$0xff]
      %v3503 = vld [vmem:[#allocation3 + $0x10] sm:$0xff]
      %v3504 = vld [vmem:[#allocation3 + $0x18] sm:$0xff]
      %v3505 = vld [vmem:[#allocation3 + $0x20] sm:$0xff]
      %v3506 = vld [vmem:[#allocation3 + $0x28] sm:$0xff]
      %v3507 = vld [vmem:[#allocation3 + $0x30] sm:$0xff]
      %v3508 = vld [vmem:[#allocation3 + $0x38] sm:$0xff]
      %v3509 = vld [vmem:[#allocation3 + $0x40] sm:$0xff]
      %v3510 = vld [vmem:[#allocation3 + $0x48] sm:$0xff]
      %v3511 = vld [vmem:[#allocation3 + $0x50] sm:$0xff]
      %v3512 = vld [vmem:[#allocation3 + $0x58] sm:$0xff]
      %v3513 = vld [vmem:[#allocation3 + $0x60] sm:$0xff]
      %v3514 = vld [vmem:[#allocation3 + $0x68] sm:$0xff]
      %v3515 = vld [vmem:[#allocation3 + $0x70] sm:$0xff]
      %v3516 = vld [vmem:[#allocation3 + $0x78] sm:$0xff]
      %v3517 = vld [vmem:[#allocation3 + $0x80] sm:$0xff]
      %v3518 = vld [vmem:[#allocation3 + $0x88] sm:$0xff]
      %v3519 = vld [vmem:[#allocation3 + $0x90] sm:$0xff]
      %v3520 = vld [vmem:[#allocation3 + $0x98] sm:$0xff]
      %v3521 = vld [vmem:[#allocation3 + $0xa0] sm:$0xff]
      %v3522 = vld [vmem:[#allocation3 + $0xa8] sm:$0xff]
      %v3523 = vld [vmem:[#allocation3 + $0xb0] sm:$0xff]
      %v3524 = vld [vmem:[#allocation3 + $0xb8] sm:$0xff]
      %v3525 = vld [vmem:[#allocation3 + $0xc0] sm:$0xff]
      %v3526 = vld [vmem:[#allocation3 + $0xc8] sm:$0xff]
      %v3527 = vld [vmem:[#allocation3 + $0xd0] sm:$0xff]
      %v3528 = vld [vmem:[#allocation3 + $0xd8] sm:$0xff]
      %v3529 = vld [vmem:[#allocation3 + $0xe0] sm:$0xff]
      %v3530 = vld [vmem:[#allocation3 + $0xe8] sm:$0xff]
      %v3531 = vld [vmem:[#allocation3 + $0xf0] sm:$0xff]
      %v3532 = vld [vmem:[#allocation3 + $0xf8] sm:$0xff]
      %3533 = vst [vmem:[%s262] sm:$0xff] %v3501
      %3534 = vst [vmem:[%s262 + $0x8] sm:$0xff] %v3502
      %3535 = vst [vmem:[%s262 + $0x10] sm:$0xff] %v3503
      %3536 = vst [vmem:[%s262 + $0x18] sm:$0xff] %v3504
      %3537 = vst [vmem:[%s262 + $0x20] sm:$0xff] %v3505
      %3538 = vst [vmem:[%s262 + $0x28] sm:$0xff] %v3506
      %3539 = vst [vmem:[%s262 + $0x30] sm:$0xff] %v3507
      %3540 = vst [vmem:[%s262 + $0x38] sm:$0xff] %v3508
      %3541 = vst [vmem:[%s262 + $0x40] sm:$0xff] %v3509
      %3542 = vst [vmem:[%s262 + $0x48] sm:$0xff] %v3510
      %3543 = vst [vmem:[%s262 + $0x50] sm:$0xff] %v3511
      %3544 = vst [vmem:[%s262 + $0x58] sm:$0xff] %v3512
      %3545 = vst [vmem:[%s262 + $0x60] sm:$0xff] %v3513
      %3546 = vst [vmem:[%s262 + $0x68] sm:$0xff] %v3514
      %3547 = vst [vmem:[%s262 + $0x70] sm:$0xff] %v3515
      %3548 = vst [vmem:[%s262 + $0x78] sm:$0xff] %v3516
      %3549 = vst [vmem:[%s262 + $0x80] sm:$0xff] %v3517
      %3550 = vst [vmem:[%s262 + $0x88] sm:$0xff] %v3518
      %3551 = vst [vmem:[%s262 + $0x90] sm:$0xff] %v3519
      %3552 = vst [vmem:[%s262 + $0x98] sm:$0xff] %v3520
      %3553 = vst [vmem:[%s262 + $0xa0] sm:$0xff] %v3521
      %3554 = vst [vmem:[%s262 + $0xa8] sm:$0xff] %v3522
      %3555 = vst [vmem:[%s262 + $0xb0] sm:$0xff] %v3523
      %3556 = vst [vmem:[%s262 + $0xb8] sm:$0xff] %v3524
      %3557 = vst [vmem:[%s262 + $0xc0] sm:$0xff] %v3525
      %3558 = vst [vmem:[%s262 + $0xc8] sm:$0xff] %v3526
      %3559 = vst [vmem:[%s262 + $0xd0] sm:$0xff] %v3527
      %3560 = vst [vmem:[%s262 + $0xd8] sm:$0xff] %v3528
      %3561 = vst [vmem:[%s262 + $0xe0] sm:$0xff] %v3529
      %3562 = vst [vmem:[%s262 + $0xe8] sm:$0xff] %v3530
      %3563 = vst [vmem:[%s262 + $0xf0] sm:$0xff] %v3531
      %3564 = vst [vmem:[%s262 + $0xf8] sm:$0xff] %v3532
      %v3565 = vadd.f32 %v3501, %v3502
      %v3566 = vadd.f32 %v3565, %v3503
      %v3567 = vadd.f32 %v3566, %v3504
      %v3568 = vadd.f32 %v3567, %v3505
      %v3569 = vadd.f32 %v3568, %v3506
      %v3570 = vadd.f32 %v3569, %v3507
      %v3571 = vadd.f32 %v3570, %v3508
      %v3572 = vadd.f32 %v3571, %v3509
      %v3573 = vadd.f32 %v3572, %v3510
      %v3574 = vadd.f32 %v3573, %v3511
      %v3575 = vadd.f32 %v3574, %v3512
      %v3576 = vadd.f32 %v3575, %v3513
      %v3577 = vadd.f32 %v3576, %v3514
      %v3578 = vadd.f32 %v3577, %v3515
      %v3579 = vadd.f32 %v3578, %v3516
      %v3580 = vadd.f32 %v3579, %v3517
      %v3581 = vadd.f32 %v3580, %v3518
      %v3582 = vadd.f32 %v3581, %v3519
      %v3583 = vadd.f32 %v3582, %v3520
      %v3584 = vadd.f32 %v3583, %v3521
      %v3585 = vadd.f32 %v3584, %v3522
      %v3586 = vadd.f32 %v3585, %v3523
      %v3587 = vadd.f32 %v3586, %v3524
      %v3588 = vadd.f32 %v3587, %v3525
      %v3589 = vadd.f32 %v3588, %v3526
      %v3590 = vadd.f32 %v3589, %v3527
      %v3591 = vadd.f32 %v3590, %v3528
      %v3592 = vadd.f32 %v3591, %v3529
      %v3593 = vadd.f32 %v3592, %v3530
      %v3594 = vadd.f32 %v3593, %v3531
      %v3595 = vadd.f32 %v3594, %v3532
      %v3596 = vrot.slane %v3595, 4
      %v3597 = vadd.f32 %v3595, %v3596
      %v3598 = vrot.slane %v3597, 2
      %v3599 = vadd.f32 %v3597, %v3598
      %v3600 = vrot.slane %v3599, 1
      %v3601 = vadd.f32 %v3599, %v3600
      %3602 = vst [vmem:[%s265] sm:$0x1] %v3601
      %v3603 = vmul.f32 %v3501, %v3501
      %v3604 = vmul.f32 %v3502, %v3502
      %v3605 = vmul.f32 %v3503, %v3503
      %v3606 = vmul.f32 %v3504, %v3504
      %v3607 = vmul.f32 %v3505, %v3505
      %v3608 = vmul.f32 %v3506, %v3506
      %v3609 = vmul.f32 %v3507, %v3507
      %v3610 = vmul.f32 %v3508, %v3508
      %v3611 = vmul.f32 %v3509, %v3509
      %v3612 = vmul.f32 %v3510, %v3510
      %v3613 = vmul.f32 %v3511, %v3511
      %v3614 = vmul.f32 %v3512, %v3512
      %v3615 = vmul.f32 %v3513, %v3513
      %v3616 = vmul.f32 %v3514, %v3514
      %v3617 = vmul.f32 %v3515, %v3515
      %v3618 = vmul.f32 %v3516, %v3516
      %v3619 = vmul.f32 %v3517, %v3517
      %v3620 = vmul.f32 %v3518, %v3518
      %v3621 = vmul.f32 %v3519, %v3519
      %v3622 = vmul.f32 %v3520, %v3520
      %v3623 = vmul.f32 %v3521, %v3521
      %v3624 = vmul.f32 %v3522, %v3522
      %v3625 = vmul.f32 %v3523, %v3523
      %v3626 = vmul.f32 %v3524, %v3524
      %v3627 = vmul.f32 %v3525, %v3525
      %v3628 = vmul.f32 %v3526, %v3526
      %v3629 = vmul.f32 %v3527, %v3527
      %v3630 = vmul.f32 %v3528, %v3528
      %v3631 = vmul.f32 %v3529, %v3529
      %v3632 = vmul.f32 %v3530, %v3530
      %v3633 = vmul.f32 %v3531, %v3531
      %v3634 = vmul.f32 %v3532, %v3532
      %v3635 = vadd.f32 %v3603, %v3604
      %v3636 = vadd.f32 %v3635, %v3605
      %v3637 = vadd.f32 %v3636, %v3606
      %v3638 = vadd.f32 %v3637, %v3607
      %v3639 = vadd.f32 %v3638, %v3608
      %v3640 = vadd.f32 %v3639, %v3609
      %v3641 = vadd.f32 %v3640, %v3610
      %v3642 = vadd.f32 %v3641, %v3611
      %v3643 = vadd.f32 %v3642, %v3612
      %v3644 = vadd.f32 %v3643, %v3613
      %v3645 = vadd.f32 %v3644, %v3614
      %v3646 = vadd.f32 %v3645, %v3615
      %v3647 = vadd.f32 %v3646, %v3616
      %v3648 = vadd.f32 %v3647, %v3617
      %v3649 = vadd.f32 %v3648, %v3618
      %v3650 = vadd.f32 %v3649, %v3619
      %v3651 = vadd.f32 %v3650, %v3620
      %v3652 = vadd.f32 %v3651, %v3621
      %v3653 = vadd.f32 %v3652, %v3622
      %v3654 = vadd.f32 %v3653, %v3623
      %v3655 = vadd.f32 %v3654, %v3624
      %v3656 = vadd.f32 %v3655, %v3625
      %v3657 = vadd.f32 %v3656, %v3626
      %v3658 = vadd.f32 %v3657, %v3627
      %v3659 = vadd.f32 %v3658, %v3628
      %v3660 = vadd.f32 %v3659, %v3629
      %v3661 = vadd.f32 %v3660, %v3630
      %v3662 = vadd.f32 %v3661, %v3631
      %v3663 = vadd.f32 %v3662, %v3632
      %v3664 = vadd.f32 %v3663, %v3633
      %v3665 = vadd.f32 %v3664, %v3634
      %v3666 = vrot.slane %v3665, 4
      %v3667 = vadd.f32 %v3665, %v3666
      %v3668 = vrot.slane %v3667, 2
      %v3669 = vadd.f32 %v3667, %v3668
      %v3670 = vrot.slane %v3669, 1
      %v3671 = vadd.f32 %v3669, %v3670
      %3672 = vst [vmem:[%s268] sm:$0x1] %v3671
      %p3673 = scmp.lt.s32.totalorder %s18, 1
      %s3674 = scalar_select %p3673, %s18, 1
      %s3675 = smul.addr %s3674, 32
      %s3676 = smul.addr %s3675, 8
      %s3677 = scalar_lea.vmem %s4, %s3676
      %p3678 = scmp.lt.s32.totalorder %s18, 1
      %s3679 = scalar_select %p3678, %s18, 1
      %s3680 = scalar_lea.vmem %s5, %s3679
      %p3681 = scmp.lt.s32.totalorder %s18, 1
      %s3682 = scalar_select %p3681, %s18, 1
      %s3683 = scalar_lea.vmem %s6, %s3682
      // Predicated region
      $region37: #{inconv_forward.3} parent=35 // pred_check
        %p3684 = pneg %p125
      $region38: #{inconv_forward.3} parent=35 // pred_check_branch
        %3686 = sbr.rel (%p3684) target = $region40
      $region39: #{inconv_forward.3} parent=35 // pred_region
        _
      $region40: #{inconv_forward.3} parent=35 // pred_fallthru
        _
      // Predicated region
      $region41: #{inconv_forward.3} parent=35 // pred_check
        %p3687 = pneg %p151
      $region42: #{inconv_forward.3} parent=35 // pred_check_branch
        %3689 = sbr.rel (%p3687) target = $region44
      $region43: #{inconv_forward.3} parent=35 // pred_region
        _
      $region44: #{inconv_forward.3} parent=35 // pred_fallthru
        _
      // Predicated region
      $region45: #{inconv_forward.3} parent=35 // pred_check
        %p3690 = pneg %p177
      $region46: #{inconv_forward.3} parent=35 // pred_check_branch
        %3692 = sbr.rel (%p3690) target = $region48
      $region47: #{inconv_forward.3} parent=35 // pred_region
        _
      $region48: #{inconv_forward.3} parent=35 // pred_fallthru
        _
    $region36: #{inconv_forward.3} parent=5 // pred_fallthru
      _
    %p3693 = scmp.le.s32.totalorder 2, %s13
    // Predicated region
    $region49: #{inconv_forward.3} parent=5 // pred_check
      %p3694 = pneg %p3693
    $region50: #{inconv_forward.3} parent=5 // pred_check_branch
      %3696 = sbr.rel (%p3694) target = $region52
    $region51: #{inconv_forward.3} parent=5 // pred_region
      %s3697 = ssub.s32 %s13, 2
      // Predicated region
      $region53: #{inconv_forward.3} parent=51 // pred_check
        %p3698 = pneg %p131
      $region54: #{inconv_forward.3} parent=51 // pred_check_branch
        %3700 = sbr.rel (%p3698) target = $region56
      $region55: #{inconv_forward.3} parent=51 // pred_region
        %p3701 = scmp.lt.s32.totalorder %s19, 1
        %s3702 = scalar_select %p3701, %s19, 1
        %s3703 = smul.addr %s3702, 32
        %s3704 = smul.addr %s3703, 8
        %s3705 = scalar_lea.vmem %s4, %s3704
      $region56: #{inconv_forward.3} parent=51 // pred_fallthru
        _
      // Predicated region
      $region57: #{inconv_forward.3} parent=51 // pred_check
        %p3706 = pneg %p157
      $region58: #{inconv_forward.3} parent=51 // pred_check_branch
        %3708 = sbr.rel (%p3706) target = $region60
      $region59: #{inconv_forward.3} parent=51 // pred_region
        %p3709 = scmp.lt.s32.totalorder %s19, 1
        %s3710 = scalar_select %p3709, %s19, 1
        %s3711 = scalar_lea.vmem %s5, %s3710
      $region60: #{inconv_forward.3} parent=51 // pred_fallthru
        _
      // Predicated region
      $region61: #{inconv_forward.3} parent=51 // pred_check
        %p3712 = pneg %p183
      $region62: #{inconv_forward.3} parent=51 // pred_check_branch
        %3714 = sbr.rel (%p3712) target = $region64
      $region63: #{inconv_forward.3} parent=51 // pred_region
        %p3715 = scmp.lt.s32.totalorder %s19, 1
        %s3716 = scalar_select %p3715, %s19, 1
        %s3717 = scalar_lea.vmem %s6, %s3716
      $region64: #{inconv_forward.3} parent=51 // pred_fallthru
        _
    $region52: #{inconv_forward.3} parent=5 // pred_fallthru
      _
  $region6: #{inconv_forward.3} parent=0 // loop_footer
    %s17 = sadd.s32 1, %s13
  $region7: #{inconv_forward.3} parent=0 // loop_footer_branch
    %12 = sbr.rel target = $region3
  $region8: #{inconv_forward.3} parent=0 // loop_exit
    _

</llo_original>
